<compile_context>
chip_gen: v7x
topology: tpu7x:2x2x1
jax: 0.10.0
libtpu: 0.0.40
codegen_flags: <defaults>
</compile_context>

<pallas_src>
import functools

import jax
import jax.numpy as jnp
from jax.experimental import pallas as pl
from jax.experimental.pallas import tpu as pltpu


# ----------------------------------------------------------------------------
# Fused kernel
# ----------------------------------------------------------------------------
def _pointnet_cls_kernel(
    x_flat_ref,    # (B*N, 3)  f32  raw points, batches flattened into rows
    x_rep_ref,     # (B*N, 9)  f32  each coordinate column repeated 3x
    # STN3d (fw3/fb3 pre-padded to 128 cols, identity folded into fb3)
    s_w1, s_b1, s_w2, s_b2, s_w3, s_b3,
    s_fw1, s_fb1, s_fw2, s_fb2, s_fw3, s_fb3,
    # PointNetfeat trunk (w1 pre-tiled to (9, 64))
    f_w1, f_b1, f_w2, f_b2, f_w3, f_b3, f_w4, f_b4,
    # classifier head (fw3/fb3 pre-padded to a lane-dense width)
    c_fw1, c_fb1, c_fw2, c_fb2, c_fw3, c_fb3,
    # outputs
    logits_ref,    # (B, k_pad)
    xglobal_ref,   # (B, 1024)
    trans_ref,     # (B, 128)  cols 0..8 = flattened per-batch 3x3 transform
    *, B, N):
  """Fused STN3d + PointNetfeat + classifier forward (single invocation)."""

  def lin(h, w_ref, b_ref):
    # Matmul in the weight dtype (bf16 or f32) with f32 accumulation on the
    # MXU; bias add stays in f32.
    return jnp.dot(h.astype(w_ref.dtype), w_ref[...],
                   preferred_element_type=jnp.float32) + b_ref[...]

  def relu(h):
    return jnp.maximum(h, 0.0)

  def batch_max(h):
    # Per-batch max over the N points: (B*N, C) -> (B, C).  Static slices
    # (N is a multiple of 8) + sublane reduction; B is tiny so unroll.
    rows = [jnp.max(h[b * N:(b + 1) * N, :], axis=0, keepdims=True)
            for b in range(B)]
    return jnp.concatenate(rows, axis=0)

  x = x_flat_ref[...]                                   # (B*N, 3)

  # ---- STN3d: 3 pointwise convs + global max-pool + fc1/fc2/fc3 (+identity).
  h = relu(lin(x, s_w1, s_b1))                          # (B*N, 64)
  h = relu(lin(h, s_w2, s_b2))                          # (B*N, 128)
  h = relu(lin(h, s_w3, s_b3))                          # (B*N, 1024)
  g = batch_max(h)                                      # (B, 1024)
  g = relu(lin(g, s_fw1, s_fb1))                        # (B, 512)
  g = relu(lin(g, s_fw2, s_fb2))                        # (B, 256)
  t_pad = lin(g, s_fw3, s_fb3)                          # (B, 128), iden in bias
  trans_ref[...] = t_pad                                # lane-dense store

  # ---- Input transform folded into the first feat conv:
  #      (x @ T_b) @ W1  ==  (x_rep * t_rows) @ tile(W1, (3, 1))
  t9 = t_pad[:, 0:9]                                    # (B, 9) row-major 3x3
  t_rows = jnp.concatenate(
      [jnp.broadcast_to(t9[b:b + 1, :], (N, 9)) for b in range(B)], axis=0)
  z = x_rep_ref[...] * t_rows                           # (B*N, 9)

  # ---- PointNetfeat trunk: conv1..conv4 + global max-pool (no ReLU on conv4).
  h = relu(lin(z, f_w1, f_b1))                          # (B*N, 64)
  h = relu(lin(h, f_w2, f_b2))                          # (B*N, 64)
  h = relu(lin(h, f_w3, f_b3))                          # (B*N, 128)
  h = lin(h, f_w4, f_b4)                                # (B*N, 1024)
  xg = batch_max(h)                                     # (B, 1024)
  xglobal_ref[...] = xg

  # ---- Classifier head.
  c = relu(lin(xg, c_fw1, c_fb1))                       # (B, 512)
  # TODO(synk): nn.Dropout(p=0.3) modeled as eval-mode identity (no RNG mask).
  c = relu(lin(c, c_fw2, c_fb2))                        # (B, 256)
  logits_ref[...] = lin(c, c_fw3, c_fb3)                # (B, k_pad)


# ----------------------------------------------------------------------------
# Wrapper
# ----------------------------------------------------------------------------
def _pad_cols(a, width):
  return jnp.pad(a, ((0, 0), (0, width - a.shape[1])))


def pointnet_cls_forward(x, params, k=3, matmul_dtype=jnp.bfloat16):
  """Forward of PointNetCls(k, feature_transform=False).

  x: (B, N, 3) float32 point clouds (the PyTorch forward transposes to
  (B, 3, N) internally; we keep channels last so every k=1 conv is a matmul).
  Returns (logits (B,k), x_global (B,1024,1), trans (B,3,3), trans_feat=None).
  """
  B, N, C = x.shape
  assert C == 3
  assert N % 8 == 0, "N must be a multiple of 8 (sublane alignment)"
  p = params

  x = x.astype(jnp.float32)
  x_flat = x.reshape(B * N, 3)
  x_rep = jnp.repeat(x_flat, 3, axis=1)      # (B*N, 9): [x,x,x, y,y,y, z,z,z]

  k_pad = pl.cdiv(k, 128) * 128
  iden = jnp.eye(3, dtype=jnp.float32).reshape(1, 9)

  # Weight massaging (cheap, runs in XLA outside the kernel):
  #  * STN fc3: fold the identity offset into the bias, pad to 128 lanes.
  #  * feat conv1: tile to (9, 64) so it contracts against x_rep * t_rows.
  #  * classifier fc3: pad to a lane-dense width.
  s_fw3 = _pad_cols(p["s_fw3"], 128)
  s_fb3 = _pad_cols(p["s_fb3"] + iden, 128)
  f_w1 = jnp.tile(p["f_w1"], (3, 1))
  c_fw3 = _pad_cols(p["c_fw3"], k_pad)
  c_fb3 = _pad_cols(p["c_fb3"], k_pad)

  wb = [
      (p["s_w1"], p["s_b1"]), (p["s_w2"], p["s_b2"]), (p["s_w3"], p["s_b3"]),
      (p["s_fw1"], p["s_fb1"]), (p["s_fw2"], p["s_fb2"]), (s_fw3, s_fb3),
      (f_w1, p["f_b1"]), (p["f_w2"], p["f_b2"]), (p["f_w3"], p["f_b3"]),
      (p["f_w4"], p["f_b4"]),
      (p["c_fw1"], p["c_fb1"]), (p["c_fw2"], p["c_fb2"]), (c_fw3, c_fb3),
  ]
  flat_params = []
  for w, b in wb:
    flat_params += [w.astype(matmul_dtype), b.astype(jnp.float32)]

  logits_p, x_global, trans_p = pl.pallas_call(
      functools.partial(_pointnet_cls_kernel, B=B, N=N),
      out_shape=(
          jax.ShapeDtypeStruct((B, k_pad), jnp.float32),   # padded logits
          jax.ShapeDtypeStruct((B, 1024), jnp.float32),    # global feature
          jax.ShapeDtypeStruct((B, 128), jnp.float32),     # padded 3x3 trans
      ),
      # Single fused invocation: no grid, every operand is a whole-array VMEM
      # block (no double-buffering of the resident weights).  ~3.3 MB of bf16
      # weights + ~2 MB of live activations fits comfortably under the limit
      # on v5e/v6e (128 MiB) and v7x (64 MiB).
      compiler_params=pltpu.CompilerParams(
          vmem_limit_bytes=32 * 1024 * 1024),
  )(x_flat, x_rep, *flat_params)

  logits = logits_p[:, :k]
  trans = trans_p[:, :9].reshape(B, 3, 3)
  return logits, x_global[:, :, None], trans, None


# ----------------------------------------------------------------------------
# Deterministic parameter init (shapes from the PyTorch __init__)
# ----------------------------------------------------------------------------
def init_params(key, k=3):
  """Random params.  Weights are (Cin, Cout) (pre-transposed); biases (1, Cout)."""
  shapes = {
      # STN3d
      "s_w1": (3, 64), "s_w2": (64, 128), "s_w3": (128, 1024),
      "s_fw1": (1024, 512), "s_fw2": (512, 256), "s_fw3": (256, 9),
      # PointNetfeat trunk
      "f_w1": (3, 64), "f_w2": (64, 64), "f_w3": (64, 128), "f_w4": (128, 1024),
      # classifier head
      "c_fw1": (1024, 512), "c_fw2": (512, 256), "c_fw3": (256, k),
  }
  p = {}
  keys = jax.random.split(key, len(shapes))
  for kk, (name, (cin, cout)) in zip(keys, shapes.items()):
    kw, kb = jax.random.split(kk)
    p[name] = jax.random.normal(kw, (cin, cout), jnp.float32) / jnp.sqrt(cin)
    # "s_w1" -> "s_b1", "s_fw1" -> "s_fb1", "c_fw3" -> "c_fb3", ...
    p[name.replace("w", "b", 1)] = (
        jax.random.normal(kb, (1, cout), jnp.float32) * 0.01)
  return p


# ----------------------------------------------------------------------------
# Pure-JAX f32 reference (direct restatement of PointNetCls.forward)
# ----------------------------------------------------------------------------
def reference_forward(x, p, k=3):
  B, N, _ = x.shape
  lin = lambda h, w, b: h @ w + b
  relu = jax.nn.relu
  h = relu(lin(x.reshape(B * N, 3), p["s_w1"], p["s_b1"]))
  h = relu(lin(h, p["s_w2"], p["s_b2"]))
  h = relu(lin(h, p["s_w3"], p["s_b3"]))
  g = jnp.max(h.reshape(B, N, 1024), axis=1)
  g = relu(lin(g, p["s_fw1"], p["s_fb1"]))
  g = relu(lin(g, p["s_fw2"], p["s_fb2"]))
  trans = (lin(g, p["s_fw3"], p["s_fb3"])
           + jnp.eye(3, dtype=jnp.float32).reshape(1, 9)).reshape(B, 3, 3)
  xt = jnp.einsum("bni,bij->bnj", x, trans).reshape(B * N, 3)
  h = relu(lin(xt, p["f_w1"], p["f_b1"]))
  h = relu(lin(h, p["f_w2"], p["f_b2"]))
  h = relu(lin(h, p["f_w3"], p["f_b3"]))
  h = lin(h, p["f_w4"], p["f_b4"])
  xg = jnp.max(h.reshape(B, N, 1024), axis=1)
  c = relu(lin(xg, p["c_fw1"], p["c_fb1"]))
  c = relu(lin(c, p["c_fw2"], p["c_fb2"]))
  return lin(c, p["c_fw3"], p["c_fb3"]), xg, trans


# ----------------------------------------------------------------------------
if __name__ == "__main__":
  B, N, K = 2, 128, 3
  key = jax.random.PRNGKey(0)
  kx, kp = jax.random.split(key)
  x = jax.random.normal(kx, (B, N, 3), jnp.float32)   # (batch, n_points, 3)
  params = init_params(kp, k=K)

  fwd = jax.jit(functools.partial(pointnet_cls_forward, k=K))
  logits, x_global, trans, trans_feat = fwd(x, params)
  jax.block_until_ready((logits, x_global, trans))

  assert logits.shape == (B, K)
  assert x_global.shape == (B, 1024, 1)
  assert trans.shape == (B, 3, 3)
  assert trans_feat is None
  assert bool(jnp.all(jnp.isfinite(logits)))

  # Loose sanity check vs. the pure-JAX reference (kernel matmuls run in bf16).
  ref_logits, ref_xg, ref_trans = reference_forward(x, params, k=K)
  assert jnp.allclose(trans, ref_trans, rtol=0.15, atol=0.3), "trans mismatch"
  assert jnp.allclose(x_global[:, :, 0], ref_xg, rtol=0.15, atol=0.5), "x_global mismatch"
  assert jnp.allclose(logits, ref_logits, rtol=0.15, atol=0.5), "logits mismatch"

  print("KERNEL_OK")
</pallas_src>

<mosaic_0001>
module attributes {stable_mosaic.version = 11 : i64} {
  func.func @_pointnet_cls_kernel(%arg0: memref<256x3xf32, #tpu.memory_space<vmem>>, %arg1: memref<256x9xf32, #tpu.memory_space<vmem>>, %arg2: memref<3x64xbf16, #tpu.memory_space<vmem>>, %arg3: memref<1x64xf32, #tpu.memory_space<vmem>>, %arg4: memref<64x128xbf16, #tpu.memory_space<vmem>>, %arg5: memref<1x128xf32, #tpu.memory_space<vmem>>, %arg6: memref<128x1024xbf16, #tpu.memory_space<vmem>>, %arg7: memref<1x1024xf32, #tpu.memory_space<vmem>>, %arg8: memref<1024x512xbf16, #tpu.memory_space<vmem>>, %arg9: memref<1x512xf32, #tpu.memory_space<vmem>>, %arg10: memref<512x256xbf16, #tpu.memory_space<vmem>>, %arg11: memref<1x256xf32, #tpu.memory_space<vmem>>, %arg12: memref<256x128xbf16, #tpu.memory_space<vmem>>, %arg13: memref<1x128xf32, #tpu.memory_space<vmem>>, %arg14: memref<9x64xbf16, #tpu.memory_space<vmem>>, %arg15: memref<1x64xf32, #tpu.memory_space<vmem>>, %arg16: memref<64x64xbf16, #tpu.memory_space<vmem>>, %arg17: memref<1x64xf32, #tpu.memory_space<vmem>>, %arg18: memref<64x128xbf16, #tpu.memory_space<vmem>>, %arg19: memref<1x128xf32, #tpu.memory_space<vmem>>, %arg20: memref<128x1024xbf16, #tpu.memory_space<vmem>>, %arg21: memref<1x1024xf32, #tpu.memory_space<vmem>>, %arg22: memref<1024x512xbf16, #tpu.memory_space<vmem>>, %arg23: memref<1x512xf32, #tpu.memory_space<vmem>>, %arg24: memref<512x256xbf16, #tpu.memory_space<vmem>>, %arg25: memref<1x256xf32, #tpu.memory_space<vmem>>, %arg26: memref<256x128xbf16, #tpu.memory_space<vmem>>, %arg27: memref<1x128xf32, #tpu.memory_space<vmem>>, %arg28: memref<2x128xf32, #tpu.memory_space<vmem>>, %arg29: memref<2x1024xf32, #tpu.memory_space<vmem>>, %arg30: memref<2x128xf32, #tpu.memory_space<vmem>>) attributes {dimension_semantics = [], scalar_prefetch = 0 : i64, scratch_operands = 0 : i64, tpu.core_type = #tpu.core_type<tc>} {
    %c0 = arith.constant 0 : index
    %c0_0 = arith.constant 0 : index
    %0 = vector.load %arg0[%c0, %c0_0] : memref<256x3xf32, #tpu.memory_space<vmem>>, vector<256x3xf32>
    %1 = arith.truncf %0 : vector<256x3xf32> to vector<256x3xbf16>
    %c0_1 = arith.constant 0 : index
    %c0_2 = arith.constant 0 : index
    %2 = vector.load %arg2[%c0_1, %c0_2] : memref<3x64xbf16, #tpu.memory_space<vmem>>, vector<3x64xbf16>
    %cst = arith.constant dense<0.000000e+00> : vector<256x64xf32>
    %3 = tpu.matmul %1, %2, %cst {dimension_numbers = #tpu.dot_dimension_numbers<[1], [0], [0], [1], [0, 0, 1, 1], [], []>} : vector<256x3xbf16>, vector<3x64xbf16>, vector<256x64xf32> -> vector<256x64xf32>
    %c0_3 = arith.constant 0 : index
    %c0_4 = arith.constant 0 : index
    %4 = vector.load %arg3[%c0_3, %c0_4] : memref<1x64xf32, #tpu.memory_space<vmem>>, vector<1x64xf32>
    %5 = vector.broadcast %4 : vector<1x64xf32> to vector<256x64xf32>
    %6 = arith.addf %3, %5 : vector<256x64xf32>
    %cst_5 = arith.constant 0.000000e+00 : f32
    %7 = vector.broadcast %cst_5 : f32 to vector<256x64xf32>
    %8 = arith.maximumf %6, %7 : vector<256x64xf32>
    %9 = arith.truncf %8 : vector<256x64xf32> to vector<256x64xbf16>
    %c0_6 = arith.constant 0 : index
    %c0_7 = arith.constant 0 : index
    %10 = vector.load %arg4[%c0_6, %c0_7] : memref<64x128xbf16, #tpu.memory_space<vmem>>, vector<64x128xbf16>
    %cst_8 = arith.constant dense<0.000000e+00> : vector<256x128xf32>
    %11 = tpu.matmul %9, %10, %cst_8 {dimension_numbers = #tpu.dot_dimension_numbers<[1], [0], [0], [1], [0, 0, 1, 1], [], []>} : vector<256x64xbf16>, vector<64x128xbf16>, vector<256x128xf32> -> vector<256x128xf32>
    %c0_9 = arith.constant 0 : index
    %c0_10 = arith.constant 0 : index
    %12 = vector.load %arg5[%c0_9, %c0_10] : memref<1x128xf32, #tpu.memory_space<vmem>>, vector<1x128xf32>
    %13 = vector.broadcast %12 : vector<1x128xf32> to vector<256x128xf32>
    %14 = arith.addf %11, %13 : vector<256x128xf32>
    %cst_11 = arith.constant 0.000000e+00 : f32
    %15 = vector.broadcast %cst_11 : f32 to vector<256x128xf32>
    %16 = arith.maximumf %14, %15 : vector<256x128xf32>
    %17 = arith.truncf %16 : vector<256x128xf32> to vector<256x128xbf16>
    %c0_12 = arith.constant 0 : index
    %c0_13 = arith.constant 0 : index
    %18 = vector.load %arg6[%c0_12, %c0_13] : memref<128x1024xbf16, #tpu.memory_space<vmem>>, vector<128x1024xbf16>
    %cst_14 = arith.constant dense<0.000000e+00> : vector<256x1024xf32>
    %19 = tpu.matmul %17, %18, %cst_14 {dimension_numbers = #tpu.dot_dimension_numbers<[1], [0], [0], [1], [0, 0, 1, 1], [], []>} : vector<256x128xbf16>, vector<128x1024xbf16>, vector<256x1024xf32> -> vector<256x1024xf32>
    %c0_15 = arith.constant 0 : index
    %c0_16 = arith.constant 0 : index
    %20 = vector.load %arg7[%c0_15, %c0_16] : memref<1x1024xf32, #tpu.memory_space<vmem>>, vector<1x1024xf32>
    %21 = vector.broadcast %20 : vector<1x1024xf32> to vector<256x1024xf32>
    %22 = arith.addf %19, %21 : vector<256x1024xf32>
    %cst_17 = arith.constant 0.000000e+00 : f32
    %23 = vector.broadcast %cst_17 : f32 to vector<256x1024xf32>
    %24 = arith.maximumf %22, %23 : vector<256x1024xf32>
    %25 = vector.extract_strided_slice %24 {offsets = [0, 0], sizes = [128, 1024], strides = [1, 1]} : vector<256x1024xf32> to vector<128x1024xf32>
    %cst_18 = arith.constant dense<0xFF800000> : vector<1024xf32>
    %26 = vector.multi_reduction <maximumf>, %25, %cst_18 [0] : vector<128x1024xf32> to vector<1024xf32>
    %27 = vector.shape_cast %26 : vector<1024xf32> to vector<1x1024xf32>
    %28 = vector.extract_strided_slice %24 {offsets = [128, 0], sizes = [128, 1024], strides = [1, 1]} : vector<256x1024xf32> to vector<128x1024xf32>
    %cst_19 = arith.constant dense<0xFF800000> : vector<1024xf32>
    %29 = vector.multi_reduction <maximumf>, %28, %cst_19 [0] : vector<128x1024xf32> to vector<1024xf32>
    %30 = vector.shape_cast %29 : vector<1024xf32> to vector<1x1024xf32>
    %31 = tpu.concatenate %27, %30 in 0 : vector<1x1024xf32>, vector<1x1024xf32> -> vector<2x1024xf32>
    %32 = arith.truncf %31 : vector<2x1024xf32> to vector<2x1024xbf16>
    %c0_20 = arith.constant 0 : index
    %c0_21 = arith.constant 0 : index
    %33 = vector.load %arg8[%c0_20, %c0_21] : memref<1024x512xbf16, #tpu.memory_space<vmem>>, vector<1024x512xbf16>
    %cst_22 = arith.constant dense<0.000000e+00> : vector<2x512xf32>
    %34 = tpu.matmul %32, %33, %cst_22 {dimension_numbers = #tpu.dot_dimension_numbers<[1], [0], [0], [1], [0, 0, 1, 1], [], []>} : vector<2x1024xbf16>, vector<1024x512xbf16>, vector<2x512xf32> -> vector<2x512xf32>
    %c0_23 = arith.constant 0 : index
    %c0_24 = arith.constant 0 : index
    %35 = vector.load %arg9[%c0_23, %c0_24] : memref<1x512xf32, #tpu.memory_space<vmem>>, vector<1x512xf32>
    %36 = vector.broadcast %35 : vector<1x512xf32> to vector<2x512xf32>
    %37 = arith.addf %34, %36 : vector<2x512xf32>
    %cst_25 = arith.constant 0.000000e+00 : f32
    %38 = vector.broadcast %cst_25 : f32 to vector<2x512xf32>
    %39 = arith.maximumf %37, %38 : vector<2x512xf32>
    %40 = arith.truncf %39 : vector<2x512xf32> to vector<2x512xbf16>
    %c0_26 = arith.constant 0 : index
    %c0_27 = arith.constant 0 : index
    %41 = vector.load %arg10[%c0_26, %c0_27] : memref<512x256xbf16, #tpu.memory_space<vmem>>, vector<512x256xbf16>
    %cst_28 = arith.constant dense<0.000000e+00> : vector<2x256xf32>
    %42 = tpu.matmul %40, %41, %cst_28 {dimension_numbers = #tpu.dot_dimension_numbers<[1], [0], [0], [1], [0, 0, 1, 1], [], []>} : vector<2x512xbf16>, vector<512x256xbf16>, vector<2x256xf32> -> vector<2x256xf32>
    %c0_29 = arith.constant 0 : index
    %c0_30 = arith.constant 0 : index
    %43 = vector.load %arg11[%c0_29, %c0_30] : memref<1x256xf32, #tpu.memory_space<vmem>>, vector<1x256xf32>
    %44 = vector.broadcast %43 : vector<1x256xf32> to vector<2x256xf32>
    %45 = arith.addf %42, %44 : vector<2x256xf32>
    %cst_31 = arith.constant 0.000000e+00 : f32
    %46 = vector.broadcast %cst_31 : f32 to vector<2x256xf32>
    %47 = arith.maximumf %45, %46 : vector<2x256xf32>
    %48 = arith.truncf %47 : vector<2x256xf32> to vector<2x256xbf16>
    %c0_32 = arith.constant 0 : index
    %c0_33 = arith.constant 0 : index
    %49 = vector.load %arg12[%c0_32, %c0_33] : memref<256x128xbf16, #tpu.memory_space<vmem>>, vector<256x128xbf16>
    %cst_34 = arith.constant dense<0.000000e+00> : vector<2x128xf32>
    %50 = tpu.matmul %48, %49, %cst_34 {dimension_numbers = #tpu.dot_dimension_numbers<[1], [0], [0], [1], [0, 0, 1, 1], [], []>} : vector<2x256xbf16>, vector<256x128xbf16>, vector<2x128xf32> -> vector<2x128xf32>
    %c0_35 = arith.constant 0 : index
    %c0_36 = arith.constant 0 : index
    %51 = vector.load %arg13[%c0_35, %c0_36] : memref<1x128xf32, #tpu.memory_space<vmem>>, vector<1x128xf32>
    %52 = vector.broadcast %51 : vector<1x128xf32> to vector<2x128xf32>
    %53 = arith.addf %50, %52 : vector<2x128xf32>
    %c0_37 = arith.constant 0 : index
    %c0_38 = arith.constant 0 : index
    %54 = vector.load %arg30[%c0_37, %c0_38] : memref<2x128xf32, #tpu.memory_space<vmem>>, vector<2x128xf32>
    tpu.vector_store %arg30[%c0_37, %c0_38], %53 {strides = array<i32>} : memref<2x128xf32, #tpu.memory_space<vmem>>, vector<2x128xf32>,
    %55 = vector.extract_strided_slice %53 {offsets = [0, 0], sizes = [2, 9], strides = [1, 1]} : vector<2x128xf32> to vector<2x9xf32>
    %56 = vector.extract_strided_slice %55 {offsets = [0, 0], sizes = [1, 9], strides = [1, 1]} : vector<2x9xf32> to vector<1x9xf32>
    %57 = vector.shape_cast %56 : vector<1x9xf32> to vector<1x9xf32>
    %58 = vector.broadcast %57 : vector<1x9xf32> to vector<128x9xf32>
    %59 = vector.extract_strided_slice %55 {offsets = [1, 0], sizes = [1, 9], strides = [1, 1]} : vector<2x9xf32> to vector<1x9xf32>
    %60 = vector.shape_cast %59 : vector<1x9xf32> to vector<1x9xf32>
    %61 = vector.broadcast %60 : vector<1x9xf32> to vector<128x9xf32>
    %62 = tpu.concatenate %58, %61 in 0 : vector<128x9xf32>, vector<128x9xf32> -> vector<256x9xf32>
    %c0_39 = arith.constant 0 : index
    %c0_40 = arith.constant 0 : index
    %63 = vector.load %arg1[%c0_39, %c0_40] : memref<256x9xf32, #tpu.memory_space<vmem>>, vector<256x9xf32>
    %64 = arith.mulf %63, %62 : vector<256x9xf32>
    %65 = arith.truncf %64 : vector<256x9xf32> to vector<256x9xbf16>
    %c0_41 = arith.constant 0 : index
    %c0_42 = arith.constant 0 : index
    %66 = vector.load %arg14[%c0_41, %c0_42] : memref<9x64xbf16, #tpu.memory_space<vmem>>, vector<9x64xbf16>
    %cst_43 = arith.constant dense<0.000000e+00> : vector<256x64xf32>
    %67 = tpu.matmul %65, %66, %cst_43 {dimension_numbers = #tpu.dot_dimension_numbers<[1], [0], [0], [1], [0, 0, 1, 1], [], []>} : vector<256x9xbf16>, vector<9x64xbf16>, vector<256x64xf32> -> vector<256x64xf32>
    %c0_44 = arith.constant 0 : index
    %c0_45 = arith.constant 0 : index
    %68 = vector.load %arg15[%c0_44, %c0_45] : memref<1x64xf32, #tpu.memory_space<vmem>>, vector<1x64xf32>
    %69 = vector.broadcast %68 : vector<1x64xf32> to vector<256x64xf32>
    %70 = arith.addf %67, %69 : vector<256x64xf32>
    %cst_46 = arith.constant 0.000000e+00 : f32
    %71 = vector.broadcast %cst_46 : f32 to vector<256x64xf32>
    %72 = arith.maximumf %70, %71 : vector<256x64xf32>
    %73 = arith.truncf %72 : vector<256x64xf32> to vector<256x64xbf16>
    %c0_47 = arith.constant 0 : index
    %c0_48 = arith.constant 0 : index
    %74 = vector.load %arg16[%c0_47, %c0_48] : memref<64x64xbf16, #tpu.memory_space<vmem>>, vector<64x64xbf16>
    %cst_49 = arith.constant dense<0.000000e+00> : vector<256x64xf32>
    %75 = tpu.matmul %73, %74, %cst_49 {dimension_numbers = #tpu.dot_dimension_numbers<[1], [0], [0], [1], [0, 0, 1, 1], [], []>} : vector<256x64xbf16>, vector<64x64xbf16>, vector<256x64xf32> -> vector<256x64xf32>
    %c0_50 = arith.constant 0 : index
    %c0_51 = arith.constant 0 : index
    %76 = vector.load %arg17[%c0_50, %c0_51] : memref<1x64xf32, #tpu.memory_space<vmem>>, vector<1x64xf32>
    %77 = vector.broadcast %76 : vector<1x64xf32> to vector<256x64xf32>
    %78 = arith.addf %75, %77 : vector<256x64xf32>
    %cst_52 = arith.constant 0.000000e+00 : f32
    %79 = vector.broadcast %cst_52 : f32 to vector<256x64xf32>
    %80 = arith.maximumf %78, %79 : vector<256x64xf32>
    %81 = arith.truncf %80 : vector<256x64xf32> to vector<256x64xbf16>
    %c0_53 = arith.constant 0 : index
    %c0_54 = arith.constant 0 : index
    %82 = vector.load %arg18[%c0_53, %c0_54] : memref<64x128xbf16, #tpu.memory_space<vmem>>, vector<64x128xbf16>
    %cst_55 = arith.constant dense<0.000000e+00> : vector<256x128xf32>
    %83 = tpu.matmul %81, %82, %cst_55 {dimension_numbers = #tpu.dot_dimension_numbers<[1], [0], [0], [1], [0, 0, 1, 1], [], []>} : vector<256x64xbf16>, vector<64x128xbf16>, vector<256x128xf32> -> vector<256x128xf32>
    %c0_56 = arith.constant 0 : index
    %c0_57 = arith.constant 0 : index
    %84 = vector.load %arg19[%c0_56, %c0_57] : memref<1x128xf32, #tpu.memory_space<vmem>>, vector<1x128xf32>
    %85 = vector.broadcast %84 : vector<1x128xf32> to vector<256x128xf32>
    %86 = arith.addf %83, %85 : vector<256x128xf32>
    %cst_58 = arith.constant 0.000000e+00 : f32
    %87 = vector.broadcast %cst_58 : f32 to vector<256x128xf32>
    %88 = arith.maximumf %86, %87 : vector<256x128xf32>
    %89 = arith.truncf %88 : vector<256x128xf32> to vector<256x128xbf16>
    %c0_59 = arith.constant 0 : index
    %c0_60 = arith.constant 0 : index
    %90 = vector.load %arg20[%c0_59, %c0_60] : memref<128x1024xbf16, #tpu.memory_space<vmem>>, vector<128x1024xbf16>
    %cst_61 = arith.constant dense<0.000000e+00> : vector<256x1024xf32>
    %91 = tpu.matmul %89, %90, %cst_61 {dimension_numbers = #tpu.dot_dimension_numbers<[1], [0], [0], [1], [0, 0, 1, 1], [], []>} : vector<256x128xbf16>, vector<128x1024xbf16>, vector<256x1024xf32> -> vector<256x1024xf32>
    %c0_62 = arith.constant 0 : index
    %c0_63 = arith.constant 0 : index
    %92 = vector.load %arg21[%c0_62, %c0_63] : memref<1x1024xf32, #tpu.memory_space<vmem>>, vector<1x1024xf32>
    %93 = vector.broadcast %92 : vector<1x1024xf32> to vector<256x1024xf32>
    %94 = arith.addf %91, %93 : vector<256x1024xf32>
    %95 = vector.extract_strided_slice %94 {offsets = [0, 0], sizes = [128, 1024], strides = [1, 1]} : vector<256x1024xf32> to vector<128x1024xf32>
    %cst_64 = arith.constant dense<0xFF800000> : vector<1024xf32>
    %96 = vector.multi_reduction <maximumf>, %95, %cst_64 [0] : vector<128x1024xf32> to vector<1024xf32>
    %97 = vector.shape_cast %96 : vector<1024xf32> to vector<1x1024xf32>
    %98 = vector.extract_strided_slice %94 {offsets = [128, 0], sizes = [128, 1024], strides = [1, 1]} : vector<256x1024xf32> to vector<128x1024xf32>
    %cst_65 = arith.constant dense<0xFF800000> : vector<1024xf32>
    %99 = vector.multi_reduction <maximumf>, %98, %cst_65 [0] : vector<128x1024xf32> to vector<1024xf32>
    %100 = vector.shape_cast %99 : vector<1024xf32> to vector<1x1024xf32>
    %101 = tpu.concatenate %97, %100 in 0 : vector<1x1024xf32>, vector<1x1024xf32> -> vector<2x1024xf32>
    %c0_66 = arith.constant 0 : index
    %c0_67 = arith.constant 0 : index
    %102 = vector.load %arg29[%c0_66, %c0_67] : memref<2x1024xf32, #tpu.memory_space<vmem>>, vector<2x1024xf32>
    tpu.vector_store %arg29[%c0_66, %c0_67], %101 {strides = array<i32>} : memref<2x1024xf32, #tpu.memory_space<vmem>>, vector<2x1024xf32>,
    %103 = arith.truncf %101 : vector<2x1024xf32> to vector<2x1024xbf16>
    %c0_68 = arith.constant 0 : index
    %c0_69 = arith.constant 0 : index
    %104 = vector.load %arg22[%c0_68, %c0_69] : memref<1024x512xbf16, #tpu.memory_space<vmem>>, vector<1024x512xbf16>
    %cst_70 = arith.constant dense<0.000000e+00> : vector<2x512xf32>
    %105 = tpu.matmul %103, %104, %cst_70 {dimension_numbers = #tpu.dot_dimension_numbers<[1], [0], [0], [1], [0, 0, 1, 1], [], []>} : vector<2x1024xbf16>, vector<1024x512xbf16>, vector<2x512xf32> -> vector<2x512xf32>
    %c0_71 = arith.constant 0 : index
    %c0_72 = arith.constant 0 : index
    %106 = vector.load %arg23[%c0_71, %c0_72] : memref<1x512xf32, #tpu.memory_space<vmem>>, vector<1x512xf32>
    %107 = vector.broadcast %106 : vector<1x512xf32> to vector<2x512xf32>
    %108 = arith.addf %105, %107 : vector<2x512xf32>
    %cst_73 = arith.constant 0.000000e+00 : f32
    %109 = vector.broadcast %cst_73 : f32 to vector<2x512xf32>
    %110 = arith.maximumf %108, %109 : vector<2x512xf32>
    %111 = arith.truncf %110 : vector<2x512xf32> to vector<2x512xbf16>
    %c0_74 = arith.constant 0 : index
    %c0_75 = arith.constant 0 : index
    %112 = vector.load %arg24[%c0_74, %c0_75] : memref<512x256xbf16, #tpu.memory_space<vmem>>, vector<512x256xbf16>
    %cst_76 = arith.constant dense<0.000000e+00> : vector<2x256xf32>
    %113 = tpu.matmul %111, %112, %cst_76 {dimension_numbers = #tpu.dot_dimension_numbers<[1], [0], [0], [1], [0, 0, 1, 1], [], []>} : vector<2x512xbf16>, vector<512x256xbf16>, vector<2x256xf32> -> vector<2x256xf32>
    %c0_77 = arith.constant 0 : index
    %c0_78 = arith.constant 0 : index
    %114 = vector.load %arg25[%c0_77, %c0_78] : memref<1x256xf32, #tpu.memory_space<vmem>>, vector<1x256xf32>
    %115 = vector.broadcast %114 : vector<1x256xf32> to vector<2x256xf32>
    %116 = arith.addf %113, %115 : vector<2x256xf32>
    %cst_79 = arith.constant 0.000000e+00 : f32
    %117 = vector.broadcast %cst_79 : f32 to vector<2x256xf32>
    %118 = arith.maximumf %116, %117 : vector<2x256xf32>
    %119 = arith.truncf %118 : vector<2x256xf32> to vector<2x256xbf16>
    %c0_80 = arith.constant 0 : index
    %c0_81 = arith.constant 0 : index
    %120 = vector.load %arg26[%c0_80, %c0_81] : memref<256x128xbf16, #tpu.memory_space<vmem>>, vector<256x128xbf16>
    %cst_82 = arith.constant dense<0.000000e+00> : vector<2x128xf32>
    %121 = tpu.matmul %119, %120, %cst_82 {dimension_numbers = #tpu.dot_dimension_numbers<[1], [0], [0], [1], [0, 0, 1, 1], [], []>} : vector<2x256xbf16>, vector<256x128xbf16>, vector<2x128xf32> -> vector<2x128xf32>
    %c0_83 = arith.constant 0 : index
    %c0_84 = arith.constant 0 : index
    %122 = vector.load %arg27[%c0_83, %c0_84] : memref<1x128xf32, #tpu.memory_space<vmem>>, vector<1x128xf32>
    %123 = vector.broadcast %122 : vector<1x128xf32> to vector<2x128xf32>
    %124 = arith.addf %121, %123 : vector<2x128xf32>
    %c0_85 = arith.constant 0 : index
    %c0_86 = arith.constant 0 : index
    %125 = vector.load %arg28[%c0_85, %c0_86] : memref<2x128xf32, #tpu.memory_space<vmem>>, vector<2x128xf32>
    tpu.vector_store %arg28[%c0_85, %c0_86], %124 {strides = array<i32>} : memref<2x128xf32, #tpu.memory_space<vmem>>, vector<2x128xf32>,
    return
  }
}

</mosaic_0001>

<llo_original>
// kernel: pointnet_cls_forward.1
$region0: #{pointnet_cls_forward.1}
  #allocation0 [shape = 'u32[]', space=smem, size = 0x4, offset = 0x4, fixed_abs, tag = 'smem constant byte address 0x4 - core index']
  #allocation1 [shape = 'u32[144,128]{1,0:T(1,128)}', space=vmem, size = 0x12000, scoped, tag = 'internal scratch']
  %s0 = inlined_call_operand.smem [shape: u32[31], index: -1, kind: input, shape index: {}]
  %s1 = sld [smem:[%s0]]
  %s2 = scalar_lea.smem %s0, 1
  %s3 = sld [smem:[%s2]]
  %s4 = scalar_lea.smem %s0, 2
  %s5 = sld [smem:[%s4]]
  %s6 = scalar_lea.smem %s0, 3
  %s7 = sld [smem:[%s6]]
  %s8 = scalar_lea.smem %s0, 4
  %s9 = sld [smem:[%s8]]
  %s10 = scalar_lea.smem %s0, 5
  %s11 = sld [smem:[%s10]]
  %s12 = scalar_lea.smem %s0, 6
  %s13 = sld [smem:[%s12]]
  %s14 = scalar_lea.smem %s0, 7
  %s15 = sld [smem:[%s14]]
  %s16 = scalar_lea.smem %s0, 8
  %s17 = sld [smem:[%s16]]
  %s18 = scalar_lea.smem %s0, 9
  %s19 = sld [smem:[%s18]]
  %s20 = scalar_lea.smem %s0, 10
  %s21 = sld [smem:[%s20]]
  %s22 = scalar_lea.smem %s0, 11
  %s23 = sld [smem:[%s22]]
  %s24 = scalar_lea.smem %s0, 12
  %s25 = sld [smem:[%s24]]
  %s26 = scalar_lea.smem %s0, 13
  %s27 = sld [smem:[%s26]]
  %s28 = scalar_lea.smem %s0, 14
  %s29 = sld [smem:[%s28]]
  %s30 = scalar_lea.smem %s0, 15
  %s31 = sld [smem:[%s30]]
  %s32 = scalar_lea.smem %s0, 16
  %s33 = sld [smem:[%s32]]
  %s34 = scalar_lea.smem %s0, 17
  %s35 = sld [smem:[%s34]]
  %s36 = scalar_lea.smem %s0, 18
  %s37 = sld [smem:[%s36]]
  %s38 = scalar_lea.smem %s0, 19
  %s39 = sld [smem:[%s38]]
  %s40 = scalar_lea.smem %s0, 20
  %s41 = sld [smem:[%s40]]
  %s42 = scalar_lea.smem %s0, 21
  %s43 = sld [smem:[%s42]]
  %s44 = scalar_lea.smem %s0, 22
  %s45 = sld [smem:[%s44]]
  %s46 = scalar_lea.smem %s0, 23
  %s47 = sld [smem:[%s46]]
  %s48 = scalar_lea.smem %s0, 24
  %s49 = sld [smem:[%s48]]
  %s50 = scalar_lea.smem %s0, 25
  %s51 = sld [smem:[%s50]]
  %s52 = scalar_lea.smem %s0, 26
  %s53 = sld [smem:[%s52]]
  %s54 = scalar_lea.smem %s0, 27
  %s55 = sld [smem:[%s54]]
  %s56 = scalar_lea.smem %s0, 28
  %s57 = sld [smem:[%s56]]
  %s58 = scalar_lea.smem %s0, 29
  %s59 = sld [smem:[%s58]]
  %s60 = scalar_lea.smem %s0, 30
  %s61 = sld [smem:[%s60]]
  %62 = xla_tuple %s57, %s59, %s61
  %s63 = sld [smem:[#allocation0]]
  $region138: #{pointnet_cls_forward.1} parent=0
    _
  %s65 = ssub.s32 1, %s63
  %s66 = scalar_select 0, %s65, %s63
  $region1: #{pointnet_cls_forward.1} parent=0
    #allocation2 [shape = 'u8[1024]{0}', space=vmem, size = 0x400, scoped, tag = 'output window, operand 0, single buffered']
    #allocation3 [shape = 's32[1]{0}', space=sflag, size = 0x4, scoped, tag = 'scoped memory for pointnet_cls_forward.1']
    %67 = vsyncpa [#allocation3], 0
    // Predicated region
    $region2: #{pointnet_cls_forward.1} parent=1 // pred_check
      _
    $region3: #{pointnet_cls_forward.1} parent=1 // pred_check_branch
      %69 = sbr.rel (0) target = $region5
    $region4: #{pointnet_cls_forward.1} parent=1 // pred_region
      _
    $region5: #{pointnet_cls_forward.1} parent=1 // pred_fallthru
      _
    // Predicated region
    $region6: #{pointnet_cls_forward.1} parent=1 // pred_check
      _
    $region7: #{pointnet_cls_forward.1} parent=1 // pred_check_branch
      %71 = sbr.rel (0) target = $region9
    $region8: #{pointnet_cls_forward.1} parent=1 // pred_region
      _
    $region9: #{pointnet_cls_forward.1} parent=1 // pred_fallthru
      _
    // Predicated region
    $region10: #{pointnet_cls_forward.1} parent=1 // pred_check
      _
    $region11: #{pointnet_cls_forward.1} parent=1 // pred_check_branch
      %73 = sbr.rel (0) target = $region13
    $region12: #{pointnet_cls_forward.1} parent=1 // pred_region
      _
    $region13: #{pointnet_cls_forward.1} parent=1 // pred_fallthru
      _
    // Predicated region
    $region14: #{pointnet_cls_forward.1} parent=1 // pred_check
      _
    $region15: #{pointnet_cls_forward.1} parent=1 // pred_check_branch
      %75 = sbr.rel (0) target = $region17
    $region16: #{pointnet_cls_forward.1} parent=1 // pred_region
      _
    $region17: #{pointnet_cls_forward.1} parent=1 // pred_fallthru
      _
    // Predicated region
    $region18: #{pointnet_cls_forward.1} parent=1 // pred_check
      _
    $region19: #{pointnet_cls_forward.1} parent=1 // pred_check_branch
      %77 = sbr.rel (0) target = $region21
    $region20: #{pointnet_cls_forward.1} parent=1 // pred_region
      _
    $region21: #{pointnet_cls_forward.1} parent=1 // pred_fallthru
      _
    // Predicated region
    $region22: #{pointnet_cls_forward.1} parent=1 // pred_check
      _
    $region23: #{pointnet_cls_forward.1} parent=1 // pred_check_branch
      %79 = sbr.rel (0) target = $region25
    $region24: #{pointnet_cls_forward.1} parent=1 // pred_region
      _
    $region25: #{pointnet_cls_forward.1} parent=1 // pred_fallthru
      _
    // Predicated region
    $region26: #{pointnet_cls_forward.1} parent=1 // pred_check
      _
    $region27: #{pointnet_cls_forward.1} parent=1 // pred_check_branch
      %81 = sbr.rel (0) target = $region29
    $region28: #{pointnet_cls_forward.1} parent=1 // pred_region
      _
    $region29: #{pointnet_cls_forward.1} parent=1 // pred_fallthru
      _
    // Predicated region
    $region30: #{pointnet_cls_forward.1} parent=1 // pred_check
      _
    $region31: #{pointnet_cls_forward.1} parent=1 // pred_check_branch
      %83 = sbr.rel (0) target = $region33
    $region32: #{pointnet_cls_forward.1} parent=1 // pred_region
      _
    $region33: #{pointnet_cls_forward.1} parent=1 // pred_fallthru
      _
    // Predicated region
    $region34: #{pointnet_cls_forward.1} parent=1 // pred_check
      _
    $region35: #{pointnet_cls_forward.1} parent=1 // pred_check_branch
      %85 = sbr.rel (0) target = $region37
    $region36: #{pointnet_cls_forward.1} parent=1 // pred_region
      _
    $region37: #{pointnet_cls_forward.1} parent=1 // pred_fallthru
      _
    // Predicated region
    $region38: #{pointnet_cls_forward.1} parent=1 // pred_check
      _
    $region39: #{pointnet_cls_forward.1} parent=1 // pred_check_branch
      %87 = sbr.rel (0) target = $region41
    $region40: #{pointnet_cls_forward.1} parent=1 // pred_region
      _
    $region41: #{pointnet_cls_forward.1} parent=1 // pred_fallthru
      _
    // Predicated region
    $region42: #{pointnet_cls_forward.1} parent=1 // pred_check
      _
    $region43: #{pointnet_cls_forward.1} parent=1 // pred_check_branch
      %89 = sbr.rel (0) target = $region45
    $region44: #{pointnet_cls_forward.1} parent=1 // pred_region
      _
    $region45: #{pointnet_cls_forward.1} parent=1 // pred_fallthru
      _
    // Predicated region
    $region46: #{pointnet_cls_forward.1} parent=1 // pred_check
      _
    $region47: #{pointnet_cls_forward.1} parent=1 // pred_check_branch
      %91 = sbr.rel (0) target = $region49
    $region48: #{pointnet_cls_forward.1} parent=1 // pred_region
      _
    $region49: #{pointnet_cls_forward.1} parent=1 // pred_fallthru
      _
    // Predicated region
    $region50: #{pointnet_cls_forward.1} parent=1 // pred_check
      _
    $region51: #{pointnet_cls_forward.1} parent=1 // pred_check_branch
      %93 = sbr.rel (0) target = $region53
    $region52: #{pointnet_cls_forward.1} parent=1 // pred_region
      _
    $region53: #{pointnet_cls_forward.1} parent=1 // pred_fallthru
      _
    // Predicated region
    $region54: #{pointnet_cls_forward.1} parent=1 // pred_check
      _
    $region55: #{pointnet_cls_forward.1} parent=1 // pred_check_branch
      %95 = sbr.rel (0) target = $region57
    $region56: #{pointnet_cls_forward.1} parent=1 // pred_region
      _
    $region57: #{pointnet_cls_forward.1} parent=1 // pred_fallthru
      _
    // Predicated region
    $region58: #{pointnet_cls_forward.1} parent=1 // pred_check
      _
    $region59: #{pointnet_cls_forward.1} parent=1 // pred_check_branch
      %97 = sbr.rel (0) target = $region61
    $region60: #{pointnet_cls_forward.1} parent=1 // pred_region
      _
    $region61: #{pointnet_cls_forward.1} parent=1 // pred_fallthru
      _
    // Predicated region
    $region62: #{pointnet_cls_forward.1} parent=1 // pred_check
      _
    $region63: #{pointnet_cls_forward.1} parent=1 // pred_check_branch
      %99 = sbr.rel (0) target = $region65
    $region64: #{pointnet_cls_forward.1} parent=1 // pred_region
      _
    $region65: #{pointnet_cls_forward.1} parent=1 // pred_fallthru
      _
    // Predicated region
    $region66: #{pointnet_cls_forward.1} parent=1 // pred_check
      _
    $region67: #{pointnet_cls_forward.1} parent=1 // pred_check_branch
      %101 = sbr.rel (0) target = $region69
    $region68: #{pointnet_cls_forward.1} parent=1 // pred_region
      _
    $region69: #{pointnet_cls_forward.1} parent=1 // pred_fallthru
      _
    // Predicated region
    $region70: #{pointnet_cls_forward.1} parent=1 // pred_check
      _
    $region71: #{pointnet_cls_forward.1} parent=1 // pred_check_branch
      %103 = sbr.rel (0) target = $region73
    $region72: #{pointnet_cls_forward.1} parent=1 // pred_region
      _
    $region73: #{pointnet_cls_forward.1} parent=1 // pred_fallthru
      _
    // Predicated region
    $region74: #{pointnet_cls_forward.1} parent=1 // pred_check
      _
    $region75: #{pointnet_cls_forward.1} parent=1 // pred_check_branch
      %105 = sbr.rel (0) target = $region77
    $region76: #{pointnet_cls_forward.1} parent=1 // pred_region
      _
    $region77: #{pointnet_cls_forward.1} parent=1 // pred_fallthru
      _
    // Predicated region
    $region78: #{pointnet_cls_forward.1} parent=1 // pred_check
      _
    $region79: #{pointnet_cls_forward.1} parent=1 // pred_check_branch
      %107 = sbr.rel (0) target = $region81
    $region80: #{pointnet_cls_forward.1} parent=1 // pred_region
      _
    $region81: #{pointnet_cls_forward.1} parent=1 // pred_fallthru
      _
    // Predicated region
    $region82: #{pointnet_cls_forward.1} parent=1 // pred_check
      _
    $region83: #{pointnet_cls_forward.1} parent=1 // pred_check_branch
      %109 = sbr.rel (0) target = $region85
    $region84: #{pointnet_cls_forward.1} parent=1 // pred_region
      _
    $region85: #{pointnet_cls_forward.1} parent=1 // pred_fallthru
      _
    // Predicated region
    $region86: #{pointnet_cls_forward.1} parent=1 // pred_check
      _
    $region87: #{pointnet_cls_forward.1} parent=1 // pred_check_branch
      %111 = sbr.rel (0) target = $region89
    $region88: #{pointnet_cls_forward.1} parent=1 // pred_region
      _
    $region89: #{pointnet_cls_forward.1} parent=1 // pred_fallthru
      _
    // Predicated region
    $region90: #{pointnet_cls_forward.1} parent=1 // pred_check
      _
    $region91: #{pointnet_cls_forward.1} parent=1 // pred_check_branch
      %113 = sbr.rel (0) target = $region93
    $region92: #{pointnet_cls_forward.1} parent=1 // pred_region
      _
    $region93: #{pointnet_cls_forward.1} parent=1 // pred_fallthru
      _
    // Predicated region
    $region94: #{pointnet_cls_forward.1} parent=1 // pred_check
      _
    $region95: #{pointnet_cls_forward.1} parent=1 // pred_check_branch
      %115 = sbr.rel (0) target = $region97
    $region96: #{pointnet_cls_forward.1} parent=1 // pred_region
      _
    $region97: #{pointnet_cls_forward.1} parent=1 // pred_fallthru
      _
    // Predicated region
    $region98: #{pointnet_cls_forward.1} parent=1 // pred_check
      _
    $region99: #{pointnet_cls_forward.1} parent=1 // pred_check_branch
      %117 = sbr.rel (0) target = $region101
    $region100: #{pointnet_cls_forward.1} parent=1 // pred_region
      _
    $region101: #{pointnet_cls_forward.1} parent=1 // pred_fallthru
      _
    // Predicated region
    $region102: #{pointnet_cls_forward.1} parent=1 // pred_check
      _
    $region103: #{pointnet_cls_forward.1} parent=1 // pred_check_branch
      %119 = sbr.rel (0) target = $region105
    $region104: #{pointnet_cls_forward.1} parent=1 // pred_region
      _
    $region105: #{pointnet_cls_forward.1} parent=1 // pred_fallthru
      _
    // Predicated region
    $region106: #{pointnet_cls_forward.1} parent=1 // pred_check
      _
    $region107: #{pointnet_cls_forward.1} parent=1 // pred_check_branch
      %121 = sbr.rel (0) target = $region109
    $region108: #{pointnet_cls_forward.1} parent=1 // pred_region
      _
    $region109: #{pointnet_cls_forward.1} parent=1 // pred_fallthru
      _
    // Predicated region
    $region110: #{pointnet_cls_forward.1} parent=1 // pred_check
      _
    $region111: #{pointnet_cls_forward.1} parent=1 // pred_check_branch
      %123 = sbr.rel (0) target = $region113
    $region112: #{pointnet_cls_forward.1} parent=1 // pred_region
      _
    $region113: #{pointnet_cls_forward.1} parent=1 // pred_fallthru
      _
    %v125 = vld [vmem:[%s1] sm:$0xff]
    %v126 = vld [vmem:[%s1 + $0x8] sm:$0xff]
    %v127 = vld [vmem:[%s1 + $0x10] sm:$0xff]
    %v128 = vld [vmem:[%s1 + $0x18] sm:$0xff]
    %v129 = vld [vmem:[%s1 + $0x20] sm:$0xff]
    %v130 = vld [vmem:[%s1 + $0x28] sm:$0xff]
    %v131 = vld [vmem:[%s1 + $0x30] sm:$0xff]
    %v132 = vld [vmem:[%s1 + $0x38] sm:$0xff]
    %v133 = vld [vmem:[%s1 + $0x40] sm:$0xff]
    %v134 = vld [vmem:[%s1 + $0x48] sm:$0xff]
    %v135 = vld [vmem:[%s1 + $0x50] sm:$0xff]
    %v136 = vld [vmem:[%s1 + $0x58] sm:$0xff]
    %v137 = vld [vmem:[%s1 + $0x60] sm:$0xff]
    %v138 = vld [vmem:[%s1 + $0x68] sm:$0xff]
    %v139 = vld [vmem:[%s1 + $0x70] sm:$0xff]
    %v140 = vld [vmem:[%s1 + $0x78] sm:$0xff]
    %v141 = vld [vmem:[%s1 + $0x80] sm:$0xff]
    %v142 = vld [vmem:[%s1 + $0x88] sm:$0xff]
    %v143 = vld [vmem:[%s1 + $0x90] sm:$0xff]
    %v144 = vld [vmem:[%s1 + $0x98] sm:$0xff]
    %v145 = vld [vmem:[%s1 + $0xa0] sm:$0xff]
    %v146 = vld [vmem:[%s1 + $0xa8] sm:$0xff]
    %v147 = vld [vmem:[%s1 + $0xb0] sm:$0xff]
    %v148 = vld [vmem:[%s1 + $0xb8] sm:$0xff]
    %v149 = vld [vmem:[%s1 + $0xc0] sm:$0xff]
    %v150 = vld [vmem:[%s1 + $0xc8] sm:$0xff]
    %v151 = vld [vmem:[%s1 + $0xd0] sm:$0xff]
    %v152 = vld [vmem:[%s1 + $0xd8] sm:$0xff]
    %v153 = vld [vmem:[%s1 + $0xe0] sm:$0xff]
    %v154 = vld [vmem:[%s1 + $0xe8] sm:$0xff]
    %v155 = vld [vmem:[%s1 + $0xf0] sm:$0xff]
    %v156 = vld [vmem:[%s1 + $0xf8] sm:$0xff]
    %v157 = vpack.c.bf16 %v126, %v125
    %v158 = vpack.c.bf16 %v128, %v127
    %v159 = vpack.c.bf16 %v130, %v129
    %v160 = vpack.c.bf16 %v132, %v131
    %v161 = vpack.c.bf16 %v134, %v133
    %v162 = vpack.c.bf16 %v136, %v135
    %v163 = vpack.c.bf16 %v138, %v137
    %v164 = vpack.c.bf16 %v140, %v139
    %v165 = vpack.c.bf16 %v142, %v141
    %v166 = vpack.c.bf16 %v144, %v143
    %v167 = vpack.c.bf16 %v146, %v145
    %v168 = vpack.c.bf16 %v148, %v147
    %v169 = vpack.c.bf16 %v150, %v149
    %v170 = vpack.c.bf16 %v152, %v151
    %v171 = vpack.c.bf16 %v154, %v153
    %v172 = vpack.c.bf16 %v156, %v155
    %v173 = vld [vmem:[%s5] sm:$0x3]
    %v174 = vld [vmem:[%s7] sm:$0x1]
    %v176 = vlaneseq
    %v177 = vshrl.u32 %v176, 7
    %v178 = vsub.s32 0, %v177
    %v179 = vrot.slane %v174, %v178
    %vm181 = vcmask 23552
    %v183 = vsel %vm181, %v157, 0
    %v186 = vsel %vm181, %v158, 0
    %v189 = vsel %vm181, %v159, 0
    %v192 = vsel %vm181, %v160, 0
    %v195 = vsel %vm181, %v161, 0
    %v198 = vsel %vm181, %v162, 0
    %v201 = vsel %vm181, %v163, 0
    %v204 = vsel %vm181, %v164, 0
    %v207 = vsel %vm181, %v165, 0
    %v210 = vsel %vm181, %v166, 0
    %v213 = vsel %vm181, %v167, 0
    %v216 = vsel %vm181, %v168, 0
    %v219 = vsel %vm181, %v169, 0
    %v222 = vsel %vm181, %v170, 0
    %v225 = vsel %vm181, %v171, 0
    %v228 = vsel %vm181, %v172, 0
    %vm230 = vcmask 1040384
    %vm231 = vcmask 1041408
    %v232 = vsel %vm230, 4294967295, 65535
    %v233 = vsel %vm231, %v232, 0
    %v235 = vand.u32 %v173, %v233
    %237 = vmatprep.subr.bf16.mxu0 0
    %238 = vmatpush1.bf16.msra.mxu0 %v235
    %239 = vmatprep.subr.bf16.mxu0 0
    %240 = vmatpush1.bf16.msra.mxu0 0
    %241 = vmatprep.subr.bf16.mxu0 0
    %242 = vmatpush1.bf16.msra.mxu0 0
    %243 = vmatprep.subr.bf16.mxu0 0
    %244 = vmatpush1.bf16.msra.mxu0 0
    %245 = vmatprep.subr.bf16.mxu0 0
    %246 = vmatpush1.bf16.msra.mxu0 0
    %247 = vmatprep.subr.bf16.mxu0 0
    %248 = vmatpush1.bf16.msra.mxu0 0
    %249 = vmatprep.subr.bf16.mxu0 0
    %250 = vmatpush1.bf16.msra.mxu0 0
    %251 = vmatprep.subr.bf16.mxu0 0
    %252 = vmatpush1.bf16.msra.mxu0 0
    %253 = vmatprep.subr.bf16.mxu0 0
    %254 = vmatpush1.bf16.msra.mxu0 0
    %255 = vmatprep.subr.bf16.mxu0 0
    %256 = vmatpush1.bf16.msra.mxu0 0
    %257 = vmatprep.subr.bf16.mxu0 0
    %258 = vmatpush1.bf16.msra.mxu0 0
    %259 = vmatprep.subr.bf16.mxu0 0
    %260 = vmatpush1.bf16.msra.mxu0 0
    %261 = vmatprep.subr.bf16.mxu0 0
    %262 = vmatpush1.bf16.msra.mxu0 0
    %263 = vmatprep.subr.bf16.mxu0 0
    %264 = vmatpush1.bf16.msra.mxu0 0
    %265 = vmatprep.subr.bf16.mxu0 0
    %266 = vmatpush1.bf16.msra.mxu0 0
    %267 = vmatprep.subr.bf16.mxu0 0
    %268 = vmatpush1.bf16.msra.mxu0 0
    %269 = vmatprep.mubr.bf16.mxu0 0
    %270 = vmatmul.mubr.bf16.gmra.mrb[0].mxu0 %v183
    %v271 = vpop.f32.mrb[0].mxu0
    %v272 = vadd.f32 %v179, %v271
    %v273 = vpop.f32.mrb[0].mxu0
    %v274 = vpop.f32.mrb[0].mxu0
    %v275 = vadd.f32 %v179, %v274
    %v276 = vpop.f32.mrb[0].mxu0
    %277 = vmatprep.mubr.bf16.mxu0 0
    %278 = vmatmul.mubr.bf16.gmra.mrb[0].mxu0 %v186
    %v279 = vpop.f32.mrb[0].mxu0
    %v280 = vadd.f32 %v179, %v279
    %v281 = vpop.f32.mrb[0].mxu0
    %v282 = vpop.f32.mrb[0].mxu0
    %v283 = vadd.f32 %v179, %v282
    %v284 = vpop.f32.mrb[0].mxu0
    %285 = vmatprep.mubr.bf16.mxu0 0
    %286 = vmatmul.mubr.bf16.gmra.mrb[0].mxu0 %v189
    %v287 = vpop.f32.mrb[0].mxu0
    %v288 = vadd.f32 %v179, %v287
    %v289 = vpop.f32.mrb[0].mxu0
    %v290 = vpop.f32.mrb[0].mxu0
    %v291 = vadd.f32 %v179, %v290
    %v292 = vpop.f32.mrb[0].mxu0
    %293 = vmatprep.mubr.bf16.mxu0 0
    %294 = vmatmul.mubr.bf16.gmra.mrb[0].mxu0 %v192
    %v295 = vpop.f32.mrb[0].mxu0
    %v296 = vadd.f32 %v179, %v295
    %v297 = vpop.f32.mrb[0].mxu0
    %v298 = vpop.f32.mrb[0].mxu0
    %v299 = vadd.f32 %v179, %v298
    %v300 = vpop.f32.mrb[0].mxu0
    %301 = vmatprep.mubr.bf16.mxu0 0
    %302 = vmatmul.mubr.bf16.gmra.mrb[0].mxu0 %v195
    %v303 = vpop.f32.mrb[0].mxu0
    %v304 = vadd.f32 %v179, %v303
    %v305 = vpop.f32.mrb[0].mxu0
    %v306 = vpop.f32.mrb[0].mxu0
    %v307 = vadd.f32 %v179, %v306
    %v308 = vpop.f32.mrb[0].mxu0
    %309 = vmatprep.mubr.bf16.mxu0 0
    %310 = vmatmul.mubr.bf16.gmra.mrb[0].mxu0 %v198
    %v311 = vpop.f32.mrb[0].mxu0
    %v312 = vadd.f32 %v179, %v311
    %v313 = vpop.f32.mrb[0].mxu0
    %v314 = vpop.f32.mrb[0].mxu0
    %v315 = vadd.f32 %v179, %v314
    %v316 = vpop.f32.mrb[0].mxu0
    %317 = vmatprep.mubr.bf16.mxu0 0
    %318 = vmatmul.mubr.bf16.gmra.mrb[0].mxu0 %v201
    %v319 = vpop.f32.mrb[0].mxu0
    %v320 = vadd.f32 %v179, %v319
    %v321 = vpop.f32.mrb[0].mxu0
    %v322 = vpop.f32.mrb[0].mxu0
    %v323 = vadd.f32 %v179, %v322
    %v324 = vpop.f32.mrb[0].mxu0
    %325 = vmatprep.mubr.bf16.mxu0 0
    %326 = vmatmul.mubr.bf16.gmra.mrb[0].mxu0 %v204
    %v327 = vpop.f32.mrb[0].mxu0
    %v328 = vadd.f32 %v179, %v327
    %v329 = vpop.f32.mrb[0].mxu0
    %v330 = vpop.f32.mrb[0].mxu0
    %v331 = vadd.f32 %v179, %v330
    %v332 = vpop.f32.mrb[0].mxu0
    %333 = vmatprep.mubr.bf16.mxu0 0
    %334 = vmatmul.mubr.bf16.gmra.mrb[0].mxu0 %v207
    %v335 = vpop.f32.mrb[0].mxu0
    %v336 = vadd.f32 %v179, %v335
    %v337 = vpop.f32.mrb[0].mxu0
    %v338 = vpop.f32.mrb[0].mxu0
    %v339 = vadd.f32 %v179, %v338
    %v340 = vpop.f32.mrb[0].mxu0
    %341 = vmatprep.mubr.bf16.mxu0 0
    %342 = vmatmul.mubr.bf16.gmra.mrb[0].mxu0 %v210
    %v343 = vpop.f32.mrb[0].mxu0
    %v344 = vadd.f32 %v179, %v343
    %v345 = vpop.f32.mrb[0].mxu0
    %v346 = vpop.f32.mrb[0].mxu0
    %v347 = vadd.f32 %v179, %v346
    %v348 = vpop.f32.mrb[0].mxu0
    %349 = vmatprep.mubr.bf16.mxu0 0
    %350 = vmatmul.mubr.bf16.gmra.mrb[0].mxu0 %v213
    %v351 = vpop.f32.mrb[0].mxu0
    %v352 = vadd.f32 %v179, %v351
    %v353 = vpop.f32.mrb[0].mxu0
    %v354 = vpop.f32.mrb[0].mxu0
    %v355 = vadd.f32 %v179, %v354
    %v356 = vpop.f32.mrb[0].mxu0
    %357 = vmatprep.mubr.bf16.mxu0 0
    %358 = vmatmul.mubr.bf16.gmra.mrb[0].mxu0 %v216
    %v359 = vpop.f32.mrb[0].mxu0
    %v360 = vadd.f32 %v179, %v359
    %v361 = vpop.f32.mrb[0].mxu0
    %v362 = vpop.f32.mrb[0].mxu0
    %v363 = vadd.f32 %v179, %v362
    %v364 = vpop.f32.mrb[0].mxu0
    %365 = vmatprep.mubr.bf16.mxu0 0
    %366 = vmatmul.mubr.bf16.gmra.mrb[0].mxu0 %v219
    %v367 = vpop.f32.mrb[0].mxu0
    %v368 = vadd.f32 %v179, %v367
    %v369 = vpop.f32.mrb[0].mxu0
    %v370 = vpop.f32.mrb[0].mxu0
    %v371 = vadd.f32 %v179, %v370
    %v372 = vpop.f32.mrb[0].mxu0
    %373 = vmatprep.mubr.bf16.mxu0 0
    %374 = vmatmul.mubr.bf16.gmra.mrb[0].mxu0 %v222
    %v375 = vpop.f32.mrb[0].mxu0
    %v376 = vadd.f32 %v179, %v375
    %v377 = vpop.f32.mrb[0].mxu0
    %v378 = vpop.f32.mrb[0].mxu0
    %v379 = vadd.f32 %v179, %v378
    %v380 = vpop.f32.mrb[0].mxu0
    %381 = vmatprep.mubr.bf16.mxu0 0
    %382 = vmatmul.mubr.bf16.gmra.mrb[0].mxu0 %v225
    %v383 = vpop.f32.mrb[0].mxu0
    %v384 = vadd.f32 %v179, %v383
    %v385 = vpop.f32.mrb[0].mxu0
    %v386 = vpop.f32.mrb[0].mxu0
    %v387 = vadd.f32 %v179, %v386
    %v388 = vpop.f32.mrb[0].mxu0
    %389 = vmatprep.mubr.bf16.mxu0 0
    %390 = vmatmul.mubr.bf16.gmra.mrb[0].mxu0 %v228
    %v391 = vpop.f32.mrb[0].mxu0
    %v392 = vadd.f32 %v179, %v391
    %v393 = vpop.f32.mrb[0].mxu0
    %v394 = vpop.f32.mrb[0].mxu0
    %v395 = vadd.f32 %v179, %v394
    %v396 = vpop.f32.mrb[0].mxu0
    %397 = vdwg.mxu0
    %v398 = vmax.f32 %v272, 0.0
    %v399 = vmax.f32 %v275, 0.0
    %v400 = vmax.f32 %v280, 0.0
    %v401 = vmax.f32 %v283, 0.0
    %v402 = vmax.f32 %v288, 0.0
    %v403 = vmax.f32 %v291, 0.0
    %v404 = vmax.f32 %v296, 0.0
    %v405 = vmax.f32 %v299, 0.0
    %v406 = vmax.f32 %v304, 0.0
    %v407 = vmax.f32 %v307, 0.0
    %v408 = vmax.f32 %v312, 0.0
    %v409 = vmax.f32 %v315, 0.0
    %v410 = vmax.f32 %v320, 0.0
    %v411 = vmax.f32 %v323, 0.0
    %v412 = vmax.f32 %v328, 0.0
    %v413 = vmax.f32 %v331, 0.0
    %v414 = vmax.f32 %v336, 0.0
    %v415 = vmax.f32 %v339, 0.0
    %v416 = vmax.f32 %v344, 0.0
    %v417 = vmax.f32 %v347, 0.0
    %v418 = vmax.f32 %v352, 0.0
    %v419 = vmax.f32 %v355, 0.0
    %v420 = vmax.f32 %v360, 0.0
    %v421 = vmax.f32 %v363, 0.0
    %v422 = vmax.f32 %v368, 0.0
    %v423 = vmax.f32 %v371, 0.0
    %v424 = vmax.f32 %v376, 0.0
    %v425 = vmax.f32 %v379, 0.0
    %v426 = vmax.f32 %v384, 0.0
    %v427 = vmax.f32 %v387, 0.0
    %v428 = vmax.f32 %v392, 0.0
    %v429 = vmax.f32 %v395, 0.0
    %v430 = vpack.c.bf16 %v399, %v398
    %v431 = vpack.c.bf16 %v401, %v400
    %v432 = vpack.c.bf16 %v403, %v402
    %v433 = vpack.c.bf16 %v405, %v404
    %v434 = vpack.c.bf16 %v407, %v406
    %v435 = vpack.c.bf16 %v409, %v408
    %v436 = vpack.c.bf16 %v411, %v410
    %v437 = vpack.c.bf16 %v413, %v412
    %v438 = vpack.c.bf16 %v415, %v414
    %v439 = vpack.c.bf16 %v417, %v416
    %v440 = vpack.c.bf16 %v419, %v418
    %v441 = vpack.c.bf16 %v421, %v420
    %v442 = vpack.c.bf16 %v423, %v422
    %v443 = vpack.c.bf16 %v425, %v424
    %v444 = vpack.c.bf16 %v427, %v426
    %v445 = vpack.c.bf16 %v429, %v428
    %v446 = vld [vmem:[%s9] sm:$0xf]
    %v447 = vld [vmem:[%s9 + $0x4] sm:$0xf]
    %v448 = vld [vmem:[%s9 + $0x8] sm:$0xf]
    %v449 = vld [vmem:[%s9 + $0xc] sm:$0xf]
    %v450 = vld [vmem:[%s9 + $0x10] sm:$0xf]
    %v451 = vld [vmem:[%s9 + $0x14] sm:$0xf]
    %v452 = vld [vmem:[%s9 + $0x18] sm:$0xf]
    %v453 = vld [vmem:[%s9 + $0x1c] sm:$0xf]
    %v454 = vld [vmem:[%s11] sm:$0x1]
    %v456 = vlaneseq
    %v457 = vshrl.u32 %v456, 7
    %v458 = vsub.s32 0, %v457
    %v459 = vrot.slane %v454, %v458
    %v469 = vunpack.c.l.b16 %v446
    %v470 = vunpack.c.l.b16 %v447
    %v471 = vunpack.c.l.b16 %v448
    %v472 = vunpack.c.l.b16 %v449
    %v473 = vunpack.c.l.b16 %v450
    %v474 = vunpack.c.l.b16 %v451
    %v475 = vunpack.c.l.b16 %v452
    %v476 = vunpack.c.l.b16 %v453
    %v477 = vpack.c.b16 %v470, %v469
    %v478 = vpack.c.b16 %v472, %v471
    %v479 = vpack.c.b16 %v474, %v473
    %v480 = vpack.c.b16 %v476, %v475
    %vm485 = vcmask 523264
    %v487 = vsel %vm485, %v430, 0
    %v490 = vsel %vm485, %v431, 0
    %v493 = vsel %vm485, %v432, 0
    %v496 = vsel %vm485, %v433, 0
    %v499 = vsel %vm485, %v434, 0
    %v502 = vsel %vm485, %v435, 0
    %v505 = vsel %vm485, %v436, 0
    %v508 = vsel %vm485, %v437, 0
    %v511 = vsel %vm485, %v438, 0
    %v514 = vsel %vm485, %v439, 0
    %v517 = vsel %vm485, %v440, 0
    %v520 = vsel %vm485, %v441, 0
    %v523 = vsel %vm485, %v442, 0
    %v526 = vsel %vm485, %v443, 0
    %v529 = vsel %vm485, %v444, 0
    %v532 = vsel %vm485, %v445, 0
    %534 = vmatprep.subr.bf16.mxu0 0
    %535 = vmatpush1.bf16.msra.mxu0 %v477
    %536 = vmatprep.subr.bf16.mxu0 0
    %537 = vmatpush1.bf16.msra.mxu0 %v478
    %538 = vmatprep.subr.bf16.mxu0 0
    %539 = vmatpush1.bf16.msra.mxu0 %v479
    %540 = vmatprep.subr.bf16.mxu0 0
    %541 = vmatpush1.bf16.msra.mxu0 %v480
    %542 = vmatprep.subr.bf16.mxu0 0
    %543 = vmatpush1.bf16.msra.mxu0 0
    %544 = vmatprep.subr.bf16.mxu0 0
    %545 = vmatpush1.bf16.msra.mxu0 0
    %546 = vmatprep.subr.bf16.mxu0 0
    %547 = vmatpush1.bf16.msra.mxu0 0
    %548 = vmatprep.subr.bf16.mxu0 0
    %549 = vmatpush1.bf16.msra.mxu0 0
    %550 = vmatprep.subr.bf16.mxu0 0
    %551 = vmatpush1.bf16.msra.mxu0 0
    %552 = vmatprep.subr.bf16.mxu0 0
    %553 = vmatpush1.bf16.msra.mxu0 0
    %554 = vmatprep.subr.bf16.mxu0 0
    %555 = vmatpush1.bf16.msra.mxu0 0
    %556 = vmatprep.subr.bf16.mxu0 0
    %557 = vmatpush1.bf16.msra.mxu0 0
    %558 = vmatprep.subr.bf16.mxu0 0
    %559 = vmatpush1.bf16.msra.mxu0 0
    %560 = vmatprep.subr.bf16.mxu0 0
    %561 = vmatpush1.bf16.msra.mxu0 0
    %562 = vmatprep.subr.bf16.mxu0 0
    %563 = vmatpush1.bf16.msra.mxu0 0
    %564 = vmatprep.subr.bf16.mxu0 0
    %565 = vmatpush1.bf16.msra.mxu0 0
    %566 = vmatprep.mubr.bf16.mxu0 0
    %567 = vmatmul.mubr.bf16.gmra.mrb[0].mxu0 %v487
    %v568 = vpop.f32.mrb[0].mxu0
    %v569 = vadd.f32 %v459, %v568
    %v570 = vpop.f32.mrb[0].mxu0
    %v571 = vpop.f32.mrb[0].mxu0
    %v572 = vadd.f32 %v459, %v571
    %v573 = vpop.f32.mrb[0].mxu0
    %574 = vmatprep.mubr.bf16.mxu0 0
    %575 = vmatmul.mubr.bf16.gmra.mrb[0].mxu0 %v490
    %v576 = vpop.f32.mrb[0].mxu0
    %v577 = vadd.f32 %v459, %v576
    %v578 = vpop.f32.mrb[0].mxu0
    %v579 = vpop.f32.mrb[0].mxu0
    %v580 = vadd.f32 %v459, %v579
    %v581 = vpop.f32.mrb[0].mxu0
    %582 = vmatprep.mubr.bf16.mxu0 0
    %583 = vmatmul.mubr.bf16.gmra.mrb[0].mxu0 %v493
    %v584 = vpop.f32.mrb[0].mxu0
    %v585 = vadd.f32 %v459, %v584
    %v586 = vpop.f32.mrb[0].mxu0
    %v587 = vpop.f32.mrb[0].mxu0
    %v588 = vadd.f32 %v459, %v587
    %v589 = vpop.f32.mrb[0].mxu0
    %590 = vmatprep.mubr.bf16.mxu0 0
    %591 = vmatmul.mubr.bf16.gmra.mrb[0].mxu0 %v496
    %v592 = vpop.f32.mrb[0].mxu0
    %v593 = vadd.f32 %v459, %v592
    %v594 = vpop.f32.mrb[0].mxu0
    %v595 = vpop.f32.mrb[0].mxu0
    %v596 = vadd.f32 %v459, %v595
    %v597 = vpop.f32.mrb[0].mxu0
    %598 = vmatprep.mubr.bf16.mxu0 0
    %599 = vmatmul.mubr.bf16.gmra.mrb[0].mxu0 %v499
    %v600 = vpop.f32.mrb[0].mxu0
    %v601 = vadd.f32 %v459, %v600
    %v602 = vpop.f32.mrb[0].mxu0
    %v603 = vpop.f32.mrb[0].mxu0
    %v604 = vadd.f32 %v459, %v603
    %v605 = vpop.f32.mrb[0].mxu0
    %606 = vmatprep.mubr.bf16.mxu0 0
    %607 = vmatmul.mubr.bf16.gmra.mrb[0].mxu0 %v502
    %v608 = vpop.f32.mrb[0].mxu0
    %v609 = vadd.f32 %v459, %v608
    %v610 = vpop.f32.mrb[0].mxu0
    %v611 = vpop.f32.mrb[0].mxu0
    %v612 = vadd.f32 %v459, %v611
    %v613 = vpop.f32.mrb[0].mxu0
    %614 = vmatprep.mubr.bf16.mxu0 0
    %615 = vmatmul.mubr.bf16.gmra.mrb[0].mxu0 %v505
    %v616 = vpop.f32.mrb[0].mxu0
    %v617 = vadd.f32 %v459, %v616
    %v618 = vpop.f32.mrb[0].mxu0
    %v619 = vpop.f32.mrb[0].mxu0
    %v620 = vadd.f32 %v459, %v619
    %v621 = vpop.f32.mrb[0].mxu0
    %622 = vmatprep.mubr.bf16.mxu0 0
    %623 = vmatmul.mubr.bf16.gmra.mrb[0].mxu0 %v508
    %v624 = vpop.f32.mrb[0].mxu0
    %v625 = vadd.f32 %v459, %v624
    %v626 = vpop.f32.mrb[0].mxu0
    %v627 = vpop.f32.mrb[0].mxu0
    %v628 = vadd.f32 %v459, %v627
    %v629 = vpop.f32.mrb[0].mxu0
    %630 = vmatprep.mubr.bf16.mxu0 0
    %631 = vmatmul.mubr.bf16.gmra.mrb[0].mxu0 %v511
    %v632 = vpop.f32.mrb[0].mxu0
    %v633 = vadd.f32 %v459, %v632
    %v634 = vpop.f32.mrb[0].mxu0
    %v635 = vpop.f32.mrb[0].mxu0
    %v636 = vadd.f32 %v459, %v635
    %v637 = vpop.f32.mrb[0].mxu0
    %638 = vmatprep.mubr.bf16.mxu0 0
    %639 = vmatmul.mubr.bf16.gmra.mrb[0].mxu0 %v514
    %v640 = vpop.f32.mrb[0].mxu0
    %v641 = vadd.f32 %v459, %v640
    %v642 = vpop.f32.mrb[0].mxu0
    %v643 = vpop.f32.mrb[0].mxu0
    %v644 = vadd.f32 %v459, %v643
    %v645 = vpop.f32.mrb[0].mxu0
    %646 = vmatprep.mubr.bf16.mxu0 0
    %647 = vmatmul.mubr.bf16.gmra.mrb[0].mxu0 %v517
    %v648 = vpop.f32.mrb[0].mxu0
    %v649 = vadd.f32 %v459, %v648
    %v650 = vpop.f32.mrb[0].mxu0
    %v651 = vpop.f32.mrb[0].mxu0
    %v652 = vadd.f32 %v459, %v651
    %v653 = vpop.f32.mrb[0].mxu0
    %654 = vmatprep.mubr.bf16.mxu0 0
    %655 = vmatmul.mubr.bf16.gmra.mrb[0].mxu0 %v520
    %v656 = vpop.f32.mrb[0].mxu0
    %v657 = vadd.f32 %v459, %v656
    %v658 = vpop.f32.mrb[0].mxu0
    %v659 = vpop.f32.mrb[0].mxu0
    %v660 = vadd.f32 %v459, %v659
    %v661 = vpop.f32.mrb[0].mxu0
    %662 = vmatprep.mubr.bf16.mxu0 0
    %663 = vmatmul.mubr.bf16.gmra.mrb[0].mxu0 %v523
    %v664 = vpop.f32.mrb[0].mxu0
    %v665 = vadd.f32 %v459, %v664
    %v666 = vpop.f32.mrb[0].mxu0
    %v667 = vpop.f32.mrb[0].mxu0
    %v668 = vadd.f32 %v459, %v667
    %v669 = vpop.f32.mrb[0].mxu0
    %670 = vmatprep.mubr.bf16.mxu0 0
    %671 = vmatmul.mubr.bf16.gmra.mrb[0].mxu0 %v526
    %v672 = vpop.f32.mrb[0].mxu0
    %v673 = vadd.f32 %v459, %v672
    %v674 = vpop.f32.mrb[0].mxu0
    %v675 = vpop.f32.mrb[0].mxu0
    %v676 = vadd.f32 %v459, %v675
    %v677 = vpop.f32.mrb[0].mxu0
    %678 = vmatprep.mubr.bf16.mxu0 0
    %679 = vmatmul.mubr.bf16.gmra.mrb[0].mxu0 %v529
    %v680 = vpop.f32.mrb[0].mxu0
    %v681 = vadd.f32 %v459, %v680
    %v682 = vpop.f32.mrb[0].mxu0
    %v683 = vpop.f32.mrb[0].mxu0
    %v684 = vadd.f32 %v459, %v683
    %v685 = vpop.f32.mrb[0].mxu0
    %686 = vmatprep.mubr.bf16.mxu0 0
    %687 = vmatmul.mubr.bf16.gmra.mrb[0].mxu0 %v532
    %v688 = vpop.f32.mrb[0].mxu0
    %v689 = vadd.f32 %v459, %v688
    %v690 = vpop.f32.mrb[0].mxu0
    %v691 = vpop.f32.mrb[0].mxu0
    %v692 = vadd.f32 %v459, %v691
    %v693 = vpop.f32.mrb[0].mxu0
    %694 = vdwg.mxu0
    %v695 = vmax.f32 %v569, 0.0
    %v696 = vmax.f32 %v572, 0.0
    %v697 = vmax.f32 %v577, 0.0
    %v698 = vmax.f32 %v580, 0.0
    %v699 = vmax.f32 %v585, 0.0
    %v700 = vmax.f32 %v588, 0.0
    %v701 = vmax.f32 %v593, 0.0
    %v702 = vmax.f32 %v596, 0.0
    %v703 = vmax.f32 %v601, 0.0
    %v704 = vmax.f32 %v604, 0.0
    %v705 = vmax.f32 %v609, 0.0
    %v706 = vmax.f32 %v612, 0.0
    %v707 = vmax.f32 %v617, 0.0
    %v708 = vmax.f32 %v620, 0.0
    %v709 = vmax.f32 %v625, 0.0
    %v710 = vmax.f32 %v628, 0.0
    %v711 = vmax.f32 %v633, 0.0
    %v712 = vmax.f32 %v636, 0.0
    %v713 = vmax.f32 %v641, 0.0
    %v714 = vmax.f32 %v644, 0.0
    %v715 = vmax.f32 %v649, 0.0
    %v716 = vmax.f32 %v652, 0.0
    %v717 = vmax.f32 %v657, 0.0
    %v718 = vmax.f32 %v660, 0.0
    %v719 = vmax.f32 %v665, 0.0
    %v720 = vmax.f32 %v668, 0.0
    %v721 = vmax.f32 %v673, 0.0
    %v722 = vmax.f32 %v676, 0.0
    %v723 = vmax.f32 %v681, 0.0
    %v724 = vmax.f32 %v684, 0.0
    %v725 = vmax.f32 %v689, 0.0
    %v726 = vmax.f32 %v692, 0.0
    %v727 = vpack.c.bf16 %v696, %v695
    %v728 = vpack.c.bf16 %v698, %v697
    %v729 = vpack.c.bf16 %v700, %v699
    %v730 = vpack.c.bf16 %v702, %v701
    %v731 = vpack.c.bf16 %v704, %v703
    %v732 = vpack.c.bf16 %v706, %v705
    %v733 = vpack.c.bf16 %v708, %v707
    %v734 = vpack.c.bf16 %v710, %v709
    %v735 = vpack.c.bf16 %v712, %v711
    %v736 = vpack.c.bf16 %v714, %v713
    %v737 = vpack.c.bf16 %v716, %v715
    %v738 = vpack.c.bf16 %v718, %v717
    %v739 = vpack.c.bf16 %v720, %v719
    %v740 = vpack.c.bf16 %v722, %v721
    %v741 = vpack.c.bf16 %v724, %v723
    %v742 = vpack.c.bf16 %v726, %v725
    %v743 = vld [vmem:[%s13] sm:$0xff]
    %v744 = vld [vmem:[%s13 + $0x8] sm:$0xff]
    %v745 = vld [vmem:[%s13 + $0x10] sm:$0xff]
    %v746 = vld [vmem:[%s13 + $0x18] sm:$0xff]
    %v747 = vld [vmem:[%s13 + $0x20] sm:$0xff]
    %v748 = vld [vmem:[%s13 + $0x28] sm:$0xff]
    %v749 = vld [vmem:[%s13 + $0x30] sm:$0xff]
    %v750 = vld [vmem:[%s13 + $0x38] sm:$0xff]
    %v751 = vld [vmem:[%s13 + $0x40] sm:$0xff]
    %v752 = vld [vmem:[%s13 + $0x48] sm:$0xff]
    %v753 = vld [vmem:[%s13 + $0x50] sm:$0xff]
    %v754 = vld [vmem:[%s13 + $0x58] sm:$0xff]
    %v755 = vld [vmem:[%s13 + $0x60] sm:$0xff]
    %v756 = vld [vmem:[%s13 + $0x68] sm:$0xff]
    %v757 = vld [vmem:[%s13 + $0x70] sm:$0xff]
    %v758 = vld [vmem:[%s13 + $0x78] sm:$0xff]
    %v759 = vld [vmem:[%s13 + $0x80] sm:$0xff]
    %v760 = vld [vmem:[%s13 + $0x88] sm:$0xff]
    %v761 = vld [vmem:[%s13 + $0x90] sm:$0xff]
    %v762 = vld [vmem:[%s13 + $0x98] sm:$0xff]
    %v763 = vld [vmem:[%s13 + $0xa0] sm:$0xff]
    %v764 = vld [vmem:[%s13 + $0xa8] sm:$0xff]
    %v765 = vld [vmem:[%s13 + $0xb0] sm:$0xff]
    %v766 = vld [vmem:[%s13 + $0xb8] sm:$0xff]
    %v767 = vld [vmem:[%s13 + $0xc0] sm:$0xff]
    %v768 = vld [vmem:[%s13 + $0xc8] sm:$0xff]
    %v769 = vld [vmem:[%s13 + $0xd0] sm:$0xff]
    %v770 = vld [vmem:[%s13 + $0xd8] sm:$0xff]
    %v771 = vld [vmem:[%s13 + $0xe0] sm:$0xff]
    %v772 = vld [vmem:[%s13 + $0xe8] sm:$0xff]
    %v773 = vld [vmem:[%s13 + $0xf0] sm:$0xff]
    %v774 = vld [vmem:[%s13 + $0xf8] sm:$0xff]
    %v775 = vld [vmem:[%s13 + $0x100] sm:$0xff]
    %v776 = vld [vmem:[%s13 + $0x108] sm:$0xff]
    %v777 = vld [vmem:[%s13 + $0x110] sm:$0xff]
    %v778 = vld [vmem:[%s13 + $0x118] sm:$0xff]
    %v779 = vld [vmem:[%s13 + $0x120] sm:$0xff]
    %v780 = vld [vmem:[%s13 + $0x128] sm:$0xff]
    %v781 = vld [vmem:[%s13 + $0x130] sm:$0xff]
    %v782 = vld [vmem:[%s13 + $0x138] sm:$0xff]
    %v783 = vld [vmem:[%s13 + $0x140] sm:$0xff]
    %v784 = vld [vmem:[%s13 + $0x148] sm:$0xff]
    %v785 = vld [vmem:[%s13 + $0x150] sm:$0xff]
    %v786 = vld [vmem:[%s13 + $0x158] sm:$0xff]
    %v787 = vld [vmem:[%s13 + $0x160] sm:$0xff]
    %v788 = vld [vmem:[%s13 + $0x168] sm:$0xff]
    %v789 = vld [vmem:[%s13 + $0x170] sm:$0xff]
    %v790 = vld [vmem:[%s13 + $0x178] sm:$0xff]
    %v791 = vld [vmem:[%s13 + $0x180] sm:$0xff]
    %v792 = vld [vmem:[%s13 + $0x188] sm:$0xff]
    %v793 = vld [vmem:[%s13 + $0x190] sm:$0xff]
    %v794 = vld [vmem:[%s13 + $0x198] sm:$0xff]
    %v795 = vld [vmem:[%s13 + $0x1a0] sm:$0xff]
    %v796 = vld [vmem:[%s13 + $0x1a8] sm:$0xff]
    %v797 = vld [vmem:[%s13 + $0x1b0] sm:$0xff]
    %v798 = vld [vmem:[%s13 + $0x1b8] sm:$0xff]
    %v799 = vld [vmem:[%s13 + $0x1c0] sm:$0xff]
    %v800 = vld [vmem:[%s13 + $0x1c8] sm:$0xff]
    %v801 = vld [vmem:[%s13 + $0x1d0] sm:$0xff]
    %v802 = vld [vmem:[%s13 + $0x1d8] sm:$0xff]
    %v803 = vld [vmem:[%s13 + $0x1e0] sm:$0xff]
    %v804 = vld [vmem:[%s13 + $0x1e8] sm:$0xff]
    %v805 = vld [vmem:[%s13 + $0x1f0] sm:$0xff]
    %v806 = vld [vmem:[%s13 + $0x1f8] sm:$0xff]
    %v807 = vld [vmem:[%s15] sm:$0xff]
    %v809 = vlaneseq
    %v810 = vshrl.u32 %v809, 7
    %v811 = vsub.s32 0, %v810
    %v812 = vrot.slane %v807, %v811
    %v813 = vlaneseq
    %v814 = vshrl.u32 %v813, 7
    %v815 = vsub.s32 1, %v814
    %v816 = vrot.slane %v807, %v815
    %v817 = vlaneseq
    %v818 = vshrl.u32 %v817, 7
    %v819 = vsub.s32 2, %v818
    %v820 = vrot.slane %v807, %v819
    %v821 = vlaneseq
    %v822 = vshrl.u32 %v821, 7
    %v823 = vsub.s32 3, %v822
    %v824 = vrot.slane %v807, %v823
    %v825 = vlaneseq
    %v826 = vshrl.u32 %v825, 7
    %v827 = vsub.s32 4, %v826
    %v828 = vrot.slane %v807, %v827
    %v829 = vlaneseq
    %v830 = vshrl.u32 %v829, 7
    %v831 = vsub.s32 5, %v830
    %v832 = vrot.slane %v807, %v831
    %v833 = vlaneseq
    %v834 = vshrl.u32 %v833, 7
    %v835 = vsub.s32 6, %v834
    %v836 = vrot.slane %v807, %v835
    %v837 = vlaneseq
    %v838 = vshrl.u32 %v837, 7
    %v839 = vsub.s32 7, %v838
    %v840 = vrot.slane %v807, %v839
    %v913 = vunpack.c.l.b16 %v743
    %v914 = vunpack.c.h.b16 %v743
    %v915 = vunpack.c.l.b16 %v744
    %v916 = vunpack.c.h.b16 %v744
    %v917 = vunpack.c.l.b16 %v745
    %v918 = vunpack.c.h.b16 %v745
    %v919 = vunpack.c.l.b16 %v746
    %v920 = vunpack.c.h.b16 %v746
    %v921 = vunpack.c.l.b16 %v747
    %v922 = vunpack.c.h.b16 %v747
    %v923 = vunpack.c.l.b16 %v748
    %v924 = vunpack.c.h.b16 %v748
    %v925 = vunpack.c.l.b16 %v749
    %v926 = vunpack.c.h.b16 %v749
    %v927 = vunpack.c.l.b16 %v750
    %v928 = vunpack.c.h.b16 %v750
    %v929 = vunpack.c.l.b16 %v751
    %v930 = vunpack.c.h.b16 %v751
    %v931 = vunpack.c.l.b16 %v752
    %v932 = vunpack.c.h.b16 %v752
    %v933 = vunpack.c.l.b16 %v753
    %v934 = vunpack.c.h.b16 %v753
    %v935 = vunpack.c.l.b16 %v754
    %v936 = vunpack.c.h.b16 %v754
    %v937 = vunpack.c.l.b16 %v755
    %v938 = vunpack.c.h.b16 %v755
    %v939 = vunpack.c.l.b16 %v756
    %v940 = vunpack.c.h.b16 %v756
    %v941 = vunpack.c.l.b16 %v757
    %v942 = vunpack.c.h.b16 %v757
    %v943 = vunpack.c.l.b16 %v758
    %v944 = vunpack.c.h.b16 %v758
    %v945 = vunpack.c.l.b16 %v759
    %v946 = vunpack.c.h.b16 %v759
    %v947 = vunpack.c.l.b16 %v760
    %v948 = vunpack.c.h.b16 %v760
    %v949 = vunpack.c.l.b16 %v761
    %v950 = vunpack.c.h.b16 %v761
    %v951 = vunpack.c.l.b16 %v762
    %v952 = vunpack.c.h.b16 %v762
    %v953 = vunpack.c.l.b16 %v763
    %v954 = vunpack.c.h.b16 %v763
    %v955 = vunpack.c.l.b16 %v764
    %v956 = vunpack.c.h.b16 %v764
    %v957 = vunpack.c.l.b16 %v765
    %v958 = vunpack.c.h.b16 %v765
    %v959 = vunpack.c.l.b16 %v766
    %v960 = vunpack.c.h.b16 %v766
    %v961 = vunpack.c.l.b16 %v767
    %v962 = vunpack.c.h.b16 %v767
    %v963 = vunpack.c.l.b16 %v768
    %v964 = vunpack.c.h.b16 %v768
    %v965 = vunpack.c.l.b16 %v769
    %v966 = vunpack.c.h.b16 %v769
    %v967 = vunpack.c.l.b16 %v770
    %v968 = vunpack.c.h.b16 %v770
    %v969 = vunpack.c.l.b16 %v771
    %v970 = vunpack.c.h.b16 %v771
    %v971 = vunpack.c.l.b16 %v772
    %v972 = vunpack.c.h.b16 %v772
    %v973 = vunpack.c.l.b16 %v773
    %v974 = vunpack.c.h.b16 %v773
    %v975 = vunpack.c.l.b16 %v774
    %v976 = vunpack.c.h.b16 %v774
    %v977 = vunpack.c.l.b16 %v775
    %v978 = vunpack.c.h.b16 %v775
    %v979 = vunpack.c.l.b16 %v776
    %v980 = vunpack.c.h.b16 %v776
    %v981 = vunpack.c.l.b16 %v777
    %v982 = vunpack.c.h.b16 %v777
    %v983 = vunpack.c.l.b16 %v778
    %v984 = vunpack.c.h.b16 %v778
    %v985 = vunpack.c.l.b16 %v779
    %v986 = vunpack.c.h.b16 %v779
    %v987 = vunpack.c.l.b16 %v780
    %v988 = vunpack.c.h.b16 %v780
    %v989 = vunpack.c.l.b16 %v781
    %v990 = vunpack.c.h.b16 %v781
    %v991 = vunpack.c.l.b16 %v782
    %v992 = vunpack.c.h.b16 %v782
    %v993 = vunpack.c.l.b16 %v783
    %v994 = vunpack.c.h.b16 %v783
    %v995 = vunpack.c.l.b16 %v784
    %v996 = vunpack.c.h.b16 %v784
    %v997 = vunpack.c.l.b16 %v785
    %v998 = vunpack.c.h.b16 %v785
    %v999 = vunpack.c.l.b16 %v786
    %v1000 = vunpack.c.h.b16 %v786
    %v1001 = vunpack.c.l.b16 %v787
    %v1002 = vunpack.c.h.b16 %v787
    %v1003 = vunpack.c.l.b16 %v788
    %v1004 = vunpack.c.h.b16 %v788
    %v1005 = vunpack.c.l.b16 %v789
    %v1006 = vunpack.c.h.b16 %v789
    %v1007 = vunpack.c.l.b16 %v790
    %v1008 = vunpack.c.h.b16 %v790
    %v1009 = vunpack.c.l.b16 %v791
    %v1010 = vunpack.c.h.b16 %v791
    %v1011 = vunpack.c.l.b16 %v792
    %v1012 = vunpack.c.h.b16 %v792
    %v1013 = vunpack.c.l.b16 %v793
    %v1014 = vunpack.c.h.b16 %v793
    %v1015 = vunpack.c.l.b16 %v794
    %v1016 = vunpack.c.h.b16 %v794
    %v1017 = vunpack.c.l.b16 %v795
    %v1018 = vunpack.c.h.b16 %v795
    %v1019 = vunpack.c.l.b16 %v796
    %v1020 = vunpack.c.h.b16 %v796
    %v1021 = vunpack.c.l.b16 %v797
    %v1022 = vunpack.c.h.b16 %v797
    %v1023 = vunpack.c.l.b16 %v798
    %v1024 = vunpack.c.h.b16 %v798
    %v1025 = vunpack.c.l.b16 %v799
    %v1026 = vunpack.c.h.b16 %v799
    %v1027 = vunpack.c.l.b16 %v800
    %v1028 = vunpack.c.h.b16 %v800
    %v1029 = vunpack.c.l.b16 %v801
    %v1030 = vunpack.c.h.b16 %v801
    %v1031 = vunpack.c.l.b16 %v802
    %v1032 = vunpack.c.h.b16 %v802
    %v1033 = vunpack.c.l.b16 %v803
    %v1034 = vunpack.c.h.b16 %v803
    %v1035 = vunpack.c.l.b16 %v804
    %v1036 = vunpack.c.h.b16 %v804
    %v1037 = vunpack.c.l.b16 %v805
    %v1038 = vunpack.c.h.b16 %v805
    %v1039 = vunpack.c.l.b16 %v806
    %v1040 = vunpack.c.h.b16 %v806
    %v1041 = vpack.c.b16 %v921, %v913
    %v1042 = vpack.c.b16 %v922, %v914
    %v1043 = vpack.c.b16 %v923, %v915
    %v1044 = vpack.c.b16 %v924, %v916
    %v1045 = vpack.c.b16 %v925, %v917
    %v1046 = vpack.c.b16 %v926, %v918
    %v1047 = vpack.c.b16 %v927, %v919
    %v1048 = vpack.c.b16 %v928, %v920
    %v1049 = vpack.c.b16 %v937, %v929
    %v1050 = vpack.c.b16 %v938, %v930
    %v1051 = vpack.c.b16 %v939, %v931
    %v1052 = vpack.c.b16 %v940, %v932
    %v1053 = vpack.c.b16 %v941, %v933
    %v1054 = vpack.c.b16 %v942, %v934
    %v1055 = vpack.c.b16 %v943, %v935
    %v1056 = vpack.c.b16 %v944, %v936
    %v1057 = vpack.c.b16 %v953, %v945
    %v1058 = vpack.c.b16 %v954, %v946
    %v1059 = vpack.c.b16 %v955, %v947
    %v1060 = vpack.c.b16 %v956, %v948
    %v1061 = vpack.c.b16 %v957, %v949
    %v1062 = vpack.c.b16 %v958, %v950
    %v1063 = vpack.c.b16 %v959, %v951
    %v1064 = vpack.c.b16 %v960, %v952
    %v1065 = vpack.c.b16 %v969, %v961
    %v1066 = vpack.c.b16 %v970, %v962
    %v1067 = vpack.c.b16 %v971, %v963
    %v1068 = vpack.c.b16 %v972, %v964
    %v1069 = vpack.c.b16 %v973, %v965
    %v1070 = vpack.c.b16 %v974, %v966
    %v1071 = vpack.c.b16 %v975, %v967
    %v1072 = vpack.c.b16 %v976, %v968
    %v1073 = vpack.c.b16 %v985, %v977
    %v1074 = vpack.c.b16 %v986, %v978
    %v1075 = vpack.c.b16 %v987, %v979
    %v1076 = vpack.c.b16 %v988, %v980
    %v1077 = vpack.c.b16 %v989, %v981
    %v1078 = vpack.c.b16 %v990, %v982
    %v1079 = vpack.c.b16 %v991, %v983
    %v1080 = vpack.c.b16 %v992, %v984
    %v1081 = vpack.c.b16 %v1001, %v993
    %v1082 = vpack.c.b16 %v1002, %v994
    %v1083 = vpack.c.b16 %v1003, %v995
    %v1084 = vpack.c.b16 %v1004, %v996
    %v1085 = vpack.c.b16 %v1005, %v997
    %v1086 = vpack.c.b16 %v1006, %v998
    %v1087 = vpack.c.b16 %v1007, %v999
    %v1088 = vpack.c.b16 %v1008, %v1000
    %v1089 = vpack.c.b16 %v1017, %v1009
    %v1090 = vpack.c.b16 %v1018, %v1010
    %v1091 = vpack.c.b16 %v1019, %v1011
    %v1092 = vpack.c.b16 %v1020, %v1012
    %v1093 = vpack.c.b16 %v1021, %v1013
    %v1094 = vpack.c.b16 %v1022, %v1014
    %v1095 = vpack.c.b16 %v1023, %v1015
    %v1096 = vpack.c.b16 %v1024, %v1016
    %v1097 = vpack.c.b16 %v1033, %v1025
    %v1098 = vpack.c.b16 %v1034, %v1026
    %v1099 = vpack.c.b16 %v1035, %v1027
    %v1100 = vpack.c.b16 %v1036, %v1028
    %v1101 = vpack.c.b16 %v1037, %v1029
    %v1102 = vpack.c.b16 %v1038, %v1030
    %v1103 = vpack.c.b16 %v1039, %v1031
    %v1104 = vpack.c.b16 %v1040, %v1032
    %1169 = vmatprep.subr.bf16.mxu0 %v1042
    %1170 = vmatpush1.bf16.msra.mxu0 %v1041
    %1171 = vmatprep.subr.bf16.mxu0 %v1050
    %1172 = vmatpush1.bf16.msra.mxu0 %v1049
    %1173 = vmatprep.subr.bf16.mxu0 %v1058
    %1174 = vmatpush1.bf16.msra.mxu0 %v1057
    %1175 = vmatprep.subr.bf16.mxu0 %v1066
    %1176 = vmatpush1.bf16.msra.mxu0 %v1065
    %1177 = vmatprep.subr.bf16.mxu0 %v1074
    %1178 = vmatpush1.bf16.msra.mxu0 %v1073
    %1179 = vmatprep.subr.bf16.mxu0 %v1082
    %1180 = vmatpush1.bf16.msra.mxu0 %v1081
    %1181 = vmatprep.subr.bf16.mxu0 %v1090
    %1182 = vmatpush1.bf16.msra.mxu0 %v1089
    %1183 = vmatprep.subr.bf16.mxu0 %v1098
    %1184 = vmatpush1.bf16.msra.mxu0 %v1097
    %1185 = vmatprep.subr.bf16.mxu0 0
    %1186 = vmatpush1.bf16.msra.mxu0 0
    %1187 = vmatprep.subr.bf16.mxu0 0
    %1188 = vmatpush1.bf16.msra.mxu0 0
    %1189 = vmatprep.subr.bf16.mxu0 0
    %1190 = vmatpush1.bf16.msra.mxu0 0
    %1191 = vmatprep.subr.bf16.mxu0 0
    %1192 = vmatpush1.bf16.msra.mxu0 0
    %1193 = vmatprep.subr.bf16.mxu0 0
    %1194 = vmatpush1.bf16.msra.mxu0 0
    %1195 = vmatprep.subr.bf16.mxu0 0
    %1196 = vmatpush1.bf16.msra.mxu0 0
    %1197 = vmatprep.subr.bf16.mxu0 0
    %1198 = vmatpush1.bf16.msra.mxu0 0
    %1199 = vmatprep.subr.bf16.mxu0 0
    %1200 = vmatpush1.bf16.msra.mxu0 0
    %1201 = vmatprep.mubr.bf16.mxu0 0
    %1202 = vmatmul.mubr.bf16.gmra.mrb[0].mxu0 %v727
    %v1203 = vpop.f32.mrb[0].mxu0
    %v1204 = vadd.f32 %v812, %v1203
    %v1205 = vpop.f32.mrb[0].mxu0
    %v1206 = vadd.f32 %v816, %v1205
    %v1207 = vpop.f32.mrb[0].mxu0
    %v1208 = vadd.f32 %v812, %v1207
    %v1209 = vpop.f32.mrb[0].mxu0
    %v1210 = vadd.f32 %v816, %v1209
    %1211 = vmatprep.mubr.bf16.mxu0 0
    %1212 = vmatmul.mubr.bf16.gmra.mrb[0].mxu0 %v728
    %v1213 = vpop.f32.mrb[0].mxu0
    %v1214 = vadd.f32 %v812, %v1213
    %v1215 = vpop.f32.mrb[0].mxu0
    %v1216 = vadd.f32 %v816, %v1215
    %v1217 = vpop.f32.mrb[0].mxu0
    %v1218 = vadd.f32 %v812, %v1217
    %v1219 = vpop.f32.mrb[0].mxu0
    %v1220 = vadd.f32 %v816, %v1219
    %1221 = vmatprep.mubr.bf16.mxu0 0
    %1222 = vmatmul.mubr.bf16.gmra.mrb[0].mxu0 %v729
    %v1223 = vpop.f32.mrb[0].mxu0
    %v1224 = vadd.f32 %v812, %v1223
    %v1225 = vpop.f32.mrb[0].mxu0
    %v1226 = vadd.f32 %v816, %v1225
    %v1227 = vpop.f32.mrb[0].mxu0
    %v1228 = vadd.f32 %v812, %v1227
    %v1229 = vpop.f32.mrb[0].mxu0
    %v1230 = vadd.f32 %v816, %v1229
    %1231 = vmatprep.mubr.bf16.mxu0 0
    %1232 = vmatmul.mubr.bf16.gmra.mrb[0].mxu0 %v730
    %v1233 = vpop.f32.mrb[0].mxu0
    %v1234 = vadd.f32 %v812, %v1233
    %v1235 = vpop.f32.mrb[0].mxu0
    %v1236 = vadd.f32 %v816, %v1235
    %v1237 = vpop.f32.mrb[0].mxu0
    %v1238 = vadd.f32 %v812, %v1237
    %v1239 = vpop.f32.mrb[0].mxu0
    %v1240 = vadd.f32 %v816, %v1239
    %1241 = vmatprep.mubr.bf16.mxu0 0
    %1242 = vmatmul.mubr.bf16.gmra.mrb[0].mxu0 %v731
    %v1243 = vpop.f32.mrb[0].mxu0
    %v1244 = vadd.f32 %v812, %v1243
    %v1245 = vpop.f32.mrb[0].mxu0
    %v1246 = vadd.f32 %v816, %v1245
    %v1247 = vpop.f32.mrb[0].mxu0
    %v1248 = vadd.f32 %v812, %v1247
    %v1249 = vpop.f32.mrb[0].mxu0
    %v1250 = vadd.f32 %v816, %v1249
    %1251 = vmatprep.mubr.bf16.mxu0 0
    %1252 = vmatmul.mubr.bf16.gmra.mrb[0].mxu0 %v732
    %v1253 = vpop.f32.mrb[0].mxu0
    %v1254 = vadd.f32 %v812, %v1253
    %v1255 = vpop.f32.mrb[0].mxu0
    %v1256 = vadd.f32 %v816, %v1255
    %v1257 = vpop.f32.mrb[0].mxu0
    %v1258 = vadd.f32 %v812, %v1257
    %v1259 = vpop.f32.mrb[0].mxu0
    %v1260 = vadd.f32 %v816, %v1259
    %1261 = vmatprep.mubr.bf16.mxu0 0
    %1262 = vmatmul.mubr.bf16.gmra.mrb[0].mxu0 %v733
    %v1263 = vpop.f32.mrb[0].mxu0
    %v1264 = vadd.f32 %v812, %v1263
    %v1265 = vpop.f32.mrb[0].mxu0
    %v1266 = vadd.f32 %v816, %v1265
    %v1267 = vpop.f32.mrb[0].mxu0
    %v1268 = vadd.f32 %v812, %v1267
    %v1269 = vpop.f32.mrb[0].mxu0
    %v1270 = vadd.f32 %v816, %v1269
    %1271 = vmatprep.mubr.bf16.mxu0 0
    %1272 = vmatmul.mubr.bf16.gmra.mrb[0].mxu0 %v734
    %v1273 = vpop.f32.mrb[0].mxu0
    %v1274 = vadd.f32 %v812, %v1273
    %v1275 = vpop.f32.mrb[0].mxu0
    %v1276 = vadd.f32 %v816, %v1275
    %v1277 = vpop.f32.mrb[0].mxu0
    %v1278 = vadd.f32 %v812, %v1277
    %v1279 = vpop.f32.mrb[0].mxu0
    %v1280 = vadd.f32 %v816, %v1279
    %1281 = vmatprep.mubr.bf16.mxu0 0
    %1282 = vmatmul.mubr.bf16.gmra.mrb[0].mxu0 %v735
    %v1283 = vpop.f32.mrb[0].mxu0
    %v1284 = vadd.f32 %v812, %v1283
    %v1285 = vpop.f32.mrb[0].mxu0
    %v1286 = vadd.f32 %v816, %v1285
    %v1287 = vpop.f32.mrb[0].mxu0
    %v1288 = vadd.f32 %v812, %v1287
    %v1289 = vpop.f32.mrb[0].mxu0
    %v1290 = vadd.f32 %v816, %v1289
    %1291 = vmatprep.mubr.bf16.mxu0 0
    %1292 = vmatmul.mubr.bf16.gmra.mrb[0].mxu0 %v736
    %v1293 = vpop.f32.mrb[0].mxu0
    %v1294 = vadd.f32 %v812, %v1293
    %v1295 = vpop.f32.mrb[0].mxu0
    %v1296 = vadd.f32 %v816, %v1295
    %v1297 = vpop.f32.mrb[0].mxu0
    %v1298 = vadd.f32 %v812, %v1297
    %v1299 = vpop.f32.mrb[0].mxu0
    %v1300 = vadd.f32 %v816, %v1299
    %1301 = vmatprep.mubr.bf16.mxu0 0
    %1302 = vmatmul.mubr.bf16.gmra.mrb[0].mxu0 %v737
    %v1303 = vpop.f32.mrb[0].mxu0
    %v1304 = vadd.f32 %v812, %v1303
    %v1305 = vpop.f32.mrb[0].mxu0
    %v1306 = vadd.f32 %v816, %v1305
    %v1307 = vpop.f32.mrb[0].mxu0
    %v1308 = vadd.f32 %v812, %v1307
    %v1309 = vpop.f32.mrb[0].mxu0
    %v1310 = vadd.f32 %v816, %v1309
    %1311 = vmatprep.mubr.bf16.mxu0 0
    %1312 = vmatmul.mubr.bf16.gmra.mrb[0].mxu0 %v738
    %v1313 = vpop.f32.mrb[0].mxu0
    %v1314 = vadd.f32 %v812, %v1313
    %v1315 = vpop.f32.mrb[0].mxu0
    %v1316 = vadd.f32 %v816, %v1315
    %v1317 = vpop.f32.mrb[0].mxu0
    %v1318 = vadd.f32 %v812, %v1317
    %v1319 = vpop.f32.mrb[0].mxu0
    %v1320 = vadd.f32 %v816, %v1319
    %1321 = vmatprep.mubr.bf16.mxu0 0
    %1322 = vmatmul.mubr.bf16.gmra.mrb[0].mxu0 %v739
    %v1323 = vpop.f32.mrb[0].mxu0
    %v1324 = vadd.f32 %v812, %v1323
    %v1325 = vpop.f32.mrb[0].mxu0
    %v1326 = vadd.f32 %v816, %v1325
    %v1327 = vpop.f32.mrb[0].mxu0
    %v1328 = vadd.f32 %v812, %v1327
    %v1329 = vpop.f32.mrb[0].mxu0
    %v1330 = vadd.f32 %v816, %v1329
    %1331 = vmatprep.mubr.bf16.mxu0 0
    %1332 = vmatmul.mubr.bf16.gmra.mrb[0].mxu0 %v740
    %v1333 = vpop.f32.mrb[0].mxu0
    %v1334 = vadd.f32 %v812, %v1333
    %v1335 = vpop.f32.mrb[0].mxu0
    %v1336 = vadd.f32 %v816, %v1335
    %v1337 = vpop.f32.mrb[0].mxu0
    %v1338 = vadd.f32 %v812, %v1337
    %v1339 = vpop.f32.mrb[0].mxu0
    %v1340 = vadd.f32 %v816, %v1339
    %1341 = vmatprep.mubr.bf16.mxu0 0
    %1342 = vmatmul.mubr.bf16.gmra.mrb[0].mxu0 %v741
    %v1343 = vpop.f32.mrb[0].mxu0
    %v1344 = vadd.f32 %v812, %v1343
    %v1345 = vpop.f32.mrb[0].mxu0
    %v1346 = vadd.f32 %v816, %v1345
    %v1347 = vpop.f32.mrb[0].mxu0
    %v1348 = vadd.f32 %v812, %v1347
    %v1349 = vpop.f32.mrb[0].mxu0
    %v1350 = vadd.f32 %v816, %v1349
    %1351 = vmatprep.mubr.bf16.mxu0 0
    %1352 = vmatmul.mubr.bf16.gmra.mrb[0].mxu0 %v742
    %v1353 = vpop.f32.mrb[0].mxu0
    %v1354 = vadd.f32 %v812, %v1353
    %v1355 = vpop.f32.mrb[0].mxu0
    %v1356 = vadd.f32 %v816, %v1355
    %v1357 = vpop.f32.mrb[0].mxu0
    %v1358 = vadd.f32 %v812, %v1357
    %v1359 = vpop.f32.mrb[0].mxu0
    %v1360 = vadd.f32 %v816, %v1359
    %1361 = vdwg.mxu0
    %1362 = vmatprep.subr.bf16.mxu0 %v1044
    %1363 = vmatpush1.bf16.msra.mxu0 %v1043
    %1364 = vmatprep.subr.bf16.mxu0 %v1052
    %1365 = vmatpush1.bf16.msra.mxu0 %v1051
    %1366 = vmatprep.subr.bf16.mxu0 %v1060
    %1367 = vmatpush1.bf16.msra.mxu0 %v1059
    %1368 = vmatprep.subr.bf16.mxu0 %v1068
    %1369 = vmatpush1.bf16.msra.mxu0 %v1067
    %1370 = vmatprep.subr.bf16.mxu0 %v1076
    %1371 = vmatpush1.bf16.msra.mxu0 %v1075
    %1372 = vmatprep.subr.bf16.mxu0 %v1084
    %1373 = vmatpush1.bf16.msra.mxu0 %v1083
    %1374 = vmatprep.subr.bf16.mxu0 %v1092
    %1375 = vmatpush1.bf16.msra.mxu0 %v1091
    %1376 = vmatprep.subr.bf16.mxu0 %v1100
    %1377 = vmatpush1.bf16.msra.mxu0 %v1099
    %1378 = vmatprep.subr.bf16.mxu0 0
    %1379 = vmatpush1.bf16.msra.mxu0 0
    %1380 = vmatprep.subr.bf16.mxu0 0
    %1381 = vmatpush1.bf16.msra.mxu0 0
    %1382 = vmatprep.subr.bf16.mxu0 0
    %1383 = vmatpush1.bf16.msra.mxu0 0
    %1384 = vmatprep.subr.bf16.mxu0 0
    %1385 = vmatpush1.bf16.msra.mxu0 0
    %1386 = vmatprep.subr.bf16.mxu0 0
    %1387 = vmatpush1.bf16.msra.mxu0 0
    %1388 = vmatprep.subr.bf16.mxu0 0
    %1389 = vmatpush1.bf16.msra.mxu0 0
    %1390 = vmatprep.subr.bf16.mxu0 0
    %1391 = vmatpush1.bf16.msra.mxu0 0
    %1392 = vmatprep.subr.bf16.mxu0 0
    %1393 = vmatpush1.bf16.msra.mxu0 0
    %1394 = vmatprep.mubr.bf16.mxu0 0
    %1395 = vmatmul.mubr.bf16.gmra.mrb[0].mxu0 %v727
    %v1396 = vpop.f32.mrb[0].mxu0
    %v1397 = vadd.f32 %v820, %v1396
    %v1398 = vpop.f32.mrb[0].mxu0
    %v1399 = vadd.f32 %v824, %v1398
    %v1400 = vpop.f32.mrb[0].mxu0
    %v1401 = vadd.f32 %v820, %v1400
    %v1402 = vpop.f32.mrb[0].mxu0
    %v1403 = vadd.f32 %v824, %v1402
    %1404 = vmatprep.mubr.bf16.mxu0 0
    %1405 = vmatmul.mubr.bf16.gmra.mrb[0].mxu0 %v728
    %v1406 = vpop.f32.mrb[0].mxu0
    %v1407 = vadd.f32 %v820, %v1406
    %v1408 = vpop.f32.mrb[0].mxu0
    %v1409 = vadd.f32 %v824, %v1408
    %v1410 = vpop.f32.mrb[0].mxu0
    %v1411 = vadd.f32 %v820, %v1410
    %v1412 = vpop.f32.mrb[0].mxu0
    %v1413 = vadd.f32 %v824, %v1412
    %1414 = vmatprep.mubr.bf16.mxu0 0
    %1415 = vmatmul.mubr.bf16.gmra.mrb[0].mxu0 %v729
    %v1416 = vpop.f32.mrb[0].mxu0
    %v1417 = vadd.f32 %v820, %v1416
    %v1418 = vpop.f32.mrb[0].mxu0
    %v1419 = vadd.f32 %v824, %v1418
    %v1420 = vpop.f32.mrb[0].mxu0
    %v1421 = vadd.f32 %v820, %v1420
    %v1422 = vpop.f32.mrb[0].mxu0
    %v1423 = vadd.f32 %v824, %v1422
    %1424 = vmatprep.mubr.bf16.mxu0 0
    %1425 = vmatmul.mubr.bf16.gmra.mrb[0].mxu0 %v730
    %v1426 = vpop.f32.mrb[0].mxu0
    %v1427 = vadd.f32 %v820, %v1426
    %v1428 = vpop.f32.mrb[0].mxu0
    %v1429 = vadd.f32 %v824, %v1428
    %v1430 = vpop.f32.mrb[0].mxu0
    %v1431 = vadd.f32 %v820, %v1430
    %v1432 = vpop.f32.mrb[0].mxu0
    %v1433 = vadd.f32 %v824, %v1432
    %1434 = vmatprep.mubr.bf16.mxu0 0
    %1435 = vmatmul.mubr.bf16.gmra.mrb[0].mxu0 %v731
    %v1436 = vpop.f32.mrb[0].mxu0
    %v1437 = vadd.f32 %v820, %v1436
    %v1438 = vpop.f32.mrb[0].mxu0
    %v1439 = vadd.f32 %v824, %v1438
    %v1440 = vpop.f32.mrb[0].mxu0
    %v1441 = vadd.f32 %v820, %v1440
    %v1442 = vpop.f32.mrb[0].mxu0
    %v1443 = vadd.f32 %v824, %v1442
    %1444 = vmatprep.mubr.bf16.mxu0 0
    %1445 = vmatmul.mubr.bf16.gmra.mrb[0].mxu0 %v732
    %v1446 = vpop.f32.mrb[0].mxu0
    %v1447 = vadd.f32 %v820, %v1446
    %v1448 = vpop.f32.mrb[0].mxu0
    %v1449 = vadd.f32 %v824, %v1448
    %v1450 = vpop.f32.mrb[0].mxu0
    %v1451 = vadd.f32 %v820, %v1450
    %v1452 = vpop.f32.mrb[0].mxu0
    %v1453 = vadd.f32 %v824, %v1452
    %1454 = vmatprep.mubr.bf16.mxu0 0
    %1455 = vmatmul.mubr.bf16.gmra.mrb[0].mxu0 %v733
    %v1456 = vpop.f32.mrb[0].mxu0
    %v1457 = vadd.f32 %v820, %v1456
    %v1458 = vpop.f32.mrb[0].mxu0
    %v1459 = vadd.f32 %v824, %v1458
    %v1460 = vpop.f32.mrb[0].mxu0
    %v1461 = vadd.f32 %v820, %v1460
    %v1462 = vpop.f32.mrb[0].mxu0
    %v1463 = vadd.f32 %v824, %v1462
    %1464 = vmatprep.mubr.bf16.mxu0 0
    %1465 = vmatmul.mubr.bf16.gmra.mrb[0].mxu0 %v734
    %v1466 = vpop.f32.mrb[0].mxu0
    %v1467 = vadd.f32 %v820, %v1466
    %v1468 = vpop.f32.mrb[0].mxu0
    %v1469 = vadd.f32 %v824, %v1468
    %v1470 = vpop.f32.mrb[0].mxu0
    %v1471 = vadd.f32 %v820, %v1470
    %v1472 = vpop.f32.mrb[0].mxu0
    %v1473 = vadd.f32 %v824, %v1472
    %1474 = vmatprep.mubr.bf16.mxu0 0
    %1475 = vmatmul.mubr.bf16.gmra.mrb[0].mxu0 %v735
    %v1476 = vpop.f32.mrb[0].mxu0
    %v1477 = vadd.f32 %v820, %v1476
    %v1478 = vpop.f32.mrb[0].mxu0
    %v1479 = vadd.f32 %v824, %v1478
    %v1480 = vpop.f32.mrb[0].mxu0
    %v1481 = vadd.f32 %v820, %v1480
    %v1482 = vpop.f32.mrb[0].mxu0
    %v1483 = vadd.f32 %v824, %v1482
    %1484 = vmatprep.mubr.bf16.mxu0 0
    %1485 = vmatmul.mubr.bf16.gmra.mrb[0].mxu0 %v736
    %v1486 = vpop.f32.mrb[0].mxu0
    %v1487 = vadd.f32 %v820, %v1486
    %v1488 = vpop.f32.mrb[0].mxu0
    %v1489 = vadd.f32 %v824, %v1488
    %v1490 = vpop.f32.mrb[0].mxu0
    %v1491 = vadd.f32 %v820, %v1490
    %v1492 = vpop.f32.mrb[0].mxu0
    %v1493 = vadd.f32 %v824, %v1492
    %1494 = vmatprep.mubr.bf16.mxu0 0
    %1495 = vmatmul.mubr.bf16.gmra.mrb[0].mxu0 %v737
    %v1496 = vpop.f32.mrb[0].mxu0
    %v1497 = vadd.f32 %v820, %v1496
    %v1498 = vpop.f32.mrb[0].mxu0
    %v1499 = vadd.f32 %v824, %v1498
    %v1500 = vpop.f32.mrb[0].mxu0
    %v1501 = vadd.f32 %v820, %v1500
    %v1502 = vpop.f32.mrb[0].mxu0
    %v1503 = vadd.f32 %v824, %v1502
    %1504 = vmatprep.mubr.bf16.mxu0 0
    %1505 = vmatmul.mubr.bf16.gmra.mrb[0].mxu0 %v738
    %v1506 = vpop.f32.mrb[0].mxu0
    %v1507 = vadd.f32 %v820, %v1506
    %v1508 = vpop.f32.mrb[0].mxu0
    %v1509 = vadd.f32 %v824, %v1508
    %v1510 = vpop.f32.mrb[0].mxu0
    %v1511 = vadd.f32 %v820, %v1510
    %v1512 = vpop.f32.mrb[0].mxu0
    %v1513 = vadd.f32 %v824, %v1512
    %1514 = vmatprep.mubr.bf16.mxu0 0
    %1515 = vmatmul.mubr.bf16.gmra.mrb[0].mxu0 %v739
    %v1516 = vpop.f32.mrb[0].mxu0
    %v1517 = vadd.f32 %v820, %v1516
    %v1518 = vpop.f32.mrb[0].mxu0
    %v1519 = vadd.f32 %v824, %v1518
    %v1520 = vpop.f32.mrb[0].mxu0
    %v1521 = vadd.f32 %v820, %v1520
    %v1522 = vpop.f32.mrb[0].mxu0
    %v1523 = vadd.f32 %v824, %v1522
    %1524 = vmatprep.mubr.bf16.mxu0 0
    %1525 = vmatmul.mubr.bf16.gmra.mrb[0].mxu0 %v740
    %v1526 = vpop.f32.mrb[0].mxu0
    %v1527 = vadd.f32 %v820, %v1526
    %v1528 = vpop.f32.mrb[0].mxu0
    %v1529 = vadd.f32 %v824, %v1528
    %v1530 = vpop.f32.mrb[0].mxu0
    %v1531 = vadd.f32 %v820, %v1530
    %v1532 = vpop.f32.mrb[0].mxu0
    %v1533 = vadd.f32 %v824, %v1532
    %1534 = vmatprep.mubr.bf16.mxu0 0
    %1535 = vmatmul.mubr.bf16.gmra.mrb[0].mxu0 %v741
    %v1536 = vpop.f32.mrb[0].mxu0
    %v1537 = vadd.f32 %v820, %v1536
    %v1538 = vpop.f32.mrb[0].mxu0
    %v1539 = vadd.f32 %v824, %v1538
    %v1540 = vpop.f32.mrb[0].mxu0
    %v1541 = vadd.f32 %v820, %v1540
    %v1542 = vpop.f32.mrb[0].mxu0
    %v1543 = vadd.f32 %v824, %v1542
    %1544 = vmatprep.mubr.bf16.mxu0 0
    %1545 = vmatmul.mubr.bf16.gmra.mrb[0].mxu0 %v742
    %v1546 = vpop.f32.mrb[0].mxu0
    %v1547 = vadd.f32 %v820, %v1546
    %v1548 = vpop.f32.mrb[0].mxu0
    %v1549 = vadd.f32 %v824, %v1548
    %v1550 = vpop.f32.mrb[0].mxu0
    %v1551 = vadd.f32 %v820, %v1550
    %v1552 = vpop.f32.mrb[0].mxu0
    %v1553 = vadd.f32 %v824, %v1552
    %1554 = vdwg.mxu0
    %1555 = vmatprep.subr.bf16.mxu0 %v1046
    %1556 = vmatpush1.bf16.msra.mxu0 %v1045
    %1557 = vmatprep.subr.bf16.mxu0 %v1054
    %1558 = vmatpush1.bf16.msra.mxu0 %v1053
    %1559 = vmatprep.subr.bf16.mxu0 %v1062
    %1560 = vmatpush1.bf16.msra.mxu0 %v1061
    %1561 = vmatprep.subr.bf16.mxu0 %v1070
    %1562 = vmatpush1.bf16.msra.mxu0 %v1069
    %1563 = vmatprep.subr.bf16.mxu0 %v1078
    %1564 = vmatpush1.bf16.msra.mxu0 %v1077
    %1565 = vmatprep.subr.bf16.mxu0 %v1086
    %1566 = vmatpush1.bf16.msra.mxu0 %v1085
    %1567 = vmatprep.subr.bf16.mxu0 %v1094
    %1568 = vmatpush1.bf16.msra.mxu0 %v1093
    %1569 = vmatprep.subr.bf16.mxu0 %v1102
    %1570 = vmatpush1.bf16.msra.mxu0 %v1101
    %1571 = vmatprep.subr.bf16.mxu0 0
    %1572 = vmatpush1.bf16.msra.mxu0 0
    %1573 = vmatprep.subr.bf16.mxu0 0
    %1574 = vmatpush1.bf16.msra.mxu0 0
    %1575 = vmatprep.subr.bf16.mxu0 0
    %1576 = vmatpush1.bf16.msra.mxu0 0
    %1577 = vmatprep.subr.bf16.mxu0 0
    %1578 = vmatpush1.bf16.msra.mxu0 0
    %1579 = vmatprep.subr.bf16.mxu0 0
    %1580 = vmatpush1.bf16.msra.mxu0 0
    %1581 = vmatprep.subr.bf16.mxu0 0
    %1582 = vmatpush1.bf16.msra.mxu0 0
    %1583 = vmatprep.subr.bf16.mxu0 0
    %1584 = vmatpush1.bf16.msra.mxu0 0
    %1585 = vmatprep.subr.bf16.mxu0 0
    %1586 = vmatpush1.bf16.msra.mxu0 0
    %1587 = vmatprep.mubr.bf16.mxu0 0
    %1588 = vmatmul.mubr.bf16.gmra.mrb[0].mxu0 %v727
    %v1589 = vpop.f32.mrb[0].mxu0
    %v1590 = vadd.f32 %v828, %v1589
    %v1591 = vpop.f32.mrb[0].mxu0
    %v1592 = vadd.f32 %v832, %v1591
    %v1593 = vpop.f32.mrb[0].mxu0
    %v1594 = vadd.f32 %v828, %v1593
    %v1595 = vpop.f32.mrb[0].mxu0
    %v1596 = vadd.f32 %v832, %v1595
    %1597 = vmatprep.mubr.bf16.mxu0 0
    %1598 = vmatmul.mubr.bf16.gmra.mrb[0].mxu0 %v728
    %v1599 = vpop.f32.mrb[0].mxu0
    %v1600 = vadd.f32 %v828, %v1599
    %v1601 = vpop.f32.mrb[0].mxu0
    %v1602 = vadd.f32 %v832, %v1601
    %v1603 = vpop.f32.mrb[0].mxu0
    %v1604 = vadd.f32 %v828, %v1603
    %v1605 = vpop.f32.mrb[0].mxu0
    %v1606 = vadd.f32 %v832, %v1605
    %1607 = vmatprep.mubr.bf16.mxu0 0
    %1608 = vmatmul.mubr.bf16.gmra.mrb[0].mxu0 %v729
    %v1609 = vpop.f32.mrb[0].mxu0
    %v1610 = vadd.f32 %v828, %v1609
    %v1611 = vpop.f32.mrb[0].mxu0
    %v1612 = vadd.f32 %v832, %v1611
    %v1613 = vpop.f32.mrb[0].mxu0
    %v1614 = vadd.f32 %v828, %v1613
    %v1615 = vpop.f32.mrb[0].mxu0
    %v1616 = vadd.f32 %v832, %v1615
    %1617 = vmatprep.mubr.bf16.mxu0 0
    %1618 = vmatmul.mubr.bf16.gmra.mrb[0].mxu0 %v730
    %v1619 = vpop.f32.mrb[0].mxu0
    %v1620 = vadd.f32 %v828, %v1619
    %v1621 = vpop.f32.mrb[0].mxu0
    %v1622 = vadd.f32 %v832, %v1621
    %v1623 = vpop.f32.mrb[0].mxu0
    %v1624 = vadd.f32 %v828, %v1623
    %v1625 = vpop.f32.mrb[0].mxu0
    %v1626 = vadd.f32 %v832, %v1625
    %1627 = vmatprep.mubr.bf16.mxu0 0
    %1628 = vmatmul.mubr.bf16.gmra.mrb[0].mxu0 %v731
    %v1629 = vpop.f32.mrb[0].mxu0
    %v1630 = vadd.f32 %v828, %v1629
    %v1631 = vpop.f32.mrb[0].mxu0
    %v1632 = vadd.f32 %v832, %v1631
    %v1633 = vpop.f32.mrb[0].mxu0
    %v1634 = vadd.f32 %v828, %v1633
    %v1635 = vpop.f32.mrb[0].mxu0
    %v1636 = vadd.f32 %v832, %v1635
    %1637 = vmatprep.mubr.bf16.mxu0 0
    %1638 = vmatmul.mubr.bf16.gmra.mrb[0].mxu0 %v732
    %v1639 = vpop.f32.mrb[0].mxu0
    %v1640 = vadd.f32 %v828, %v1639
    %v1641 = vpop.f32.mrb[0].mxu0
    %v1642 = vadd.f32 %v832, %v1641
    %v1643 = vpop.f32.mrb[0].mxu0
    %v1644 = vadd.f32 %v828, %v1643
    %v1645 = vpop.f32.mrb[0].mxu0
    %v1646 = vadd.f32 %v832, %v1645
    %1647 = vmatprep.mubr.bf16.mxu0 0
    %1648 = vmatmul.mubr.bf16.gmra.mrb[0].mxu0 %v733
    %v1649 = vpop.f32.mrb[0].mxu0
    %v1650 = vadd.f32 %v828, %v1649
    %v1651 = vpop.f32.mrb[0].mxu0
    %v1652 = vadd.f32 %v832, %v1651
    %v1653 = vpop.f32.mrb[0].mxu0
    %v1654 = vadd.f32 %v828, %v1653
    %v1655 = vpop.f32.mrb[0].mxu0
    %v1656 = vadd.f32 %v832, %v1655
    %1657 = vmatprep.mubr.bf16.mxu0 0
    %1658 = vmatmul.mubr.bf16.gmra.mrb[0].mxu0 %v734
    %v1659 = vpop.f32.mrb[0].mxu0
    %v1660 = vadd.f32 %v828, %v1659
    %v1661 = vpop.f32.mrb[0].mxu0
    %v1662 = vadd.f32 %v832, %v1661
    %v1663 = vpop.f32.mrb[0].mxu0
    %v1664 = vadd.f32 %v828, %v1663
    %v1665 = vpop.f32.mrb[0].mxu0
    %v1666 = vadd.f32 %v832, %v1665
    %1667 = vmatprep.mubr.bf16.mxu0 0
    %1668 = vmatmul.mubr.bf16.gmra.mrb[0].mxu0 %v735
    %v1669 = vpop.f32.mrb[0].mxu0
    %v1670 = vadd.f32 %v828, %v1669
    %v1671 = vpop.f32.mrb[0].mxu0
    %v1672 = vadd.f32 %v832, %v1671
    %v1673 = vpop.f32.mrb[0].mxu0
    %v1674 = vadd.f32 %v828, %v1673
    %v1675 = vpop.f32.mrb[0].mxu0
    %v1676 = vadd.f32 %v832, %v1675
    %1677 = vmatprep.mubr.bf16.mxu0 0
    %1678 = vmatmul.mubr.bf16.gmra.mrb[0].mxu0 %v736
    %v1679 = vpop.f32.mrb[0].mxu0
    %v1680 = vadd.f32 %v828, %v1679
    %v1681 = vpop.f32.mrb[0].mxu0
    %v1682 = vadd.f32 %v832, %v1681
    %v1683 = vpop.f32.mrb[0].mxu0
    %v1684 = vadd.f32 %v828, %v1683
    %v1685 = vpop.f32.mrb[0].mxu0
    %v1686 = vadd.f32 %v832, %v1685
    %1687 = vmatprep.mubr.bf16.mxu0 0
    %1688 = vmatmul.mubr.bf16.gmra.mrb[0].mxu0 %v737
    %v1689 = vpop.f32.mrb[0].mxu0
    %v1690 = vadd.f32 %v828, %v1689
    %v1691 = vpop.f32.mrb[0].mxu0
    %v1692 = vadd.f32 %v832, %v1691
    %v1693 = vpop.f32.mrb[0].mxu0
    %v1694 = vadd.f32 %v828, %v1693
    %v1695 = vpop.f32.mrb[0].mxu0
    %v1696 = vadd.f32 %v832, %v1695
    %1697 = vmatprep.mubr.bf16.mxu0 0
    %1698 = vmatmul.mubr.bf16.gmra.mrb[0].mxu0 %v738
    %v1699 = vpop.f32.mrb[0].mxu0
    %v1700 = vadd.f32 %v828, %v1699
    %v1701 = vpop.f32.mrb[0].mxu0
    %v1702 = vadd.f32 %v832, %v1701
    %v1703 = vpop.f32.mrb[0].mxu0
    %v1704 = vadd.f32 %v828, %v1703
    %v1705 = vpop.f32.mrb[0].mxu0
    %v1706 = vadd.f32 %v832, %v1705
    %1707 = vmatprep.mubr.bf16.mxu0 0
    %1708 = vmatmul.mubr.bf16.gmra.mrb[0].mxu0 %v739
    %v1709 = vpop.f32.mrb[0].mxu0
    %v1710 = vadd.f32 %v828, %v1709
    %v1711 = vpop.f32.mrb[0].mxu0
    %v1712 = vadd.f32 %v832, %v1711
    %v1713 = vpop.f32.mrb[0].mxu0
    %v1714 = vadd.f32 %v828, %v1713
    %v1715 = vpop.f32.mrb[0].mxu0
    %v1716 = vadd.f32 %v832, %v1715
    %1717 = vmatprep.mubr.bf16.mxu0 0
    %1718 = vmatmul.mubr.bf16.gmra.mrb[0].mxu0 %v740
    %v1719 = vpop.f32.mrb[0].mxu0
    %v1720 = vadd.f32 %v828, %v1719
    %v1721 = vpop.f32.mrb[0].mxu0
    %v1722 = vadd.f32 %v832, %v1721
    %v1723 = vpop.f32.mrb[0].mxu0
    %v1724 = vadd.f32 %v828, %v1723
    %v1725 = vpop.f32.mrb[0].mxu0
    %v1726 = vadd.f32 %v832, %v1725
    %1727 = vmatprep.mubr.bf16.mxu0 0
    %1728 = vmatmul.mubr.bf16.gmra.mrb[0].mxu0 %v741
    %v1729 = vpop.f32.mrb[0].mxu0
    %v1730 = vadd.f32 %v828, %v1729
    %v1731 = vpop.f32.mrb[0].mxu0
    %v1732 = vadd.f32 %v832, %v1731
    %v1733 = vpop.f32.mrb[0].mxu0
    %v1734 = vadd.f32 %v828, %v1733
    %v1735 = vpop.f32.mrb[0].mxu0
    %v1736 = vadd.f32 %v832, %v1735
    %1737 = vmatprep.mubr.bf16.mxu0 0
    %1738 = vmatmul.mubr.bf16.gmra.mrb[0].mxu0 %v742
    %v1739 = vpop.f32.mrb[0].mxu0
    %v1740 = vadd.f32 %v828, %v1739
    %v1741 = vpop.f32.mrb[0].mxu0
    %v1742 = vadd.f32 %v832, %v1741
    %v1743 = vpop.f32.mrb[0].mxu0
    %v1744 = vadd.f32 %v828, %v1743
    %v1745 = vpop.f32.mrb[0].mxu0
    %v1746 = vadd.f32 %v832, %v1745
    %1747 = vdwg.mxu0
    %1748 = vmatprep.subr.bf16.mxu0 %v1048
    %1749 = vmatpush1.bf16.msra.mxu0 %v1047
    %1750 = vmatprep.subr.bf16.mxu0 %v1056
    %1751 = vmatpush1.bf16.msra.mxu0 %v1055
    %1752 = vmatprep.subr.bf16.mxu0 %v1064
    %1753 = vmatpush1.bf16.msra.mxu0 %v1063
    %1754 = vmatprep.subr.bf16.mxu0 %v1072
    %1755 = vmatpush1.bf16.msra.mxu0 %v1071
    %1756 = vmatprep.subr.bf16.mxu0 %v1080
    %1757 = vmatpush1.bf16.msra.mxu0 %v1079
    %1758 = vmatprep.subr.bf16.mxu0 %v1088
    %1759 = vmatpush1.bf16.msra.mxu0 %v1087
    %1760 = vmatprep.subr.bf16.mxu0 %v1096
    %1761 = vmatpush1.bf16.msra.mxu0 %v1095
    %1762 = vmatprep.subr.bf16.mxu0 %v1104
    %1763 = vmatpush1.bf16.msra.mxu0 %v1103
    %1764 = vmatprep.subr.bf16.mxu0 0
    %1765 = vmatpush1.bf16.msra.mxu0 0
    %1766 = vmatprep.subr.bf16.mxu0 0
    %1767 = vmatpush1.bf16.msra.mxu0 0
    %1768 = vmatprep.subr.bf16.mxu0 0
    %1769 = vmatpush1.bf16.msra.mxu0 0
    %1770 = vmatprep.subr.bf16.mxu0 0
    %1771 = vmatpush1.bf16.msra.mxu0 0
    %1772 = vmatprep.subr.bf16.mxu0 0
    %1773 = vmatpush1.bf16.msra.mxu0 0
    %1774 = vmatprep.subr.bf16.mxu0 0
    %1775 = vmatpush1.bf16.msra.mxu0 0
    %1776 = vmatprep.subr.bf16.mxu0 0
    %1777 = vmatpush1.bf16.msra.mxu0 0
    %1778 = vmatprep.subr.bf16.mxu0 0
    %1779 = vmatpush1.bf16.msra.mxu0 0
    %1780 = vmatprep.mubr.bf16.mxu0 0
    %1781 = vmatmul.mubr.bf16.gmra.mrb[0].mxu0 %v727
    %v1782 = vpop.f32.mrb[0].mxu0
    %v1783 = vadd.f32 %v836, %v1782
    %v1784 = vpop.f32.mrb[0].mxu0
    %v1785 = vadd.f32 %v840, %v1784
    %v1786 = vpop.f32.mrb[0].mxu0
    %v1787 = vadd.f32 %v836, %v1786
    %v1788 = vpop.f32.mrb[0].mxu0
    %v1789 = vadd.f32 %v840, %v1788
    %1790 = vmatprep.mubr.bf16.mxu0 0
    %1791 = vmatmul.mubr.bf16.gmra.mrb[0].mxu0 %v728
    %v1792 = vpop.f32.mrb[0].mxu0
    %v1793 = vadd.f32 %v836, %v1792
    %v1794 = vpop.f32.mrb[0].mxu0
    %v1795 = vadd.f32 %v840, %v1794
    %v1796 = vpop.f32.mrb[0].mxu0
    %v1797 = vadd.f32 %v836, %v1796
    %v1798 = vpop.f32.mrb[0].mxu0
    %v1799 = vadd.f32 %v840, %v1798
    %1800 = vmatprep.mubr.bf16.mxu0 0
    %1801 = vmatmul.mubr.bf16.gmra.mrb[0].mxu0 %v729
    %v1802 = vpop.f32.mrb[0].mxu0
    %v1803 = vadd.f32 %v836, %v1802
    %v1804 = vpop.f32.mrb[0].mxu0
    %v1805 = vadd.f32 %v840, %v1804
    %v1806 = vpop.f32.mrb[0].mxu0
    %v1807 = vadd.f32 %v836, %v1806
    %v1808 = vpop.f32.mrb[0].mxu0
    %v1809 = vadd.f32 %v840, %v1808
    %1810 = vmatprep.mubr.bf16.mxu0 0
    %1811 = vmatmul.mubr.bf16.gmra.mrb[0].mxu0 %v730
    %v1812 = vpop.f32.mrb[0].mxu0
    %v1813 = vadd.f32 %v836, %v1812
    %v1814 = vpop.f32.mrb[0].mxu0
    %v1815 = vadd.f32 %v840, %v1814
    %v1816 = vpop.f32.mrb[0].mxu0
    %v1817 = vadd.f32 %v836, %v1816
    %v1818 = vpop.f32.mrb[0].mxu0
    %v1819 = vadd.f32 %v840, %v1818
    %1820 = vmatprep.mubr.bf16.mxu0 0
    %1821 = vmatmul.mubr.bf16.gmra.mrb[0].mxu0 %v731
    %v1822 = vpop.f32.mrb[0].mxu0
    %v1823 = vadd.f32 %v836, %v1822
    %v1824 = vpop.f32.mrb[0].mxu0
    %v1825 = vadd.f32 %v840, %v1824
    %v1826 = vpop.f32.mrb[0].mxu0
    %v1827 = vadd.f32 %v836, %v1826
    %v1828 = vpop.f32.mrb[0].mxu0
    %v1829 = vadd.f32 %v840, %v1828
    %1830 = vmatprep.mubr.bf16.mxu0 0
    %1831 = vmatmul.mubr.bf16.gmra.mrb[0].mxu0 %v732
    %v1832 = vpop.f32.mrb[0].mxu0
    %v1833 = vadd.f32 %v836, %v1832
    %v1834 = vpop.f32.mrb[0].mxu0
    %v1835 = vadd.f32 %v840, %v1834
    %v1836 = vpop.f32.mrb[0].mxu0
    %v1837 = vadd.f32 %v836, %v1836
    %v1838 = vpop.f32.mrb[0].mxu0
    %v1839 = vadd.f32 %v840, %v1838
    %1840 = vmatprep.mubr.bf16.mxu0 0
    %1841 = vmatmul.mubr.bf16.gmra.mrb[0].mxu0 %v733
    %v1842 = vpop.f32.mrb[0].mxu0
    %v1843 = vadd.f32 %v836, %v1842
    %v1844 = vpop.f32.mrb[0].mxu0
    %v1845 = vadd.f32 %v840, %v1844
    %v1846 = vpop.f32.mrb[0].mxu0
    %v1847 = vadd.f32 %v836, %v1846
    %v1848 = vpop.f32.mrb[0].mxu0
    %v1849 = vadd.f32 %v840, %v1848
    %1850 = vmatprep.mubr.bf16.mxu0 0
    %1851 = vmatmul.mubr.bf16.gmra.mrb[0].mxu0 %v734
    %v1852 = vpop.f32.mrb[0].mxu0
    %v1853 = vadd.f32 %v836, %v1852
    %v1854 = vpop.f32.mrb[0].mxu0
    %v1855 = vadd.f32 %v840, %v1854
    %v1856 = vpop.f32.mrb[0].mxu0
    %v1857 = vadd.f32 %v836, %v1856
    %v1858 = vpop.f32.mrb[0].mxu0
    %v1859 = vadd.f32 %v840, %v1858
    %1860 = vmatprep.mubr.bf16.mxu0 0
    %1861 = vmatmul.mubr.bf16.gmra.mrb[0].mxu0 %v735
    %v1862 = vpop.f32.mrb[0].mxu0
    %v1863 = vadd.f32 %v836, %v1862
    %v1864 = vpop.f32.mrb[0].mxu0
    %v1865 = vadd.f32 %v840, %v1864
    %v1866 = vpop.f32.mrb[0].mxu0
    %v1867 = vadd.f32 %v836, %v1866
    %v1868 = vpop.f32.mrb[0].mxu0
    %v1869 = vadd.f32 %v840, %v1868
    %1870 = vmatprep.mubr.bf16.mxu0 0
    %1871 = vmatmul.mubr.bf16.gmra.mrb[0].mxu0 %v736
    %v1872 = vpop.f32.mrb[0].mxu0
    %v1873 = vadd.f32 %v836, %v1872
    %v1874 = vpop.f32.mrb[0].mxu0
    %v1875 = vadd.f32 %v840, %v1874
    %v1876 = vpop.f32.mrb[0].mxu0
    %v1877 = vadd.f32 %v836, %v1876
    %v1878 = vpop.f32.mrb[0].mxu0
    %v1879 = vadd.f32 %v840, %v1878
    %1880 = vmatprep.mubr.bf16.mxu0 0
    %1881 = vmatmul.mubr.bf16.gmra.mrb[0].mxu0 %v737
    %v1882 = vpop.f32.mrb[0].mxu0
    %v1883 = vadd.f32 %v836, %v1882
    %v1884 = vpop.f32.mrb[0].mxu0
    %v1885 = vadd.f32 %v840, %v1884
    %v1886 = vpop.f32.mrb[0].mxu0
    %v1887 = vadd.f32 %v836, %v1886
    %v1888 = vpop.f32.mrb[0].mxu0
    %v1889 = vadd.f32 %v840, %v1888
    %1890 = vmatprep.mubr.bf16.mxu0 0
    %1891 = vmatmul.mubr.bf16.gmra.mrb[0].mxu0 %v738
    %v1892 = vpop.f32.mrb[0].mxu0
    %v1893 = vadd.f32 %v836, %v1892
    %v1894 = vpop.f32.mrb[0].mxu0
    %v1895 = vadd.f32 %v840, %v1894
    %v1896 = vpop.f32.mrb[0].mxu0
    %v1897 = vadd.f32 %v836, %v1896
    %v1898 = vpop.f32.mrb[0].mxu0
    %v1899 = vadd.f32 %v840, %v1898
    %1900 = vmatprep.mubr.bf16.mxu0 0
    %1901 = vmatmul.mubr.bf16.gmra.mrb[0].mxu0 %v739
    %v1902 = vpop.f32.mrb[0].mxu0
    %v1903 = vadd.f32 %v836, %v1902
    %v1904 = vpop.f32.mrb[0].mxu0
    %v1905 = vadd.f32 %v840, %v1904
    %v1906 = vpop.f32.mrb[0].mxu0
    %v1907 = vadd.f32 %v836, %v1906
    %v1908 = vpop.f32.mrb[0].mxu0
    %v1909 = vadd.f32 %v840, %v1908
    %1910 = vmatprep.mubr.bf16.mxu0 0
    %1911 = vmatmul.mubr.bf16.gmra.mrb[0].mxu0 %v740
    %v1912 = vpop.f32.mrb[0].mxu0
    %v1913 = vadd.f32 %v836, %v1912
    %v1914 = vpop.f32.mrb[0].mxu0
    %v1915 = vadd.f32 %v840, %v1914
    %v1916 = vpop.f32.mrb[0].mxu0
    %v1917 = vadd.f32 %v836, %v1916
    %v1918 = vpop.f32.mrb[0].mxu0
    %v1919 = vadd.f32 %v840, %v1918
    %1920 = vmatprep.mubr.bf16.mxu0 0
    %1921 = vmatmul.mubr.bf16.gmra.mrb[0].mxu0 %v741
    %v1922 = vpop.f32.mrb[0].mxu0
    %v1923 = vadd.f32 %v836, %v1922
    %v1924 = vpop.f32.mrb[0].mxu0
    %v1925 = vadd.f32 %v840, %v1924
    %v1926 = vpop.f32.mrb[0].mxu0
    %v1927 = vadd.f32 %v836, %v1926
    %v1928 = vpop.f32.mrb[0].mxu0
    %v1929 = vadd.f32 %v840, %v1928
    %1930 = vmatprep.mubr.bf16.mxu0 0
    %1931 = vmatmul.mubr.bf16.gmra.mrb[0].mxu0 %v742
    %v1932 = vpop.f32.mrb[0].mxu0
    %v1933 = vadd.f32 %v836, %v1932
    %v1934 = vpop.f32.mrb[0].mxu0
    %v1935 = vadd.f32 %v840, %v1934
    %v1936 = vpop.f32.mrb[0].mxu0
    %v1937 = vadd.f32 %v836, %v1936
    %v1938 = vpop.f32.mrb[0].mxu0
    %v1939 = vadd.f32 %v840, %v1938
    %1940 = vdwg.mxu0
    %v1941 = vmax.f32 %v1204, 0.0
    %v1942 = vmax.f32 %v1206, 0.0
    %v1943 = vmax.f32 %v1397, 0.0
    %v1944 = vmax.f32 %v1399, 0.0
    %v1945 = vmax.f32 %v1590, 0.0
    %v1946 = vmax.f32 %v1592, 0.0
    %v1947 = vmax.f32 %v1783, 0.0
    %v1948 = vmax.f32 %v1785, 0.0
    %v1949 = vmax.f32 %v1208, 0.0
    %v1950 = vmax.f32 %v1210, 0.0
    %v1951 = vmax.f32 %v1401, 0.0
    %v1952 = vmax.f32 %v1403, 0.0
    %v1953 = vmax.f32 %v1594, 0.0
    %v1954 = vmax.f32 %v1596, 0.0
    %v1955 = vmax.f32 %v1787, 0.0
    %v1956 = vmax.f32 %v1789, 0.0
    %v1957 = vmax.f32 %v1214, 0.0
    %v1958 = vmax.f32 %v1216, 0.0
    %v1959 = vmax.f32 %v1407, 0.0
    %v1960 = vmax.f32 %v1409, 0.0
    %v1961 = vmax.f32 %v1600, 0.0
    %v1962 = vmax.f32 %v1602, 0.0
    %v1963 = vmax.f32 %v1793, 0.0
    %v1964 = vmax.f32 %v1795, 0.0
    %v1965 = vmax.f32 %v1218, 0.0
    %v1966 = vmax.f32 %v1220, 0.0
    %v1967 = vmax.f32 %v1411, 0.0
    %v1968 = vmax.f32 %v1413, 0.0
    %v1969 = vmax.f32 %v1604, 0.0
    %v1970 = vmax.f32 %v1606, 0.0
    %v1971 = vmax.f32 %v1797, 0.0
    %v1972 = vmax.f32 %v1799, 0.0
    %v1973 = vmax.f32 %v1224, 0.0
    %v1974 = vmax.f32 %v1226, 0.0
    %v1975 = vmax.f32 %v1417, 0.0
    %v1976 = vmax.f32 %v1419, 0.0
    %v1977 = vmax.f32 %v1610, 0.0
    %v1978 = vmax.f32 %v1612, 0.0
    %v1979 = vmax.f32 %v1803, 0.0
    %v1980 = vmax.f32 %v1805, 0.0
    %v1981 = vmax.f32 %v1228, 0.0
    %v1982 = vmax.f32 %v1230, 0.0
    %v1983 = vmax.f32 %v1421, 0.0
    %v1984 = vmax.f32 %v1423, 0.0
    %v1985 = vmax.f32 %v1614, 0.0
    %v1986 = vmax.f32 %v1616, 0.0
    %v1987 = vmax.f32 %v1807, 0.0
    %v1988 = vmax.f32 %v1809, 0.0
    %v1989 = vmax.f32 %v1234, 0.0
    %v1990 = vmax.f32 %v1236, 0.0
    %v1991 = vmax.f32 %v1427, 0.0
    %v1992 = vmax.f32 %v1429, 0.0
    %v1993 = vmax.f32 %v1620, 0.0
    %v1994 = vmax.f32 %v1622, 0.0
    %v1995 = vmax.f32 %v1813, 0.0
    %v1996 = vmax.f32 %v1815, 0.0
    %v1997 = vmax.f32 %v1238, 0.0
    %v1998 = vmax.f32 %v1240, 0.0
    %v1999 = vmax.f32 %v1431, 0.0
    %v2000 = vmax.f32 %v1433, 0.0
    %v2001 = vmax.f32 %v1624, 0.0
    %v2002 = vmax.f32 %v1626, 0.0
    %v2003 = vmax.f32 %v1817, 0.0
    %v2004 = vmax.f32 %v1819, 0.0
    %v2005 = vmax.f32 %v1244, 0.0
    %v2006 = vmax.f32 %v1246, 0.0
    %v2007 = vmax.f32 %v1437, 0.0
    %v2008 = vmax.f32 %v1439, 0.0
    %v2009 = vmax.f32 %v1630, 0.0
    %v2010 = vmax.f32 %v1632, 0.0
    %v2011 = vmax.f32 %v1823, 0.0
    %v2012 = vmax.f32 %v1825, 0.0
    %v2013 = vmax.f32 %v1248, 0.0
    %v2014 = vmax.f32 %v1250, 0.0
    %v2015 = vmax.f32 %v1441, 0.0
    %v2016 = vmax.f32 %v1443, 0.0
    %v2017 = vmax.f32 %v1634, 0.0
    %v2018 = vmax.f32 %v1636, 0.0
    %v2019 = vmax.f32 %v1827, 0.0
    %v2020 = vmax.f32 %v1829, 0.0
    %v2021 = vmax.f32 %v1254, 0.0
    %v2022 = vmax.f32 %v1256, 0.0
    %v2023 = vmax.f32 %v1447, 0.0
    %v2024 = vmax.f32 %v1449, 0.0
    %v2025 = vmax.f32 %v1640, 0.0
    %v2026 = vmax.f32 %v1642, 0.0
    %v2027 = vmax.f32 %v1833, 0.0
    %v2028 = vmax.f32 %v1835, 0.0
    %v2029 = vmax.f32 %v1258, 0.0
    %v2030 = vmax.f32 %v1260, 0.0
    %v2031 = vmax.f32 %v1451, 0.0
    %v2032 = vmax.f32 %v1453, 0.0
    %v2033 = vmax.f32 %v1644, 0.0
    %v2034 = vmax.f32 %v1646, 0.0
    %v2035 = vmax.f32 %v1837, 0.0
    %v2036 = vmax.f32 %v1839, 0.0
    %v2037 = vmax.f32 %v1264, 0.0
    %v2038 = vmax.f32 %v1266, 0.0
    %v2039 = vmax.f32 %v1457, 0.0
    %v2040 = vmax.f32 %v1459, 0.0
    %v2041 = vmax.f32 %v1650, 0.0
    %v2042 = vmax.f32 %v1652, 0.0
    %v2043 = vmax.f32 %v1843, 0.0
    %v2044 = vmax.f32 %v1845, 0.0
    %v2045 = vmax.f32 %v1268, 0.0
    %v2046 = vmax.f32 %v1270, 0.0
    %v2047 = vmax.f32 %v1461, 0.0
    %v2048 = vmax.f32 %v1463, 0.0
    %v2049 = vmax.f32 %v1654, 0.0
    %v2050 = vmax.f32 %v1656, 0.0
    %v2051 = vmax.f32 %v1847, 0.0
    %v2052 = vmax.f32 %v1849, 0.0
    %v2053 = vmax.f32 %v1274, 0.0
    %v2054 = vmax.f32 %v1276, 0.0
    %v2055 = vmax.f32 %v1467, 0.0
    %v2056 = vmax.f32 %v1469, 0.0
    %v2057 = vmax.f32 %v1660, 0.0
    %v2058 = vmax.f32 %v1662, 0.0
    %v2059 = vmax.f32 %v1853, 0.0
    %v2060 = vmax.f32 %v1855, 0.0
    %v2061 = vmax.f32 %v1278, 0.0
    %v2062 = vmax.f32 %v1280, 0.0
    %v2063 = vmax.f32 %v1471, 0.0
    %v2064 = vmax.f32 %v1473, 0.0
    %v2065 = vmax.f32 %v1664, 0.0
    %v2066 = vmax.f32 %v1666, 0.0
    %v2067 = vmax.f32 %v1857, 0.0
    %v2068 = vmax.f32 %v1859, 0.0
    %v2069 = vmax.f32 %v1284, 0.0
    %v2070 = vmax.f32 %v1286, 0.0
    %v2071 = vmax.f32 %v1477, 0.0
    %v2072 = vmax.f32 %v1479, 0.0
    %v2073 = vmax.f32 %v1670, 0.0
    %v2074 = vmax.f32 %v1672, 0.0
    %v2075 = vmax.f32 %v1863, 0.0
    %v2076 = vmax.f32 %v1865, 0.0
    %v2077 = vmax.f32 %v1288, 0.0
    %v2078 = vmax.f32 %v1290, 0.0
    %v2079 = vmax.f32 %v1481, 0.0
    %v2080 = vmax.f32 %v1483, 0.0
    %v2081 = vmax.f32 %v1674, 0.0
    %v2082 = vmax.f32 %v1676, 0.0
    %v2083 = vmax.f32 %v1867, 0.0
    %v2084 = vmax.f32 %v1869, 0.0
    %v2085 = vmax.f32 %v1294, 0.0
    %v2086 = vmax.f32 %v1296, 0.0
    %v2087 = vmax.f32 %v1487, 0.0
    %v2088 = vmax.f32 %v1489, 0.0
    %v2089 = vmax.f32 %v1680, 0.0
    %v2090 = vmax.f32 %v1682, 0.0
    %v2091 = vmax.f32 %v1873, 0.0
    %v2092 = vmax.f32 %v1875, 0.0
    %v2093 = vmax.f32 %v1298, 0.0
    %v2094 = vmax.f32 %v1300, 0.0
    %v2095 = vmax.f32 %v1491, 0.0
    %v2096 = vmax.f32 %v1493, 0.0
    %v2097 = vmax.f32 %v1684, 0.0
    %v2098 = vmax.f32 %v1686, 0.0
    %v2099 = vmax.f32 %v1877, 0.0
    %v2100 = vmax.f32 %v1879, 0.0
    %v2101 = vmax.f32 %v1304, 0.0
    %v2102 = vmax.f32 %v1306, 0.0
    %v2103 = vmax.f32 %v1497, 0.0
    %v2104 = vmax.f32 %v1499, 0.0
    %v2105 = vmax.f32 %v1690, 0.0
    %v2106 = vmax.f32 %v1692, 0.0
    %v2107 = vmax.f32 %v1883, 0.0
    %v2108 = vmax.f32 %v1885, 0.0
    %v2109 = vmax.f32 %v1308, 0.0
    %v2110 = vmax.f32 %v1310, 0.0
    %v2111 = vmax.f32 %v1501, 0.0
    %v2112 = vmax.f32 %v1503, 0.0
    %v2113 = vmax.f32 %v1694, 0.0
    %v2114 = vmax.f32 %v1696, 0.0
    %v2115 = vmax.f32 %v1887, 0.0
    %v2116 = vmax.f32 %v1889, 0.0
    %v2117 = vmax.f32 %v1314, 0.0
    %v2118 = vmax.f32 %v1316, 0.0
    %v2119 = vmax.f32 %v1507, 0.0
    %v2120 = vmax.f32 %v1509, 0.0
    %v2121 = vmax.f32 %v1700, 0.0
    %v2122 = vmax.f32 %v1702, 0.0
    %v2123 = vmax.f32 %v1893, 0.0
    %v2124 = vmax.f32 %v1895, 0.0
    %v2125 = vmax.f32 %v1318, 0.0
    %v2126 = vmax.f32 %v1320, 0.0
    %v2127 = vmax.f32 %v1511, 0.0
    %v2128 = vmax.f32 %v1513, 0.0
    %v2129 = vmax.f32 %v1704, 0.0
    %v2130 = vmax.f32 %v1706, 0.0
    %v2131 = vmax.f32 %v1897, 0.0
    %v2132 = vmax.f32 %v1899, 0.0
    %v2133 = vmax.f32 %v1324, 0.0
    %v2134 = vmax.f32 %v1326, 0.0
    %v2135 = vmax.f32 %v1517, 0.0
    %v2136 = vmax.f32 %v1519, 0.0
    %v2137 = vmax.f32 %v1710, 0.0
    %v2138 = vmax.f32 %v1712, 0.0
    %v2139 = vmax.f32 %v1903, 0.0
    %v2140 = vmax.f32 %v1905, 0.0
    %v2141 = vmax.f32 %v1328, 0.0
    %v2142 = vmax.f32 %v1330, 0.0
    %v2143 = vmax.f32 %v1521, 0.0
    %v2144 = vmax.f32 %v1523, 0.0
    %v2145 = vmax.f32 %v1714, 0.0
    %v2146 = vmax.f32 %v1716, 0.0
    %v2147 = vmax.f32 %v1907, 0.0
    %v2148 = vmax.f32 %v1909, 0.0
    %v2149 = vmax.f32 %v1334, 0.0
    %v2150 = vmax.f32 %v1336, 0.0
    %v2151 = vmax.f32 %v1527, 0.0
    %v2152 = vmax.f32 %v1529, 0.0
    %v2153 = vmax.f32 %v1720, 0.0
    %v2154 = vmax.f32 %v1722, 0.0
    %v2155 = vmax.f32 %v1913, 0.0
    %v2156 = vmax.f32 %v1915, 0.0
    %v2157 = vmax.f32 %v1338, 0.0
    %v2158 = vmax.f32 %v1340, 0.0
    %v2159 = vmax.f32 %v1531, 0.0
    %v2160 = vmax.f32 %v1533, 0.0
    %v2161 = vmax.f32 %v1724, 0.0
    %v2162 = vmax.f32 %v1726, 0.0
    %v2163 = vmax.f32 %v1917, 0.0
    %v2164 = vmax.f32 %v1919, 0.0
    %v2165 = vmax.f32 %v1344, 0.0
    %v2166 = vmax.f32 %v1346, 0.0
    %v2167 = vmax.f32 %v1537, 0.0
    %v2168 = vmax.f32 %v1539, 0.0
    %v2169 = vmax.f32 %v1730, 0.0
    %v2170 = vmax.f32 %v1732, 0.0
    %v2171 = vmax.f32 %v1923, 0.0
    %v2172 = vmax.f32 %v1925, 0.0
    %v2173 = vmax.f32 %v1348, 0.0
    %v2174 = vmax.f32 %v1350, 0.0
    %v2175 = vmax.f32 %v1541, 0.0
    %v2176 = vmax.f32 %v1543, 0.0
    %v2177 = vmax.f32 %v1734, 0.0
    %v2178 = vmax.f32 %v1736, 0.0
    %v2179 = vmax.f32 %v1927, 0.0
    %v2180 = vmax.f32 %v1929, 0.0
    %v2181 = vmax.f32 %v1354, 0.0
    %v2182 = vmax.f32 %v1356, 0.0
    %v2183 = vmax.f32 %v1547, 0.0
    %v2184 = vmax.f32 %v1549, 0.0
    %v2185 = vmax.f32 %v1740, 0.0
    %v2186 = vmax.f32 %v1742, 0.0
    %v2187 = vmax.f32 %v1933, 0.0
    %v2188 = vmax.f32 %v1935, 0.0
    %v2189 = vmax.f32 %v1358, 0.0
    %v2190 = vmax.f32 %v1360, 0.0
    %v2191 = vmax.f32 %v1551, 0.0
    %v2192 = vmax.f32 %v1553, 0.0
    %v2193 = vmax.f32 %v1744, 0.0
    %v2194 = vmax.f32 %v1746, 0.0
    %v2195 = vmax.f32 %v1937, 0.0
    %v2196 = vmax.f32 %v1939, 0.0
    %v2197 = vmax.f32 %v1941, %v1949
    %v2198 = vmax.f32 %v2197, %v1957
    %v2199 = vmax.f32 %v2198, %v1965
    %v2200 = vmax.f32 %v2199, %v1973
    %v2201 = vmax.f32 %v2200, %v1981
    %v2202 = vmax.f32 %v2201, %v1989
    %v2203 = vmax.f32 %v2202, %v1997
    %v2204 = vmax.f32 %v2203, %v2005
    %v2205 = vmax.f32 %v2204, %v2013
    %v2206 = vmax.f32 %v2205, %v2021
    %v2207 = vmax.f32 %v2206, %v2029
    %v2208 = vmax.f32 %v2207, %v2037
    %v2209 = vmax.f32 %v2208, %v2045
    %v2210 = vmax.f32 %v2209, %v2053
    %v2211 = vmax.f32 %v2210, %v2061
    %v2212 = vrot.slane %v2211, 4
    %v2213 = vmax.f32 %v2211, %v2212
    %v2214 = vrot.slane %v2213, 2
    %v2215 = vmax.f32 %v2213, %v2214
    %v2216 = vrot.slane %v2215, 1
    %v2217 = vmax.f32 %v2215, %v2216
    %v2218 = vmax.f32 %v1942, %v1950
    %v2219 = vmax.f32 %v2218, %v1958
    %v2220 = vmax.f32 %v2219, %v1966
    %v2221 = vmax.f32 %v2220, %v1974
    %v2222 = vmax.f32 %v2221, %v1982
    %v2223 = vmax.f32 %v2222, %v1990
    %v2224 = vmax.f32 %v2223, %v1998
    %v2225 = vmax.f32 %v2224, %v2006
    %v2226 = vmax.f32 %v2225, %v2014
    %v2227 = vmax.f32 %v2226, %v2022
    %v2228 = vmax.f32 %v2227, %v2030
    %v2229 = vmax.f32 %v2228, %v2038
    %v2230 = vmax.f32 %v2229, %v2046
    %v2231 = vmax.f32 %v2230, %v2054
    %v2232 = vmax.f32 %v2231, %v2062
    %v2233 = vrot.slane %v2232, 4
    %v2234 = vmax.f32 %v2232, %v2233
    %v2235 = vrot.slane %v2234, 2
    %v2236 = vmax.f32 %v2234, %v2235
    %v2237 = vrot.slane %v2236, 1
    %v2238 = vmax.f32 %v2236, %v2237
    %v2239 = vmax.f32 %v1943, %v1951
    %v2240 = vmax.f32 %v2239, %v1959
    %v2241 = vmax.f32 %v2240, %v1967
    %v2242 = vmax.f32 %v2241, %v1975
    %v2243 = vmax.f32 %v2242, %v1983
    %v2244 = vmax.f32 %v2243, %v1991
    %v2245 = vmax.f32 %v2244, %v1999
    %v2246 = vmax.f32 %v2245, %v2007
    %v2247 = vmax.f32 %v2246, %v2015
    %v2248 = vmax.f32 %v2247, %v2023
    %v2249 = vmax.f32 %v2248, %v2031
    %v2250 = vmax.f32 %v2249, %v2039
    %v2251 = vmax.f32 %v2250, %v2047
    %v2252 = vmax.f32 %v2251, %v2055
    %v2253 = vmax.f32 %v2252, %v2063
    %v2254 = vrot.slane %v2253, 4
    %v2255 = vmax.f32 %v2253, %v2254
    %v2256 = vrot.slane %v2255, 2
    %v2257 = vmax.f32 %v2255, %v2256
    %v2258 = vrot.slane %v2257, 1
    %v2259 = vmax.f32 %v2257, %v2258
    %v2260 = vmax.f32 %v1944, %v1952
    %v2261 = vmax.f32 %v2260, %v1960
    %v2262 = vmax.f32 %v2261, %v1968
    %v2263 = vmax.f32 %v2262, %v1976
    %v2264 = vmax.f32 %v2263, %v1984
    %v2265 = vmax.f32 %v2264, %v1992
    %v2266 = vmax.f32 %v2265, %v2000
    %v2267 = vmax.f32 %v2266, %v2008
    %v2268 = vmax.f32 %v2267, %v2016
    %v2269 = vmax.f32 %v2268, %v2024
    %v2270 = vmax.f32 %v2269, %v2032
    %v2271 = vmax.f32 %v2270, %v2040
    %v2272 = vmax.f32 %v2271, %v2048
    %v2273 = vmax.f32 %v2272, %v2056
    %v2274 = vmax.f32 %v2273, %v2064
    %v2275 = vrot.slane %v2274, 4
    %v2276 = vmax.f32 %v2274, %v2275
    %v2277 = vrot.slane %v2276, 2
    %v2278 = vmax.f32 %v2276, %v2277
    %v2279 = vrot.slane %v2278, 1
    %v2280 = vmax.f32 %v2278, %v2279
    %v2281 = vmax.f32 %v1945, %v1953
    %v2282 = vmax.f32 %v2281, %v1961
    %v2283 = vmax.f32 %v2282, %v1969
    %v2284 = vmax.f32 %v2283, %v1977
    %v2285 = vmax.f32 %v2284, %v1985
    %v2286 = vmax.f32 %v2285, %v1993
    %v2287 = vmax.f32 %v2286, %v2001
    %v2288 = vmax.f32 %v2287, %v2009
    %v2289 = vmax.f32 %v2288, %v2017
    %v2290 = vmax.f32 %v2289, %v2025
    %v2291 = vmax.f32 %v2290, %v2033
    %v2292 = vmax.f32 %v2291, %v2041
    %v2293 = vmax.f32 %v2292, %v2049
    %v2294 = vmax.f32 %v2293, %v2057
    %v2295 = vmax.f32 %v2294, %v2065
    %v2296 = vrot.slane %v2295, 4
    %v2297 = vmax.f32 %v2295, %v2296
    %v2298 = vrot.slane %v2297, 2
    %v2299 = vmax.f32 %v2297, %v2298
    %v2300 = vrot.slane %v2299, 1
    %v2301 = vmax.f32 %v2299, %v2300
    %v2302 = vmax.f32 %v1946, %v1954
    %v2303 = vmax.f32 %v2302, %v1962
    %v2304 = vmax.f32 %v2303, %v1970
    %v2305 = vmax.f32 %v2304, %v1978
    %v2306 = vmax.f32 %v2305, %v1986
    %v2307 = vmax.f32 %v2306, %v1994
    %v2308 = vmax.f32 %v2307, %v2002
    %v2309 = vmax.f32 %v2308, %v2010
    %v2310 = vmax.f32 %v2309, %v2018
    %v2311 = vmax.f32 %v2310, %v2026
    %v2312 = vmax.f32 %v2311, %v2034
    %v2313 = vmax.f32 %v2312, %v2042
    %v2314 = vmax.f32 %v2313, %v2050
    %v2315 = vmax.f32 %v2314, %v2058
    %v2316 = vmax.f32 %v2315, %v2066
    %v2317 = vrot.slane %v2316, 4
    %v2318 = vmax.f32 %v2316, %v2317
    %v2319 = vrot.slane %v2318, 2
    %v2320 = vmax.f32 %v2318, %v2319
    %v2321 = vrot.slane %v2320, 1
    %v2322 = vmax.f32 %v2320, %v2321
    %v2323 = vmax.f32 %v1947, %v1955
    %v2324 = vmax.f32 %v2323, %v1963
    %v2325 = vmax.f32 %v2324, %v1971
    %v2326 = vmax.f32 %v2325, %v1979
    %v2327 = vmax.f32 %v2326, %v1987
    %v2328 = vmax.f32 %v2327, %v1995
    %v2329 = vmax.f32 %v2328, %v2003
    %v2330 = vmax.f32 %v2329, %v2011
    %v2331 = vmax.f32 %v2330, %v2019
    %v2332 = vmax.f32 %v2331, %v2027
    %v2333 = vmax.f32 %v2332, %v2035
    %v2334 = vmax.f32 %v2333, %v2043
    %v2335 = vmax.f32 %v2334, %v2051
    %v2336 = vmax.f32 %v2335, %v2059
    %v2337 = vmax.f32 %v2336, %v2067
    %v2338 = vrot.slane %v2337, 4
    %v2339 = vmax.f32 %v2337, %v2338
    %v2340 = vrot.slane %v2339, 2
    %v2341 = vmax.f32 %v2339, %v2340
    %v2342 = vrot.slane %v2341, 1
    %v2343 = vmax.f32 %v2341, %v2342
    %v2344 = vmax.f32 %v1948, %v1956
    %v2345 = vmax.f32 %v2344, %v1964
    %v2346 = vmax.f32 %v2345, %v1972
    %v2347 = vmax.f32 %v2346, %v1980
    %v2348 = vmax.f32 %v2347, %v1988
    %v2349 = vmax.f32 %v2348, %v1996
    %v2350 = vmax.f32 %v2349, %v2004
    %v2351 = vmax.f32 %v2350, %v2012
    %v2352 = vmax.f32 %v2351, %v2020
    %v2353 = vmax.f32 %v2352, %v2028
    %v2354 = vmax.f32 %v2353, %v2036
    %v2355 = vmax.f32 %v2354, %v2044
    %v2356 = vmax.f32 %v2355, %v2052
    %v2357 = vmax.f32 %v2356, %v2060
    %v2358 = vmax.f32 %v2357, %v2068
    %v2359 = vrot.slane %v2358, 4
    %v2360 = vmax.f32 %v2358, %v2359
    %v2361 = vrot.slane %v2360, 2
    %v2362 = vmax.f32 %v2360, %v2361
    %v2363 = vrot.slane %v2362, 1
    %v2364 = vmax.f32 %v2362, %v2363
    %v2365 = vmax.f32 %v2069, %v2077
    %v2366 = vmax.f32 %v2365, %v2085
    %v2367 = vmax.f32 %v2366, %v2093
    %v2368 = vmax.f32 %v2367, %v2101
    %v2369 = vmax.f32 %v2368, %v2109
    %v2370 = vmax.f32 %v2369, %v2117
    %v2371 = vmax.f32 %v2370, %v2125
    %v2372 = vmax.f32 %v2371, %v2133
    %v2373 = vmax.f32 %v2372, %v2141
    %v2374 = vmax.f32 %v2373, %v2149
    %v2375 = vmax.f32 %v2374, %v2157
    %v2376 = vmax.f32 %v2375, %v2165
    %v2377 = vmax.f32 %v2376, %v2173
    %v2378 = vmax.f32 %v2377, %v2181
    %v2379 = vmax.f32 %v2378, %v2189
    %v2380 = vrot.slane %v2379, 4
    %v2381 = vmax.f32 %v2379, %v2380
    %v2382 = vrot.slane %v2381, 2
    %v2383 = vmax.f32 %v2381, %v2382
    %v2384 = vrot.slane %v2383, 1
    %v2385 = vmax.f32 %v2383, %v2384
    %v2386 = vmax.f32 %v2070, %v2078
    %v2387 = vmax.f32 %v2386, %v2086
    %v2388 = vmax.f32 %v2387, %v2094
    %v2389 = vmax.f32 %v2388, %v2102
    %v2390 = vmax.f32 %v2389, %v2110
    %v2391 = vmax.f32 %v2390, %v2118
    %v2392 = vmax.f32 %v2391, %v2126
    %v2393 = vmax.f32 %v2392, %v2134
    %v2394 = vmax.f32 %v2393, %v2142
    %v2395 = vmax.f32 %v2394, %v2150
    %v2396 = vmax.f32 %v2395, %v2158
    %v2397 = vmax.f32 %v2396, %v2166
    %v2398 = vmax.f32 %v2397, %v2174
    %v2399 = vmax.f32 %v2398, %v2182
    %v2400 = vmax.f32 %v2399, %v2190
    %v2401 = vrot.slane %v2400, 4
    %v2402 = vmax.f32 %v2400, %v2401
    %v2403 = vrot.slane %v2402, 2
    %v2404 = vmax.f32 %v2402, %v2403
    %v2405 = vrot.slane %v2404, 1
    %v2406 = vmax.f32 %v2404, %v2405
    %v2407 = vmax.f32 %v2071, %v2079
    %v2408 = vmax.f32 %v2407, %v2087
    %v2409 = vmax.f32 %v2408, %v2095
    %v2410 = vmax.f32 %v2409, %v2103
    %v2411 = vmax.f32 %v2410, %v2111
    %v2412 = vmax.f32 %v2411, %v2119
    %v2413 = vmax.f32 %v2412, %v2127
    %v2414 = vmax.f32 %v2413, %v2135
    %v2415 = vmax.f32 %v2414, %v2143
    %v2416 = vmax.f32 %v2415, %v2151
    %v2417 = vmax.f32 %v2416, %v2159
    %v2418 = vmax.f32 %v2417, %v2167
    %v2419 = vmax.f32 %v2418, %v2175
    %v2420 = vmax.f32 %v2419, %v2183
    %v2421 = vmax.f32 %v2420, %v2191
    %v2422 = vrot.slane %v2421, 4
    %v2423 = vmax.f32 %v2421, %v2422
    %v2424 = vrot.slane %v2423, 2
    %v2425 = vmax.f32 %v2423, %v2424
    %v2426 = vrot.slane %v2425, 1
    %v2427 = vmax.f32 %v2425, %v2426
    %v2428 = vmax.f32 %v2072, %v2080
    %v2429 = vmax.f32 %v2428, %v2088
    %v2430 = vmax.f32 %v2429, %v2096
    %v2431 = vmax.f32 %v2430, %v2104
    %v2432 = vmax.f32 %v2431, %v2112
    %v2433 = vmax.f32 %v2432, %v2120
    %v2434 = vmax.f32 %v2433, %v2128
    %v2435 = vmax.f32 %v2434, %v2136
    %v2436 = vmax.f32 %v2435, %v2144
    %v2437 = vmax.f32 %v2436, %v2152
    %v2438 = vmax.f32 %v2437, %v2160
    %v2439 = vmax.f32 %v2438, %v2168
    %v2440 = vmax.f32 %v2439, %v2176
    %v2441 = vmax.f32 %v2440, %v2184
    %v2442 = vmax.f32 %v2441, %v2192
    %v2443 = vrot.slane %v2442, 4
    %v2444 = vmax.f32 %v2442, %v2443
    %v2445 = vrot.slane %v2444, 2
    %v2446 = vmax.f32 %v2444, %v2445
    %v2447 = vrot.slane %v2446, 1
    %v2448 = vmax.f32 %v2446, %v2447
    %v2449 = vmax.f32 %v2073, %v2081
    %v2450 = vmax.f32 %v2449, %v2089
    %v2451 = vmax.f32 %v2450, %v2097
    %v2452 = vmax.f32 %v2451, %v2105
    %v2453 = vmax.f32 %v2452, %v2113
    %v2454 = vmax.f32 %v2453, %v2121
    %v2455 = vmax.f32 %v2454, %v2129
    %v2456 = vmax.f32 %v2455, %v2137
    %v2457 = vmax.f32 %v2456, %v2145
    %v2458 = vmax.f32 %v2457, %v2153
    %v2459 = vmax.f32 %v2458, %v2161
    %v2460 = vmax.f32 %v2459, %v2169
    %v2461 = vmax.f32 %v2460, %v2177
    %v2462 = vmax.f32 %v2461, %v2185
    %v2463 = vmax.f32 %v2462, %v2193
    %v2464 = vrot.slane %v2463, 4
    %v2465 = vmax.f32 %v2463, %v2464
    %v2466 = vrot.slane %v2465, 2
    %v2467 = vmax.f32 %v2465, %v2466
    %v2468 = vrot.slane %v2467, 1
    %v2469 = vmax.f32 %v2467, %v2468
    %v2470 = vmax.f32 %v2074, %v2082
    %v2471 = vmax.f32 %v2470, %v2090
    %v2472 = vmax.f32 %v2471, %v2098
    %v2473 = vmax.f32 %v2472, %v2106
    %v2474 = vmax.f32 %v2473, %v2114
    %v2475 = vmax.f32 %v2474, %v2122
    %v2476 = vmax.f32 %v2475, %v2130
    %v2477 = vmax.f32 %v2476, %v2138
    %v2478 = vmax.f32 %v2477, %v2146
    %v2479 = vmax.f32 %v2478, %v2154
    %v2480 = vmax.f32 %v2479, %v2162
    %v2481 = vmax.f32 %v2480, %v2170
    %v2482 = vmax.f32 %v2481, %v2178
    %v2483 = vmax.f32 %v2482, %v2186
    %v2484 = vmax.f32 %v2483, %v2194
    %v2485 = vrot.slane %v2484, 4
    %v2486 = vmax.f32 %v2484, %v2485
    %v2487 = vrot.slane %v2486, 2
    %v2488 = vmax.f32 %v2486, %v2487
    %v2489 = vrot.slane %v2488, 1
    %v2490 = vmax.f32 %v2488, %v2489
    %v2491 = vmax.f32 %v2075, %v2083
    %v2492 = vmax.f32 %v2491, %v2091
    %v2493 = vmax.f32 %v2492, %v2099
    %v2494 = vmax.f32 %v2493, %v2107
    %v2495 = vmax.f32 %v2494, %v2115
    %v2496 = vmax.f32 %v2495, %v2123
    %v2497 = vmax.f32 %v2496, %v2131
    %v2498 = vmax.f32 %v2497, %v2139
    %v2499 = vmax.f32 %v2498, %v2147
    %v2500 = vmax.f32 %v2499, %v2155
    %v2501 = vmax.f32 %v2500, %v2163
    %v2502 = vmax.f32 %v2501, %v2171
    %v2503 = vmax.f32 %v2502, %v2179
    %v2504 = vmax.f32 %v2503, %v2187
    %v2505 = vmax.f32 %v2504, %v2195
    %v2506 = vrot.slane %v2505, 4
    %v2507 = vmax.f32 %v2505, %v2506
    %v2508 = vrot.slane %v2507, 2
    %v2509 = vmax.f32 %v2507, %v2508
    %v2510 = vrot.slane %v2509, 1
    %v2511 = vmax.f32 %v2509, %v2510
    %v2512 = vmax.f32 %v2076, %v2084
    %v2513 = vmax.f32 %v2512, %v2092
    %v2514 = vmax.f32 %v2513, %v2100
    %v2515 = vmax.f32 %v2514, %v2108
    %v2516 = vmax.f32 %v2515, %v2116
    %v2517 = vmax.f32 %v2516, %v2124
    %v2518 = vmax.f32 %v2517, %v2132
    %v2519 = vmax.f32 %v2518, %v2140
    %v2520 = vmax.f32 %v2519, %v2148
    %v2521 = vmax.f32 %v2520, %v2156
    %v2522 = vmax.f32 %v2521, %v2164
    %v2523 = vmax.f32 %v2522, %v2172
    %v2524 = vmax.f32 %v2523, %v2180
    %v2525 = vmax.f32 %v2524, %v2188
    %v2526 = vmax.f32 %v2525, %v2196
    %v2527 = vrot.slane %v2526, 4
    %v2528 = vmax.f32 %v2526, %v2527
    %v2529 = vrot.slane %v2528, 2
    %v2530 = vmax.f32 %v2528, %v2529
    %v2531 = vrot.slane %v2530, 1
    %v2532 = vmax.f32 %v2530, %v2531
    %v2533 = vsel %vm230, %v2217, %v2385
    %v2534 = vsel %vm230, %v2238, %v2406
    %v2535 = vsel %vm230, %v2259, %v2427
    %v2536 = vsel %vm230, %v2280, %v2448
    %v2537 = vsel %vm230, %v2301, %v2469
    %v2538 = vsel %vm230, %v2322, %v2490
    %v2539 = vsel %vm230, %v2343, %v2511
    %v2540 = vsel %vm230, %v2364, %v2532
    %v2541 = vpack.c.bf16 %v2533, %v2533
    %v2542 = vpack.c.bf16 %v2534, %v2534
    %v2543 = vpack.c.bf16 %v2535, %v2535
    %v2544 = vpack.c.bf16 %v2536, %v2536
    %v2545 = vpack.c.bf16 %v2537, %v2537
    %v2546 = vpack.c.bf16 %v2538, %v2538
    %v2547 = vpack.c.bf16 %v2539, %v2539
    %v2548 = vpack.c.bf16 %v2540, %v2540
    %v2549 = vld [vmem:[%s17] sm:$0xff]
    %v2550 = vld [vmem:[%s17 + $0x8] sm:$0xff]
    %v2551 = vld [vmem:[%s17 + $0x10] sm:$0xff]
    %v2552 = vld [vmem:[%s17 + $0x18] sm:$0xff]
    %v2553 = vld [vmem:[%s17 + $0x20] sm:$0xff]
    %v2554 = vld [vmem:[%s17 + $0x28] sm:$0xff]
    %v2555 = vld [vmem:[%s17 + $0x30] sm:$0xff]
    %v2556 = vld [vmem:[%s17 + $0x38] sm:$0xff]
    %v2557 = vld [vmem:[%s17 + $0x40] sm:$0xff]
    %v2558 = vld [vmem:[%s17 + $0x48] sm:$0xff]
    %v2559 = vld [vmem:[%s17 + $0x50] sm:$0xff]
    %v2560 = vld [vmem:[%s17 + $0x58] sm:$0xff]
    %v2561 = vld [vmem:[%s17 + $0x60] sm:$0xff]
    %v2562 = vld [vmem:[%s17 + $0x68] sm:$0xff]
    %v2563 = vld [vmem:[%s17 + $0x70] sm:$0xff]
    %v2564 = vld [vmem:[%s17 + $0x78] sm:$0xff]
    %v2565 = vld [vmem:[%s17 + $0x80] sm:$0xff]
    %v2566 = vld [vmem:[%s17 + $0x88] sm:$0xff]
    %v2567 = vld [vmem:[%s17 + $0x90] sm:$0xff]
    %v2568 = vld [vmem:[%s17 + $0x98] sm:$0xff]
    %v2569 = vld [vmem:[%s17 + $0xa0] sm:$0xff]
    %v2570 = vld [vmem:[%s17 + $0xa8] sm:$0xff]
    %v2571 = vld [vmem:[%s17 + $0xb0] sm:$0xff]
    %v2572 = vld [vmem:[%s17 + $0xb8] sm:$0xff]
    %v2573 = vld [vmem:[%s17 + $0xc0] sm:$0xff]
    %v2574 = vld [vmem:[%s17 + $0xc8] sm:$0xff]
    %v2575 = vld [vmem:[%s17 + $0xd0] sm:$0xff]
    %v2576 = vld [vmem:[%s17 + $0xd8] sm:$0xff]
    %v2577 = vld [vmem:[%s17 + $0xe0] sm:$0xff]
    %v2578 = vld [vmem:[%s17 + $0xe8] sm:$0xff]
    %v2579 = vld [vmem:[%s17 + $0xf0] sm:$0xff]
    %v2580 = vld [vmem:[%s17 + $0xf8] sm:$0xff]
    %v2581 = vld [vmem:[%s17 + $0x100] sm:$0xff]
    %v2582 = vld [vmem:[%s17 + $0x108] sm:$0xff]
    %v2583 = vld [vmem:[%s17 + $0x110] sm:$0xff]
    %v2584 = vld [vmem:[%s17 + $0x118] sm:$0xff]
    %v2585 = vld [vmem:[%s17 + $0x120] sm:$0xff]
    %v2586 = vld [vmem:[%s17 + $0x128] sm:$0xff]
    %v2587 = vld [vmem:[%s17 + $0x130] sm:$0xff]
    %v2588 = vld [vmem:[%s17 + $0x138] sm:$0xff]
    %v2589 = vld [vmem:[%s17 + $0x140] sm:$0xff]
    %v2590 = vld [vmem:[%s17 + $0x148] sm:$0xff]
    %v2591 = vld [vmem:[%s17 + $0x150] sm:$0xff]
    %v2592 = vld [vmem:[%s17 + $0x158] sm:$0xff]
    %v2593 = vld [vmem:[%s17 + $0x160] sm:$0xff]
    %v2594 = vld [vmem:[%s17 + $0x168] sm:$0xff]
    %v2595 = vld [vmem:[%s17 + $0x170] sm:$0xff]
    %v2596 = vld [vmem:[%s17 + $0x178] sm:$0xff]
    %v2597 = vld [vmem:[%s17 + $0x180] sm:$0xff]
    %v2598 = vld [vmem:[%s17 + $0x188] sm:$0xff]
    %v2599 = vld [vmem:[%s17 + $0x190] sm:$0xff]
    %v2600 = vld [vmem:[%s17 + $0x198] sm:$0xff]
    %v2601 = vld [vmem:[%s17 + $0x1a0] sm:$0xff]
    %v2602 = vld [vmem:[%s17 + $0x1a8] sm:$0xff]
    %v2603 = vld [vmem:[%s17 + $0x1b0] sm:$0xff]
    %v2604 = vld [vmem:[%s17 + $0x1b8] sm:$0xff]
    %v2605 = vld [vmem:[%s17 + $0x1c0] sm:$0xff]
    %v2606 = vld [vmem:[%s17 + $0x1c8] sm:$0xff]
    %v2607 = vld [vmem:[%s17 + $0x1d0] sm:$0xff]
    %v2608 = vld [vmem:[%s17 + $0x1d8] sm:$0xff]
    %v2609 = vld [vmem:[%s17 + $0x1e0] sm:$0xff]
    %v2610 = vld [vmem:[%s17 + $0x1e8] sm:$0xff]
    %v2611 = vld [vmem:[%s17 + $0x1f0] sm:$0xff]
    %v2612 = vld [vmem:[%s17 + $0x1f8] sm:$0xff]
    %v2613 = vld [vmem:[%s17 + $0x200] sm:$0xff]
    %v2614 = vld [vmem:[%s17 + $0x208] sm:$0xff]
    %v2615 = vld [vmem:[%s17 + $0x210] sm:$0xff]
    %v2616 = vld [vmem:[%s17 + $0x218] sm:$0xff]
    %v2617 = vld [vmem:[%s17 + $0x220] sm:$0xff]
    %v2618 = vld [vmem:[%s17 + $0x228] sm:$0xff]
    %v2619 = vld [vmem:[%s17 + $0x230] sm:$0xff]
    %v2620 = vld [vmem:[%s17 + $0x238] sm:$0xff]
    %v2621 = vld [vmem:[%s17 + $0x240] sm:$0xff]
    %v2622 = vld [vmem:[%s17 + $0x248] sm:$0xff]
    %v2623 = vld [vmem:[%s17 + $0x250] sm:$0xff]
    %v2624 = vld [vmem:[%s17 + $0x258] sm:$0xff]
    %v2625 = vld [vmem:[%s17 + $0x260] sm:$0xff]
    %v2626 = vld [vmem:[%s17 + $0x268] sm:$0xff]
    %v2627 = vld [vmem:[%s17 + $0x270] sm:$0xff]
    %v2628 = vld [vmem:[%s17 + $0x278] sm:$0xff]
    %v2629 = vld [vmem:[%s17 + $0x280] sm:$0xff]
    %v2630 = vld [vmem:[%s17 + $0x288] sm:$0xff]
    %v2631 = vld [vmem:[%s17 + $0x290] sm:$0xff]
    %v2632 = vld [vmem:[%s17 + $0x298] sm:$0xff]
    %v2633 = vld [vmem:[%s17 + $0x2a0] sm:$0xff]
    %v2634 = vld [vmem:[%s17 + $0x2a8] sm:$0xff]
    %v2635 = vld [vmem:[%s17 + $0x2b0] sm:$0xff]
    %v2636 = vld [vmem:[%s17 + $0x2b8] sm:$0xff]
    %v2637 = vld [vmem:[%s17 + $0x2c0] sm:$0xff]
    %v2638 = vld [vmem:[%s17 + $0x2c8] sm:$0xff]
    %v2639 = vld [vmem:[%s17 + $0x2d0] sm:$0xff]
    %v2640 = vld [vmem:[%s17 + $0x2d8] sm:$0xff]
    %v2641 = vld [vmem:[%s17 + $0x2e0] sm:$0xff]
    %v2642 = vld [vmem:[%s17 + $0x2e8] sm:$0xff]
    %v2643 = vld [vmem:[%s17 + $0x2f0] sm:$0xff]
    %v2644 = vld [vmem:[%s17 + $0x2f8] sm:$0xff]
    %v2645 = vld [vmem:[%s17 + $0x300] sm:$0xff]
    %v2646 = vld [vmem:[%s17 + $0x308] sm:$0xff]
    %v2647 = vld [vmem:[%s17 + $0x310] sm:$0xff]
    %v2648 = vld [vmem:[%s17 + $0x318] sm:$0xff]
    %v2649 = vld [vmem:[%s17 + $0x320] sm:$0xff]
    %v2650 = vld [vmem:[%s17 + $0x328] sm:$0xff]
    %v2651 = vld [vmem:[%s17 + $0x330] sm:$0xff]
    %v2652 = vld [vmem:[%s17 + $0x338] sm:$0xff]
    %v2653 = vld [vmem:[%s17 + $0x340] sm:$0xff]
    %v2654 = vld [vmem:[%s17 + $0x348] sm:$0xff]
    %v2655 = vld [vmem:[%s17 + $0x350] sm:$0xff]
    %v2656 = vld [vmem:[%s17 + $0x358] sm:$0xff]
    %v2657 = vld [vmem:[%s17 + $0x360] sm:$0xff]
    %v2658 = vld [vmem:[%s17 + $0x368] sm:$0xff]
    %v2659 = vld [vmem:[%s17 + $0x370] sm:$0xff]
    %v2660 = vld [vmem:[%s17 + $0x378] sm:$0xff]
    %v2661 = vld [vmem:[%s17 + $0x380] sm:$0xff]
    %v2662 = vld [vmem:[%s17 + $0x388] sm:$0xff]
    %v2663 = vld [vmem:[%s17 + $0x390] sm:$0xff]
    %v2664 = vld [vmem:[%s17 + $0x398] sm:$0xff]
    %v2665 = vld [vmem:[%s17 + $0x3a0] sm:$0xff]
    %v2666 = vld [vmem:[%s17 + $0x3a8] sm:$0xff]
    %v2667 = vld [vmem:[%s17 + $0x3b0] sm:$0xff]
    %v2668 = vld [vmem:[%s17 + $0x3b8] sm:$0xff]
    %v2669 = vld [vmem:[%s17 + $0x3c0] sm:$0xff]
    %v2670 = vld [vmem:[%s17 + $0x3c8] sm:$0xff]
    %v2671 = vld [vmem:[%s17 + $0x3d0] sm:$0xff]
    %v2672 = vld [vmem:[%s17 + $0x3d8] sm:$0xff]
    %v2673 = vld [vmem:[%s17 + $0x3e0] sm:$0xff]
    %v2674 = vld [vmem:[%s17 + $0x3e8] sm:$0xff]
    %v2675 = vld [vmem:[%s17 + $0x3f0] sm:$0xff]
    %v2676 = vld [vmem:[%s17 + $0x3f8] sm:$0xff]
    %v2677 = vld [vmem:[%s17 + $0x400] sm:$0xff]
    %v2678 = vld [vmem:[%s17 + $0x408] sm:$0xff]
    %v2679 = vld [vmem:[%s17 + $0x410] sm:$0xff]
    %v2680 = vld [vmem:[%s17 + $0x418] sm:$0xff]
    %v2681 = vld [vmem:[%s17 + $0x420] sm:$0xff]
    %v2682 = vld [vmem:[%s17 + $0x428] sm:$0xff]
    %v2683 = vld [vmem:[%s17 + $0x430] sm:$0xff]
    %v2684 = vld [vmem:[%s17 + $0x438] sm:$0xff]
    %v2685 = vld [vmem:[%s17 + $0x440] sm:$0xff]
    %v2686 = vld [vmem:[%s17 + $0x448] sm:$0xff]
    %v2687 = vld [vmem:[%s17 + $0x450] sm:$0xff]
    %v2688 = vld [vmem:[%s17 + $0x458] sm:$0xff]
    %v2689 = vld [vmem:[%s17 + $0x460] sm:$0xff]
    %v2690 = vld [vmem:[%s17 + $0x468] sm:$0xff]
    %v2691 = vld [vmem:[%s17 + $0x470] sm:$0xff]
    %v2692 = vld [vmem:[%s17 + $0x478] sm:$0xff]
    %v2693 = vld [vmem:[%s17 + $0x480] sm:$0xff]
    %v2694 = vld [vmem:[%s17 + $0x488] sm:$0xff]
    %v2695 = vld [vmem:[%s17 + $0x490] sm:$0xff]
    %v2696 = vld [vmem:[%s17 + $0x498] sm:$0xff]
    %v2697 = vld [vmem:[%s17 + $0x4a0] sm:$0xff]
    %v2698 = vld [vmem:[%s17 + $0x4a8] sm:$0xff]
    %v2699 = vld [vmem:[%s17 + $0x4b0] sm:$0xff]
    %v2700 = vld [vmem:[%s17 + $0x4b8] sm:$0xff]
    %v2701 = vld [vmem:[%s17 + $0x4c0] sm:$0xff]
    %v2702 = vld [vmem:[%s17 + $0x4c8] sm:$0xff]
    %v2703 = vld [vmem:[%s17 + $0x4d0] sm:$0xff]
    %v2704 = vld [vmem:[%s17 + $0x4d8] sm:$0xff]
    %v2705 = vld [vmem:[%s17 + $0x4e0] sm:$0xff]
    %v2706 = vld [vmem:[%s17 + $0x4e8] sm:$0xff]
    %v2707 = vld [vmem:[%s17 + $0x4f0] sm:$0xff]
    %v2708 = vld [vmem:[%s17 + $0x4f8] sm:$0xff]
    %v2709 = vld [vmem:[%s17 + $0x500] sm:$0xff]
    %v2710 = vld [vmem:[%s17 + $0x508] sm:$0xff]
    %v2711 = vld [vmem:[%s17 + $0x510] sm:$0xff]
    %v2712 = vld [vmem:[%s17 + $0x518] sm:$0xff]
    %v2713 = vld [vmem:[%s17 + $0x520] sm:$0xff]
    %v2714 = vld [vmem:[%s17 + $0x528] sm:$0xff]
    %v2715 = vld [vmem:[%s17 + $0x530] sm:$0xff]
    %v2716 = vld [vmem:[%s17 + $0x538] sm:$0xff]
    %v2717 = vld [vmem:[%s17 + $0x540] sm:$0xff]
    %v2718 = vld [vmem:[%s17 + $0x548] sm:$0xff]
    %v2719 = vld [vmem:[%s17 + $0x550] sm:$0xff]
    %v2720 = vld [vmem:[%s17 + $0x558] sm:$0xff]
    %v2721 = vld [vmem:[%s17 + $0x560] sm:$0xff]
    %v2722 = vld [vmem:[%s17 + $0x568] sm:$0xff]
    %v2723 = vld [vmem:[%s17 + $0x570] sm:$0xff]
    %v2724 = vld [vmem:[%s17 + $0x578] sm:$0xff]
    %v2725 = vld [vmem:[%s17 + $0x580] sm:$0xff]
    %v2726 = vld [vmem:[%s17 + $0x588] sm:$0xff]
    %v2727 = vld [vmem:[%s17 + $0x590] sm:$0xff]
    %v2728 = vld [vmem:[%s17 + $0x598] sm:$0xff]
    %v2729 = vld [vmem:[%s17 + $0x5a0] sm:$0xff]
    %v2730 = vld [vmem:[%s17 + $0x5a8] sm:$0xff]
    %v2731 = vld [vmem:[%s17 + $0x5b0] sm:$0xff]
    %v2732 = vld [vmem:[%s17 + $0x5b8] sm:$0xff]
    %v2733 = vld [vmem:[%s17 + $0x5c0] sm:$0xff]
    %v2734 = vld [vmem:[%s17 + $0x5c8] sm:$0xff]
    %v2735 = vld [vmem:[%s17 + $0x5d0] sm:$0xff]
    %v2736 = vld [vmem:[%s17 + $0x5d8] sm:$0xff]
    %v2737 = vld [vmem:[%s17 + $0x5e0] sm:$0xff]
    %v2738 = vld [vmem:[%s17 + $0x5e8] sm:$0xff]
    %v2739 = vld [vmem:[%s17 + $0x5f0] sm:$0xff]
    %v2740 = vld [vmem:[%s17 + $0x5f8] sm:$0xff]
    %v2741 = vld [vmem:[%s17 + $0x600] sm:$0xff]
    %v2742 = vld [vmem:[%s17 + $0x608] sm:$0xff]
    %v2743 = vld [vmem:[%s17 + $0x610] sm:$0xff]
    %v2744 = vld [vmem:[%s17 + $0x618] sm:$0xff]
    %v2745 = vld [vmem:[%s17 + $0x620] sm:$0xff]
    %v2746 = vld [vmem:[%s17 + $0x628] sm:$0xff]
    %v2747 = vld [vmem:[%s17 + $0x630] sm:$0xff]
    %v2748 = vld [vmem:[%s17 + $0x638] sm:$0xff]
    %v2749 = vld [vmem:[%s17 + $0x640] sm:$0xff]
    %v2750 = vld [vmem:[%s17 + $0x648] sm:$0xff]
    %v2751 = vld [vmem:[%s17 + $0x650] sm:$0xff]
    %v2752 = vld [vmem:[%s17 + $0x658] sm:$0xff]
    %v2753 = vld [vmem:[%s17 + $0x660] sm:$0xff]
    %v2754 = vld [vmem:[%s17 + $0x668] sm:$0xff]
    %v2755 = vld [vmem:[%s17 + $0x670] sm:$0xff]
    %v2756 = vld [vmem:[%s17 + $0x678] sm:$0xff]
    %v2757 = vld [vmem:[%s17 + $0x680] sm:$0xff]
    %v2758 = vld [vmem:[%s17 + $0x688] sm:$0xff]
    %v2759 = vld [vmem:[%s17 + $0x690] sm:$0xff]
    %v2760 = vld [vmem:[%s17 + $0x698] sm:$0xff]
    %v2761 = vld [vmem:[%s17 + $0x6a0] sm:$0xff]
    %v2762 = vld [vmem:[%s17 + $0x6a8] sm:$0xff]
    %v2763 = vld [vmem:[%s17 + $0x6b0] sm:$0xff]
    %v2764 = vld [vmem:[%s17 + $0x6b8] sm:$0xff]
    %v2765 = vld [vmem:[%s17 + $0x6c0] sm:$0xff]
    %v2766 = vld [vmem:[%s17 + $0x6c8] sm:$0xff]
    %v2767 = vld [vmem:[%s17 + $0x6d0] sm:$0xff]
    %v2768 = vld [vmem:[%s17 + $0x6d8] sm:$0xff]
    %v2769 = vld [vmem:[%s17 + $0x6e0] sm:$0xff]
    %v2770 = vld [vmem:[%s17 + $0x6e8] sm:$0xff]
    %v2771 = vld [vmem:[%s17 + $0x6f0] sm:$0xff]
    %v2772 = vld [vmem:[%s17 + $0x6f8] sm:$0xff]
    %v2773 = vld [vmem:[%s17 + $0x700] sm:$0xff]
    %v2774 = vld [vmem:[%s17 + $0x708] sm:$0xff]
    %v2775 = vld [vmem:[%s17 + $0x710] sm:$0xff]
    %v2776 = vld [vmem:[%s17 + $0x718] sm:$0xff]
    %v2777 = vld [vmem:[%s17 + $0x720] sm:$0xff]
    %v2778 = vld [vmem:[%s17 + $0x728] sm:$0xff]
    %v2779 = vld [vmem:[%s17 + $0x730] sm:$0xff]
    %v2780 = vld [vmem:[%s17 + $0x738] sm:$0xff]
    %v2781 = vld [vmem:[%s17 + $0x740] sm:$0xff]
    %v2782 = vld [vmem:[%s17 + $0x748] sm:$0xff]
    %v2783 = vld [vmem:[%s17 + $0x750] sm:$0xff]
    %v2784 = vld [vmem:[%s17 + $0x758] sm:$0xff]
    %v2785 = vld [vmem:[%s17 + $0x760] sm:$0xff]
    %v2786 = vld [vmem:[%s17 + $0x768] sm:$0xff]
    %v2787 = vld [vmem:[%s17 + $0x770] sm:$0xff]
    %v2788 = vld [vmem:[%s17 + $0x778] sm:$0xff]
    %v2789 = vld [vmem:[%s17 + $0x780] sm:$0xff]
    %v2790 = vld [vmem:[%s17 + $0x788] sm:$0xff]
    %v2791 = vld [vmem:[%s17 + $0x790] sm:$0xff]
    %v2792 = vld [vmem:[%s17 + $0x798] sm:$0xff]
    %v2793 = vld [vmem:[%s17 + $0x7a0] sm:$0xff]
    %v2794 = vld [vmem:[%s17 + $0x7a8] sm:$0xff]
    %v2795 = vld [vmem:[%s17 + $0x7b0] sm:$0xff]
    %v2796 = vld [vmem:[%s17 + $0x7b8] sm:$0xff]
    %v2797 = vld [vmem:[%s17 + $0x7c0] sm:$0xff]
    %v2798 = vld [vmem:[%s17 + $0x7c8] sm:$0xff]
    %v2799 = vld [vmem:[%s17 + $0x7d0] sm:$0xff]
    %v2800 = vld [vmem:[%s17 + $0x7d8] sm:$0xff]
    %v2801 = vld [vmem:[%s17 + $0x7e0] sm:$0xff]
    %v2802 = vld [vmem:[%s17 + $0x7e8] sm:$0xff]
    %v2803 = vld [vmem:[%s17 + $0x7f0] sm:$0xff]
    %v2804 = vld [vmem:[%s17 + $0x7f8] sm:$0xff]
    %v2805 = vld [vmem:[%s19] sm:$0xf]
    %v2807 = vlaneseq
    %v2808 = vshrl.u32 %v2807, 7
    %v2809 = vsub.s32 0, %v2808
    %v2810 = vrot.slane %v2805, %v2809
    %v2811 = vlaneseq
    %v2812 = vshrl.u32 %v2811, 7
    %v2813 = vsub.s32 1, %v2812
    %v2814 = vrot.slane %v2805, %v2813
    %v2815 = vlaneseq
    %v2816 = vshrl.u32 %v2815, 7
    %v2817 = vsub.s32 2, %v2816
    %v2818 = vrot.slane %v2805, %v2817
    %v2819 = vlaneseq
    %v2820 = vshrl.u32 %v2819, 7
    %v2821 = vsub.s32 3, %v2820
    %v2822 = vrot.slane %v2805, %v2821
    %v3083 = vunpack.c.l.b16 %v2549
    %v3084 = vunpack.c.h.b16 %v2549
    %v3085 = vunpack.c.l.b16 %v2550
    %v3086 = vunpack.c.h.b16 %v2550
    %v3087 = vunpack.c.l.b16 %v2551
    %v3088 = vunpack.c.h.b16 %v2551
    %v3089 = vunpack.c.l.b16 %v2552
    %v3090 = vunpack.c.h.b16 %v2552
    %v3091 = vunpack.c.l.b16 %v2553
    %v3092 = vunpack.c.h.b16 %v2553
    %v3093 = vunpack.c.l.b16 %v2554
    %v3094 = vunpack.c.h.b16 %v2554
    %v3095 = vunpack.c.l.b16 %v2555
    %v3096 = vunpack.c.h.b16 %v2555
    %v3097 = vunpack.c.l.b16 %v2556
    %v3098 = vunpack.c.h.b16 %v2556
    %v3099 = vunpack.c.l.b16 %v2557
    %v3100 = vunpack.c.h.b16 %v2557
    %v3101 = vunpack.c.l.b16 %v2558
    %v3102 = vunpack.c.h.b16 %v2558
    %v3103 = vunpack.c.l.b16 %v2559
    %v3104 = vunpack.c.h.b16 %v2559
    %v3105 = vunpack.c.l.b16 %v2560
    %v3106 = vunpack.c.h.b16 %v2560
    %v3107 = vunpack.c.l.b16 %v2561
    %v3108 = vunpack.c.h.b16 %v2561
    %v3109 = vunpack.c.l.b16 %v2562
    %v3110 = vunpack.c.h.b16 %v2562
    %v3111 = vunpack.c.l.b16 %v2563
    %v3112 = vunpack.c.h.b16 %v2563
    %v3113 = vunpack.c.l.b16 %v2564
    %v3114 = vunpack.c.h.b16 %v2564
    %v3115 = vunpack.c.l.b16 %v2565
    %v3116 = vunpack.c.h.b16 %v2565
    %v3117 = vunpack.c.l.b16 %v2566
    %v3118 = vunpack.c.h.b16 %v2566
    %v3119 = vunpack.c.l.b16 %v2567
    %v3120 = vunpack.c.h.b16 %v2567
    %v3121 = vunpack.c.l.b16 %v2568
    %v3122 = vunpack.c.h.b16 %v2568
    %v3123 = vunpack.c.l.b16 %v2569
    %v3124 = vunpack.c.h.b16 %v2569
    %v3125 = vunpack.c.l.b16 %v2570
    %v3126 = vunpack.c.h.b16 %v2570
    %v3127 = vunpack.c.l.b16 %v2571
    %v3128 = vunpack.c.h.b16 %v2571
    %v3129 = vunpack.c.l.b16 %v2572
    %v3130 = vunpack.c.h.b16 %v2572
    %v3131 = vunpack.c.l.b16 %v2573
    %v3132 = vunpack.c.h.b16 %v2573
    %v3133 = vunpack.c.l.b16 %v2574
    %v3134 = vunpack.c.h.b16 %v2574
    %v3135 = vunpack.c.l.b16 %v2575
    %v3136 = vunpack.c.h.b16 %v2575
    %v3137 = vunpack.c.l.b16 %v2576
    %v3138 = vunpack.c.h.b16 %v2576
    %v3139 = vunpack.c.l.b16 %v2577
    %v3140 = vunpack.c.h.b16 %v2577
    %v3141 = vunpack.c.l.b16 %v2578
    %v3142 = vunpack.c.h.b16 %v2578
    %v3143 = vunpack.c.l.b16 %v2579
    %v3144 = vunpack.c.h.b16 %v2579
    %v3145 = vunpack.c.l.b16 %v2580
    %v3146 = vunpack.c.h.b16 %v2580
    %v3147 = vunpack.c.l.b16 %v2581
    %v3148 = vunpack.c.h.b16 %v2581
    %v3149 = vunpack.c.l.b16 %v2582
    %v3150 = vunpack.c.h.b16 %v2582
    %v3151 = vunpack.c.l.b16 %v2583
    %v3152 = vunpack.c.h.b16 %v2583
    %v3153 = vunpack.c.l.b16 %v2584
    %v3154 = vunpack.c.h.b16 %v2584
    %v3155 = vunpack.c.l.b16 %v2585
    %v3156 = vunpack.c.h.b16 %v2585
    %v3157 = vunpack.c.l.b16 %v2586
    %v3158 = vunpack.c.h.b16 %v2586
    %v3159 = vunpack.c.l.b16 %v2587
    %v3160 = vunpack.c.h.b16 %v2587
    %v3161 = vunpack.c.l.b16 %v2588
    %v3162 = vunpack.c.h.b16 %v2588
    %v3163 = vunpack.c.l.b16 %v2589
    %v3164 = vunpack.c.h.b16 %v2589
    %v3165 = vunpack.c.l.b16 %v2590
    %v3166 = vunpack.c.h.b16 %v2590
    %v3167 = vunpack.c.l.b16 %v2591
    %v3168 = vunpack.c.h.b16 %v2591
    %v3169 = vunpack.c.l.b16 %v2592
    %v3170 = vunpack.c.h.b16 %v2592
    %v3171 = vunpack.c.l.b16 %v2593
    %v3172 = vunpack.c.h.b16 %v2593
    %v3173 = vunpack.c.l.b16 %v2594
    %v3174 = vunpack.c.h.b16 %v2594
    %v3175 = vunpack.c.l.b16 %v2595
    %v3176 = vunpack.c.h.b16 %v2595
    %v3177 = vunpack.c.l.b16 %v2596
    %v3178 = vunpack.c.h.b16 %v2596
    %v3179 = vunpack.c.l.b16 %v2597
    %v3180 = vunpack.c.h.b16 %v2597
    %v3181 = vunpack.c.l.b16 %v2598
    %v3182 = vunpack.c.h.b16 %v2598
    %v3183 = vunpack.c.l.b16 %v2599
    %v3184 = vunpack.c.h.b16 %v2599
    %v3185 = vunpack.c.l.b16 %v2600
    %v3186 = vunpack.c.h.b16 %v2600
    %v3187 = vunpack.c.l.b16 %v2601
    %v3188 = vunpack.c.h.b16 %v2601
    %v3189 = vunpack.c.l.b16 %v2602
    %v3190 = vunpack.c.h.b16 %v2602
    %v3191 = vunpack.c.l.b16 %v2603
    %v3192 = vunpack.c.h.b16 %v2603
    %v3193 = vunpack.c.l.b16 %v2604
    %v3194 = vunpack.c.h.b16 %v2604
    %v3195 = vunpack.c.l.b16 %v2605
    %v3196 = vunpack.c.h.b16 %v2605
    %v3197 = vunpack.c.l.b16 %v2606
    %v3198 = vunpack.c.h.b16 %v2606
    %v3199 = vunpack.c.l.b16 %v2607
    %v3200 = vunpack.c.h.b16 %v2607
    %v3201 = vunpack.c.l.b16 %v2608
    %v3202 = vunpack.c.h.b16 %v2608
    %v3203 = vunpack.c.l.b16 %v2609
    %v3204 = vunpack.c.h.b16 %v2609
    %v3205 = vunpack.c.l.b16 %v2610
    %v3206 = vunpack.c.h.b16 %v2610
    %v3207 = vunpack.c.l.b16 %v2611
    %v3208 = vunpack.c.h.b16 %v2611
    %v3209 = vunpack.c.l.b16 %v2612
    %v3210 = vunpack.c.h.b16 %v2612
    %v3211 = vunpack.c.l.b16 %v2613
    %v3212 = vunpack.c.h.b16 %v2613
    %v3213 = vunpack.c.l.b16 %v2614
    %v3214 = vunpack.c.h.b16 %v2614
    %v3215 = vunpack.c.l.b16 %v2615
    %v3216 = vunpack.c.h.b16 %v2615
    %v3217 = vunpack.c.l.b16 %v2616
    %v3218 = vunpack.c.h.b16 %v2616
    %v3219 = vunpack.c.l.b16 %v2617
    %v3220 = vunpack.c.h.b16 %v2617
    %v3221 = vunpack.c.l.b16 %v2618
    %v3222 = vunpack.c.h.b16 %v2618
    %v3223 = vunpack.c.l.b16 %v2619
    %v3224 = vunpack.c.h.b16 %v2619
    %v3225 = vunpack.c.l.b16 %v2620
    %v3226 = vunpack.c.h.b16 %v2620
    %v3227 = vunpack.c.l.b16 %v2621
    %v3228 = vunpack.c.h.b16 %v2621
    %v3229 = vunpack.c.l.b16 %v2622
    %v3230 = vunpack.c.h.b16 %v2622
    %v3231 = vunpack.c.l.b16 %v2623
    %v3232 = vunpack.c.h.b16 %v2623
    %v3233 = vunpack.c.l.b16 %v2624
    %v3234 = vunpack.c.h.b16 %v2624
    %v3235 = vunpack.c.l.b16 %v2625
    %v3236 = vunpack.c.h.b16 %v2625
    %v3237 = vunpack.c.l.b16 %v2626
    %v3238 = vunpack.c.h.b16 %v2626
    %v3239 = vunpack.c.l.b16 %v2627
    %v3240 = vunpack.c.h.b16 %v2627
    %v3241 = vunpack.c.l.b16 %v2628
    %v3242 = vunpack.c.h.b16 %v2628
    %v3243 = vunpack.c.l.b16 %v2629
    %v3244 = vunpack.c.h.b16 %v2629
    %v3245 = vunpack.c.l.b16 %v2630
    %v3246 = vunpack.c.h.b16 %v2630
    %v3247 = vunpack.c.l.b16 %v2631
    %v3248 = vunpack.c.h.b16 %v2631
    %v3249 = vunpack.c.l.b16 %v2632
    %v3250 = vunpack.c.h.b16 %v2632
    %v3251 = vunpack.c.l.b16 %v2633
    %v3252 = vunpack.c.h.b16 %v2633
    %v3253 = vunpack.c.l.b16 %v2634
    %v3254 = vunpack.c.h.b16 %v2634
    %v3255 = vunpack.c.l.b16 %v2635
    %v3256 = vunpack.c.h.b16 %v2635
    %v3257 = vunpack.c.l.b16 %v2636
    %v3258 = vunpack.c.h.b16 %v2636
    %v3259 = vunpack.c.l.b16 %v2637
    %v3260 = vunpack.c.h.b16 %v2637
    %v3261 = vunpack.c.l.b16 %v2638
    %v3262 = vunpack.c.h.b16 %v2638
    %v3263 = vunpack.c.l.b16 %v2639
    %v3264 = vunpack.c.h.b16 %v2639
    %v3265 = vunpack.c.l.b16 %v2640
    %v3266 = vunpack.c.h.b16 %v2640
    %v3267 = vunpack.c.l.b16 %v2641
    %v3268 = vunpack.c.h.b16 %v2641
    %v3269 = vunpack.c.l.b16 %v2642
    %v3270 = vunpack.c.h.b16 %v2642
    %v3271 = vunpack.c.l.b16 %v2643
    %v3272 = vunpack.c.h.b16 %v2643
    %v3273 = vunpack.c.l.b16 %v2644
    %v3274 = vunpack.c.h.b16 %v2644
    %v3275 = vunpack.c.l.b16 %v2645
    %v3276 = vunpack.c.h.b16 %v2645
    %v3277 = vunpack.c.l.b16 %v2646
    %v3278 = vunpack.c.h.b16 %v2646
    %v3279 = vunpack.c.l.b16 %v2647
    %v3280 = vunpack.c.h.b16 %v2647
    %v3281 = vunpack.c.l.b16 %v2648
    %v3282 = vunpack.c.h.b16 %v2648
    %v3283 = vunpack.c.l.b16 %v2649
    %v3284 = vunpack.c.h.b16 %v2649
    %v3285 = vunpack.c.l.b16 %v2650
    %v3286 = vunpack.c.h.b16 %v2650
    %v3287 = vunpack.c.l.b16 %v2651
    %v3288 = vunpack.c.h.b16 %v2651
    %v3289 = vunpack.c.l.b16 %v2652
    %v3290 = vunpack.c.h.b16 %v2652
    %v3291 = vunpack.c.l.b16 %v2653
    %v3292 = vunpack.c.h.b16 %v2653
    %v3293 = vunpack.c.l.b16 %v2654
    %v3294 = vunpack.c.h.b16 %v2654
    %v3295 = vunpack.c.l.b16 %v2655
    %v3296 = vunpack.c.h.b16 %v2655
    %v3297 = vunpack.c.l.b16 %v2656
    %v3298 = vunpack.c.h.b16 %v2656
    %v3299 = vunpack.c.l.b16 %v2657
    %v3300 = vunpack.c.h.b16 %v2657
    %v3301 = vunpack.c.l.b16 %v2658
    %v3302 = vunpack.c.h.b16 %v2658
    %v3303 = vunpack.c.l.b16 %v2659
    %v3304 = vunpack.c.h.b16 %v2659
    %v3305 = vunpack.c.l.b16 %v2660
    %v3306 = vunpack.c.h.b16 %v2660
    %v3307 = vunpack.c.l.b16 %v2661
    %v3308 = vunpack.c.h.b16 %v2661
    %v3309 = vunpack.c.l.b16 %v2662
    %v3310 = vunpack.c.h.b16 %v2662
    %v3311 = vunpack.c.l.b16 %v2663
    %v3312 = vunpack.c.h.b16 %v2663
    %v3313 = vunpack.c.l.b16 %v2664
    %v3314 = vunpack.c.h.b16 %v2664
    %v3315 = vunpack.c.l.b16 %v2665
    %v3316 = vunpack.c.h.b16 %v2665
    %v3317 = vunpack.c.l.b16 %v2666
    %v3318 = vunpack.c.h.b16 %v2666
    %v3319 = vunpack.c.l.b16 %v2667
    %v3320 = vunpack.c.h.b16 %v2667
    %v3321 = vunpack.c.l.b16 %v2668
    %v3322 = vunpack.c.h.b16 %v2668
    %v3323 = vunpack.c.l.b16 %v2669
    %v3324 = vunpack.c.h.b16 %v2669
    %v3325 = vunpack.c.l.b16 %v2670
    %v3326 = vunpack.c.h.b16 %v2670
    %v3327 = vunpack.c.l.b16 %v2671
    %v3328 = vunpack.c.h.b16 %v2671
    %v3329 = vunpack.c.l.b16 %v2672
    %v3330 = vunpack.c.h.b16 %v2672
    %v3331 = vunpack.c.l.b16 %v2673
    %v3332 = vunpack.c.h.b16 %v2673
    %v3333 = vunpack.c.l.b16 %v2674
    %v3334 = vunpack.c.h.b16 %v2674
    %v3335 = vunpack.c.l.b16 %v2675
    %v3336 = vunpack.c.h.b16 %v2675
    %v3337 = vunpack.c.l.b16 %v2676
    %v3338 = vunpack.c.h.b16 %v2676
    %v3339 = vunpack.c.l.b16 %v2677
    %v3340 = vunpack.c.h.b16 %v2677
    %v3341 = vunpack.c.l.b16 %v2678
    %v3342 = vunpack.c.h.b16 %v2678
    %v3343 = vunpack.c.l.b16 %v2679
    %v3344 = vunpack.c.h.b16 %v2679
    %v3345 = vunpack.c.l.b16 %v2680
    %v3346 = vunpack.c.h.b16 %v2680
    %v3347 = vunpack.c.l.b16 %v2681
    %v3348 = vunpack.c.h.b16 %v2681
    %v3349 = vunpack.c.l.b16 %v2682
    %v3350 = vunpack.c.h.b16 %v2682
    %v3351 = vunpack.c.l.b16 %v2683
    %v3352 = vunpack.c.h.b16 %v2683
    %v3353 = vunpack.c.l.b16 %v2684
    %v3354 = vunpack.c.h.b16 %v2684
    %v3355 = vunpack.c.l.b16 %v2685
    %v3356 = vunpack.c.h.b16 %v2685
    %v3357 = vunpack.c.l.b16 %v2686
    %v3358 = vunpack.c.h.b16 %v2686
    %v3359 = vunpack.c.l.b16 %v2687
    %v3360 = vunpack.c.h.b16 %v2687
    %v3361 = vunpack.c.l.b16 %v2688
    %v3362 = vunpack.c.h.b16 %v2688
    %v3363 = vunpack.c.l.b16 %v2689
    %v3364 = vunpack.c.h.b16 %v2689
    %v3365 = vunpack.c.l.b16 %v2690
    %v3366 = vunpack.c.h.b16 %v2690
    %v3367 = vunpack.c.l.b16 %v2691
    %v3368 = vunpack.c.h.b16 %v2691
    %v3369 = vunpack.c.l.b16 %v2692
    %v3370 = vunpack.c.h.b16 %v2692
    %v3371 = vunpack.c.l.b16 %v2693
    %v3372 = vunpack.c.h.b16 %v2693
    %v3373 = vunpack.c.l.b16 %v2694
    %v3374 = vunpack.c.h.b16 %v2694
    %v3375 = vunpack.c.l.b16 %v2695
    %v3376 = vunpack.c.h.b16 %v2695
    %v3377 = vunpack.c.l.b16 %v2696
    %v3378 = vunpack.c.h.b16 %v2696
    %v3379 = vunpack.c.l.b16 %v2697
    %v3380 = vunpack.c.h.b16 %v2697
    %v3381 = vunpack.c.l.b16 %v2698
    %v3382 = vunpack.c.h.b16 %v2698
    %v3383 = vunpack.c.l.b16 %v2699
    %v3384 = vunpack.c.h.b16 %v2699
    %v3385 = vunpack.c.l.b16 %v2700
    %v3386 = vunpack.c.h.b16 %v2700
    %v3387 = vunpack.c.l.b16 %v2701
    %v3388 = vunpack.c.h.b16 %v2701
    %v3389 = vunpack.c.l.b16 %v2702
    %v3390 = vunpack.c.h.b16 %v2702
    %v3391 = vunpack.c.l.b16 %v2703
    %v3392 = vunpack.c.h.b16 %v2703
    %v3393 = vunpack.c.l.b16 %v2704
    %v3394 = vunpack.c.h.b16 %v2704
    %v3395 = vunpack.c.l.b16 %v2705
    %v3396 = vunpack.c.h.b16 %v2705
    %v3397 = vunpack.c.l.b16 %v2706
    %v3398 = vunpack.c.h.b16 %v2706
    %v3399 = vunpack.c.l.b16 %v2707
    %v3400 = vunpack.c.h.b16 %v2707
    %v3401 = vunpack.c.l.b16 %v2708
    %v3402 = vunpack.c.h.b16 %v2708
    %v3403 = vunpack.c.l.b16 %v2709
    %v3404 = vunpack.c.h.b16 %v2709
    %v3405 = vunpack.c.l.b16 %v2710
    %v3406 = vunpack.c.h.b16 %v2710
    %v3407 = vunpack.c.l.b16 %v2711
    %v3408 = vunpack.c.h.b16 %v2711
    %v3409 = vunpack.c.l.b16 %v2712
    %v3410 = vunpack.c.h.b16 %v2712
    %v3411 = vunpack.c.l.b16 %v2713
    %v3412 = vunpack.c.h.b16 %v2713
    %v3413 = vunpack.c.l.b16 %v2714
    %v3414 = vunpack.c.h.b16 %v2714
    %v3415 = vunpack.c.l.b16 %v2715
    %v3416 = vunpack.c.h.b16 %v2715
    %v3417 = vunpack.c.l.b16 %v2716
    %v3418 = vunpack.c.h.b16 %v2716
    %v3419 = vunpack.c.l.b16 %v2717
    %v3420 = vunpack.c.h.b16 %v2717
    %v3421 = vunpack.c.l.b16 %v2718
    %v3422 = vunpack.c.h.b16 %v2718
    %v3423 = vunpack.c.l.b16 %v2719
    %v3424 = vunpack.c.h.b16 %v2719
    %v3425 = vunpack.c.l.b16 %v2720
    %v3426 = vunpack.c.h.b16 %v2720
    %v3427 = vunpack.c.l.b16 %v2721
    %v3428 = vunpack.c.h.b16 %v2721
    %v3429 = vunpack.c.l.b16 %v2722
    %v3430 = vunpack.c.h.b16 %v2722
    %v3431 = vunpack.c.l.b16 %v2723
    %v3432 = vunpack.c.h.b16 %v2723
    %v3433 = vunpack.c.l.b16 %v2724
    %v3434 = vunpack.c.h.b16 %v2724
    %v3435 = vunpack.c.l.b16 %v2725
    %v3436 = vunpack.c.h.b16 %v2725
    %v3437 = vunpack.c.l.b16 %v2726
    %v3438 = vunpack.c.h.b16 %v2726
    %v3439 = vunpack.c.l.b16 %v2727
    %v3440 = vunpack.c.h.b16 %v2727
    %v3441 = vunpack.c.l.b16 %v2728
    %v3442 = vunpack.c.h.b16 %v2728
    %v3443 = vunpack.c.l.b16 %v2729
    %v3444 = vunpack.c.h.b16 %v2729
    %v3445 = vunpack.c.l.b16 %v2730
    %v3446 = vunpack.c.h.b16 %v2730
    %v3447 = vunpack.c.l.b16 %v2731
    %v3448 = vunpack.c.h.b16 %v2731
    %v3449 = vunpack.c.l.b16 %v2732
    %v3450 = vunpack.c.h.b16 %v2732
    %v3451 = vunpack.c.l.b16 %v2733
    %v3452 = vunpack.c.h.b16 %v2733
    %v3453 = vunpack.c.l.b16 %v2734
    %v3454 = vunpack.c.h.b16 %v2734
    %v3455 = vunpack.c.l.b16 %v2735
    %v3456 = vunpack.c.h.b16 %v2735
    %v3457 = vunpack.c.l.b16 %v2736
    %v3458 = vunpack.c.h.b16 %v2736
    %v3459 = vunpack.c.l.b16 %v2737
    %v3460 = vunpack.c.h.b16 %v2737
    %v3461 = vunpack.c.l.b16 %v2738
    %v3462 = vunpack.c.h.b16 %v2738
    %v3463 = vunpack.c.l.b16 %v2739
    %v3464 = vunpack.c.h.b16 %v2739
    %v3465 = vunpack.c.l.b16 %v2740
    %v3466 = vunpack.c.h.b16 %v2740
    %v3467 = vunpack.c.l.b16 %v2741
    %v3468 = vunpack.c.h.b16 %v2741
    %v3469 = vunpack.c.l.b16 %v2742
    %v3470 = vunpack.c.h.b16 %v2742
    %v3471 = vunpack.c.l.b16 %v2743
    %v3472 = vunpack.c.h.b16 %v2743
    %v3473 = vunpack.c.l.b16 %v2744
    %v3474 = vunpack.c.h.b16 %v2744
    %v3475 = vunpack.c.l.b16 %v2745
    %v3476 = vunpack.c.h.b16 %v2745
    %v3477 = vunpack.c.l.b16 %v2746
    %v3478 = vunpack.c.h.b16 %v2746
    %v3479 = vunpack.c.l.b16 %v2747
    %v3480 = vunpack.c.h.b16 %v2747
    %v3481 = vunpack.c.l.b16 %v2748
    %v3482 = vunpack.c.h.b16 %v2748
    %v3483 = vunpack.c.l.b16 %v2749
    %v3484 = vunpack.c.h.b16 %v2749
    %v3485 = vunpack.c.l.b16 %v2750
    %v3486 = vunpack.c.h.b16 %v2750
    %v3487 = vunpack.c.l.b16 %v2751
    %v3488 = vunpack.c.h.b16 %v2751
    %v3489 = vunpack.c.l.b16 %v2752
    %v3490 = vunpack.c.h.b16 %v2752
    %v3491 = vunpack.c.l.b16 %v2753
    %v3492 = vunpack.c.h.b16 %v2753
    %v3493 = vunpack.c.l.b16 %v2754
    %v3494 = vunpack.c.h.b16 %v2754
    %v3495 = vunpack.c.l.b16 %v2755
    %v3496 = vunpack.c.h.b16 %v2755
    %v3497 = vunpack.c.l.b16 %v2756
    %v3498 = vunpack.c.h.b16 %v2756
    %v3499 = vunpack.c.l.b16 %v2757
    %v3500 = vunpack.c.h.b16 %v2757
    %v3501 = vunpack.c.l.b16 %v2758
    %v3502 = vunpack.c.h.b16 %v2758
    %v3503 = vunpack.c.l.b16 %v2759
    %v3504 = vunpack.c.h.b16 %v2759
    %v3505 = vunpack.c.l.b16 %v2760
    %v3506 = vunpack.c.h.b16 %v2760
    %v3507 = vunpack.c.l.b16 %v2761
    %v3508 = vunpack.c.h.b16 %v2761
    %v3509 = vunpack.c.l.b16 %v2762
    %v3510 = vunpack.c.h.b16 %v2762
    %v3511 = vunpack.c.l.b16 %v2763
    %v3512 = vunpack.c.h.b16 %v2763
    %v3513 = vunpack.c.l.b16 %v2764
    %v3514 = vunpack.c.h.b16 %v2764
    %v3515 = vunpack.c.l.b16 %v2765
    %v3516 = vunpack.c.h.b16 %v2765
    %v3517 = vunpack.c.l.b16 %v2766
    %v3518 = vunpack.c.h.b16 %v2766
    %v3519 = vunpack.c.l.b16 %v2767
    %v3520 = vunpack.c.h.b16 %v2767
    %v3521 = vunpack.c.l.b16 %v2768
    %v3522 = vunpack.c.h.b16 %v2768
    %v3523 = vunpack.c.l.b16 %v2769
    %v3524 = vunpack.c.h.b16 %v2769
    %v3525 = vunpack.c.l.b16 %v2770
    %v3526 = vunpack.c.h.b16 %v2770
    %v3527 = vunpack.c.l.b16 %v2771
    %v3528 = vunpack.c.h.b16 %v2771
    %v3529 = vunpack.c.l.b16 %v2772
    %v3530 = vunpack.c.h.b16 %v2772
    %v3531 = vunpack.c.l.b16 %v2773
    %v3532 = vunpack.c.h.b16 %v2773
    %v3533 = vunpack.c.l.b16 %v2774
    %v3534 = vunpack.c.h.b16 %v2774
    %v3535 = vunpack.c.l.b16 %v2775
    %v3536 = vunpack.c.h.b16 %v2775
    %v3537 = vunpack.c.l.b16 %v2776
    %v3538 = vunpack.c.h.b16 %v2776
    %v3539 = vunpack.c.l.b16 %v2777
    %v3540 = vunpack.c.h.b16 %v2777
    %v3541 = vunpack.c.l.b16 %v2778
    %v3542 = vunpack.c.h.b16 %v2778
    %v3543 = vunpack.c.l.b16 %v2779
    %v3544 = vunpack.c.h.b16 %v2779
    %v3545 = vunpack.c.l.b16 %v2780
    %v3546 = vunpack.c.h.b16 %v2780
    %v3547 = vunpack.c.l.b16 %v2781
    %v3548 = vunpack.c.h.b16 %v2781
    %v3549 = vunpack.c.l.b16 %v2782
    %v3550 = vunpack.c.h.b16 %v2782
    %v3551 = vunpack.c.l.b16 %v2783
    %v3552 = vunpack.c.h.b16 %v2783
    %v3553 = vunpack.c.l.b16 %v2784
    %v3554 = vunpack.c.h.b16 %v2784
    %v3555 = vunpack.c.l.b16 %v2785
    %v3556 = vunpack.c.h.b16 %v2785
    %v3557 = vunpack.c.l.b16 %v2786
    %v3558 = vunpack.c.h.b16 %v2786
    %v3559 = vunpack.c.l.b16 %v2787
    %v3560 = vunpack.c.h.b16 %v2787
    %v3561 = vunpack.c.l.b16 %v2788
    %v3562 = vunpack.c.h.b16 %v2788
    %v3563 = vunpack.c.l.b16 %v2789
    %v3564 = vunpack.c.h.b16 %v2789
    %v3565 = vunpack.c.l.b16 %v2790
    %v3566 = vunpack.c.h.b16 %v2790
    %v3567 = vunpack.c.l.b16 %v2791
    %v3568 = vunpack.c.h.b16 %v2791
    %v3569 = vunpack.c.l.b16 %v2792
    %v3570 = vunpack.c.h.b16 %v2792
    %v3571 = vunpack.c.l.b16 %v2793
    %v3572 = vunpack.c.h.b16 %v2793
    %v3573 = vunpack.c.l.b16 %v2794
    %v3574 = vunpack.c.h.b16 %v2794
    %v3575 = vunpack.c.l.b16 %v2795
    %v3576 = vunpack.c.h.b16 %v2795
    %v3577 = vunpack.c.l.b16 %v2796
    %v3578 = vunpack.c.h.b16 %v2796
    %v3579 = vunpack.c.l.b16 %v2797
    %v3580 = vunpack.c.h.b16 %v2797
    %v3581 = vunpack.c.l.b16 %v2798
    %v3582 = vunpack.c.h.b16 %v2798
    %v3583 = vunpack.c.l.b16 %v2799
    %v3584 = vunpack.c.h.b16 %v2799
    %v3585 = vunpack.c.l.b16 %v2800
    %v3586 = vunpack.c.h.b16 %v2800
    %v3587 = vunpack.c.l.b16 %v2801
    %v3588 = vunpack.c.h.b16 %v2801
    %v3589 = vunpack.c.l.b16 %v2802
    %v3590 = vunpack.c.h.b16 %v2802
    %v3591 = vunpack.c.l.b16 %v2803
    %v3592 = vunpack.c.h.b16 %v2803
    %v3593 = vunpack.c.l.b16 %v2804
    %v3594 = vunpack.c.h.b16 %v2804
    %v3595 = vpack.c.b16 %v3087, %v3083
    %v3596 = vpack.c.b16 %v3088, %v3084
    %v3597 = vpack.c.b16 %v3089, %v3085
    %v3598 = vpack.c.b16 %v3090, %v3086
    %v3599 = vpack.c.b16 %v3095, %v3091
    %v3600 = vpack.c.b16 %v3096, %v3092
    %v3601 = vpack.c.b16 %v3097, %v3093
    %v3602 = vpack.c.b16 %v3098, %v3094
    %v3603 = vpack.c.b16 %v3103, %v3099
    %v3604 = vpack.c.b16 %v3104, %v3100
    %v3605 = vpack.c.b16 %v3105, %v3101
    %v3606 = vpack.c.b16 %v3106, %v3102
    %v3607 = vpack.c.b16 %v3111, %v3107
    %v3608 = vpack.c.b16 %v3112, %v3108
    %v3609 = vpack.c.b16 %v3113, %v3109
    %v3610 = vpack.c.b16 %v3114, %v3110
    %v3611 = vpack.c.b16 %v3119, %v3115
    %v3612 = vpack.c.b16 %v3120, %v3116
    %v3613 = vpack.c.b16 %v3121, %v3117
    %v3614 = vpack.c.b16 %v3122, %v3118
    %v3615 = vpack.c.b16 %v3127, %v3123
    %v3616 = vpack.c.b16 %v3128, %v3124
    %v3617 = vpack.c.b16 %v3129, %v3125
    %v3618 = vpack.c.b16 %v3130, %v3126
    %v3619 = vpack.c.b16 %v3135, %v3131
    %v3620 = vpack.c.b16 %v3136, %v3132
    %v3621 = vpack.c.b16 %v3137, %v3133
    %v3622 = vpack.c.b16 %v3138, %v3134
    %v3623 = vpack.c.b16 %v3143, %v3139
    %v3624 = vpack.c.b16 %v3144, %v3140
    %v3625 = vpack.c.b16 %v3145, %v3141
    %v3626 = vpack.c.b16 %v3146, %v3142
    %v3627 = vpack.c.b16 %v3151, %v3147
    %v3628 = vpack.c.b16 %v3152, %v3148
    %v3629 = vpack.c.b16 %v3153, %v3149
    %v3630 = vpack.c.b16 %v3154, %v3150
    %v3631 = vpack.c.b16 %v3159, %v3155
    %v3632 = vpack.c.b16 %v3160, %v3156
    %v3633 = vpack.c.b16 %v3161, %v3157
    %v3634 = vpack.c.b16 %v3162, %v3158
    %v3635 = vpack.c.b16 %v3167, %v3163
    %v3636 = vpack.c.b16 %v3168, %v3164
    %v3637 = vpack.c.b16 %v3169, %v3165
    %v3638 = vpack.c.b16 %v3170, %v3166
    %v3639 = vpack.c.b16 %v3175, %v3171
    %v3640 = vpack.c.b16 %v3176, %v3172
    %v3641 = vpack.c.b16 %v3177, %v3173
    %v3642 = vpack.c.b16 %v3178, %v3174
    %v3643 = vpack.c.b16 %v3183, %v3179
    %v3644 = vpack.c.b16 %v3184, %v3180
    %v3645 = vpack.c.b16 %v3185, %v3181
    %v3646 = vpack.c.b16 %v3186, %v3182
    %v3647 = vpack.c.b16 %v3191, %v3187
    %v3648 = vpack.c.b16 %v3192, %v3188
    %v3649 = vpack.c.b16 %v3193, %v3189
    %v3650 = vpack.c.b16 %v3194, %v3190
    %v3651 = vpack.c.b16 %v3199, %v3195
    %v3652 = vpack.c.b16 %v3200, %v3196
    %v3653 = vpack.c.b16 %v3201, %v3197
    %v3654 = vpack.c.b16 %v3202, %v3198
    %v3655 = vpack.c.b16 %v3207, %v3203
    %v3656 = vpack.c.b16 %v3208, %v3204
    %v3657 = vpack.c.b16 %v3209, %v3205
    %v3658 = vpack.c.b16 %v3210, %v3206
    %v3659 = vpack.c.b16 %v3215, %v3211
    %v3660 = vpack.c.b16 %v3216, %v3212
    %v3661 = vpack.c.b16 %v3217, %v3213
    %v3662 = vpack.c.b16 %v3218, %v3214
    %v3663 = vpack.c.b16 %v3223, %v3219
    %v3664 = vpack.c.b16 %v3224, %v3220
    %v3665 = vpack.c.b16 %v3225, %v3221
    %v3666 = vpack.c.b16 %v3226, %v3222
    %v3667 = vpack.c.b16 %v3231, %v3227
    %v3668 = vpack.c.b16 %v3232, %v3228
    %v3669 = vpack.c.b16 %v3233, %v3229
    %v3670 = vpack.c.b16 %v3234, %v3230
    %v3671 = vpack.c.b16 %v3239, %v3235
    %v3672 = vpack.c.b16 %v3240, %v3236
    %v3673 = vpack.c.b16 %v3241, %v3237
    %v3674 = vpack.c.b16 %v3242, %v3238
    %v3675 = vpack.c.b16 %v3247, %v3243
    %v3676 = vpack.c.b16 %v3248, %v3244
    %v3677 = vpack.c.b16 %v3249, %v3245
    %v3678 = vpack.c.b16 %v3250, %v3246
    %v3679 = vpack.c.b16 %v3255, %v3251
    %v3680 = vpack.c.b16 %v3256, %v3252
    %v3681 = vpack.c.b16 %v3257, %v3253
    %v3682 = vpack.c.b16 %v3258, %v3254
    %v3683 = vpack.c.b16 %v3263, %v3259
    %v3684 = vpack.c.b16 %v3264, %v3260
    %v3685 = vpack.c.b16 %v3265, %v3261
    %v3686 = vpack.c.b16 %v3266, %v3262
    %v3687 = vpack.c.b16 %v3271, %v3267
    %v3688 = vpack.c.b16 %v3272, %v3268
    %v3689 = vpack.c.b16 %v3273, %v3269
    %v3690 = vpack.c.b16 %v3274, %v3270
    %v3691 = vpack.c.b16 %v3279, %v3275
    %v3692 = vpack.c.b16 %v3280, %v3276
    %v3693 = vpack.c.b16 %v3281, %v3277
    %v3694 = vpack.c.b16 %v3282, %v3278
    %v3695 = vpack.c.b16 %v3287, %v3283
    %v3696 = vpack.c.b16 %v3288, %v3284
    %v3697 = vpack.c.b16 %v3289, %v3285
    %v3698 = vpack.c.b16 %v3290, %v3286
    %v3699 = vpack.c.b16 %v3295, %v3291
    %v3700 = vpack.c.b16 %v3296, %v3292
    %v3701 = vpack.c.b16 %v3297, %v3293
    %v3702 = vpack.c.b16 %v3298, %v3294
    %v3703 = vpack.c.b16 %v3303, %v3299
    %v3704 = vpack.c.b16 %v3304, %v3300
    %v3705 = vpack.c.b16 %v3305, %v3301
    %v3706 = vpack.c.b16 %v3306, %v3302
    %v3707 = vpack.c.b16 %v3311, %v3307
    %v3708 = vpack.c.b16 %v3312, %v3308
    %v3709 = vpack.c.b16 %v3313, %v3309
    %v3710 = vpack.c.b16 %v3314, %v3310
    %v3711 = vpack.c.b16 %v3319, %v3315
    %v3712 = vpack.c.b16 %v3320, %v3316
    %v3713 = vpack.c.b16 %v3321, %v3317
    %v3714 = vpack.c.b16 %v3322, %v3318
    %v3715 = vpack.c.b16 %v3327, %v3323
    %v3716 = vpack.c.b16 %v3328, %v3324
    %v3717 = vpack.c.b16 %v3329, %v3325
    %v3718 = vpack.c.b16 %v3330, %v3326
    %v3719 = vpack.c.b16 %v3335, %v3331
    %v3720 = vpack.c.b16 %v3336, %v3332
    %v3721 = vpack.c.b16 %v3337, %v3333
    %v3722 = vpack.c.b16 %v3338, %v3334
    %v3723 = vpack.c.b16 %v3343, %v3339
    %v3724 = vpack.c.b16 %v3344, %v3340
    %v3725 = vpack.c.b16 %v3345, %v3341
    %v3726 = vpack.c.b16 %v3346, %v3342
    %v3727 = vpack.c.b16 %v3351, %v3347
    %v3728 = vpack.c.b16 %v3352, %v3348
    %v3729 = vpack.c.b16 %v3353, %v3349
    %v3730 = vpack.c.b16 %v3354, %v3350
    %v3731 = vpack.c.b16 %v3359, %v3355
    %v3732 = vpack.c.b16 %v3360, %v3356
    %v3733 = vpack.c.b16 %v3361, %v3357
    %v3734 = vpack.c.b16 %v3362, %v3358
    %v3735 = vpack.c.b16 %v3367, %v3363
    %v3736 = vpack.c.b16 %v3368, %v3364
    %v3737 = vpack.c.b16 %v3369, %v3365
    %v3738 = vpack.c.b16 %v3370, %v3366
    %v3739 = vpack.c.b16 %v3375, %v3371
    %v3740 = vpack.c.b16 %v3376, %v3372
    %v3741 = vpack.c.b16 %v3377, %v3373
    %v3742 = vpack.c.b16 %v3378, %v3374
    %v3743 = vpack.c.b16 %v3383, %v3379
    %v3744 = vpack.c.b16 %v3384, %v3380
    %v3745 = vpack.c.b16 %v3385, %v3381
    %v3746 = vpack.c.b16 %v3386, %v3382
    %v3747 = vpack.c.b16 %v3391, %v3387
    %v3748 = vpack.c.b16 %v3392, %v3388
    %v3749 = vpack.c.b16 %v3393, %v3389
    %v3750 = vpack.c.b16 %v3394, %v3390
    %v3751 = vpack.c.b16 %v3399, %v3395
    %v3752 = vpack.c.b16 %v3400, %v3396
    %v3753 = vpack.c.b16 %v3401, %v3397
    %v3754 = vpack.c.b16 %v3402, %v3398
    %v3755 = vpack.c.b16 %v3407, %v3403
    %v3756 = vpack.c.b16 %v3408, %v3404
    %v3757 = vpack.c.b16 %v3409, %v3405
    %v3758 = vpack.c.b16 %v3410, %v3406
    %v3759 = vpack.c.b16 %v3415, %v3411
    %v3760 = vpack.c.b16 %v3416, %v3412
    %v3761 = vpack.c.b16 %v3417, %v3413
    %v3762 = vpack.c.b16 %v3418, %v3414
    %v3763 = vpack.c.b16 %v3423, %v3419
    %v3764 = vpack.c.b16 %v3424, %v3420
    %v3765 = vpack.c.b16 %v3425, %v3421
    %v3766 = vpack.c.b16 %v3426, %v3422
    %v3767 = vpack.c.b16 %v3431, %v3427
    %v3768 = vpack.c.b16 %v3432, %v3428
    %v3769 = vpack.c.b16 %v3433, %v3429
    %v3770 = vpack.c.b16 %v3434, %v3430
    %v3771 = vpack.c.b16 %v3439, %v3435
    %v3772 = vpack.c.b16 %v3440, %v3436
    %v3773 = vpack.c.b16 %v3441, %v3437
    %v3774 = vpack.c.b16 %v3442, %v3438
    %v3775 = vpack.c.b16 %v3447, %v3443
    %v3776 = vpack.c.b16 %v3448, %v3444
    %v3777 = vpack.c.b16 %v3449, %v3445
    %v3778 = vpack.c.b16 %v3450, %v3446
    %v3779 = vpack.c.b16 %v3455, %v3451
    %v3780 = vpack.c.b16 %v3456, %v3452
    %v3781 = vpack.c.b16 %v3457, %v3453
    %v3782 = vpack.c.b16 %v3458, %v3454
    %v3783 = vpack.c.b16 %v3463, %v3459
    %v3784 = vpack.c.b16 %v3464, %v3460
    %v3785 = vpack.c.b16 %v3465, %v3461
    %v3786 = vpack.c.b16 %v3466, %v3462
    %v3787 = vpack.c.b16 %v3471, %v3467
    %v3788 = vpack.c.b16 %v3472, %v3468
    %v3789 = vpack.c.b16 %v3473, %v3469
    %v3790 = vpack.c.b16 %v3474, %v3470
    %v3791 = vpack.c.b16 %v3479, %v3475
    %v3792 = vpack.c.b16 %v3480, %v3476
    %v3793 = vpack.c.b16 %v3481, %v3477
    %v3794 = vpack.c.b16 %v3482, %v3478
    %v3795 = vpack.c.b16 %v3487, %v3483
    %v3796 = vpack.c.b16 %v3488, %v3484
    %v3797 = vpack.c.b16 %v3489, %v3485
    %v3798 = vpack.c.b16 %v3490, %v3486
    %v3799 = vpack.c.b16 %v3495, %v3491
    %v3800 = vpack.c.b16 %v3496, %v3492
    %v3801 = vpack.c.b16 %v3497, %v3493
    %v3802 = vpack.c.b16 %v3498, %v3494
    %v3803 = vpack.c.b16 %v3503, %v3499
    %v3804 = vpack.c.b16 %v3504, %v3500
    %v3805 = vpack.c.b16 %v3505, %v3501
    %v3806 = vpack.c.b16 %v3506, %v3502
    %v3807 = vpack.c.b16 %v3511, %v3507
    %v3808 = vpack.c.b16 %v3512, %v3508
    %v3809 = vpack.c.b16 %v3513, %v3509
    %v3810 = vpack.c.b16 %v3514, %v3510
    %v3811 = vpack.c.b16 %v3519, %v3515
    %v3812 = vpack.c.b16 %v3520, %v3516
    %v3813 = vpack.c.b16 %v3521, %v3517
    %v3814 = vpack.c.b16 %v3522, %v3518
    %v3815 = vpack.c.b16 %v3527, %v3523
    %v3816 = vpack.c.b16 %v3528, %v3524
    %v3817 = vpack.c.b16 %v3529, %v3525
    %v3818 = vpack.c.b16 %v3530, %v3526
    %v3819 = vpack.c.b16 %v3535, %v3531
    %v3820 = vpack.c.b16 %v3536, %v3532
    %v3821 = vpack.c.b16 %v3537, %v3533
    %v3822 = vpack.c.b16 %v3538, %v3534
    %v3823 = vpack.c.b16 %v3543, %v3539
    %v3824 = vpack.c.b16 %v3544, %v3540
    %v3825 = vpack.c.b16 %v3545, %v3541
    %v3826 = vpack.c.b16 %v3546, %v3542
    %v3827 = vpack.c.b16 %v3551, %v3547
    %v3828 = vpack.c.b16 %v3552, %v3548
    %v3829 = vpack.c.b16 %v3553, %v3549
    %v3830 = vpack.c.b16 %v3554, %v3550
    %v3831 = vpack.c.b16 %v3559, %v3555
    %v3832 = vpack.c.b16 %v3560, %v3556
    %v3833 = vpack.c.b16 %v3561, %v3557
    %v3834 = vpack.c.b16 %v3562, %v3558
    %v3835 = vpack.c.b16 %v3567, %v3563
    %v3836 = vpack.c.b16 %v3568, %v3564
    %v3837 = vpack.c.b16 %v3569, %v3565
    %v3838 = vpack.c.b16 %v3570, %v3566
    %v3839 = vpack.c.b16 %v3575, %v3571
    %v3840 = vpack.c.b16 %v3576, %v3572
    %v3841 = vpack.c.b16 %v3577, %v3573
    %v3842 = vpack.c.b16 %v3578, %v3574
    %v3843 = vpack.c.b16 %v3583, %v3579
    %v3844 = vpack.c.b16 %v3584, %v3580
    %v3845 = vpack.c.b16 %v3585, %v3581
    %v3846 = vpack.c.b16 %v3586, %v3582
    %v3847 = vpack.c.b16 %v3591, %v3587
    %v3848 = vpack.c.b16 %v3592, %v3588
    %v3849 = vpack.c.b16 %v3593, %v3589
    %v3850 = vpack.c.b16 %v3594, %v3590
    %4107 = vmatprep.subr.bf16.mxu0 %v3596
    %4108 = vmatpush1.bf16.msra.mxu0 %v3595
    %4109 = vmatprep.subr.bf16.mxu0 %v3600
    %4110 = vmatpush1.bf16.msra.mxu0 %v3599
    %4111 = vmatprep.subr.bf16.mxu0 %v3604
    %4112 = vmatpush1.bf16.msra.mxu0 %v3603
    %4113 = vmatprep.subr.bf16.mxu0 %v3608
    %4114 = vmatpush1.bf16.msra.mxu0 %v3607
    %4115 = vmatprep.subr.bf16.mxu0 %v3612
    %4116 = vmatpush1.bf16.msra.mxu0 %v3611
    %4117 = vmatprep.subr.bf16.mxu0 %v3616
    %4118 = vmatpush1.bf16.msra.mxu0 %v3615
    %4119 = vmatprep.subr.bf16.mxu0 %v3620
    %4120 = vmatpush1.bf16.msra.mxu0 %v3619
    %4121 = vmatprep.subr.bf16.mxu0 %v3624
    %4122 = vmatpush1.bf16.msra.mxu0 %v3623
    %4123 = vmatprep.subr.bf16.mxu0 %v3628
    %4124 = vmatpush1.bf16.msra.mxu0 %v3627
    %4125 = vmatprep.subr.bf16.mxu0 %v3632
    %4126 = vmatpush1.bf16.msra.mxu0 %v3631
    %4127 = vmatprep.subr.bf16.mxu0 %v3636
    %4128 = vmatpush1.bf16.msra.mxu0 %v3635
    %4129 = vmatprep.subr.bf16.mxu0 %v3640
    %4130 = vmatpush1.bf16.msra.mxu0 %v3639
    %4131 = vmatprep.subr.bf16.mxu0 %v3644
    %4132 = vmatpush1.bf16.msra.mxu0 %v3643
    %4133 = vmatprep.subr.bf16.mxu0 %v3648
    %4134 = vmatpush1.bf16.msra.mxu0 %v3647
    %4135 = vmatprep.subr.bf16.mxu0 %v3652
    %4136 = vmatpush1.bf16.msra.mxu0 %v3651
    %4137 = vmatprep.subr.bf16.mxu0 %v3656
    %4138 = vmatpush1.bf16.msra.mxu0 %v3655
    %4139 = vmatprep.mubr.bf16.mxu0 %v2542
    %4140 = vmatmul.mubr.bf16.gmra.mrb[0].mxu0 %v2541
    %v4141 = vpop.f32.mrb[0].mxu0
    %v4142 = vadd.f32 %v2810, %v4141
    %v4143 = vpop.f32.mrb[0].mxu0
    %v4144 = vadd.f32 %v2814, %v4143
    %v4145 = vpop.f32.mrb[0].mxu0
    %v4146 = vpop.f32.mrb[0].mxu0
    %4147 = vdwg.mxu0
    %4148 = vmatprep.subr.bf16.mxu0 %v3660
    %4149 = vmatpush1.bf16.msra.mxu0 %v3659
    %4150 = vmatprep.subr.bf16.mxu0 %v3664
    %4151 = vmatpush1.bf16.msra.mxu0 %v3663
    %4152 = vmatprep.subr.bf16.mxu0 %v3668
    %4153 = vmatpush1.bf16.msra.mxu0 %v3667
    %4154 = vmatprep.subr.bf16.mxu0 %v3672
    %4155 = vmatpush1.bf16.msra.mxu0 %v3671
    %4156 = vmatprep.subr.bf16.mxu0 %v3676
    %4157 = vmatpush1.bf16.msra.mxu0 %v3675
    %4158 = vmatprep.subr.bf16.mxu0 %v3680
    %4159 = vmatpush1.bf16.msra.mxu0 %v3679
    %4160 = vmatprep.subr.bf16.mxu0 %v3684
    %4161 = vmatpush1.bf16.msra.mxu0 %v3683
    %4162 = vmatprep.subr.bf16.mxu0 %v3688
    %4163 = vmatpush1.bf16.msra.mxu0 %v3687
    %4164 = vmatprep.subr.bf16.mxu0 %v3692
    %4165 = vmatpush1.bf16.msra.mxu0 %v3691
    %4166 = vmatprep.subr.bf16.mxu0 %v3696
    %4167 = vmatpush1.bf16.msra.mxu0 %v3695
    %4168 = vmatprep.subr.bf16.mxu0 %v3700
    %4169 = vmatpush1.bf16.msra.mxu0 %v3699
    %4170 = vmatprep.subr.bf16.mxu0 %v3704
    %4171 = vmatpush1.bf16.msra.mxu0 %v3703
    %4172 = vmatprep.subr.bf16.mxu0 %v3708
    %4173 = vmatpush1.bf16.msra.mxu0 %v3707
    %4174 = vmatprep.subr.bf16.mxu0 %v3712
    %4175 = vmatpush1.bf16.msra.mxu0 %v3711
    %4176 = vmatprep.subr.bf16.mxu0 %v3716
    %4177 = vmatpush1.bf16.msra.mxu0 %v3715
    %4178 = vmatprep.subr.bf16.mxu0 %v3720
    %4179 = vmatpush1.bf16.msra.mxu0 %v3719
    %4180 = vmatprep.mubr.bf16.mxu0 %v2544
    %4181 = vmatmul.mubr.bf16.gmra.mrb[0].mxu0 %v2543
    %v4182 = vpop.f32.mrb[0].mxu0
    %v4183 = vadd.f32 %v4142, %v4182
    %v4184 = vpop.f32.mrb[0].mxu0
    %v4185 = vadd.f32 %v4144, %v4184
    %v4186 = vpop.f32.mrb[0].mxu0
    %v4187 = vpop.f32.mrb[0].mxu0
    %4188 = vdwg.mxu0
    %4189 = vmatprep.subr.bf16.mxu0 %v3724
    %4190 = vmatpush1.bf16.msra.mxu0 %v3723
    %4191 = vmatprep.subr.bf16.mxu0 %v3728
    %4192 = vmatpush1.bf16.msra.mxu0 %v3727
    %4193 = vmatprep.subr.bf16.mxu0 %v3732
    %4194 = vmatpush1.bf16.msra.mxu0 %v3731
    %4195 = vmatprep.subr.bf16.mxu0 %v3736
    %4196 = vmatpush1.bf16.msra.mxu0 %v3735
    %4197 = vmatprep.subr.bf16.mxu0 %v3740
    %4198 = vmatpush1.bf16.msra.mxu0 %v3739
    %4199 = vmatprep.subr.bf16.mxu0 %v3744
    %4200 = vmatpush1.bf16.msra.mxu0 %v3743
    %4201 = vmatprep.subr.bf16.mxu0 %v3748
    %4202 = vmatpush1.bf16.msra.mxu0 %v3747
    %4203 = vmatprep.subr.bf16.mxu0 %v3752
    %4204 = vmatpush1.bf16.msra.mxu0 %v3751
    %4205 = vmatprep.subr.bf16.mxu0 %v3756
    %4206 = vmatpush1.bf16.msra.mxu0 %v3755
    %4207 = vmatprep.subr.bf16.mxu0 %v3760
    %4208 = vmatpush1.bf16.msra.mxu0 %v3759
    %4209 = vmatprep.subr.bf16.mxu0 %v3764
    %4210 = vmatpush1.bf16.msra.mxu0 %v3763
    %4211 = vmatprep.subr.bf16.mxu0 %v3768
    %4212 = vmatpush1.bf16.msra.mxu0 %v3767
    %4213 = vmatprep.subr.bf16.mxu0 %v3772
    %4214 = vmatpush1.bf16.msra.mxu0 %v3771
    %4215 = vmatprep.subr.bf16.mxu0 %v3776
    %4216 = vmatpush1.bf16.msra.mxu0 %v3775
    %4217 = vmatprep.subr.bf16.mxu0 %v3780
    %4218 = vmatpush1.bf16.msra.mxu0 %v3779
    %4219 = vmatprep.subr.bf16.mxu0 %v3784
    %4220 = vmatpush1.bf16.msra.mxu0 %v3783
    %4221 = vmatprep.mubr.bf16.mxu0 %v2546
    %4222 = vmatmul.mubr.bf16.gmra.mrb[0].mxu0 %v2545
    %v4223 = vpop.f32.mrb[0].mxu0
    %v4224 = vadd.f32 %v4183, %v4223
    %v4225 = vpop.f32.mrb[0].mxu0
    %v4226 = vadd.f32 %v4185, %v4225
    %v4227 = vpop.f32.mrb[0].mxu0
    %v4228 = vpop.f32.mrb[0].mxu0
    %4229 = vdwg.mxu0
    %4230 = vmatprep.subr.bf16.mxu0 %v3788
    %4231 = vmatpush1.bf16.msra.mxu0 %v3787
    %4232 = vmatprep.subr.bf16.mxu0 %v3792
    %4233 = vmatpush1.bf16.msra.mxu0 %v3791
    %4234 = vmatprep.subr.bf16.mxu0 %v3796
    %4235 = vmatpush1.bf16.msra.mxu0 %v3795
    %4236 = vmatprep.subr.bf16.mxu0 %v3800
    %4237 = vmatpush1.bf16.msra.mxu0 %v3799
    %4238 = vmatprep.subr.bf16.mxu0 %v3804
    %4239 = vmatpush1.bf16.msra.mxu0 %v3803
    %4240 = vmatprep.subr.bf16.mxu0 %v3808
    %4241 = vmatpush1.bf16.msra.mxu0 %v3807
    %4242 = vmatprep.subr.bf16.mxu0 %v3812
    %4243 = vmatpush1.bf16.msra.mxu0 %v3811
    %4244 = vmatprep.subr.bf16.mxu0 %v3816
    %4245 = vmatpush1.bf16.msra.mxu0 %v3815
    %4246 = vmatprep.subr.bf16.mxu0 %v3820
    %4247 = vmatpush1.bf16.msra.mxu0 %v3819
    %4248 = vmatprep.subr.bf16.mxu0 %v3824
    %4249 = vmatpush1.bf16.msra.mxu0 %v3823
    %4250 = vmatprep.subr.bf16.mxu0 %v3828
    %4251 = vmatpush1.bf16.msra.mxu0 %v3827
    %4252 = vmatprep.subr.bf16.mxu0 %v3832
    %4253 = vmatpush1.bf16.msra.mxu0 %v3831
    %4254 = vmatprep.subr.bf16.mxu0 %v3836
    %4255 = vmatpush1.bf16.msra.mxu0 %v3835
    %4256 = vmatprep.subr.bf16.mxu0 %v3840
    %4257 = vmatpush1.bf16.msra.mxu0 %v3839
    %4258 = vmatprep.subr.bf16.mxu0 %v3844
    %4259 = vmatpush1.bf16.msra.mxu0 %v3843
    %4260 = vmatprep.subr.bf16.mxu0 %v3848
    %4261 = vmatpush1.bf16.msra.mxu0 %v3847
    %4262 = vmatprep.mubr.bf16.mxu0 %v2548
    %4263 = vmatmul.mubr.bf16.gmra.mrb[0].mxu0 %v2547
    %v4264 = vpop.f32.mrb[0].mxu0
    %v4265 = vadd.f32 %v4224, %v4264
    %v4266 = vpop.f32.mrb[0].mxu0
    %v4267 = vadd.f32 %v4226, %v4266
    %v4268 = vpop.f32.mrb[0].mxu0
    %v4269 = vpop.f32.mrb[0].mxu0
    %4270 = vdwg.mxu0
    %4271 = vmatprep.subr.bf16.mxu0 %v3598
    %4272 = vmatpush1.bf16.msra.mxu0 %v3597
    %4273 = vmatprep.subr.bf16.mxu0 %v3602
    %4274 = vmatpush1.bf16.msra.mxu0 %v3601
    %4275 = vmatprep.subr.bf16.mxu0 %v3606
    %4276 = vmatpush1.bf16.msra.mxu0 %v3605
    %4277 = vmatprep.subr.bf16.mxu0 %v3610
    %4278 = vmatpush1.bf16.msra.mxu0 %v3609
    %4279 = vmatprep.subr.bf16.mxu0 %v3614
    %4280 = vmatpush1.bf16.msra.mxu0 %v3613
    %4281 = vmatprep.subr.bf16.mxu0 %v3618
    %4282 = vmatpush1.bf16.msra.mxu0 %v3617
    %4283 = vmatprep.subr.bf16.mxu0 %v3622
    %4284 = vmatpush1.bf16.msra.mxu0 %v3621
    %4285 = vmatprep.subr.bf16.mxu0 %v3626
    %4286 = vmatpush1.bf16.msra.mxu0 %v3625
    %4287 = vmatprep.subr.bf16.mxu0 %v3630
    %4288 = vmatpush1.bf16.msra.mxu0 %v3629
    %4289 = vmatprep.subr.bf16.mxu0 %v3634
    %4290 = vmatpush1.bf16.msra.mxu0 %v3633
    %4291 = vmatprep.subr.bf16.mxu0 %v3638
    %4292 = vmatpush1.bf16.msra.mxu0 %v3637
    %4293 = vmatprep.subr.bf16.mxu0 %v3642
    %4294 = vmatpush1.bf16.msra.mxu0 %v3641
    %4295 = vmatprep.subr.bf16.mxu0 %v3646
    %4296 = vmatpush1.bf16.msra.mxu0 %v3645
    %4297 = vmatprep.subr.bf16.mxu0 %v3650
    %4298 = vmatpush1.bf16.msra.mxu0 %v3649
    %4299 = vmatprep.subr.bf16.mxu0 %v3654
    %4300 = vmatpush1.bf16.msra.mxu0 %v3653
    %4301 = vmatprep.subr.bf16.mxu0 %v3658
    %4302 = vmatpush1.bf16.msra.mxu0 %v3657
    %4303 = vmatprep.mubr.bf16.mxu0 %v2542
    %4304 = vmatmul.mubr.bf16.gmra.mrb[0].mxu0 %v2541
    %v4305 = vpop.f32.mrb[0].mxu0
    %v4306 = vadd.f32 %v2818, %v4305
    %v4307 = vpop.f32.mrb[0].mxu0
    %v4308 = vadd.f32 %v2822, %v4307
    %v4309 = vpop.f32.mrb[0].mxu0
    %v4310 = vpop.f32.mrb[0].mxu0
    %4311 = vdwg.mxu0
    %4312 = vmatprep.subr.bf16.mxu0 %v3662
    %4313 = vmatpush1.bf16.msra.mxu0 %v3661
    %4314 = vmatprep.subr.bf16.mxu0 %v3666
    %4315 = vmatpush1.bf16.msra.mxu0 %v3665
    %4316 = vmatprep.subr.bf16.mxu0 %v3670
    %4317 = vmatpush1.bf16.msra.mxu0 %v3669
    %4318 = vmatprep.subr.bf16.mxu0 %v3674
    %4319 = vmatpush1.bf16.msra.mxu0 %v3673
    %4320 = vmatprep.subr.bf16.mxu0 %v3678
    %4321 = vmatpush1.bf16.msra.mxu0 %v3677
    %4322 = vmatprep.subr.bf16.mxu0 %v3682
    %4323 = vmatpush1.bf16.msra.mxu0 %v3681
    %4324 = vmatprep.subr.bf16.mxu0 %v3686
    %4325 = vmatpush1.bf16.msra.mxu0 %v3685
    %4326 = vmatprep.subr.bf16.mxu0 %v3690
    %4327 = vmatpush1.bf16.msra.mxu0 %v3689
    %4328 = vmatprep.subr.bf16.mxu0 %v3694
    %4329 = vmatpush1.bf16.msra.mxu0 %v3693
    %4330 = vmatprep.subr.bf16.mxu0 %v3698
    %4331 = vmatpush1.bf16.msra.mxu0 %v3697
    %4332 = vmatprep.subr.bf16.mxu0 %v3702
    %4333 = vmatpush1.bf16.msra.mxu0 %v3701
    %4334 = vmatprep.subr.bf16.mxu0 %v3706
    %4335 = vmatpush1.bf16.msra.mxu0 %v3705
    %4336 = vmatprep.subr.bf16.mxu0 %v3710
    %4337 = vmatpush1.bf16.msra.mxu0 %v3709
    %4338 = vmatprep.subr.bf16.mxu0 %v3714
    %4339 = vmatpush1.bf16.msra.mxu0 %v3713
    %4340 = vmatprep.subr.bf16.mxu0 %v3718
    %4341 = vmatpush1.bf16.msra.mxu0 %v3717
    %4342 = vmatprep.subr.bf16.mxu0 %v3722
    %4343 = vmatpush1.bf16.msra.mxu0 %v3721
    %4344 = vmatprep.mubr.bf16.mxu0 %v2544
    %4345 = vmatmul.mubr.bf16.gmra.mrb[0].mxu0 %v2543
    %v4346 = vpop.f32.mrb[0].mxu0
    %v4347 = vadd.f32 %v4306, %v4346
    %v4348 = vpop.f32.mrb[0].mxu0
    %v4349 = vadd.f32 %v4308, %v4348
    %v4350 = vpop.f32.mrb[0].mxu0
    %v4351 = vpop.f32.mrb[0].mxu0
    %4352 = vdwg.mxu0
    %4353 = vmatprep.subr.bf16.mxu0 %v3726
    %4354 = vmatpush1.bf16.msra.mxu0 %v3725
    %4355 = vmatprep.subr.bf16.mxu0 %v3730
    %4356 = vmatpush1.bf16.msra.mxu0 %v3729
    %4357 = vmatprep.subr.bf16.mxu0 %v3734
    %4358 = vmatpush1.bf16.msra.mxu0 %v3733
    %4359 = vmatprep.subr.bf16.mxu0 %v3738
    %4360 = vmatpush1.bf16.msra.mxu0 %v3737
    %4361 = vmatprep.subr.bf16.mxu0 %v3742
    %4362 = vmatpush1.bf16.msra.mxu0 %v3741
    %4363 = vmatprep.subr.bf16.mxu0 %v3746
    %4364 = vmatpush1.bf16.msra.mxu0 %v3745
    %4365 = vmatprep.subr.bf16.mxu0 %v3750
    %4366 = vmatpush1.bf16.msra.mxu0 %v3749
    %4367 = vmatprep.subr.bf16.mxu0 %v3754
    %4368 = vmatpush1.bf16.msra.mxu0 %v3753
    %4369 = vmatprep.subr.bf16.mxu0 %v3758
    %4370 = vmatpush1.bf16.msra.mxu0 %v3757
    %4371 = vmatprep.subr.bf16.mxu0 %v3762
    %4372 = vmatpush1.bf16.msra.mxu0 %v3761
    %4373 = vmatprep.subr.bf16.mxu0 %v3766
    %4374 = vmatpush1.bf16.msra.mxu0 %v3765
    %4375 = vmatprep.subr.bf16.mxu0 %v3770
    %4376 = vmatpush1.bf16.msra.mxu0 %v3769
    %4377 = vmatprep.subr.bf16.mxu0 %v3774
    %4378 = vmatpush1.bf16.msra.mxu0 %v3773
    %4379 = vmatprep.subr.bf16.mxu0 %v3778
    %4380 = vmatpush1.bf16.msra.mxu0 %v3777
    %4381 = vmatprep.subr.bf16.mxu0 %v3782
    %4382 = vmatpush1.bf16.msra.mxu0 %v3781
    %4383 = vmatprep.subr.bf16.mxu0 %v3786
    %4384 = vmatpush1.bf16.msra.mxu0 %v3785
    %4385 = vmatprep.mubr.bf16.mxu0 %v2546
    %4386 = vmatmul.mubr.bf16.gmra.mrb[0].mxu0 %v2545
    %v4387 = vpop.f32.mrb[0].mxu0
    %v4388 = vadd.f32 %v4347, %v4387
    %v4389 = vpop.f32.mrb[0].mxu0
    %v4390 = vadd.f32 %v4349, %v4389
    %v4391 = vpop.f32.mrb[0].mxu0
    %v4392 = vpop.f32.mrb[0].mxu0
    %4393 = vdwg.mxu0
    %4394 = vmatprep.subr.bf16.mxu0 %v3790
    %4395 = vmatpush1.bf16.msra.mxu0 %v3789
    %4396 = vmatprep.subr.bf16.mxu0 %v3794
    %4397 = vmatpush1.bf16.msra.mxu0 %v3793
    %4398 = vmatprep.subr.bf16.mxu0 %v3798
    %4399 = vmatpush1.bf16.msra.mxu0 %v3797
    %4400 = vmatprep.subr.bf16.mxu0 %v3802
    %4401 = vmatpush1.bf16.msra.mxu0 %v3801
    %4402 = vmatprep.subr.bf16.mxu0 %v3806
    %4403 = vmatpush1.bf16.msra.mxu0 %v3805
    %4404 = vmatprep.subr.bf16.mxu0 %v3810
    %4405 = vmatpush1.bf16.msra.mxu0 %v3809
    %4406 = vmatprep.subr.bf16.mxu0 %v3814
    %4407 = vmatpush1.bf16.msra.mxu0 %v3813
    %4408 = vmatprep.subr.bf16.mxu0 %v3818
    %4409 = vmatpush1.bf16.msra.mxu0 %v3817
    %4410 = vmatprep.subr.bf16.mxu0 %v3822
    %4411 = vmatpush1.bf16.msra.mxu0 %v3821
    %4412 = vmatprep.subr.bf16.mxu0 %v3826
    %4413 = vmatpush1.bf16.msra.mxu0 %v3825
    %4414 = vmatprep.subr.bf16.mxu0 %v3830
    %4415 = vmatpush1.bf16.msra.mxu0 %v3829
    %4416 = vmatprep.subr.bf16.mxu0 %v3834
    %4417 = vmatpush1.bf16.msra.mxu0 %v3833
    %4418 = vmatprep.subr.bf16.mxu0 %v3838
    %4419 = vmatpush1.bf16.msra.mxu0 %v3837
    %4420 = vmatprep.subr.bf16.mxu0 %v3842
    %4421 = vmatpush1.bf16.msra.mxu0 %v3841
    %4422 = vmatprep.subr.bf16.mxu0 %v3846
    %4423 = vmatpush1.bf16.msra.mxu0 %v3845
    %4424 = vmatprep.subr.bf16.mxu0 %v3850
    %4425 = vmatpush1.bf16.msra.mxu0 %v3849
    %4426 = vmatprep.mubr.bf16.mxu0 %v2548
    %4427 = vmatmul.mubr.bf16.gmra.mrb[0].mxu0 %v2547
    %v4428 = vpop.f32.mrb[0].mxu0
    %v4429 = vadd.f32 %v4388, %v4428
    %v4430 = vpop.f32.mrb[0].mxu0
    %v4431 = vadd.f32 %v4390, %v4430
    %v4432 = vpop.f32.mrb[0].mxu0
    %v4433 = vpop.f32.mrb[0].mxu0
    %4434 = vdwg.mxu0
    %v4435 = vmax.f32 %v4265, 0.0
    %v4436 = vmax.f32 %v4267, 0.0
    %v4437 = vmax.f32 %v4429, 0.0
    %v4438 = vmax.f32 %v4431, 0.0
    %v4439 = vpack.c.bf16 %v4435, %v4435
    %v4440 = vpack.c.bf16 %v4436, %v4436
    %v4441 = vpack.c.bf16 %v4437, %v4437
    %v4442 = vpack.c.bf16 %v4438, %v4438
    %v4443 = vld [vmem:[%s21] sm:$0xff]
    %v4444 = vld [vmem:[%s21 + $0x8] sm:$0xff]
    %v4445 = vld [vmem:[%s21 + $0x10] sm:$0xff]
    %v4446 = vld [vmem:[%s21 + $0x18] sm:$0xff]
    %v4447 = vld [vmem:[%s21 + $0x20] sm:$0xff]
    %v4448 = vld [vmem:[%s21 + $0x28] sm:$0xff]
    %v4449 = vld [vmem:[%s21 + $0x30] sm:$0xff]
    %v4450 = vld [vmem:[%s21 + $0x38] sm:$0xff]
    %v4451 = vld [vmem:[%s21 + $0x40] sm:$0xff]
    %v4452 = vld [vmem:[%s21 + $0x48] sm:$0xff]
    %v4453 = vld [vmem:[%s21 + $0x50] sm:$0xff]
    %v4454 = vld [vmem:[%s21 + $0x58] sm:$0xff]
    %v4455 = vld [vmem:[%s21 + $0x60] sm:$0xff]
    %v4456 = vld [vmem:[%s21 + $0x68] sm:$0xff]
    %v4457 = vld [vmem:[%s21 + $0x70] sm:$0xff]
    %v4458 = vld [vmem:[%s21 + $0x78] sm:$0xff]
    %v4459 = vld [vmem:[%s21 + $0x80] sm:$0xff]
    %v4460 = vld [vmem:[%s21 + $0x88] sm:$0xff]
    %v4461 = vld [vmem:[%s21 + $0x90] sm:$0xff]
    %v4462 = vld [vmem:[%s21 + $0x98] sm:$0xff]
    %v4463 = vld [vmem:[%s21 + $0xa0] sm:$0xff]
    %v4464 = vld [vmem:[%s21 + $0xa8] sm:$0xff]
    %v4465 = vld [vmem:[%s21 + $0xb0] sm:$0xff]
    %v4466 = vld [vmem:[%s21 + $0xb8] sm:$0xff]
    %v4467 = vld [vmem:[%s21 + $0xc0] sm:$0xff]
    %v4468 = vld [vmem:[%s21 + $0xc8] sm:$0xff]
    %v4469 = vld [vmem:[%s21 + $0xd0] sm:$0xff]
    %v4470 = vld [vmem:[%s21 + $0xd8] sm:$0xff]
    %v4471 = vld [vmem:[%s21 + $0xe0] sm:$0xff]
    %v4472 = vld [vmem:[%s21 + $0xe8] sm:$0xff]
    %v4473 = vld [vmem:[%s21 + $0xf0] sm:$0xff]
    %v4474 = vld [vmem:[%s21 + $0xf8] sm:$0xff]
    %v4475 = vld [vmem:[%s21 + $0x100] sm:$0xff]
    %v4476 = vld [vmem:[%s21 + $0x108] sm:$0xff]
    %v4477 = vld [vmem:[%s21 + $0x110] sm:$0xff]
    %v4478 = vld [vmem:[%s21 + $0x118] sm:$0xff]
    %v4479 = vld [vmem:[%s21 + $0x120] sm:$0xff]
    %v4480 = vld [vmem:[%s21 + $0x128] sm:$0xff]
    %v4481 = vld [vmem:[%s21 + $0x130] sm:$0xff]
    %v4482 = vld [vmem:[%s21 + $0x138] sm:$0xff]
    %v4483 = vld [vmem:[%s21 + $0x140] sm:$0xff]
    %v4484 = vld [vmem:[%s21 + $0x148] sm:$0xff]
    %v4485 = vld [vmem:[%s21 + $0x150] sm:$0xff]
    %v4486 = vld [vmem:[%s21 + $0x158] sm:$0xff]
    %v4487 = vld [vmem:[%s21 + $0x160] sm:$0xff]
    %v4488 = vld [vmem:[%s21 + $0x168] sm:$0xff]
    %v4489 = vld [vmem:[%s21 + $0x170] sm:$0xff]
    %v4490 = vld [vmem:[%s21 + $0x178] sm:$0xff]
    %v4491 = vld [vmem:[%s21 + $0x180] sm:$0xff]
    %v4492 = vld [vmem:[%s21 + $0x188] sm:$0xff]
    %v4493 = vld [vmem:[%s21 + $0x190] sm:$0xff]
    %v4494 = vld [vmem:[%s21 + $0x198] sm:$0xff]
    %v4495 = vld [vmem:[%s21 + $0x1a0] sm:$0xff]
    %v4496 = vld [vmem:[%s21 + $0x1a8] sm:$0xff]
    %v4497 = vld [vmem:[%s21 + $0x1b0] sm:$0xff]
    %v4498 = vld [vmem:[%s21 + $0x1b8] sm:$0xff]
    %v4499 = vld [vmem:[%s21 + $0x1c0] sm:$0xff]
    %v4500 = vld [vmem:[%s21 + $0x1c8] sm:$0xff]
    %v4501 = vld [vmem:[%s21 + $0x1d0] sm:$0xff]
    %v4502 = vld [vmem:[%s21 + $0x1d8] sm:$0xff]
    %v4503 = vld [vmem:[%s21 + $0x1e0] sm:$0xff]
    %v4504 = vld [vmem:[%s21 + $0x1e8] sm:$0xff]
    %v4505 = vld [vmem:[%s21 + $0x1f0] sm:$0xff]
    %v4506 = vld [vmem:[%s21 + $0x1f8] sm:$0xff]
    %v4507 = vld [vmem:[%s23] sm:$0x3]
    %v4509 = vlaneseq
    %v4510 = vshrl.u32 %v4509, 7
    %v4511 = vsub.s32 0, %v4510
    %v4512 = vrot.slane %v4507, %v4511
    %v4513 = vlaneseq
    %v4514 = vshrl.u32 %v4513, 7
    %v4515 = vsub.s32 1, %v4514
    %v4516 = vrot.slane %v4507, %v4515
    %v4583 = vunpack.c.l.b16 %v4443
    %v4584 = vunpack.c.h.b16 %v4443
    %v4585 = vunpack.c.l.b16 %v4444
    %v4586 = vunpack.c.h.b16 %v4444
    %v4587 = vunpack.c.l.b16 %v4445
    %v4588 = vunpack.c.h.b16 %v4445
    %v4589 = vunpack.c.l.b16 %v4446
    %v4590 = vunpack.c.h.b16 %v4446
    %v4591 = vunpack.c.l.b16 %v4447
    %v4592 = vunpack.c.h.b16 %v4447
    %v4593 = vunpack.c.l.b16 %v4448
    %v4594 = vunpack.c.h.b16 %v4448
    %v4595 = vunpack.c.l.b16 %v4449
    %v4596 = vunpack.c.h.b16 %v4449
    %v4597 = vunpack.c.l.b16 %v4450
    %v4598 = vunpack.c.h.b16 %v4450
    %v4599 = vunpack.c.l.b16 %v4451
    %v4600 = vunpack.c.h.b16 %v4451
    %v4601 = vunpack.c.l.b16 %v4452
    %v4602 = vunpack.c.h.b16 %v4452
    %v4603 = vunpack.c.l.b16 %v4453
    %v4604 = vunpack.c.h.b16 %v4453
    %v4605 = vunpack.c.l.b16 %v4454
    %v4606 = vunpack.c.h.b16 %v4454
    %v4607 = vunpack.c.l.b16 %v4455
    %v4608 = vunpack.c.h.b16 %v4455
    %v4609 = vunpack.c.l.b16 %v4456
    %v4610 = vunpack.c.h.b16 %v4456
    %v4611 = vunpack.c.l.b16 %v4457
    %v4612 = vunpack.c.h.b16 %v4457
    %v4613 = vunpack.c.l.b16 %v4458
    %v4614 = vunpack.c.h.b16 %v4458
    %v4615 = vunpack.c.l.b16 %v4459
    %v4616 = vunpack.c.h.b16 %v4459
    %v4617 = vunpack.c.l.b16 %v4460
    %v4618 = vunpack.c.h.b16 %v4460
    %v4619 = vunpack.c.l.b16 %v4461
    %v4620 = vunpack.c.h.b16 %v4461
    %v4621 = vunpack.c.l.b16 %v4462
    %v4622 = vunpack.c.h.b16 %v4462
    %v4623 = vunpack.c.l.b16 %v4463
    %v4624 = vunpack.c.h.b16 %v4463
    %v4625 = vunpack.c.l.b16 %v4464
    %v4626 = vunpack.c.h.b16 %v4464
    %v4627 = vunpack.c.l.b16 %v4465
    %v4628 = vunpack.c.h.b16 %v4465
    %v4629 = vunpack.c.l.b16 %v4466
    %v4630 = vunpack.c.h.b16 %v4466
    %v4631 = vunpack.c.l.b16 %v4467
    %v4632 = vunpack.c.h.b16 %v4467
    %v4633 = vunpack.c.l.b16 %v4468
    %v4634 = vunpack.c.h.b16 %v4468
    %v4635 = vunpack.c.l.b16 %v4469
    %v4636 = vunpack.c.h.b16 %v4469
    %v4637 = vunpack.c.l.b16 %v4470
    %v4638 = vunpack.c.h.b16 %v4470
    %v4639 = vunpack.c.l.b16 %v4471
    %v4640 = vunpack.c.h.b16 %v4471
    %v4641 = vunpack.c.l.b16 %v4472
    %v4642 = vunpack.c.h.b16 %v4472
    %v4643 = vunpack.c.l.b16 %v4473
    %v4644 = vunpack.c.h.b16 %v4473
    %v4645 = vunpack.c.l.b16 %v4474
    %v4646 = vunpack.c.h.b16 %v4474
    %v4647 = vunpack.c.l.b16 %v4475
    %v4648 = vunpack.c.h.b16 %v4475
    %v4649 = vunpack.c.l.b16 %v4476
    %v4650 = vunpack.c.h.b16 %v4476
    %v4651 = vunpack.c.l.b16 %v4477
    %v4652 = vunpack.c.h.b16 %v4477
    %v4653 = vunpack.c.l.b16 %v4478
    %v4654 = vunpack.c.h.b16 %v4478
    %v4655 = vunpack.c.l.b16 %v4479
    %v4656 = vunpack.c.h.b16 %v4479
    %v4657 = vunpack.c.l.b16 %v4480
    %v4658 = vunpack.c.h.b16 %v4480
    %v4659 = vunpack.c.l.b16 %v4481
    %v4660 = vunpack.c.h.b16 %v4481
    %v4661 = vunpack.c.l.b16 %v4482
    %v4662 = vunpack.c.h.b16 %v4482
    %v4663 = vunpack.c.l.b16 %v4483
    %v4664 = vunpack.c.h.b16 %v4483
    %v4665 = vunpack.c.l.b16 %v4484
    %v4666 = vunpack.c.h.b16 %v4484
    %v4667 = vunpack.c.l.b16 %v4485
    %v4668 = vunpack.c.h.b16 %v4485
    %v4669 = vunpack.c.l.b16 %v4486
    %v4670 = vunpack.c.h.b16 %v4486
    %v4671 = vunpack.c.l.b16 %v4487
    %v4672 = vunpack.c.h.b16 %v4487
    %v4673 = vunpack.c.l.b16 %v4488
    %v4674 = vunpack.c.h.b16 %v4488
    %v4675 = vunpack.c.l.b16 %v4489
    %v4676 = vunpack.c.h.b16 %v4489
    %v4677 = vunpack.c.l.b16 %v4490
    %v4678 = vunpack.c.h.b16 %v4490
    %v4679 = vunpack.c.l.b16 %v4491
    %v4680 = vunpack.c.h.b16 %v4491
    %v4681 = vunpack.c.l.b16 %v4492
    %v4682 = vunpack.c.h.b16 %v4492
    %v4683 = vunpack.c.l.b16 %v4493
    %v4684 = vunpack.c.h.b16 %v4493
    %v4685 = vunpack.c.l.b16 %v4494
    %v4686 = vunpack.c.h.b16 %v4494
    %v4687 = vunpack.c.l.b16 %v4495
    %v4688 = vunpack.c.h.b16 %v4495
    %v4689 = vunpack.c.l.b16 %v4496
    %v4690 = vunpack.c.h.b16 %v4496
    %v4691 = vunpack.c.l.b16 %v4497
    %v4692 = vunpack.c.h.b16 %v4497
    %v4693 = vunpack.c.l.b16 %v4498
    %v4694 = vunpack.c.h.b16 %v4498
    %v4695 = vunpack.c.l.b16 %v4499
    %v4696 = vunpack.c.h.b16 %v4499
    %v4697 = vunpack.c.l.b16 %v4500
    %v4698 = vunpack.c.h.b16 %v4500
    %v4699 = vunpack.c.l.b16 %v4501
    %v4700 = vunpack.c.h.b16 %v4501
    %v4701 = vunpack.c.l.b16 %v4502
    %v4702 = vunpack.c.h.b16 %v4502
    %v4703 = vunpack.c.l.b16 %v4503
    %v4704 = vunpack.c.h.b16 %v4503
    %v4705 = vunpack.c.l.b16 %v4504
    %v4706 = vunpack.c.h.b16 %v4504
    %v4707 = vunpack.c.l.b16 %v4505
    %v4708 = vunpack.c.h.b16 %v4505
    %v4709 = vunpack.c.l.b16 %v4506
    %v4710 = vunpack.c.h.b16 %v4506
    %v4711 = vpack.c.b16 %v4585, %v4583
    %v4712 = vpack.c.b16 %v4586, %v4584
    %v4713 = vpack.c.b16 %v4589, %v4587
    %v4714 = vpack.c.b16 %v4590, %v4588
    %v4715 = vpack.c.b16 %v4593, %v4591
    %v4716 = vpack.c.b16 %v4594, %v4592
    %v4717 = vpack.c.b16 %v4597, %v4595
    %v4718 = vpack.c.b16 %v4598, %v4596
    %v4719 = vpack.c.b16 %v4601, %v4599
    %v4720 = vpack.c.b16 %v4602, %v4600
    %v4721 = vpack.c.b16 %v4605, %v4603
    %v4722 = vpack.c.b16 %v4606, %v4604
    %v4723 = vpack.c.b16 %v4609, %v4607
    %v4724 = vpack.c.b16 %v4610, %v4608
    %v4725 = vpack.c.b16 %v4613, %v4611
    %v4726 = vpack.c.b16 %v4614, %v4612
    %v4727 = vpack.c.b16 %v4617, %v4615
    %v4728 = vpack.c.b16 %v4618, %v4616
    %v4729 = vpack.c.b16 %v4621, %v4619
    %v4730 = vpack.c.b16 %v4622, %v4620
    %v4731 = vpack.c.b16 %v4625, %v4623
    %v4732 = vpack.c.b16 %v4626, %v4624
    %v4733 = vpack.c.b16 %v4629, %v4627
    %v4734 = vpack.c.b16 %v4630, %v4628
    %v4735 = vpack.c.b16 %v4633, %v4631
    %v4736 = vpack.c.b16 %v4634, %v4632
    %v4737 = vpack.c.b16 %v4637, %v4635
    %v4738 = vpack.c.b16 %v4638, %v4636
    %v4739 = vpack.c.b16 %v4641, %v4639
    %v4740 = vpack.c.b16 %v4642, %v4640
    %v4741 = vpack.c.b16 %v4645, %v4643
    %v4742 = vpack.c.b16 %v4646, %v4644
    %v4743 = vpack.c.b16 %v4649, %v4647
    %v4744 = vpack.c.b16 %v4650, %v4648
    %v4745 = vpack.c.b16 %v4653, %v4651
    %v4746 = vpack.c.b16 %v4654, %v4652
    %v4747 = vpack.c.b16 %v4657, %v4655
    %v4748 = vpack.c.b16 %v4658, %v4656
    %v4749 = vpack.c.b16 %v4661, %v4659
    %v4750 = vpack.c.b16 %v4662, %v4660
    %v4751 = vpack.c.b16 %v4665, %v4663
    %v4752 = vpack.c.b16 %v4666, %v4664
    %v4753 = vpack.c.b16 %v4669, %v4667
    %v4754 = vpack.c.b16 %v4670, %v4668
    %v4755 = vpack.c.b16 %v4673, %v4671
    %v4756 = vpack.c.b16 %v4674, %v4672
    %v4757 = vpack.c.b16 %v4677, %v4675
    %v4758 = vpack.c.b16 %v4678, %v4676
    %v4759 = vpack.c.b16 %v4681, %v4679
    %v4760 = vpack.c.b16 %v4682, %v4680
    %v4761 = vpack.c.b16 %v4685, %v4683
    %v4762 = vpack.c.b16 %v4686, %v4684
    %v4763 = vpack.c.b16 %v4689, %v4687
    %v4764 = vpack.c.b16 %v4690, %v4688
    %v4765 = vpack.c.b16 %v4693, %v4691
    %v4766 = vpack.c.b16 %v4694, %v4692
    %v4767 = vpack.c.b16 %v4697, %v4695
    %v4768 = vpack.c.b16 %v4698, %v4696
    %v4769 = vpack.c.b16 %v4701, %v4699
    %v4770 = vpack.c.b16 %v4702, %v4700
    %v4771 = vpack.c.b16 %v4705, %v4703
    %v4772 = vpack.c.b16 %v4706, %v4704
    %v4773 = vpack.c.b16 %v4709, %v4707
    %v4774 = vpack.c.b16 %v4710, %v4708
    %4839 = vmatprep.subr.bf16.mxu0 %v4712
    %4840 = vmatpush1.bf16.msra.mxu0 %v4711
    %4841 = vmatprep.subr.bf16.mxu0 %v4714
    %4842 = vmatpush1.bf16.msra.mxu0 %v4713
    %4843 = vmatprep.subr.bf16.mxu0 %v4716
    %4844 = vmatpush1.bf16.msra.mxu0 %v4715
    %4845 = vmatprep.subr.bf16.mxu0 %v4718
    %4846 = vmatpush1.bf16.msra.mxu0 %v4717
    %4847 = vmatprep.subr.bf16.mxu0 %v4720
    %4848 = vmatpush1.bf16.msra.mxu0 %v4719
    %4849 = vmatprep.subr.bf16.mxu0 %v4722
    %4850 = vmatpush1.bf16.msra.mxu0 %v4721
    %4851 = vmatprep.subr.bf16.mxu0 %v4724
    %4852 = vmatpush1.bf16.msra.mxu0 %v4723
    %4853 = vmatprep.subr.bf16.mxu0 %v4726
    %4854 = vmatpush1.bf16.msra.mxu0 %v4725
    %4855 = vmatprep.subr.bf16.mxu0 %v4728
    %4856 = vmatpush1.bf16.msra.mxu0 %v4727
    %4857 = vmatprep.subr.bf16.mxu0 %v4730
    %4858 = vmatpush1.bf16.msra.mxu0 %v4729
    %4859 = vmatprep.subr.bf16.mxu0 %v4732
    %4860 = vmatpush1.bf16.msra.mxu0 %v4731
    %4861 = vmatprep.subr.bf16.mxu0 %v4734
    %4862 = vmatpush1.bf16.msra.mxu0 %v4733
    %4863 = vmatprep.subr.bf16.mxu0 %v4736
    %4864 = vmatpush1.bf16.msra.mxu0 %v4735
    %4865 = vmatprep.subr.bf16.mxu0 %v4738
    %4866 = vmatpush1.bf16.msra.mxu0 %v4737
    %4867 = vmatprep.subr.bf16.mxu0 %v4740
    %4868 = vmatpush1.bf16.msra.mxu0 %v4739
    %4869 = vmatprep.subr.bf16.mxu0 %v4742
    %4870 = vmatpush1.bf16.msra.mxu0 %v4741
    %4871 = vmatprep.mubr.bf16.mxu0 %v4440
    %4872 = vmatmul.mubr.bf16.gmra.mrb[0].mxu0 %v4439
    %v4873 = vpop.f32.mrb[0].mxu0
    %v4874 = vadd.f32 %v4512, %v4873
    %v4875 = vpop.f32.mrb[0].mxu0
    %v4876 = vadd.f32 %v4516, %v4875
    %v4877 = vpop.f32.mrb[0].mxu0
    %v4878 = vpop.f32.mrb[0].mxu0
    %4879 = vdwg.mxu0
    %4880 = vmatprep.subr.bf16.mxu0 %v4744
    %4881 = vmatpush1.bf16.msra.mxu0 %v4743
    %4882 = vmatprep.subr.bf16.mxu0 %v4746
    %4883 = vmatpush1.bf16.msra.mxu0 %v4745
    %4884 = vmatprep.subr.bf16.mxu0 %v4748
    %4885 = vmatpush1.bf16.msra.mxu0 %v4747
    %4886 = vmatprep.subr.bf16.mxu0 %v4750
    %4887 = vmatpush1.bf16.msra.mxu0 %v4749
    %4888 = vmatprep.subr.bf16.mxu0 %v4752
    %4889 = vmatpush1.bf16.msra.mxu0 %v4751
    %4890 = vmatprep.subr.bf16.mxu0 %v4754
    %4891 = vmatpush1.bf16.msra.mxu0 %v4753
    %4892 = vmatprep.subr.bf16.mxu0 %v4756
    %4893 = vmatpush1.bf16.msra.mxu0 %v4755
    %4894 = vmatprep.subr.bf16.mxu0 %v4758
    %4895 = vmatpush1.bf16.msra.mxu0 %v4757
    %4896 = vmatprep.subr.bf16.mxu0 %v4760
    %4897 = vmatpush1.bf16.msra.mxu0 %v4759
    %4898 = vmatprep.subr.bf16.mxu0 %v4762
    %4899 = vmatpush1.bf16.msra.mxu0 %v4761
    %4900 = vmatprep.subr.bf16.mxu0 %v4764
    %4901 = vmatpush1.bf16.msra.mxu0 %v4763
    %4902 = vmatprep.subr.bf16.mxu0 %v4766
    %4903 = vmatpush1.bf16.msra.mxu0 %v4765
    %4904 = vmatprep.subr.bf16.mxu0 %v4768
    %4905 = vmatpush1.bf16.msra.mxu0 %v4767
    %4906 = vmatprep.subr.bf16.mxu0 %v4770
    %4907 = vmatpush1.bf16.msra.mxu0 %v4769
    %4908 = vmatprep.subr.bf16.mxu0 %v4772
    %4909 = vmatpush1.bf16.msra.mxu0 %v4771
    %4910 = vmatprep.subr.bf16.mxu0 %v4774
    %4911 = vmatpush1.bf16.msra.mxu0 %v4773
    %4912 = vmatprep.mubr.bf16.mxu0 %v4442
    %4913 = vmatmul.mubr.bf16.gmra.mrb[0].mxu0 %v4441
    %v4914 = vpop.f32.mrb[0].mxu0
    %v4915 = vadd.f32 %v4874, %v4914
    %v4916 = vpop.f32.mrb[0].mxu0
    %v4917 = vadd.f32 %v4876, %v4916
    %v4918 = vpop.f32.mrb[0].mxu0
    %v4919 = vpop.f32.mrb[0].mxu0
    %4920 = vdwg.mxu0
    %v4921 = vmax.f32 %v4915, 0.0
    %v4922 = vmax.f32 %v4917, 0.0
    %v4923 = vpack.c.bf16 %v4921, %v4921
    %v4924 = vpack.c.bf16 %v4922, %v4922
    %v4925 = vld [vmem:[%s25] sm:$0xf]
    %v4926 = vld [vmem:[%s25 + $0x4] sm:$0xf]
    %v4927 = vld [vmem:[%s25 + $0x8] sm:$0xf]
    %v4928 = vld [vmem:[%s25 + $0xc] sm:$0xf]
    %v4929 = vld [vmem:[%s25 + $0x10] sm:$0xf]
    %v4930 = vld [vmem:[%s25 + $0x14] sm:$0xf]
    %v4931 = vld [vmem:[%s25 + $0x18] sm:$0xf]
    %v4932 = vld [vmem:[%s25 + $0x1c] sm:$0xf]
    %v4933 = vld [vmem:[%s25 + $0x20] sm:$0xf]
    %v4934 = vld [vmem:[%s25 + $0x24] sm:$0xf]
    %v4935 = vld [vmem:[%s25 + $0x28] sm:$0xf]
    %v4936 = vld [vmem:[%s25 + $0x2c] sm:$0xf]
    %v4937 = vld [vmem:[%s25 + $0x30] sm:$0xf]
    %v4938 = vld [vmem:[%s25 + $0x34] sm:$0xf]
    %v4939 = vld [vmem:[%s25 + $0x38] sm:$0xf]
    %v4940 = vld [vmem:[%s25 + $0x3c] sm:$0xf]
    %v4941 = vld [vmem:[%s25 + $0x40] sm:$0xf]
    %v4942 = vld [vmem:[%s25 + $0x44] sm:$0xf]
    %v4943 = vld [vmem:[%s25 + $0x48] sm:$0xf]
    %v4944 = vld [vmem:[%s25 + $0x4c] sm:$0xf]
    %v4945 = vld [vmem:[%s25 + $0x50] sm:$0xf]
    %v4946 = vld [vmem:[%s25 + $0x54] sm:$0xf]
    %v4947 = vld [vmem:[%s25 + $0x58] sm:$0xf]
    %v4948 = vld [vmem:[%s25 + $0x5c] sm:$0xf]
    %v4949 = vld [vmem:[%s25 + $0x60] sm:$0xf]
    %v4950 = vld [vmem:[%s25 + $0x64] sm:$0xf]
    %v4951 = vld [vmem:[%s25 + $0x68] sm:$0xf]
    %v4952 = vld [vmem:[%s25 + $0x6c] sm:$0xf]
    %v4953 = vld [vmem:[%s25 + $0x70] sm:$0xf]
    %v4954 = vld [vmem:[%s25 + $0x74] sm:$0xf]
    %v4955 = vld [vmem:[%s25 + $0x78] sm:$0xf]
    %v4956 = vld [vmem:[%s25 + $0x7c] sm:$0xf]
    %v4957 = vld [vmem:[%s27] sm:$0x1]
    %v4959 = vlaneseq
    %v4960 = vshrl.u32 %v4959, 7
    %v4961 = vsub.s32 0, %v4960
    %v4962 = vrot.slane %v4957, %v4961
    %v4996 = vunpack.c.l.b16 %v4925
    %v4997 = vunpack.c.l.b16 %v4926
    %v4998 = vunpack.c.l.b16 %v4927
    %v4999 = vunpack.c.l.b16 %v4928
    %v5000 = vunpack.c.l.b16 %v4929
    %v5001 = vunpack.c.l.b16 %v4930
    %v5002 = vunpack.c.l.b16 %v4931
    %v5003 = vunpack.c.l.b16 %v4932
    %v5004 = vunpack.c.l.b16 %v4933
    %v5005 = vunpack.c.l.b16 %v4934
    %v5006 = vunpack.c.l.b16 %v4935
    %v5007 = vunpack.c.l.b16 %v4936
    %v5008 = vunpack.c.l.b16 %v4937
    %v5009 = vunpack.c.l.b16 %v4938
    %v5010 = vunpack.c.l.b16 %v4939
    %v5011 = vunpack.c.l.b16 %v4940
    %v5012 = vunpack.c.l.b16 %v4941
    %v5013 = vunpack.c.l.b16 %v4942
    %v5014 = vunpack.c.l.b16 %v4943
    %v5015 = vunpack.c.l.b16 %v4944
    %v5016 = vunpack.c.l.b16 %v4945
    %v5017 = vunpack.c.l.b16 %v4946
    %v5018 = vunpack.c.l.b16 %v4947
    %v5019 = vunpack.c.l.b16 %v4948
    %v5020 = vunpack.c.l.b16 %v4949
    %v5021 = vunpack.c.l.b16 %v4950
    %v5022 = vunpack.c.l.b16 %v4951
    %v5023 = vunpack.c.l.b16 %v4952
    %v5024 = vunpack.c.l.b16 %v4953
    %v5025 = vunpack.c.l.b16 %v4954
    %v5026 = vunpack.c.l.b16 %v4955
    %v5027 = vunpack.c.l.b16 %v4956
    %v5028 = vpack.c.b16 %v4997, %v4996
    %v5029 = vpack.c.b16 %v4999, %v4998
    %v5030 = vpack.c.b16 %v5001, %v5000
    %v5031 = vpack.c.b16 %v5003, %v5002
    %v5032 = vpack.c.b16 %v5005, %v5004
    %v5033 = vpack.c.b16 %v5007, %v5006
    %v5034 = vpack.c.b16 %v5009, %v5008
    %v5035 = vpack.c.b16 %v5011, %v5010
    %v5036 = vpack.c.b16 %v5013, %v5012
    %v5037 = vpack.c.b16 %v5015, %v5014
    %v5038 = vpack.c.b16 %v5017, %v5016
    %v5039 = vpack.c.b16 %v5019, %v5018
    %v5040 = vpack.c.b16 %v5021, %v5020
    %v5041 = vpack.c.b16 %v5023, %v5022
    %v5042 = vpack.c.b16 %v5025, %v5024
    %v5043 = vpack.c.b16 %v5027, %v5026
    %5060 = vmatprep.subr.bf16.mxu0 0
    %5061 = vmatpush1.bf16.msra.mxu0 %v5028
    %5062 = vmatprep.subr.bf16.mxu0 0
    %5063 = vmatpush1.bf16.msra.mxu0 %v5029
    %5064 = vmatprep.subr.bf16.mxu0 0
    %5065 = vmatpush1.bf16.msra.mxu0 %v5030
    %5066 = vmatprep.subr.bf16.mxu0 0
    %5067 = vmatpush1.bf16.msra.mxu0 %v5031
    %5068 = vmatprep.subr.bf16.mxu0 0
    %5069 = vmatpush1.bf16.msra.mxu0 %v5032
    %5070 = vmatprep.subr.bf16.mxu0 0
    %5071 = vmatpush1.bf16.msra.mxu0 %v5033
    %5072 = vmatprep.subr.bf16.mxu0 0
    %5073 = vmatpush1.bf16.msra.mxu0 %v5034
    %5074 = vmatprep.subr.bf16.mxu0 0
    %5075 = vmatpush1.bf16.msra.mxu0 %v5035
    %5076 = vmatprep.subr.bf16.mxu0 0
    %5077 = vmatpush1.bf16.msra.mxu0 %v5036
    %5078 = vmatprep.subr.bf16.mxu0 0
    %5079 = vmatpush1.bf16.msra.mxu0 %v5037
    %5080 = vmatprep.subr.bf16.mxu0 0
    %5081 = vmatpush1.bf16.msra.mxu0 %v5038
    %5082 = vmatprep.subr.bf16.mxu0 0
    %5083 = vmatpush1.bf16.msra.mxu0 %v5039
    %5084 = vmatprep.subr.bf16.mxu0 0
    %5085 = vmatpush1.bf16.msra.mxu0 %v5040
    %5086 = vmatprep.subr.bf16.mxu0 0
    %5087 = vmatpush1.bf16.msra.mxu0 %v5041
    %5088 = vmatprep.subr.bf16.mxu0 0
    %5089 = vmatpush1.bf16.msra.mxu0 %v5042
    %5090 = vmatprep.subr.bf16.mxu0 0
    %5091 = vmatpush1.bf16.msra.mxu0 %v5043
    %5092 = vmatprep.mubr.bf16.mxu0 %v4924
    %5093 = vmatmul.mubr.bf16.gmra.mrb[0].mxu0 %v4923
    %v5094 = vpop.f32.mrb[0].mxu0
    %v5095 = vadd.f32 %v4962, %v5094
    %v5096 = vpop.f32.mrb[0].mxu0
    %v5097 = vpop.f32.mrb[0].mxu0
    %v5098 = vpop.f32.mrb[0].mxu0
    %5099 = vdwg.mxu0
    %5100 = vst [vmem:[%s61] sm:$0x3] %v5095
    %v5101 = vlaneseq
    %v5102 = vshrl.u32 %v5101, 7
    %v5103 = vsub.s32 0, %v5102
    %v5104 = vrot.slane %v5095, %v5103
    %v5105 = vlaneseq
    %v5106 = vshrl.u32 %v5105, 7
    %v5107 = vsub.s32 1, %v5106
    %v5108 = vrot.slane %v5095, %v5107
    %v5109 = vld [vmem:[%s3] sm:$0xff]
    %v5110 = vld [vmem:[%s3 + $0x8] sm:$0xff]
    %v5111 = vld [vmem:[%s3 + $0x10] sm:$0xff]
    %v5112 = vld [vmem:[%s3 + $0x18] sm:$0xff]
    %v5113 = vld [vmem:[%s3 + $0x20] sm:$0xff]
    %v5114 = vld [vmem:[%s3 + $0x28] sm:$0xff]
    %v5115 = vld [vmem:[%s3 + $0x30] sm:$0xff]
    %v5116 = vld [vmem:[%s3 + $0x38] sm:$0xff]
    %v5117 = vld [vmem:[%s3 + $0x40] sm:$0xff]
    %v5118 = vld [vmem:[%s3 + $0x48] sm:$0xff]
    %v5119 = vld [vmem:[%s3 + $0x50] sm:$0xff]
    %v5120 = vld [vmem:[%s3 + $0x58] sm:$0xff]
    %v5121 = vld [vmem:[%s3 + $0x60] sm:$0xff]
    %v5122 = vld [vmem:[%s3 + $0x68] sm:$0xff]
    %v5123 = vld [vmem:[%s3 + $0x70] sm:$0xff]
    %v5124 = vld [vmem:[%s3 + $0x78] sm:$0xff]
    %v5125 = vld [vmem:[%s3 + $0x80] sm:$0xff]
    %v5126 = vld [vmem:[%s3 + $0x88] sm:$0xff]
    %v5127 = vld [vmem:[%s3 + $0x90] sm:$0xff]
    %v5128 = vld [vmem:[%s3 + $0x98] sm:$0xff]
    %v5129 = vld [vmem:[%s3 + $0xa0] sm:$0xff]
    %v5130 = vld [vmem:[%s3 + $0xa8] sm:$0xff]
    %v5131 = vld [vmem:[%s3 + $0xb0] sm:$0xff]
    %v5132 = vld [vmem:[%s3 + $0xb8] sm:$0xff]
    %v5133 = vld [vmem:[%s3 + $0xc0] sm:$0xff]
    %v5134 = vld [vmem:[%s3 + $0xc8] sm:$0xff]
    %v5135 = vld [vmem:[%s3 + $0xd0] sm:$0xff]
    %v5136 = vld [vmem:[%s3 + $0xd8] sm:$0xff]
    %v5137 = vld [vmem:[%s3 + $0xe0] sm:$0xff]
    %v5138 = vld [vmem:[%s3 + $0xe8] sm:$0xff]
    %v5139 = vld [vmem:[%s3 + $0xf0] sm:$0xff]
    %v5140 = vld [vmem:[%s3 + $0xf8] sm:$0xff]
    %v5141 = vmul.f32 %v5109, %v5104
    %v5142 = vmul.f32 %v5110, %v5104
    %v5143 = vmul.f32 %v5111, %v5104
    %v5144 = vmul.f32 %v5112, %v5104
    %v5145 = vmul.f32 %v5113, %v5104
    %v5146 = vmul.f32 %v5114, %v5104
    %v5147 = vmul.f32 %v5115, %v5104
    %v5148 = vmul.f32 %v5116, %v5104
    %v5149 = vmul.f32 %v5117, %v5104
    %v5150 = vmul.f32 %v5118, %v5104
    %v5151 = vmul.f32 %v5119, %v5104
    %v5152 = vmul.f32 %v5120, %v5104
    %v5153 = vmul.f32 %v5121, %v5104
    %v5154 = vmul.f32 %v5122, %v5104
    %v5155 = vmul.f32 %v5123, %v5104
    %v5156 = vmul.f32 %v5124, %v5104
    %v5157 = vmul.f32 %v5125, %v5108
    %v5158 = vmul.f32 %v5126, %v5108
    %v5159 = vmul.f32 %v5127, %v5108
    %v5160 = vmul.f32 %v5128, %v5108
    %v5161 = vmul.f32 %v5129, %v5108
    %v5162 = vmul.f32 %v5130, %v5108
    %v5163 = vmul.f32 %v5131, %v5108
    %v5164 = vmul.f32 %v5132, %v5108
    %v5165 = vmul.f32 %v5133, %v5108
    %v5166 = vmul.f32 %v5134, %v5108
    %v5167 = vmul.f32 %v5135, %v5108
    %v5168 = vmul.f32 %v5136, %v5108
    %v5169 = vmul.f32 %v5137, %v5108
    %v5170 = vmul.f32 %v5138, %v5108
    %v5171 = vmul.f32 %v5139, %v5108
    %v5172 = vmul.f32 %v5140, %v5108
    %v5173 = vpack.c.bf16 %v5142, %v5141
    %v5174 = vpack.c.bf16 %v5144, %v5143
    %v5175 = vpack.c.bf16 %v5146, %v5145
    %v5176 = vpack.c.bf16 %v5148, %v5147
    %v5177 = vpack.c.bf16 %v5150, %v5149
    %v5178 = vpack.c.bf16 %v5152, %v5151
    %v5179 = vpack.c.bf16 %v5154, %v5153
    %v5180 = vpack.c.bf16 %v5156, %v5155
    %v5181 = vpack.c.bf16 %v5158, %v5157
    %v5182 = vpack.c.bf16 %v5160, %v5159
    %v5183 = vpack.c.bf16 %v5162, %v5161
    %v5184 = vpack.c.bf16 %v5164, %v5163
    %v5185 = vpack.c.bf16 %v5166, %v5165
    %v5186 = vpack.c.bf16 %v5168, %v5167
    %v5187 = vpack.c.bf16 %v5170, %v5169
    %v5188 = vpack.c.bf16 %v5172, %v5171
    %v5189 = vld [vmem:[%s29] sm:$0xf]
    %v5190 = vld [vmem:[%s29 + $0x4] sm:$0x1]
    %v5191 = vld [vmem:[%s31] sm:$0x1]
    %v5193 = vlaneseq
    %v5194 = vshrl.u32 %v5193, 7
    %v5195 = vsub.s32 0, %v5194
    %v5196 = vrot.slane %v5191, %v5195
    %v5200 = vunpack.c.l.b16 %v5189
    %v5201 = vunpack.c.l.b16 %v5190
    %v5202 = vpack.c.b16 %v5201, %v5200
    %vm5203 = vcmask 72704
    %v5205 = vsel %vm5203, %v5173, 0
    %v5208 = vsel %vm5203, %v5174, 0
    %v5211 = vsel %vm5203, %v5175, 0
    %v5214 = vsel %vm5203, %v5176, 0
    %v5217 = vsel %vm5203, %v5177, 0
    %v5220 = vsel %vm5203, %v5178, 0
    %v5223 = vsel %vm5203, %v5179, 0
    %v5226 = vsel %vm5203, %v5180, 0
    %v5229 = vsel %vm5203, %v5181, 0
    %v5232 = vsel %vm5203, %v5182, 0
    %v5235 = vsel %vm5203, %v5183, 0
    %v5238 = vsel %vm5203, %v5184, 0
    %v5241 = vsel %vm5203, %v5185, 0
    %v5244 = vsel %vm5203, %v5186, 0
    %v5247 = vsel %vm5203, %v5187, 0
    %v5250 = vsel %vm5203, %v5188, 0
    %vm5252 = vcmask 1043456
    %vm5253 = vcmask 1044480
    %v5254 = vsel %vm5252, 4294967295, 65535
    %v5255 = vsel %vm5253, %v5254, 0
    %v5257 = vand.u32 %v5202, %v5255
    %5259 = vmatprep.subr.bf16.mxu0 0
    %5260 = vmatpush1.bf16.msra.mxu0 %v5257
    %5261 = vmatprep.subr.bf16.mxu0 0
    %5262 = vmatpush1.bf16.msra.mxu0 0
    %5263 = vmatprep.subr.bf16.mxu0 0
    %5264 = vmatpush1.bf16.msra.mxu0 0
    %5265 = vmatprep.subr.bf16.mxu0 0
    %5266 = vmatpush1.bf16.msra.mxu0 0
    %5267 = vmatprep.subr.bf16.mxu0 0
    %5268 = vmatpush1.bf16.msra.mxu0 0
    %5269 = vmatprep.subr.bf16.mxu0 0
    %5270 = vmatpush1.bf16.msra.mxu0 0
    %5271 = vmatprep.subr.bf16.mxu0 0
    %5272 = vmatpush1.bf16.msra.mxu0 0
    %5273 = vmatprep.subr.bf16.mxu0 0
    %5274 = vmatpush1.bf16.msra.mxu0 0
    %5275 = vmatprep.subr.bf16.mxu0 0
    %5276 = vmatpush1.bf16.msra.mxu0 0
    %5277 = vmatprep.subr.bf16.mxu0 0
    %5278 = vmatpush1.bf16.msra.mxu0 0
    %5279 = vmatprep.subr.bf16.mxu0 0
    %5280 = vmatpush1.bf16.msra.mxu0 0
    %5281 = vmatprep.subr.bf16.mxu0 0
    %5282 = vmatpush1.bf16.msra.mxu0 0
    %5283 = vmatprep.subr.bf16.mxu0 0
    %5284 = vmatpush1.bf16.msra.mxu0 0
    %5285 = vmatprep.subr.bf16.mxu0 0
    %5286 = vmatpush1.bf16.msra.mxu0 0
    %5287 = vmatprep.subr.bf16.mxu0 0
    %5288 = vmatpush1.bf16.msra.mxu0 0
    %5289 = vmatprep.subr.bf16.mxu0 0
    %5290 = vmatpush1.bf16.msra.mxu0 0
    %5291 = vmatprep.mubr.bf16.mxu0 0
    %5292 = vmatmul.mubr.bf16.gmra.mrb[0].mxu0 %v5205
    %v5293 = vpop.f32.mrb[0].mxu0
    %v5294 = vadd.f32 %v5196, %v5293
    %v5295 = vpop.f32.mrb[0].mxu0
    %v5296 = vpop.f32.mrb[0].mxu0
    %v5297 = vadd.f32 %v5196, %v5296
    %v5298 = vpop.f32.mrb[0].mxu0
    %5299 = vmatprep.mubr.bf16.mxu0 0
    %5300 = vmatmul.mubr.bf16.gmra.mrb[0].mxu0 %v5208
    %v5301 = vpop.f32.mrb[0].mxu0
    %v5302 = vadd.f32 %v5196, %v5301
    %v5303 = vpop.f32.mrb[0].mxu0
    %v5304 = vpop.f32.mrb[0].mxu0
    %v5305 = vadd.f32 %v5196, %v5304
    %v5306 = vpop.f32.mrb[0].mxu0
    %5307 = vmatprep.mubr.bf16.mxu0 0
    %5308 = vmatmul.mubr.bf16.gmra.mrb[0].mxu0 %v5211
    %v5309 = vpop.f32.mrb[0].mxu0
    %v5310 = vadd.f32 %v5196, %v5309
    %v5311 = vpop.f32.mrb[0].mxu0
    %v5312 = vpop.f32.mrb[0].mxu0
    %v5313 = vadd.f32 %v5196, %v5312
    %v5314 = vpop.f32.mrb[0].mxu0
    %5315 = vmatprep.mubr.bf16.mxu0 0
    %5316 = vmatmul.mubr.bf16.gmra.mrb[0].mxu0 %v5214
    %v5317 = vpop.f32.mrb[0].mxu0
    %v5318 = vadd.f32 %v5196, %v5317
    %v5319 = vpop.f32.mrb[0].mxu0
    %v5320 = vpop.f32.mrb[0].mxu0
    %v5321 = vadd.f32 %v5196, %v5320
    %v5322 = vpop.f32.mrb[0].mxu0
    %5323 = vmatprep.mubr.bf16.mxu0 0
    %5324 = vmatmul.mubr.bf16.gmra.mrb[0].mxu0 %v5217
    %v5325 = vpop.f32.mrb[0].mxu0
    %v5326 = vadd.f32 %v5196, %v5325
    %v5327 = vpop.f32.mrb[0].mxu0
    %v5328 = vpop.f32.mrb[0].mxu0
    %v5329 = vadd.f32 %v5196, %v5328
    %v5330 = vpop.f32.mrb[0].mxu0
    %5331 = vmatprep.mubr.bf16.mxu0 0
    %5332 = vmatmul.mubr.bf16.gmra.mrb[0].mxu0 %v5220
    %v5333 = vpop.f32.mrb[0].mxu0
    %v5334 = vadd.f32 %v5196, %v5333
    %v5335 = vpop.f32.mrb[0].mxu0
    %v5336 = vpop.f32.mrb[0].mxu0
    %v5337 = vadd.f32 %v5196, %v5336
    %v5338 = vpop.f32.mrb[0].mxu0
    %5339 = vmatprep.mubr.bf16.mxu0 0
    %5340 = vmatmul.mubr.bf16.gmra.mrb[0].mxu0 %v5223
    %v5341 = vpop.f32.mrb[0].mxu0
    %v5342 = vadd.f32 %v5196, %v5341
    %v5343 = vpop.f32.mrb[0].mxu0
    %v5344 = vpop.f32.mrb[0].mxu0
    %v5345 = vadd.f32 %v5196, %v5344
    %v5346 = vpop.f32.mrb[0].mxu0
    %5347 = vmatprep.mubr.bf16.mxu0 0
    %5348 = vmatmul.mubr.bf16.gmra.mrb[0].mxu0 %v5226
    %v5349 = vpop.f32.mrb[0].mxu0
    %v5350 = vadd.f32 %v5196, %v5349
    %v5351 = vpop.f32.mrb[0].mxu0
    %v5352 = vpop.f32.mrb[0].mxu0
    %v5353 = vadd.f32 %v5196, %v5352
    %v5354 = vpop.f32.mrb[0].mxu0
    %5355 = vmatprep.mubr.bf16.mxu0 0
    %5356 = vmatmul.mubr.bf16.gmra.mrb[0].mxu0 %v5229
    %v5357 = vpop.f32.mrb[0].mxu0
    %v5358 = vadd.f32 %v5196, %v5357
    %v5359 = vpop.f32.mrb[0].mxu0
    %v5360 = vpop.f32.mrb[0].mxu0
    %v5361 = vadd.f32 %v5196, %v5360
    %v5362 = vpop.f32.mrb[0].mxu0
    %5363 = vmatprep.mubr.bf16.mxu0 0
    %5364 = vmatmul.mubr.bf16.gmra.mrb[0].mxu0 %v5232
    %v5365 = vpop.f32.mrb[0].mxu0
    %v5366 = vadd.f32 %v5196, %v5365
    %v5367 = vpop.f32.mrb[0].mxu0
    %v5368 = vpop.f32.mrb[0].mxu0
    %v5369 = vadd.f32 %v5196, %v5368
    %v5370 = vpop.f32.mrb[0].mxu0
    %5371 = vmatprep.mubr.bf16.mxu0 0
    %5372 = vmatmul.mubr.bf16.gmra.mrb[0].mxu0 %v5235
    %v5373 = vpop.f32.mrb[0].mxu0
    %v5374 = vadd.f32 %v5196, %v5373
    %v5375 = vpop.f32.mrb[0].mxu0
    %v5376 = vpop.f32.mrb[0].mxu0
    %v5377 = vadd.f32 %v5196, %v5376
    %v5378 = vpop.f32.mrb[0].mxu0
    %5379 = vmatprep.mubr.bf16.mxu0 0
    %5380 = vmatmul.mubr.bf16.gmra.mrb[0].mxu0 %v5238
    %v5381 = vpop.f32.mrb[0].mxu0
    %v5382 = vadd.f32 %v5196, %v5381
    %v5383 = vpop.f32.mrb[0].mxu0
    %v5384 = vpop.f32.mrb[0].mxu0
    %v5385 = vadd.f32 %v5196, %v5384
    %v5386 = vpop.f32.mrb[0].mxu0
    %5387 = vmatprep.mubr.bf16.mxu0 0
    %5388 = vmatmul.mubr.bf16.gmra.mrb[0].mxu0 %v5241
    %v5389 = vpop.f32.mrb[0].mxu0
    %v5390 = vadd.f32 %v5196, %v5389
    %v5391 = vpop.f32.mrb[0].mxu0
    %v5392 = vpop.f32.mrb[0].mxu0
    %v5393 = vadd.f32 %v5196, %v5392
    %v5394 = vpop.f32.mrb[0].mxu0
    %5395 = vmatprep.mubr.bf16.mxu0 0
    %5396 = vmatmul.mubr.bf16.gmra.mrb[0].mxu0 %v5244
    %v5397 = vpop.f32.mrb[0].mxu0
    %v5398 = vadd.f32 %v5196, %v5397
    %v5399 = vpop.f32.mrb[0].mxu0
    %v5400 = vpop.f32.mrb[0].mxu0
    %v5401 = vadd.f32 %v5196, %v5400
    %v5402 = vpop.f32.mrb[0].mxu0
    %5403 = vmatprep.mubr.bf16.mxu0 0
    %5404 = vmatmul.mubr.bf16.gmra.mrb[0].mxu0 %v5247
    %v5405 = vpop.f32.mrb[0].mxu0
    %v5406 = vadd.f32 %v5196, %v5405
    %v5407 = vpop.f32.mrb[0].mxu0
    %v5408 = vpop.f32.mrb[0].mxu0
    %v5409 = vadd.f32 %v5196, %v5408
    %v5410 = vpop.f32.mrb[0].mxu0
    %5411 = vmatprep.mubr.bf16.mxu0 0
    %5412 = vmatmul.mubr.bf16.gmra.mrb[0].mxu0 %v5250
    %v5413 = vpop.f32.mrb[0].mxu0
    %v5414 = vadd.f32 %v5196, %v5413
    %v5415 = vpop.f32.mrb[0].mxu0
    %v5416 = vpop.f32.mrb[0].mxu0
    %v5417 = vadd.f32 %v5196, %v5416
    %v5418 = vpop.f32.mrb[0].mxu0
    %5419 = vdwg.mxu0
    %v5420 = vmax.f32 %v5294, 0.0
    %v5421 = vmax.f32 %v5297, 0.0
    %v5422 = vmax.f32 %v5302, 0.0
    %v5423 = vmax.f32 %v5305, 0.0
    %v5424 = vmax.f32 %v5310, 0.0
    %v5425 = vmax.f32 %v5313, 0.0
    %v5426 = vmax.f32 %v5318, 0.0
    %v5427 = vmax.f32 %v5321, 0.0
    %v5428 = vmax.f32 %v5326, 0.0
    %v5429 = vmax.f32 %v5329, 0.0
    %v5430 = vmax.f32 %v5334, 0.0
    %v5431 = vmax.f32 %v5337, 0.0
    %v5432 = vmax.f32 %v5342, 0.0
    %v5433 = vmax.f32 %v5345, 0.0
    %v5434 = vmax.f32 %v5350, 0.0
    %v5435 = vmax.f32 %v5353, 0.0
    %v5436 = vmax.f32 %v5358, 0.0
    %v5437 = vmax.f32 %v5361, 0.0
    %v5438 = vmax.f32 %v5366, 0.0
    %v5439 = vmax.f32 %v5369, 0.0
    %v5440 = vmax.f32 %v5374, 0.0
    %v5441 = vmax.f32 %v5377, 0.0
    %v5442 = vmax.f32 %v5382, 0.0
    %v5443 = vmax.f32 %v5385, 0.0
    %v5444 = vmax.f32 %v5390, 0.0
    %v5445 = vmax.f32 %v5393, 0.0
    %v5446 = vmax.f32 %v5398, 0.0
    %v5447 = vmax.f32 %v5401, 0.0
    %v5448 = vmax.f32 %v5406, 0.0
    %v5449 = vmax.f32 %v5409, 0.0
    %v5450 = vmax.f32 %v5414, 0.0
    %v5451 = vmax.f32 %v5417, 0.0
    %v5452 = vpack.c.bf16 %v5421, %v5420
    %v5453 = vpack.c.bf16 %v5423, %v5422
    %v5454 = vpack.c.bf16 %v5425, %v5424
    %v5455 = vpack.c.bf16 %v5427, %v5426
    %v5456 = vpack.c.bf16 %v5429, %v5428
    %v5457 = vpack.c.bf16 %v5431, %v5430
    %v5458 = vpack.c.bf16 %v5433, %v5432
    %v5459 = vpack.c.bf16 %v5435, %v5434
    %v5460 = vpack.c.bf16 %v5437, %v5436
    %v5461 = vpack.c.bf16 %v5439, %v5438
    %v5462 = vpack.c.bf16 %v5441, %v5440
    %v5463 = vpack.c.bf16 %v5443, %v5442
    %v5464 = vpack.c.bf16 %v5445, %v5444
    %v5465 = vpack.c.bf16 %v5447, %v5446
    %v5466 = vpack.c.bf16 %v5449, %v5448
    %v5467 = vpack.c.bf16 %v5451, %v5450
    %v5468 = vld [vmem:[%s33] sm:$0xf]
    %v5469 = vld [vmem:[%s33 + $0x4] sm:$0xf]
    %v5470 = vld [vmem:[%s33 + $0x8] sm:$0xf]
    %v5471 = vld [vmem:[%s33 + $0xc] sm:$0xf]
    %v5472 = vld [vmem:[%s33 + $0x10] sm:$0xf]
    %v5473 = vld [vmem:[%s33 + $0x14] sm:$0xf]
    %v5474 = vld [vmem:[%s33 + $0x18] sm:$0xf]
    %v5475 = vld [vmem:[%s33 + $0x1c] sm:$0xf]
    %v5476 = vld [vmem:[%s35] sm:$0x1]
    %v5478 = vlaneseq
    %v5479 = vshrl.u32 %v5478, 7
    %v5480 = vsub.s32 0, %v5479
    %v5481 = vrot.slane %v5476, %v5480
    %v5491 = vunpack.c.l.b16 %v5468
    %v5492 = vunpack.c.l.b16 %v5469
    %v5493 = vunpack.c.l.b16 %v5470
    %v5494 = vunpack.c.l.b16 %v5471
    %v5495 = vunpack.c.l.b16 %v5472
    %v5496 = vunpack.c.l.b16 %v5473
    %v5497 = vunpack.c.l.b16 %v5474
    %v5498 = vunpack.c.l.b16 %v5475
    %v5499 = vpack.c.b16 %v5492, %v5491
    %v5500 = vpack.c.b16 %v5494, %v5493
    %v5501 = vpack.c.b16 %v5496, %v5495
    %v5502 = vpack.c.b16 %v5498, %v5497
    %v5508 = vsel %vm485, %v5452, 0
    %v5511 = vsel %vm485, %v5453, 0
    %v5514 = vsel %vm485, %v5454, 0
    %v5517 = vsel %vm485, %v5455, 0
    %v5520 = vsel %vm485, %v5456, 0
    %v5523 = vsel %vm485, %v5457, 0
    %v5526 = vsel %vm485, %v5458, 0
    %v5529 = vsel %vm485, %v5459, 0
    %v5532 = vsel %vm485, %v5460, 0
    %v5535 = vsel %vm485, %v5461, 0
    %v5538 = vsel %vm485, %v5462, 0
    %v5541 = vsel %vm485, %v5463, 0
    %v5544 = vsel %vm485, %v5464, 0
    %v5547 = vsel %vm485, %v5465, 0
    %v5550 = vsel %vm485, %v5466, 0
    %v5553 = vsel %vm485, %v5467, 0
    %5555 = vmatprep.subr.bf16.mxu0 0
    %5556 = vmatpush1.bf16.msra.mxu0 %v5499
    %5557 = vmatprep.subr.bf16.mxu0 0
    %5558 = vmatpush1.bf16.msra.mxu0 %v5500
    %5559 = vmatprep.subr.bf16.mxu0 0
    %5560 = vmatpush1.bf16.msra.mxu0 %v5501
    %5561 = vmatprep.subr.bf16.mxu0 0
    %5562 = vmatpush1.bf16.msra.mxu0 %v5502
    %5563 = vmatprep.subr.bf16.mxu0 0
    %5564 = vmatpush1.bf16.msra.mxu0 0
    %5565 = vmatprep.subr.bf16.mxu0 0
    %5566 = vmatpush1.bf16.msra.mxu0 0
    %5567 = vmatprep.subr.bf16.mxu0 0
    %5568 = vmatpush1.bf16.msra.mxu0 0
    %5569 = vmatprep.subr.bf16.mxu0 0
    %5570 = vmatpush1.bf16.msra.mxu0 0
    %5571 = vmatprep.subr.bf16.mxu0 0
    %5572 = vmatpush1.bf16.msra.mxu0 0
    %5573 = vmatprep.subr.bf16.mxu0 0
    %5574 = vmatpush1.bf16.msra.mxu0 0
    %5575 = vmatprep.subr.bf16.mxu0 0
    %5576 = vmatpush1.bf16.msra.mxu0 0
    %5577 = vmatprep.subr.bf16.mxu0 0
    %5578 = vmatpush1.bf16.msra.mxu0 0
    %5579 = vmatprep.subr.bf16.mxu0 0
    %5580 = vmatpush1.bf16.msra.mxu0 0
    %5581 = vmatprep.subr.bf16.mxu0 0
    %5582 = vmatpush1.bf16.msra.mxu0 0
    %5583 = vmatprep.subr.bf16.mxu0 0
    %5584 = vmatpush1.bf16.msra.mxu0 0
    %5585 = vmatprep.subr.bf16.mxu0 0
    %5586 = vmatpush1.bf16.msra.mxu0 0
    %5587 = vmatprep.mubr.bf16.mxu0 0
    %5588 = vmatmul.mubr.bf16.gmra.mrb[0].mxu0 %v5508
    %v5589 = vpop.f32.mrb[0].mxu0
    %v5590 = vadd.f32 %v5481, %v5589
    %v5591 = vpop.f32.mrb[0].mxu0
    %v5592 = vpop.f32.mrb[0].mxu0
    %v5593 = vadd.f32 %v5481, %v5592
    %v5594 = vpop.f32.mrb[0].mxu0
    %5595 = vmatprep.mubr.bf16.mxu0 0
    %5596 = vmatmul.mubr.bf16.gmra.mrb[0].mxu0 %v5511
    %v5597 = vpop.f32.mrb[0].mxu0
    %v5598 = vadd.f32 %v5481, %v5597
    %v5599 = vpop.f32.mrb[0].mxu0
    %v5600 = vpop.f32.mrb[0].mxu0
    %v5601 = vadd.f32 %v5481, %v5600
    %v5602 = vpop.f32.mrb[0].mxu0
    %5603 = vmatprep.mubr.bf16.mxu0 0
    %5604 = vmatmul.mubr.bf16.gmra.mrb[0].mxu0 %v5514
    %v5605 = vpop.f32.mrb[0].mxu0
    %v5606 = vadd.f32 %v5481, %v5605
    %v5607 = vpop.f32.mrb[0].mxu0
    %v5608 = vpop.f32.mrb[0].mxu0
    %v5609 = vadd.f32 %v5481, %v5608
    %v5610 = vpop.f32.mrb[0].mxu0
    %5611 = vmatprep.mubr.bf16.mxu0 0
    %5612 = vmatmul.mubr.bf16.gmra.mrb[0].mxu0 %v5517
    %v5613 = vpop.f32.mrb[0].mxu0
    %v5614 = vadd.f32 %v5481, %v5613
    %v5615 = vpop.f32.mrb[0].mxu0
    %v5616 = vpop.f32.mrb[0].mxu0
    %v5617 = vadd.f32 %v5481, %v5616
    %v5618 = vpop.f32.mrb[0].mxu0
    %5619 = vmatprep.mubr.bf16.mxu0 0
    %5620 = vmatmul.mubr.bf16.gmra.mrb[0].mxu0 %v5520
    %v5621 = vpop.f32.mrb[0].mxu0
    %v5622 = vadd.f32 %v5481, %v5621
    %v5623 = vpop.f32.mrb[0].mxu0
    %v5624 = vpop.f32.mrb[0].mxu0
    %v5625 = vadd.f32 %v5481, %v5624
    %v5626 = vpop.f32.mrb[0].mxu0
    %5627 = vmatprep.mubr.bf16.mxu0 0
    %5628 = vmatmul.mubr.bf16.gmra.mrb[0].mxu0 %v5523
    %v5629 = vpop.f32.mrb[0].mxu0
    %v5630 = vadd.f32 %v5481, %v5629
    %v5631 = vpop.f32.mrb[0].mxu0
    %v5632 = vpop.f32.mrb[0].mxu0
    %v5633 = vadd.f32 %v5481, %v5632
    %v5634 = vpop.f32.mrb[0].mxu0
    %5635 = vmatprep.mubr.bf16.mxu0 0
    %5636 = vmatmul.mubr.bf16.gmra.mrb[0].mxu0 %v5526
    %v5637 = vpop.f32.mrb[0].mxu0
    %v5638 = vadd.f32 %v5481, %v5637
    %v5639 = vpop.f32.mrb[0].mxu0
    %v5640 = vpop.f32.mrb[0].mxu0
    %v5641 = vadd.f32 %v5481, %v5640
    %v5642 = vpop.f32.mrb[0].mxu0
    %5643 = vmatprep.mubr.bf16.mxu0 0
    %5644 = vmatmul.mubr.bf16.gmra.mrb[0].mxu0 %v5529
    %v5645 = vpop.f32.mrb[0].mxu0
    %v5646 = vadd.f32 %v5481, %v5645
    %v5647 = vpop.f32.mrb[0].mxu0
    %v5648 = vpop.f32.mrb[0].mxu0
    %v5649 = vadd.f32 %v5481, %v5648
    %v5650 = vpop.f32.mrb[0].mxu0
    %5651 = vmatprep.mubr.bf16.mxu0 0
    %5652 = vmatmul.mubr.bf16.gmra.mrb[0].mxu0 %v5532
    %v5653 = vpop.f32.mrb[0].mxu0
    %v5654 = vadd.f32 %v5481, %v5653
    %v5655 = vpop.f32.mrb[0].mxu0
    %v5656 = vpop.f32.mrb[0].mxu0
    %v5657 = vadd.f32 %v5481, %v5656
    %v5658 = vpop.f32.mrb[0].mxu0
    %5659 = vmatprep.mubr.bf16.mxu0 0
    %5660 = vmatmul.mubr.bf16.gmra.mrb[0].mxu0 %v5535
    %v5661 = vpop.f32.mrb[0].mxu0
    %v5662 = vadd.f32 %v5481, %v5661
    %v5663 = vpop.f32.mrb[0].mxu0
    %v5664 = vpop.f32.mrb[0].mxu0
    %v5665 = vadd.f32 %v5481, %v5664
    %v5666 = vpop.f32.mrb[0].mxu0
    %5667 = vmatprep.mubr.bf16.mxu0 0
    %5668 = vmatmul.mubr.bf16.gmra.mrb[0].mxu0 %v5538
    %v5669 = vpop.f32.mrb[0].mxu0
    %v5670 = vadd.f32 %v5481, %v5669
    %v5671 = vpop.f32.mrb[0].mxu0
    %v5672 = vpop.f32.mrb[0].mxu0
    %v5673 = vadd.f32 %v5481, %v5672
    %v5674 = vpop.f32.mrb[0].mxu0
    %5675 = vmatprep.mubr.bf16.mxu0 0
    %5676 = vmatmul.mubr.bf16.gmra.mrb[0].mxu0 %v5541
    %v5677 = vpop.f32.mrb[0].mxu0
    %v5678 = vadd.f32 %v5481, %v5677
    %v5679 = vpop.f32.mrb[0].mxu0
    %v5680 = vpop.f32.mrb[0].mxu0
    %v5681 = vadd.f32 %v5481, %v5680
    %v5682 = vpop.f32.mrb[0].mxu0
    %5683 = vmatprep.mubr.bf16.mxu0 0
    %5684 = vmatmul.mubr.bf16.gmra.mrb[0].mxu0 %v5544
    %v5685 = vpop.f32.mrb[0].mxu0
    %v5686 = vadd.f32 %v5481, %v5685
    %v5687 = vpop.f32.mrb[0].mxu0
    %v5688 = vpop.f32.mrb[0].mxu0
    %v5689 = vadd.f32 %v5481, %v5688
    %v5690 = vpop.f32.mrb[0].mxu0
    %5691 = vmatprep.mubr.bf16.mxu0 0
    %5692 = vmatmul.mubr.bf16.gmra.mrb[0].mxu0 %v5547
    %v5693 = vpop.f32.mrb[0].mxu0
    %v5694 = vadd.f32 %v5481, %v5693
    %v5695 = vpop.f32.mrb[0].mxu0
    %v5696 = vpop.f32.mrb[0].mxu0
    %v5697 = vadd.f32 %v5481, %v5696
    %v5698 = vpop.f32.mrb[0].mxu0
    %5699 = vmatprep.mubr.bf16.mxu0 0
    %5700 = vmatmul.mubr.bf16.gmra.mrb[0].mxu0 %v5550
    %v5701 = vpop.f32.mrb[0].mxu0
    %v5702 = vadd.f32 %v5481, %v5701
    %v5703 = vpop.f32.mrb[0].mxu0
    %v5704 = vpop.f32.mrb[0].mxu0
    %v5705 = vadd.f32 %v5481, %v5704
    %v5706 = vpop.f32.mrb[0].mxu0
    %5707 = vmatprep.mubr.bf16.mxu0 0
    %5708 = vmatmul.mubr.bf16.gmra.mrb[0].mxu0 %v5553
    %v5709 = vpop.f32.mrb[0].mxu0
    %v5710 = vadd.f32 %v5481, %v5709
    %v5711 = vpop.f32.mrb[0].mxu0
    %v5712 = vpop.f32.mrb[0].mxu0
    %v5713 = vadd.f32 %v5481, %v5712
    %v5714 = vpop.f32.mrb[0].mxu0
    %5715 = vdwg.mxu0
    %v5716 = vmax.f32 %v5590, 0.0
    %v5717 = vmax.f32 %v5593, 0.0
    %v5718 = vmax.f32 %v5598, 0.0
    %v5719 = vmax.f32 %v5601, 0.0
    %v5720 = vmax.f32 %v5606, 0.0
    %v5721 = vmax.f32 %v5609, 0.0
    %v5722 = vmax.f32 %v5614, 0.0
    %v5723 = vmax.f32 %v5617, 0.0
    %v5724 = vmax.f32 %v5622, 0.0
    %v5725 = vmax.f32 %v5625, 0.0
    %v5726 = vmax.f32 %v5630, 0.0
    %v5727 = vmax.f32 %v5633, 0.0
    %v5728 = vmax.f32 %v5638, 0.0
    %v5729 = vmax.f32 %v5641, 0.0
    %v5730 = vmax.f32 %v5646, 0.0
    %v5731 = vmax.f32 %v5649, 0.0
    %v5732 = vmax.f32 %v5654, 0.0
    %v5733 = vmax.f32 %v5657, 0.0
    %v5734 = vmax.f32 %v5662, 0.0
    %v5735 = vmax.f32 %v5665, 0.0
    %v5736 = vmax.f32 %v5670, 0.0
    %v5737 = vmax.f32 %v5673, 0.0
    %v5738 = vmax.f32 %v5678, 0.0
    %v5739 = vmax.f32 %v5681, 0.0
    %v5740 = vmax.f32 %v5686, 0.0
    %v5741 = vmax.f32 %v5689, 0.0
    %v5742 = vmax.f32 %v5694, 0.0
    %v5743 = vmax.f32 %v5697, 0.0
    %v5744 = vmax.f32 %v5702, 0.0
    %v5745 = vmax.f32 %v5705, 0.0
    %v5746 = vmax.f32 %v5710, 0.0
    %v5747 = vmax.f32 %v5713, 0.0
    %v5748 = vpack.c.bf16 %v5717, %v5716
    %v5749 = vpack.c.bf16 %v5719, %v5718
    %v5750 = vpack.c.bf16 %v5721, %v5720
    %v5751 = vpack.c.bf16 %v5723, %v5722
    %v5752 = vpack.c.bf16 %v5725, %v5724
    %v5753 = vpack.c.bf16 %v5727, %v5726
    %v5754 = vpack.c.bf16 %v5729, %v5728
    %v5755 = vpack.c.bf16 %v5731, %v5730
    %v5756 = vpack.c.bf16 %v5733, %v5732
    %v5757 = vpack.c.bf16 %v5735, %v5734
    %v5758 = vpack.c.bf16 %v5737, %v5736
    %v5759 = vpack.c.bf16 %v5739, %v5738
    %v5760 = vpack.c.bf16 %v5741, %v5740
    %v5761 = vpack.c.bf16 %v5743, %v5742
    %v5762 = vpack.c.bf16 %v5745, %v5744
    %v5763 = vpack.c.bf16 %v5747, %v5746
    %v5764 = vld [vmem:[%s37] sm:$0xf]
    %v5765 = vld [vmem:[%s37 + $0x4] sm:$0xf]
    %v5766 = vld [vmem:[%s37 + $0x8] sm:$0xf]
    %v5767 = vld [vmem:[%s37 + $0xc] sm:$0xf]
    %v5768 = vld [vmem:[%s37 + $0x10] sm:$0xf]
    %v5769 = vld [vmem:[%s37 + $0x14] sm:$0xf]
    %v5770 = vld [vmem:[%s37 + $0x18] sm:$0xf]
    %v5771 = vld [vmem:[%s37 + $0x1c] sm:$0xf]
    %v5772 = vld [vmem:[%s39] sm:$0x1]
    %v5774 = vlaneseq
    %v5775 = vshrl.u32 %v5774, 7
    %v5776 = vsub.s32 0, %v5775
    %v5777 = vrot.slane %v5772, %v5776
    %v5787 = vunpack.c.l.b16 %v5764
    %v5788 = vunpack.c.l.b16 %v5765
    %v5789 = vunpack.c.l.b16 %v5766
    %v5790 = vunpack.c.l.b16 %v5767
    %v5791 = vunpack.c.l.b16 %v5768
    %v5792 = vunpack.c.l.b16 %v5769
    %v5793 = vunpack.c.l.b16 %v5770
    %v5794 = vunpack.c.l.b16 %v5771
    %v5795 = vpack.c.b16 %v5788, %v5787
    %v5796 = vpack.c.b16 %v5790, %v5789
    %v5797 = vpack.c.b16 %v5792, %v5791
    %v5798 = vpack.c.b16 %v5794, %v5793
    %v5804 = vsel %vm485, %v5748, 0
    %v5807 = vsel %vm485, %v5749, 0
    %v5810 = vsel %vm485, %v5750, 0
    %v5813 = vsel %vm485, %v5751, 0
    %v5816 = vsel %vm485, %v5752, 0
    %v5819 = vsel %vm485, %v5753, 0
    %v5822 = vsel %vm485, %v5754, 0
    %v5825 = vsel %vm485, %v5755, 0
    %v5828 = vsel %vm485, %v5756, 0
    %v5831 = vsel %vm485, %v5757, 0
    %v5834 = vsel %vm485, %v5758, 0
    %v5837 = vsel %vm485, %v5759, 0
    %v5840 = vsel %vm485, %v5760, 0
    %v5843 = vsel %vm485, %v5761, 0
    %v5846 = vsel %vm485, %v5762, 0
    %v5849 = vsel %vm485, %v5763, 0
    %5851 = vmatprep.subr.bf16.mxu0 0
    %5852 = vmatpush1.bf16.msra.mxu0 %v5795
    %5853 = vmatprep.subr.bf16.mxu0 0
    %5854 = vmatpush1.bf16.msra.mxu0 %v5796
    %5855 = vmatprep.subr.bf16.mxu0 0
    %5856 = vmatpush1.bf16.msra.mxu0 %v5797
    %5857 = vmatprep.subr.bf16.mxu0 0
    %5858 = vmatpush1.bf16.msra.mxu0 %v5798
    %5859 = vmatprep.subr.bf16.mxu0 0
    %5860 = vmatpush1.bf16.msra.mxu0 0
    %5861 = vmatprep.subr.bf16.mxu0 0
    %5862 = vmatpush1.bf16.msra.mxu0 0
    %5863 = vmatprep.subr.bf16.mxu0 0
    %5864 = vmatpush1.bf16.msra.mxu0 0
    %5865 = vmatprep.subr.bf16.mxu0 0
    %5866 = vmatpush1.bf16.msra.mxu0 0
    %5867 = vmatprep.subr.bf16.mxu0 0
    %5868 = vmatpush1.bf16.msra.mxu0 0
    %5869 = vmatprep.subr.bf16.mxu0 0
    %5870 = vmatpush1.bf16.msra.mxu0 0
    %5871 = vmatprep.subr.bf16.mxu0 0
    %5872 = vmatpush1.bf16.msra.mxu0 0
    %5873 = vmatprep.subr.bf16.mxu0 0
    %5874 = vmatpush1.bf16.msra.mxu0 0
    %5875 = vmatprep.subr.bf16.mxu0 0
    %5876 = vmatpush1.bf16.msra.mxu0 0
    %5877 = vmatprep.subr.bf16.mxu0 0
    %5878 = vmatpush1.bf16.msra.mxu0 0
    %5879 = vmatprep.subr.bf16.mxu0 0
    %5880 = vmatpush1.bf16.msra.mxu0 0
    %5881 = vmatprep.subr.bf16.mxu0 0
    %5882 = vmatpush1.bf16.msra.mxu0 0
    %5883 = vmatprep.mubr.bf16.mxu0 0
    %5884 = vmatmul.mubr.bf16.gmra.mrb[0].mxu0 %v5804
    %v5885 = vpop.f32.mrb[0].mxu0
    %v5886 = vadd.f32 %v5777, %v5885
    %v5887 = vpop.f32.mrb[0].mxu0
    %v5888 = vpop.f32.mrb[0].mxu0
    %v5889 = vadd.f32 %v5777, %v5888
    %v5890 = vpop.f32.mrb[0].mxu0
    %5891 = vmatprep.mubr.bf16.mxu0 0
    %5892 = vmatmul.mubr.bf16.gmra.mrb[0].mxu0 %v5807
    %v5893 = vpop.f32.mrb[0].mxu0
    %v5894 = vadd.f32 %v5777, %v5893
    %v5895 = vpop.f32.mrb[0].mxu0
    %v5896 = vpop.f32.mrb[0].mxu0
    %v5897 = vadd.f32 %v5777, %v5896
    %v5898 = vpop.f32.mrb[0].mxu0
    %5899 = vmatprep.mubr.bf16.mxu0 0
    %5900 = vmatmul.mubr.bf16.gmra.mrb[0].mxu0 %v5810
    %v5901 = vpop.f32.mrb[0].mxu0
    %v5902 = vadd.f32 %v5777, %v5901
    %v5903 = vpop.f32.mrb[0].mxu0
    %v5904 = vpop.f32.mrb[0].mxu0
    %v5905 = vadd.f32 %v5777, %v5904
    %v5906 = vpop.f32.mrb[0].mxu0
    %5907 = vmatprep.mubr.bf16.mxu0 0
    %5908 = vmatmul.mubr.bf16.gmra.mrb[0].mxu0 %v5813
    %v5909 = vpop.f32.mrb[0].mxu0
    %v5910 = vadd.f32 %v5777, %v5909
    %v5911 = vpop.f32.mrb[0].mxu0
    %v5912 = vpop.f32.mrb[0].mxu0
    %v5913 = vadd.f32 %v5777, %v5912
    %v5914 = vpop.f32.mrb[0].mxu0
    %5915 = vmatprep.mubr.bf16.mxu0 0
    %5916 = vmatmul.mubr.bf16.gmra.mrb[0].mxu0 %v5816
    %v5917 = vpop.f32.mrb[0].mxu0
    %v5918 = vadd.f32 %v5777, %v5917
    %v5919 = vpop.f32.mrb[0].mxu0
    %v5920 = vpop.f32.mrb[0].mxu0
    %v5921 = vadd.f32 %v5777, %v5920
    %v5922 = vpop.f32.mrb[0].mxu0
    %5923 = vmatprep.mubr.bf16.mxu0 0
    %5924 = vmatmul.mubr.bf16.gmra.mrb[0].mxu0 %v5819
    %v5925 = vpop.f32.mrb[0].mxu0
    %v5926 = vadd.f32 %v5777, %v5925
    %v5927 = vpop.f32.mrb[0].mxu0
    %v5928 = vpop.f32.mrb[0].mxu0
    %v5929 = vadd.f32 %v5777, %v5928
    %v5930 = vpop.f32.mrb[0].mxu0
    %5931 = vmatprep.mubr.bf16.mxu0 0
    %5932 = vmatmul.mubr.bf16.gmra.mrb[0].mxu0 %v5822
    %v5933 = vpop.f32.mrb[0].mxu0
    %v5934 = vadd.f32 %v5777, %v5933
    %v5935 = vpop.f32.mrb[0].mxu0
    %v5936 = vpop.f32.mrb[0].mxu0
    %v5937 = vadd.f32 %v5777, %v5936
    %v5938 = vpop.f32.mrb[0].mxu0
    %5939 = vmatprep.mubr.bf16.mxu0 0
    %5940 = vmatmul.mubr.bf16.gmra.mrb[0].mxu0 %v5825
    %v5941 = vpop.f32.mrb[0].mxu0
    %v5942 = vadd.f32 %v5777, %v5941
    %v5943 = vpop.f32.mrb[0].mxu0
    %v5944 = vpop.f32.mrb[0].mxu0
    %v5945 = vadd.f32 %v5777, %v5944
    %v5946 = vpop.f32.mrb[0].mxu0
    %5947 = vmatprep.mubr.bf16.mxu0 0
    %5948 = vmatmul.mubr.bf16.gmra.mrb[0].mxu0 %v5828
    %v5949 = vpop.f32.mrb[0].mxu0
    %v5950 = vadd.f32 %v5777, %v5949
    %v5951 = vpop.f32.mrb[0].mxu0
    %v5952 = vpop.f32.mrb[0].mxu0
    %v5953 = vadd.f32 %v5777, %v5952
    %v5954 = vpop.f32.mrb[0].mxu0
    %5955 = vmatprep.mubr.bf16.mxu0 0
    %5956 = vmatmul.mubr.bf16.gmra.mrb[0].mxu0 %v5831
    %v5957 = vpop.f32.mrb[0].mxu0
    %v5958 = vadd.f32 %v5777, %v5957
    %v5959 = vpop.f32.mrb[0].mxu0
    %v5960 = vpop.f32.mrb[0].mxu0
    %v5961 = vadd.f32 %v5777, %v5960
    %v5962 = vpop.f32.mrb[0].mxu0
    %5963 = vmatprep.mubr.bf16.mxu0 0
    %5964 = vmatmul.mubr.bf16.gmra.mrb[0].mxu0 %v5834
    %v5965 = vpop.f32.mrb[0].mxu0
    %v5966 = vadd.f32 %v5777, %v5965
    %v5967 = vpop.f32.mrb[0].mxu0
    %v5968 = vpop.f32.mrb[0].mxu0
    %v5969 = vadd.f32 %v5777, %v5968
    %v5970 = vpop.f32.mrb[0].mxu0
    %5971 = vmatprep.mubr.bf16.mxu0 0
    %5972 = vmatmul.mubr.bf16.gmra.mrb[0].mxu0 %v5837
    %v5973 = vpop.f32.mrb[0].mxu0
    %v5974 = vadd.f32 %v5777, %v5973
    %v5975 = vpop.f32.mrb[0].mxu0
    %v5976 = vpop.f32.mrb[0].mxu0
    %v5977 = vadd.f32 %v5777, %v5976
    %v5978 = vpop.f32.mrb[0].mxu0
    %5979 = vmatprep.mubr.bf16.mxu0 0
    %5980 = vmatmul.mubr.bf16.gmra.mrb[0].mxu0 %v5840
    %v5981 = vpop.f32.mrb[0].mxu0
    %v5982 = vadd.f32 %v5777, %v5981
    %v5983 = vpop.f32.mrb[0].mxu0
    %v5984 = vpop.f32.mrb[0].mxu0
    %v5985 = vadd.f32 %v5777, %v5984
    %v5986 = vpop.f32.mrb[0].mxu0
    %5987 = vmatprep.mubr.bf16.mxu0 0
    %5988 = vmatmul.mubr.bf16.gmra.mrb[0].mxu0 %v5843
    %v5989 = vpop.f32.mrb[0].mxu0
    %v5990 = vadd.f32 %v5777, %v5989
    %v5991 = vpop.f32.mrb[0].mxu0
    %v5992 = vpop.f32.mrb[0].mxu0
    %v5993 = vadd.f32 %v5777, %v5992
    %v5994 = vpop.f32.mrb[0].mxu0
    %5995 = vmatprep.mubr.bf16.mxu0 0
    %5996 = vmatmul.mubr.bf16.gmra.mrb[0].mxu0 %v5846
    %v5997 = vpop.f32.mrb[0].mxu0
    %v5998 = vadd.f32 %v5777, %v5997
    %v5999 = vpop.f32.mrb[0].mxu0
    %v6000 = vpop.f32.mrb[0].mxu0
    %v6001 = vadd.f32 %v5777, %v6000
    %v6002 = vpop.f32.mrb[0].mxu0
    %6003 = vmatprep.mubr.bf16.mxu0 0
    %6004 = vmatmul.mubr.bf16.gmra.mrb[0].mxu0 %v5849
    %v6005 = vpop.f32.mrb[0].mxu0
    %v6006 = vadd.f32 %v5777, %v6005
    %v6007 = vpop.f32.mrb[0].mxu0
    %v6008 = vpop.f32.mrb[0].mxu0
    %v6009 = vadd.f32 %v5777, %v6008
    %v6010 = vpop.f32.mrb[0].mxu0
    %6011 = vdwg.mxu0
    %v6012 = vmax.f32 %v5886, 0.0
    %v6013 = vmax.f32 %v5889, 0.0
    %v6014 = vmax.f32 %v5894, 0.0
    %v6015 = vmax.f32 %v5897, 0.0
    %v6016 = vmax.f32 %v5902, 0.0
    %v6017 = vmax.f32 %v5905, 0.0
    %v6018 = vmax.f32 %v5910, 0.0
    %v6019 = vmax.f32 %v5913, 0.0
    %v6020 = vmax.f32 %v5918, 0.0
    %v6021 = vmax.f32 %v5921, 0.0
    %v6022 = vmax.f32 %v5926, 0.0
    %v6023 = vmax.f32 %v5929, 0.0
    %v6024 = vmax.f32 %v5934, 0.0
    %v6025 = vmax.f32 %v5937, 0.0
    %v6026 = vmax.f32 %v5942, 0.0
    %v6027 = vmax.f32 %v5945, 0.0
    %v6028 = vmax.f32 %v5950, 0.0
    %v6029 = vmax.f32 %v5953, 0.0
    %v6030 = vmax.f32 %v5958, 0.0
    %v6031 = vmax.f32 %v5961, 0.0
    %v6032 = vmax.f32 %v5966, 0.0
    %v6033 = vmax.f32 %v5969, 0.0
    %v6034 = vmax.f32 %v5974, 0.0
    %v6035 = vmax.f32 %v5977, 0.0
    %v6036 = vmax.f32 %v5982, 0.0
    %v6037 = vmax.f32 %v5985, 0.0
    %v6038 = vmax.f32 %v5990, 0.0
    %v6039 = vmax.f32 %v5993, 0.0
    %v6040 = vmax.f32 %v5998, 0.0
    %v6041 = vmax.f32 %v6001, 0.0
    %v6042 = vmax.f32 %v6006, 0.0
    %v6043 = vmax.f32 %v6009, 0.0
    %v6044 = vpack.c.bf16 %v6013, %v6012
    %v6045 = vpack.c.bf16 %v6015, %v6014
    %v6046 = vpack.c.bf16 %v6017, %v6016
    %v6047 = vpack.c.bf16 %v6019, %v6018
    %v6048 = vpack.c.bf16 %v6021, %v6020
    %v6049 = vpack.c.bf16 %v6023, %v6022
    %v6050 = vpack.c.bf16 %v6025, %v6024
    %v6051 = vpack.c.bf16 %v6027, %v6026
    %v6052 = vpack.c.bf16 %v6029, %v6028
    %v6053 = vpack.c.bf16 %v6031, %v6030
    %v6054 = vpack.c.bf16 %v6033, %v6032
    %v6055 = vpack.c.bf16 %v6035, %v6034
    %v6056 = vpack.c.bf16 %v6037, %v6036
    %v6057 = vpack.c.bf16 %v6039, %v6038
    %v6058 = vpack.c.bf16 %v6041, %v6040
    %v6059 = vpack.c.bf16 %v6043, %v6042
    %v6060 = vld [vmem:[%s41] sm:$0xff]
    %v6061 = vld [vmem:[%s41 + $0x8] sm:$0xff]
    %v6062 = vld [vmem:[%s41 + $0x10] sm:$0xff]
    %v6063 = vld [vmem:[%s41 + $0x18] sm:$0xff]
    %v6064 = vld [vmem:[%s41 + $0x20] sm:$0xff]
    %v6065 = vld [vmem:[%s41 + $0x28] sm:$0xff]
    %v6066 = vld [vmem:[%s41 + $0x30] sm:$0xff]
    %v6067 = vld [vmem:[%s41 + $0x38] sm:$0xff]
    %v6068 = vld [vmem:[%s41 + $0x40] sm:$0xff]
    %v6069 = vld [vmem:[%s41 + $0x48] sm:$0xff]
    %v6070 = vld [vmem:[%s41 + $0x50] sm:$0xff]
    %v6071 = vld [vmem:[%s41 + $0x58] sm:$0xff]
    %v6072 = vld [vmem:[%s41 + $0x60] sm:$0xff]
    %v6073 = vld [vmem:[%s41 + $0x68] sm:$0xff]
    %v6074 = vld [vmem:[%s41 + $0x70] sm:$0xff]
    %v6075 = vld [vmem:[%s41 + $0x78] sm:$0xff]
    %v6076 = vld [vmem:[%s41 + $0x80] sm:$0xff]
    %v6077 = vld [vmem:[%s41 + $0x88] sm:$0xff]
    %v6078 = vld [vmem:[%s41 + $0x90] sm:$0xff]
    %v6079 = vld [vmem:[%s41 + $0x98] sm:$0xff]
    %v6080 = vld [vmem:[%s41 + $0xa0] sm:$0xff]
    %v6081 = vld [vmem:[%s41 + $0xa8] sm:$0xff]
    %v6082 = vld [vmem:[%s41 + $0xb0] sm:$0xff]
    %v6083 = vld [vmem:[%s41 + $0xb8] sm:$0xff]
    %v6084 = vld [vmem:[%s41 + $0xc0] sm:$0xff]
    %v6085 = vld [vmem:[%s41 + $0xc8] sm:$0xff]
    %v6086 = vld [vmem:[%s41 + $0xd0] sm:$0xff]
    %v6087 = vld [vmem:[%s41 + $0xd8] sm:$0xff]
    %v6088 = vld [vmem:[%s41 + $0xe0] sm:$0xff]
    %v6089 = vld [vmem:[%s41 + $0xe8] sm:$0xff]
    %v6090 = vld [vmem:[%s41 + $0xf0] sm:$0xff]
    %v6091 = vld [vmem:[%s41 + $0xf8] sm:$0xff]
    %v6092 = vld [vmem:[%s41 + $0x100] sm:$0xff]
    %v6093 = vld [vmem:[%s41 + $0x108] sm:$0xff]
    %v6094 = vld [vmem:[%s41 + $0x110] sm:$0xff]
    %v6095 = vld [vmem:[%s41 + $0x118] sm:$0xff]
    %v6096 = vld [vmem:[%s41 + $0x120] sm:$0xff]
    %v6097 = vld [vmem:[%s41 + $0x128] sm:$0xff]
    %v6098 = vld [vmem:[%s41 + $0x130] sm:$0xff]
    %v6099 = vld [vmem:[%s41 + $0x138] sm:$0xff]
    %v6100 = vld [vmem:[%s41 + $0x140] sm:$0xff]
    %v6101 = vld [vmem:[%s41 + $0x148] sm:$0xff]
    %v6102 = vld [vmem:[%s41 + $0x150] sm:$0xff]
    %v6103 = vld [vmem:[%s41 + $0x158] sm:$0xff]
    %v6104 = vld [vmem:[%s41 + $0x160] sm:$0xff]
    %v6105 = vld [vmem:[%s41 + $0x168] sm:$0xff]
    %v6106 = vld [vmem:[%s41 + $0x170] sm:$0xff]
    %v6107 = vld [vmem:[%s41 + $0x178] sm:$0xff]
    %v6108 = vld [vmem:[%s41 + $0x180] sm:$0xff]
    %v6109 = vld [vmem:[%s41 + $0x188] sm:$0xff]
    %v6110 = vld [vmem:[%s41 + $0x190] sm:$0xff]
    %v6111 = vld [vmem:[%s41 + $0x198] sm:$0xff]
    %v6112 = vld [vmem:[%s41 + $0x1a0] sm:$0xff]
    %v6113 = vld [vmem:[%s41 + $0x1a8] sm:$0xff]
    %v6114 = vld [vmem:[%s41 + $0x1b0] sm:$0xff]
    %v6115 = vld [vmem:[%s41 + $0x1b8] sm:$0xff]
    %v6116 = vld [vmem:[%s41 + $0x1c0] sm:$0xff]
    %v6117 = vld [vmem:[%s41 + $0x1c8] sm:$0xff]
    %v6118 = vld [vmem:[%s41 + $0x1d0] sm:$0xff]
    %v6119 = vld [vmem:[%s41 + $0x1d8] sm:$0xff]
    %v6120 = vld [vmem:[%s41 + $0x1e0] sm:$0xff]
    %v6121 = vld [vmem:[%s41 + $0x1e8] sm:$0xff]
    %v6122 = vld [vmem:[%s41 + $0x1f0] sm:$0xff]
    %v6123 = vld [vmem:[%s41 + $0x1f8] sm:$0xff]
    %v6124 = vld [vmem:[%s43] sm:$0xff]
    %v6126 = vlaneseq
    %v6127 = vshrl.u32 %v6126, 7
    %v6128 = vsub.s32 0, %v6127
    %v6129 = vrot.slane %v6124, %v6128
    %v6130 = vlaneseq
    %v6131 = vshrl.u32 %v6130, 7
    %v6132 = vsub.s32 1, %v6131
    %v6133 = vrot.slane %v6124, %v6132
    %v6134 = vlaneseq
    %v6135 = vshrl.u32 %v6134, 7
    %v6136 = vsub.s32 2, %v6135
    %v6137 = vrot.slane %v6124, %v6136
    %v6138 = vlaneseq
    %v6139 = vshrl.u32 %v6138, 7
    %v6140 = vsub.s32 3, %v6139
    %v6141 = vrot.slane %v6124, %v6140
    %v6142 = vlaneseq
    %v6143 = vshrl.u32 %v6142, 7
    %v6144 = vsub.s32 4, %v6143
    %v6145 = vrot.slane %v6124, %v6144
    %v6146 = vlaneseq
    %v6147 = vshrl.u32 %v6146, 7
    %v6148 = vsub.s32 5, %v6147
    %v6149 = vrot.slane %v6124, %v6148
    %v6150 = vlaneseq
    %v6151 = vshrl.u32 %v6150, 7
    %v6152 = vsub.s32 6, %v6151
    %v6153 = vrot.slane %v6124, %v6152
    %v6154 = vlaneseq
    %v6155 = vshrl.u32 %v6154, 7
    %v6156 = vsub.s32 7, %v6155
    %v6157 = vrot.slane %v6124, %v6156
    %v6230 = vunpack.c.l.b16 %v6060
    %v6231 = vunpack.c.h.b16 %v6060
    %v6232 = vunpack.c.l.b16 %v6061
    %v6233 = vunpack.c.h.b16 %v6061
    %v6234 = vunpack.c.l.b16 %v6062
    %v6235 = vunpack.c.h.b16 %v6062
    %v6236 = vunpack.c.l.b16 %v6063
    %v6237 = vunpack.c.h.b16 %v6063
    %v6238 = vunpack.c.l.b16 %v6064
    %v6239 = vunpack.c.h.b16 %v6064
    %v6240 = vunpack.c.l.b16 %v6065
    %v6241 = vunpack.c.h.b16 %v6065
    %v6242 = vunpack.c.l.b16 %v6066
    %v6243 = vunpack.c.h.b16 %v6066
    %v6244 = vunpack.c.l.b16 %v6067
    %v6245 = vunpack.c.h.b16 %v6067
    %v6246 = vunpack.c.l.b16 %v6068
    %v6247 = vunpack.c.h.b16 %v6068
    %v6248 = vunpack.c.l.b16 %v6069
    %v6249 = vunpack.c.h.b16 %v6069
    %v6250 = vunpack.c.l.b16 %v6070
    %v6251 = vunpack.c.h.b16 %v6070
    %v6252 = vunpack.c.l.b16 %v6071
    %v6253 = vunpack.c.h.b16 %v6071
    %v6254 = vunpack.c.l.b16 %v6072
    %v6255 = vunpack.c.h.b16 %v6072
    %v6256 = vunpack.c.l.b16 %v6073
    %v6257 = vunpack.c.h.b16 %v6073
    %v6258 = vunpack.c.l.b16 %v6074
    %v6259 = vunpack.c.h.b16 %v6074
    %v6260 = vunpack.c.l.b16 %v6075
    %v6261 = vunpack.c.h.b16 %v6075
    %v6262 = vunpack.c.l.b16 %v6076
    %v6263 = vunpack.c.h.b16 %v6076
    %v6264 = vunpack.c.l.b16 %v6077
    %v6265 = vunpack.c.h.b16 %v6077
    %v6266 = vunpack.c.l.b16 %v6078
    %v6267 = vunpack.c.h.b16 %v6078
    %v6268 = vunpack.c.l.b16 %v6079
    %v6269 = vunpack.c.h.b16 %v6079
    %v6270 = vunpack.c.l.b16 %v6080
    %v6271 = vunpack.c.h.b16 %v6080
    %v6272 = vunpack.c.l.b16 %v6081
    %v6273 = vunpack.c.h.b16 %v6081
    %v6274 = vunpack.c.l.b16 %v6082
    %v6275 = vunpack.c.h.b16 %v6082
    %v6276 = vunpack.c.l.b16 %v6083
    %v6277 = vunpack.c.h.b16 %v6083
    %v6278 = vunpack.c.l.b16 %v6084
    %v6279 = vunpack.c.h.b16 %v6084
    %v6280 = vunpack.c.l.b16 %v6085
    %v6281 = vunpack.c.h.b16 %v6085
    %v6282 = vunpack.c.l.b16 %v6086
    %v6283 = vunpack.c.h.b16 %v6086
    %v6284 = vunpack.c.l.b16 %v6087
    %v6285 = vunpack.c.h.b16 %v6087
    %v6286 = vunpack.c.l.b16 %v6088
    %v6287 = vunpack.c.h.b16 %v6088
    %v6288 = vunpack.c.l.b16 %v6089
    %v6289 = vunpack.c.h.b16 %v6089
    %v6290 = vunpack.c.l.b16 %v6090
    %v6291 = vunpack.c.h.b16 %v6090
    %v6292 = vunpack.c.l.b16 %v6091
    %v6293 = vunpack.c.h.b16 %v6091
    %v6294 = vunpack.c.l.b16 %v6092
    %v6295 = vunpack.c.h.b16 %v6092
    %v6296 = vunpack.c.l.b16 %v6093
    %v6297 = vunpack.c.h.b16 %v6093
    %v6298 = vunpack.c.l.b16 %v6094
    %v6299 = vunpack.c.h.b16 %v6094
    %v6300 = vunpack.c.l.b16 %v6095
    %v6301 = vunpack.c.h.b16 %v6095
    %v6302 = vunpack.c.l.b16 %v6096
    %v6303 = vunpack.c.h.b16 %v6096
    %v6304 = vunpack.c.l.b16 %v6097
    %v6305 = vunpack.c.h.b16 %v6097
    %v6306 = vunpack.c.l.b16 %v6098
    %v6307 = vunpack.c.h.b16 %v6098
    %v6308 = vunpack.c.l.b16 %v6099
    %v6309 = vunpack.c.h.b16 %v6099
    %v6310 = vunpack.c.l.b16 %v6100
    %v6311 = vunpack.c.h.b16 %v6100
    %v6312 = vunpack.c.l.b16 %v6101
    %v6313 = vunpack.c.h.b16 %v6101
    %v6314 = vunpack.c.l.b16 %v6102
    %v6315 = vunpack.c.h.b16 %v6102
    %v6316 = vunpack.c.l.b16 %v6103
    %v6317 = vunpack.c.h.b16 %v6103
    %v6318 = vunpack.c.l.b16 %v6104
    %v6319 = vunpack.c.h.b16 %v6104
    %v6320 = vunpack.c.l.b16 %v6105
    %v6321 = vunpack.c.h.b16 %v6105
    %v6322 = vunpack.c.l.b16 %v6106
    %v6323 = vunpack.c.h.b16 %v6106
    %v6324 = vunpack.c.l.b16 %v6107
    %v6325 = vunpack.c.h.b16 %v6107
    %v6326 = vunpack.c.l.b16 %v6108
    %v6327 = vunpack.c.h.b16 %v6108
    %v6328 = vunpack.c.l.b16 %v6109
    %v6329 = vunpack.c.h.b16 %v6109
    %v6330 = vunpack.c.l.b16 %v6110
    %v6331 = vunpack.c.h.b16 %v6110
    %v6332 = vunpack.c.l.b16 %v6111
    %v6333 = vunpack.c.h.b16 %v6111
    %v6334 = vunpack.c.l.b16 %v6112
    %v6335 = vunpack.c.h.b16 %v6112
    %v6336 = vunpack.c.l.b16 %v6113
    %v6337 = vunpack.c.h.b16 %v6113
    %v6338 = vunpack.c.l.b16 %v6114
    %v6339 = vunpack.c.h.b16 %v6114
    %v6340 = vunpack.c.l.b16 %v6115
    %v6341 = vunpack.c.h.b16 %v6115
    %v6342 = vunpack.c.l.b16 %v6116
    %v6343 = vunpack.c.h.b16 %v6116
    %v6344 = vunpack.c.l.b16 %v6117
    %v6345 = vunpack.c.h.b16 %v6117
    %v6346 = vunpack.c.l.b16 %v6118
    %v6347 = vunpack.c.h.b16 %v6118
    %v6348 = vunpack.c.l.b16 %v6119
    %v6349 = vunpack.c.h.b16 %v6119
    %v6350 = vunpack.c.l.b16 %v6120
    %v6351 = vunpack.c.h.b16 %v6120
    %v6352 = vunpack.c.l.b16 %v6121
    %v6353 = vunpack.c.h.b16 %v6121
    %v6354 = vunpack.c.l.b16 %v6122
    %v6355 = vunpack.c.h.b16 %v6122
    %v6356 = vunpack.c.l.b16 %v6123
    %v6357 = vunpack.c.h.b16 %v6123
    %v6358 = vpack.c.b16 %v6238, %v6230
    %v6359 = vpack.c.b16 %v6239, %v6231
    %v6360 = vpack.c.b16 %v6240, %v6232
    %v6361 = vpack.c.b16 %v6241, %v6233
    %v6362 = vpack.c.b16 %v6242, %v6234
    %v6363 = vpack.c.b16 %v6243, %v6235
    %v6364 = vpack.c.b16 %v6244, %v6236
    %v6365 = vpack.c.b16 %v6245, %v6237
    %v6366 = vpack.c.b16 %v6254, %v6246
    %v6367 = vpack.c.b16 %v6255, %v6247
    %v6368 = vpack.c.b16 %v6256, %v6248
    %v6369 = vpack.c.b16 %v6257, %v6249
    %v6370 = vpack.c.b16 %v6258, %v6250
    %v6371 = vpack.c.b16 %v6259, %v6251
    %v6372 = vpack.c.b16 %v6260, %v6252
    %v6373 = vpack.c.b16 %v6261, %v6253
    %v6374 = vpack.c.b16 %v6270, %v6262
    %v6375 = vpack.c.b16 %v6271, %v6263
    %v6376 = vpack.c.b16 %v6272, %v6264
    %v6377 = vpack.c.b16 %v6273, %v6265
    %v6378 = vpack.c.b16 %v6274, %v6266
    %v6379 = vpack.c.b16 %v6275, %v6267
    %v6380 = vpack.c.b16 %v6276, %v6268
    %v6381 = vpack.c.b16 %v6277, %v6269
    %v6382 = vpack.c.b16 %v6286, %v6278
    %v6383 = vpack.c.b16 %v6287, %v6279
    %v6384 = vpack.c.b16 %v6288, %v6280
    %v6385 = vpack.c.b16 %v6289, %v6281
    %v6386 = vpack.c.b16 %v6290, %v6282
    %v6387 = vpack.c.b16 %v6291, %v6283
    %v6388 = vpack.c.b16 %v6292, %v6284
    %v6389 = vpack.c.b16 %v6293, %v6285
    %v6390 = vpack.c.b16 %v6302, %v6294
    %v6391 = vpack.c.b16 %v6303, %v6295
    %v6392 = vpack.c.b16 %v6304, %v6296
    %v6393 = vpack.c.b16 %v6305, %v6297
    %v6394 = vpack.c.b16 %v6306, %v6298
    %v6395 = vpack.c.b16 %v6307, %v6299
    %v6396 = vpack.c.b16 %v6308, %v6300
    %v6397 = vpack.c.b16 %v6309, %v6301
    %v6398 = vpack.c.b16 %v6318, %v6310
    %v6399 = vpack.c.b16 %v6319, %v6311
    %v6400 = vpack.c.b16 %v6320, %v6312
    %v6401 = vpack.c.b16 %v6321, %v6313
    %v6402 = vpack.c.b16 %v6322, %v6314
    %v6403 = vpack.c.b16 %v6323, %v6315
    %v6404 = vpack.c.b16 %v6324, %v6316
    %v6405 = vpack.c.b16 %v6325, %v6317
    %v6406 = vpack.c.b16 %v6334, %v6326
    %v6407 = vpack.c.b16 %v6335, %v6327
    %v6408 = vpack.c.b16 %v6336, %v6328
    %v6409 = vpack.c.b16 %v6337, %v6329
    %v6410 = vpack.c.b16 %v6338, %v6330
    %v6411 = vpack.c.b16 %v6339, %v6331
    %v6412 = vpack.c.b16 %v6340, %v6332
    %v6413 = vpack.c.b16 %v6341, %v6333
    %v6414 = vpack.c.b16 %v6350, %v6342
    %v6415 = vpack.c.b16 %v6351, %v6343
    %v6416 = vpack.c.b16 %v6352, %v6344
    %v6417 = vpack.c.b16 %v6353, %v6345
    %v6418 = vpack.c.b16 %v6354, %v6346
    %v6419 = vpack.c.b16 %v6355, %v6347
    %v6420 = vpack.c.b16 %v6356, %v6348
    %v6421 = vpack.c.b16 %v6357, %v6349
    %6486 = vmatprep.subr.bf16.mxu0 %v6359
    %6487 = vmatpush1.bf16.msra.mxu0 %v6358
    %6488 = vmatprep.subr.bf16.mxu0 %v6367
    %6489 = vmatpush1.bf16.msra.mxu0 %v6366
    %6490 = vmatprep.subr.bf16.mxu0 %v6375
    %6491 = vmatpush1.bf16.msra.mxu0 %v6374
    %6492 = vmatprep.subr.bf16.mxu0 %v6383
    %6493 = vmatpush1.bf16.msra.mxu0 %v6382
    %6494 = vmatprep.subr.bf16.mxu0 %v6391
    %6495 = vmatpush1.bf16.msra.mxu0 %v6390
    %6496 = vmatprep.subr.bf16.mxu0 %v6399
    %6497 = vmatpush1.bf16.msra.mxu0 %v6398
    %6498 = vmatprep.subr.bf16.mxu0 %v6407
    %6499 = vmatpush1.bf16.msra.mxu0 %v6406
    %6500 = vmatprep.subr.bf16.mxu0 %v6415
    %6501 = vmatpush1.bf16.msra.mxu0 %v6414
    %6502 = vmatprep.subr.bf16.mxu0 0
    %6503 = vmatpush1.bf16.msra.mxu0 0
    %6504 = vmatprep.subr.bf16.mxu0 0
    %6505 = vmatpush1.bf16.msra.mxu0 0
    %6506 = vmatprep.subr.bf16.mxu0 0
    %6507 = vmatpush1.bf16.msra.mxu0 0
    %6508 = vmatprep.subr.bf16.mxu0 0
    %6509 = vmatpush1.bf16.msra.mxu0 0
    %6510 = vmatprep.subr.bf16.mxu0 0
    %6511 = vmatpush1.bf16.msra.mxu0 0
    %6512 = vmatprep.subr.bf16.mxu0 0
    %6513 = vmatpush1.bf16.msra.mxu0 0
    %6514 = vmatprep.subr.bf16.mxu0 0
    %6515 = vmatpush1.bf16.msra.mxu0 0
    %6516 = vmatprep.subr.bf16.mxu0 0
    %6517 = vmatpush1.bf16.msra.mxu0 0
    %6518 = vmatprep.mubr.bf16.mxu0 0
    %6519 = vmatmul.mubr.bf16.gmra.mrb[0].mxu0 %v6044
    %v6520 = vpop.f32.mrb[0].mxu0
    %v6521 = vadd.f32 %v6129, %v6520
    %v6522 = vpop.f32.mrb[0].mxu0
    %v6523 = vadd.f32 %v6133, %v6522
    %v6524 = vpop.f32.mrb[0].mxu0
    %v6525 = vadd.f32 %v6129, %v6524
    %v6526 = vpop.f32.mrb[0].mxu0
    %v6527 = vadd.f32 %v6133, %v6526
    %6528 = vmatprep.mubr.bf16.mxu0 0
    %6529 = vmatmul.mubr.bf16.gmra.mrb[0].mxu0 %v6045
    %v6530 = vpop.f32.mrb[0].mxu0
    %v6531 = vadd.f32 %v6129, %v6530
    %v6532 = vpop.f32.mrb[0].mxu0
    %v6533 = vadd.f32 %v6133, %v6532
    %v6534 = vpop.f32.mrb[0].mxu0
    %v6535 = vadd.f32 %v6129, %v6534
    %v6536 = vpop.f32.mrb[0].mxu0
    %v6537 = vadd.f32 %v6133, %v6536
    %6538 = vmatprep.mubr.bf16.mxu0 0
    %6539 = vmatmul.mubr.bf16.gmra.mrb[0].mxu0 %v6046
    %v6540 = vpop.f32.mrb[0].mxu0
    %v6541 = vadd.f32 %v6129, %v6540
    %v6542 = vpop.f32.mrb[0].mxu0
    %v6543 = vadd.f32 %v6133, %v6542
    %v6544 = vpop.f32.mrb[0].mxu0
    %v6545 = vadd.f32 %v6129, %v6544
    %v6546 = vpop.f32.mrb[0].mxu0
    %v6547 = vadd.f32 %v6133, %v6546
    %6548 = vmatprep.mubr.bf16.mxu0 0
    %6549 = vmatmul.mubr.bf16.gmra.mrb[0].mxu0 %v6047
    %v6550 = vpop.f32.mrb[0].mxu0
    %v6551 = vadd.f32 %v6129, %v6550
    %v6552 = vpop.f32.mrb[0].mxu0
    %v6553 = vadd.f32 %v6133, %v6552
    %v6554 = vpop.f32.mrb[0].mxu0
    %v6555 = vadd.f32 %v6129, %v6554
    %v6556 = vpop.f32.mrb[0].mxu0
    %v6557 = vadd.f32 %v6133, %v6556
    %6558 = vmatprep.mubr.bf16.mxu0 0
    %6559 = vmatmul.mubr.bf16.gmra.mrb[0].mxu0 %v6048
    %v6560 = vpop.f32.mrb[0].mxu0
    %v6561 = vadd.f32 %v6129, %v6560
    %v6562 = vpop.f32.mrb[0].mxu0
    %v6563 = vadd.f32 %v6133, %v6562
    %v6564 = vpop.f32.mrb[0].mxu0
    %v6565 = vadd.f32 %v6129, %v6564
    %v6566 = vpop.f32.mrb[0].mxu0
    %v6567 = vadd.f32 %v6133, %v6566
    %6568 = vmatprep.mubr.bf16.mxu0 0
    %6569 = vmatmul.mubr.bf16.gmra.mrb[0].mxu0 %v6049
    %v6570 = vpop.f32.mrb[0].mxu0
    %v6571 = vadd.f32 %v6129, %v6570
    %v6572 = vpop.f32.mrb[0].mxu0
    %v6573 = vadd.f32 %v6133, %v6572
    %v6574 = vpop.f32.mrb[0].mxu0
    %v6575 = vadd.f32 %v6129, %v6574
    %v6576 = vpop.f32.mrb[0].mxu0
    %v6577 = vadd.f32 %v6133, %v6576
    %6578 = vmatprep.mubr.bf16.mxu0 0
    %6579 = vmatmul.mubr.bf16.gmra.mrb[0].mxu0 %v6050
    %v6580 = vpop.f32.mrb[0].mxu0
    %v6581 = vadd.f32 %v6129, %v6580
    %v6582 = vpop.f32.mrb[0].mxu0
    %v6583 = vadd.f32 %v6133, %v6582
    %v6584 = vpop.f32.mrb[0].mxu0
    %v6585 = vadd.f32 %v6129, %v6584
    %v6586 = vpop.f32.mrb[0].mxu0
    %v6587 = vadd.f32 %v6133, %v6586
    %6588 = vmatprep.mubr.bf16.mxu0 0
    %6589 = vmatmul.mubr.bf16.gmra.mrb[0].mxu0 %v6051
    %v6590 = vpop.f32.mrb[0].mxu0
    %v6591 = vadd.f32 %v6129, %v6590
    %v6592 = vpop.f32.mrb[0].mxu0
    %v6593 = vadd.f32 %v6133, %v6592
    %v6594 = vpop.f32.mrb[0].mxu0
    %v6595 = vadd.f32 %v6129, %v6594
    %v6596 = vpop.f32.mrb[0].mxu0
    %v6597 = vadd.f32 %v6133, %v6596
    %6598 = vmatprep.mubr.bf16.mxu0 0
    %6599 = vmatmul.mubr.bf16.gmra.mrb[0].mxu0 %v6052
    %v6600 = vpop.f32.mrb[0].mxu0
    %v6601 = vadd.f32 %v6129, %v6600
    %v6602 = vpop.f32.mrb[0].mxu0
    %v6603 = vadd.f32 %v6133, %v6602
    %v6604 = vpop.f32.mrb[0].mxu0
    %v6605 = vadd.f32 %v6129, %v6604
    %v6606 = vpop.f32.mrb[0].mxu0
    %v6607 = vadd.f32 %v6133, %v6606
    %6608 = vmatprep.mubr.bf16.mxu0 0
    %6609 = vmatmul.mubr.bf16.gmra.mrb[0].mxu0 %v6053
    %v6610 = vpop.f32.mrb[0].mxu0
    %v6611 = vadd.f32 %v6129, %v6610
    %v6612 = vpop.f32.mrb[0].mxu0
    %v6613 = vadd.f32 %v6133, %v6612
    %v6614 = vpop.f32.mrb[0].mxu0
    %v6615 = vadd.f32 %v6129, %v6614
    %v6616 = vpop.f32.mrb[0].mxu0
    %v6617 = vadd.f32 %v6133, %v6616
    %6618 = vmatprep.mubr.bf16.mxu0 0
    %6619 = vmatmul.mubr.bf16.gmra.mrb[0].mxu0 %v6054
    %v6620 = vpop.f32.mrb[0].mxu0
    %v6621 = vadd.f32 %v6129, %v6620
    %v6622 = vpop.f32.mrb[0].mxu0
    %v6623 = vadd.f32 %v6133, %v6622
    %v6624 = vpop.f32.mrb[0].mxu0
    %v6625 = vadd.f32 %v6129, %v6624
    %v6626 = vpop.f32.mrb[0].mxu0
    %v6627 = vadd.f32 %v6133, %v6626
    %6628 = vmatprep.mubr.bf16.mxu0 0
    %6629 = vmatmul.mubr.bf16.gmra.mrb[0].mxu0 %v6055
    %v6630 = vpop.f32.mrb[0].mxu0
    %v6631 = vadd.f32 %v6129, %v6630
    %v6632 = vpop.f32.mrb[0].mxu0
    %v6633 = vadd.f32 %v6133, %v6632
    %v6634 = vpop.f32.mrb[0].mxu0
    %v6635 = vadd.f32 %v6129, %v6634
    %v6636 = vpop.f32.mrb[0].mxu0
    %v6637 = vadd.f32 %v6133, %v6636
    %6638 = vmatprep.mubr.bf16.mxu0 0
    %6639 = vmatmul.mubr.bf16.gmra.mrb[0].mxu0 %v6056
    %v6640 = vpop.f32.mrb[0].mxu0
    %v6641 = vadd.f32 %v6129, %v6640
    %v6642 = vpop.f32.mrb[0].mxu0
    %v6643 = vadd.f32 %v6133, %v6642
    %v6644 = vpop.f32.mrb[0].mxu0
    %v6645 = vadd.f32 %v6129, %v6644
    %v6646 = vpop.f32.mrb[0].mxu0
    %v6647 = vadd.f32 %v6133, %v6646
    %6648 = vmatprep.mubr.bf16.mxu0 0
    %6649 = vmatmul.mubr.bf16.gmra.mrb[0].mxu0 %v6057
    %v6650 = vpop.f32.mrb[0].mxu0
    %v6651 = vadd.f32 %v6129, %v6650
    %v6652 = vpop.f32.mrb[0].mxu0
    %v6653 = vadd.f32 %v6133, %v6652
    %v6654 = vpop.f32.mrb[0].mxu0
    %v6655 = vadd.f32 %v6129, %v6654
    %v6656 = vpop.f32.mrb[0].mxu0
    %v6657 = vadd.f32 %v6133, %v6656
    %6658 = vmatprep.mubr.bf16.mxu0 0
    %6659 = vmatmul.mubr.bf16.gmra.mrb[0].mxu0 %v6058
    %v6660 = vpop.f32.mrb[0].mxu0
    %v6661 = vadd.f32 %v6129, %v6660
    %v6662 = vpop.f32.mrb[0].mxu0
    %v6663 = vadd.f32 %v6133, %v6662
    %v6664 = vpop.f32.mrb[0].mxu0
    %v6665 = vadd.f32 %v6129, %v6664
    %v6666 = vpop.f32.mrb[0].mxu0
    %v6667 = vadd.f32 %v6133, %v6666
    %6668 = vmatprep.mubr.bf16.mxu0 0
    %6669 = vmatmul.mubr.bf16.gmra.mrb[0].mxu0 %v6059
    %v6670 = vpop.f32.mrb[0].mxu0
    %v6671 = vadd.f32 %v6129, %v6670
    %v6672 = vpop.f32.mrb[0].mxu0
    %v6673 = vadd.f32 %v6133, %v6672
    %v6674 = vpop.f32.mrb[0].mxu0
    %v6675 = vadd.f32 %v6129, %v6674
    %v6676 = vpop.f32.mrb[0].mxu0
    %v6677 = vadd.f32 %v6133, %v6676
    %6678 = vdwg.mxu0
    %6679 = vmatprep.subr.bf16.mxu0 %v6361
    %6680 = vmatpush1.bf16.msra.mxu0 %v6360
    %6681 = vmatprep.subr.bf16.mxu0 %v6369
    %6682 = vmatpush1.bf16.msra.mxu0 %v6368
    %6683 = vmatprep.subr.bf16.mxu0 %v6377
    %6684 = vmatpush1.bf16.msra.mxu0 %v6376
    %6685 = vmatprep.subr.bf16.mxu0 %v6385
    %6686 = vmatpush1.bf16.msra.mxu0 %v6384
    %6687 = vmatprep.subr.bf16.mxu0 %v6393
    %6688 = vmatpush1.bf16.msra.mxu0 %v6392
    %6689 = vmatprep.subr.bf16.mxu0 %v6401
    %6690 = vmatpush1.bf16.msra.mxu0 %v6400
    %6691 = vmatprep.subr.bf16.mxu0 %v6409
    %6692 = vmatpush1.bf16.msra.mxu0 %v6408
    %6693 = vmatprep.subr.bf16.mxu0 %v6417
    %6694 = vmatpush1.bf16.msra.mxu0 %v6416
    %6695 = vmatprep.subr.bf16.mxu0 0
    %6696 = vmatpush1.bf16.msra.mxu0 0
    %6697 = vmatprep.subr.bf16.mxu0 0
    %6698 = vmatpush1.bf16.msra.mxu0 0
    %6699 = vmatprep.subr.bf16.mxu0 0
    %6700 = vmatpush1.bf16.msra.mxu0 0
    %6701 = vmatprep.subr.bf16.mxu0 0
    %6702 = vmatpush1.bf16.msra.mxu0 0
    %6703 = vmatprep.subr.bf16.mxu0 0
    %6704 = vmatpush1.bf16.msra.mxu0 0
    %6705 = vmatprep.subr.bf16.mxu0 0
    %6706 = vmatpush1.bf16.msra.mxu0 0
    %6707 = vmatprep.subr.bf16.mxu0 0
    %6708 = vmatpush1.bf16.msra.mxu0 0
    %6709 = vmatprep.subr.bf16.mxu0 0
    %6710 = vmatpush1.bf16.msra.mxu0 0
    %6711 = vmatprep.mubr.bf16.mxu0 0
    %6712 = vmatmul.mubr.bf16.gmra.mrb[0].mxu0 %v6044
    %v6713 = vpop.f32.mrb[0].mxu0
    %v6714 = vadd.f32 %v6137, %v6713
    %v6715 = vpop.f32.mrb[0].mxu0
    %v6716 = vadd.f32 %v6141, %v6715
    %v6717 = vpop.f32.mrb[0].mxu0
    %v6718 = vadd.f32 %v6137, %v6717
    %v6719 = vpop.f32.mrb[0].mxu0
    %v6720 = vadd.f32 %v6141, %v6719
    %6721 = vmatprep.mubr.bf16.mxu0 0
    %6722 = vmatmul.mubr.bf16.gmra.mrb[0].mxu0 %v6045
    %v6723 = vpop.f32.mrb[0].mxu0
    %v6724 = vadd.f32 %v6137, %v6723
    %v6725 = vpop.f32.mrb[0].mxu0
    %v6726 = vadd.f32 %v6141, %v6725
    %v6727 = vpop.f32.mrb[0].mxu0
    %v6728 = vadd.f32 %v6137, %v6727
    %v6729 = vpop.f32.mrb[0].mxu0
    %v6730 = vadd.f32 %v6141, %v6729
    %6731 = vmatprep.mubr.bf16.mxu0 0
    %6732 = vmatmul.mubr.bf16.gmra.mrb[0].mxu0 %v6046
    %v6733 = vpop.f32.mrb[0].mxu0
    %v6734 = vadd.f32 %v6137, %v6733
    %v6735 = vpop.f32.mrb[0].mxu0
    %v6736 = vadd.f32 %v6141, %v6735
    %v6737 = vpop.f32.mrb[0].mxu0
    %v6738 = vadd.f32 %v6137, %v6737
    %v6739 = vpop.f32.mrb[0].mxu0
    %v6740 = vadd.f32 %v6141, %v6739
    %6741 = vmatprep.mubr.bf16.mxu0 0
    %6742 = vmatmul.mubr.bf16.gmra.mrb[0].mxu0 %v6047
    %v6743 = vpop.f32.mrb[0].mxu0
    %v6744 = vadd.f32 %v6137, %v6743
    %v6745 = vpop.f32.mrb[0].mxu0
    %v6746 = vadd.f32 %v6141, %v6745
    %v6747 = vpop.f32.mrb[0].mxu0
    %v6748 = vadd.f32 %v6137, %v6747
    %v6749 = vpop.f32.mrb[0].mxu0
    %v6750 = vadd.f32 %v6141, %v6749
    %6751 = vmatprep.mubr.bf16.mxu0 0
    %6752 = vmatmul.mubr.bf16.gmra.mrb[0].mxu0 %v6048
    %v6753 = vpop.f32.mrb[0].mxu0
    %v6754 = vadd.f32 %v6137, %v6753
    %v6755 = vpop.f32.mrb[0].mxu0
    %v6756 = vadd.f32 %v6141, %v6755
    %v6757 = vpop.f32.mrb[0].mxu0
    %v6758 = vadd.f32 %v6137, %v6757
    %v6759 = vpop.f32.mrb[0].mxu0
    %v6760 = vadd.f32 %v6141, %v6759
    %6761 = vmatprep.mubr.bf16.mxu0 0
    %6762 = vmatmul.mubr.bf16.gmra.mrb[0].mxu0 %v6049
    %v6763 = vpop.f32.mrb[0].mxu0
    %v6764 = vadd.f32 %v6137, %v6763
    %v6765 = vpop.f32.mrb[0].mxu0
    %v6766 = vadd.f32 %v6141, %v6765
    %v6767 = vpop.f32.mrb[0].mxu0
    %v6768 = vadd.f32 %v6137, %v6767
    %v6769 = vpop.f32.mrb[0].mxu0
    %v6770 = vadd.f32 %v6141, %v6769
    %6771 = vmatprep.mubr.bf16.mxu0 0
    %6772 = vmatmul.mubr.bf16.gmra.mrb[0].mxu0 %v6050
    %v6773 = vpop.f32.mrb[0].mxu0
    %v6774 = vadd.f32 %v6137, %v6773
    %v6775 = vpop.f32.mrb[0].mxu0
    %v6776 = vadd.f32 %v6141, %v6775
    %v6777 = vpop.f32.mrb[0].mxu0
    %v6778 = vadd.f32 %v6137, %v6777
    %v6779 = vpop.f32.mrb[0].mxu0
    %v6780 = vadd.f32 %v6141, %v6779
    %6781 = vmatprep.mubr.bf16.mxu0 0
    %6782 = vmatmul.mubr.bf16.gmra.mrb[0].mxu0 %v6051
    %v6783 = vpop.f32.mrb[0].mxu0
    %v6784 = vadd.f32 %v6137, %v6783
    %v6785 = vpop.f32.mrb[0].mxu0
    %v6786 = vadd.f32 %v6141, %v6785
    %v6787 = vpop.f32.mrb[0].mxu0
    %v6788 = vadd.f32 %v6137, %v6787
    %v6789 = vpop.f32.mrb[0].mxu0
    %v6790 = vadd.f32 %v6141, %v6789
    %6791 = vmatprep.mubr.bf16.mxu0 0
    %6792 = vmatmul.mubr.bf16.gmra.mrb[0].mxu0 %v6052
    %v6793 = vpop.f32.mrb[0].mxu0
    %v6794 = vadd.f32 %v6137, %v6793
    %v6795 = vpop.f32.mrb[0].mxu0
    %v6796 = vadd.f32 %v6141, %v6795
    %v6797 = vpop.f32.mrb[0].mxu0
    %v6798 = vadd.f32 %v6137, %v6797
    %v6799 = vpop.f32.mrb[0].mxu0
    %v6800 = vadd.f32 %v6141, %v6799
    %6801 = vmatprep.mubr.bf16.mxu0 0
    %6802 = vmatmul.mubr.bf16.gmra.mrb[0].mxu0 %v6053
    %v6803 = vpop.f32.mrb[0].mxu0
    %v6804 = vadd.f32 %v6137, %v6803
    %v6805 = vpop.f32.mrb[0].mxu0
    %v6806 = vadd.f32 %v6141, %v6805
    %v6807 = vpop.f32.mrb[0].mxu0
    %v6808 = vadd.f32 %v6137, %v6807
    %v6809 = vpop.f32.mrb[0].mxu0
    %v6810 = vadd.f32 %v6141, %v6809
    %6811 = vmatprep.mubr.bf16.mxu0 0
    %6812 = vmatmul.mubr.bf16.gmra.mrb[0].mxu0 %v6054
    %v6813 = vpop.f32.mrb[0].mxu0
    %v6814 = vadd.f32 %v6137, %v6813
    %v6815 = vpop.f32.mrb[0].mxu0
    %v6816 = vadd.f32 %v6141, %v6815
    %v6817 = vpop.f32.mrb[0].mxu0
    %v6818 = vadd.f32 %v6137, %v6817
    %v6819 = vpop.f32.mrb[0].mxu0
    %v6820 = vadd.f32 %v6141, %v6819
    %6821 = vmatprep.mubr.bf16.mxu0 0
    %6822 = vmatmul.mubr.bf16.gmra.mrb[0].mxu0 %v6055
    %v6823 = vpop.f32.mrb[0].mxu0
    %v6824 = vadd.f32 %v6137, %v6823
    %v6825 = vpop.f32.mrb[0].mxu0
    %v6826 = vadd.f32 %v6141, %v6825
    %v6827 = vpop.f32.mrb[0].mxu0
    %v6828 = vadd.f32 %v6137, %v6827
    %v6829 = vpop.f32.mrb[0].mxu0
    %v6830 = vadd.f32 %v6141, %v6829
    %6831 = vmatprep.mubr.bf16.mxu0 0
    %6832 = vmatmul.mubr.bf16.gmra.mrb[0].mxu0 %v6056
    %v6833 = vpop.f32.mrb[0].mxu0
    %v6834 = vadd.f32 %v6137, %v6833
    %v6835 = vpop.f32.mrb[0].mxu0
    %v6836 = vadd.f32 %v6141, %v6835
    %v6837 = vpop.f32.mrb[0].mxu0
    %v6838 = vadd.f32 %v6137, %v6837
    %v6839 = vpop.f32.mrb[0].mxu0
    %v6840 = vadd.f32 %v6141, %v6839
    %6841 = vmatprep.mubr.bf16.mxu0 0
    %6842 = vmatmul.mubr.bf16.gmra.mrb[0].mxu0 %v6057
    %v6843 = vpop.f32.mrb[0].mxu0
    %v6844 = vadd.f32 %v6137, %v6843
    %v6845 = vpop.f32.mrb[0].mxu0
    %v6846 = vadd.f32 %v6141, %v6845
    %v6847 = vpop.f32.mrb[0].mxu0
    %v6848 = vadd.f32 %v6137, %v6847
    %v6849 = vpop.f32.mrb[0].mxu0
    %v6850 = vadd.f32 %v6141, %v6849
    %6851 = vmatprep.mubr.bf16.mxu0 0
    %6852 = vmatmul.mubr.bf16.gmra.mrb[0].mxu0 %v6058
    %v6853 = vpop.f32.mrb[0].mxu0
    %v6854 = vadd.f32 %v6137, %v6853
    %v6855 = vpop.f32.mrb[0].mxu0
    %v6856 = vadd.f32 %v6141, %v6855
    %v6857 = vpop.f32.mrb[0].mxu0
    %v6858 = vadd.f32 %v6137, %v6857
    %v6859 = vpop.f32.mrb[0].mxu0
    %v6860 = vadd.f32 %v6141, %v6859
    %6861 = vmatprep.mubr.bf16.mxu0 0
    %6862 = vmatmul.mubr.bf16.gmra.mrb[0].mxu0 %v6059
    %v6863 = vpop.f32.mrb[0].mxu0
    %v6864 = vadd.f32 %v6137, %v6863
    %v6865 = vpop.f32.mrb[0].mxu0
    %v6866 = vadd.f32 %v6141, %v6865
    %v6867 = vpop.f32.mrb[0].mxu0
    %v6868 = vadd.f32 %v6137, %v6867
    %v6869 = vpop.f32.mrb[0].mxu0
    %v6870 = vadd.f32 %v6141, %v6869
    %6871 = vdwg.mxu0
    %6872 = vmatprep.subr.bf16.mxu0 %v6363
    %6873 = vmatpush1.bf16.msra.mxu0 %v6362
    %6874 = vmatprep.subr.bf16.mxu0 %v6371
    %6875 = vmatpush1.bf16.msra.mxu0 %v6370
    %6876 = vmatprep.subr.bf16.mxu0 %v6379
    %6877 = vmatpush1.bf16.msra.mxu0 %v6378
    %6878 = vmatprep.subr.bf16.mxu0 %v6387
    %6879 = vmatpush1.bf16.msra.mxu0 %v6386
    %6880 = vmatprep.subr.bf16.mxu0 %v6395
    %6881 = vmatpush1.bf16.msra.mxu0 %v6394
    %6882 = vmatprep.subr.bf16.mxu0 %v6403
    %6883 = vmatpush1.bf16.msra.mxu0 %v6402
    %6884 = vmatprep.subr.bf16.mxu0 %v6411
    %6885 = vmatpush1.bf16.msra.mxu0 %v6410
    %6886 = vmatprep.subr.bf16.mxu0 %v6419
    %6887 = vmatpush1.bf16.msra.mxu0 %v6418
    %6888 = vmatprep.subr.bf16.mxu0 0
    %6889 = vmatpush1.bf16.msra.mxu0 0
    %6890 = vmatprep.subr.bf16.mxu0 0
    %6891 = vmatpush1.bf16.msra.mxu0 0
    %6892 = vmatprep.subr.bf16.mxu0 0
    %6893 = vmatpush1.bf16.msra.mxu0 0
    %6894 = vmatprep.subr.bf16.mxu0 0
    %6895 = vmatpush1.bf16.msra.mxu0 0
    %6896 = vmatprep.subr.bf16.mxu0 0
    %6897 = vmatpush1.bf16.msra.mxu0 0
    %6898 = vmatprep.subr.bf16.mxu0 0
    %6899 = vmatpush1.bf16.msra.mxu0 0
    %6900 = vmatprep.subr.bf16.mxu0 0
    %6901 = vmatpush1.bf16.msra.mxu0 0
    %6902 = vmatprep.subr.bf16.mxu0 0
    %6903 = vmatpush1.bf16.msra.mxu0 0
    %6904 = vmatprep.mubr.bf16.mxu0 0
    %6905 = vmatmul.mubr.bf16.gmra.mrb[0].mxu0 %v6044
    %v6906 = vpop.f32.mrb[0].mxu0
    %v6907 = vadd.f32 %v6145, %v6906
    %v6908 = vpop.f32.mrb[0].mxu0
    %v6909 = vadd.f32 %v6149, %v6908
    %v6910 = vpop.f32.mrb[0].mxu0
    %v6911 = vadd.f32 %v6145, %v6910
    %v6912 = vpop.f32.mrb[0].mxu0
    %v6913 = vadd.f32 %v6149, %v6912
    %6914 = vmatprep.mubr.bf16.mxu0 0
    %6915 = vmatmul.mubr.bf16.gmra.mrb[0].mxu0 %v6045
    %v6916 = vpop.f32.mrb[0].mxu0
    %v6917 = vadd.f32 %v6145, %v6916
    %v6918 = vpop.f32.mrb[0].mxu0
    %v6919 = vadd.f32 %v6149, %v6918
    %v6920 = vpop.f32.mrb[0].mxu0
    %v6921 = vadd.f32 %v6145, %v6920
    %v6922 = vpop.f32.mrb[0].mxu0
    %v6923 = vadd.f32 %v6149, %v6922
    %6924 = vmatprep.mubr.bf16.mxu0 0
    %6925 = vmatmul.mubr.bf16.gmra.mrb[0].mxu0 %v6046
    %v6926 = vpop.f32.mrb[0].mxu0
    %v6927 = vadd.f32 %v6145, %v6926
    %v6928 = vpop.f32.mrb[0].mxu0
    %v6929 = vadd.f32 %v6149, %v6928
    %v6930 = vpop.f32.mrb[0].mxu0
    %v6931 = vadd.f32 %v6145, %v6930
    %v6932 = vpop.f32.mrb[0].mxu0
    %v6933 = vadd.f32 %v6149, %v6932
    %6934 = vmatprep.mubr.bf16.mxu0 0
    %6935 = vmatmul.mubr.bf16.gmra.mrb[0].mxu0 %v6047
    %v6936 = vpop.f32.mrb[0].mxu0
    %v6937 = vadd.f32 %v6145, %v6936
    %v6938 = vpop.f32.mrb[0].mxu0
    %v6939 = vadd.f32 %v6149, %v6938
    %v6940 = vpop.f32.mrb[0].mxu0
    %v6941 = vadd.f32 %v6145, %v6940
    %v6942 = vpop.f32.mrb[0].mxu0
    %v6943 = vadd.f32 %v6149, %v6942
    %6944 = vmatprep.mubr.bf16.mxu0 0
    %6945 = vmatmul.mubr.bf16.gmra.mrb[0].mxu0 %v6048
    %v6946 = vpop.f32.mrb[0].mxu0
    %v6947 = vadd.f32 %v6145, %v6946
    %v6948 = vpop.f32.mrb[0].mxu0
    %v6949 = vadd.f32 %v6149, %v6948
    %v6950 = vpop.f32.mrb[0].mxu0
    %v6951 = vadd.f32 %v6145, %v6950
    %v6952 = vpop.f32.mrb[0].mxu0
    %v6953 = vadd.f32 %v6149, %v6952
    %6954 = vmatprep.mubr.bf16.mxu0 0
    %6955 = vmatmul.mubr.bf16.gmra.mrb[0].mxu0 %v6049
    %v6956 = vpop.f32.mrb[0].mxu0
    %v6957 = vadd.f32 %v6145, %v6956
    %v6958 = vpop.f32.mrb[0].mxu0
    %v6959 = vadd.f32 %v6149, %v6958
    %v6960 = vpop.f32.mrb[0].mxu0
    %v6961 = vadd.f32 %v6145, %v6960
    %v6962 = vpop.f32.mrb[0].mxu0
    %v6963 = vadd.f32 %v6149, %v6962
    %6964 = vmatprep.mubr.bf16.mxu0 0
    %6965 = vmatmul.mubr.bf16.gmra.mrb[0].mxu0 %v6050
    %v6966 = vpop.f32.mrb[0].mxu0
    %v6967 = vadd.f32 %v6145, %v6966
    %v6968 = vpop.f32.mrb[0].mxu0
    %v6969 = vadd.f32 %v6149, %v6968
    %v6970 = vpop.f32.mrb[0].mxu0
    %v6971 = vadd.f32 %v6145, %v6970
    %v6972 = vpop.f32.mrb[0].mxu0
    %v6973 = vadd.f32 %v6149, %v6972
    %6974 = vmatprep.mubr.bf16.mxu0 0
    %6975 = vmatmul.mubr.bf16.gmra.mrb[0].mxu0 %v6051
    %v6976 = vpop.f32.mrb[0].mxu0
    %v6977 = vadd.f32 %v6145, %v6976
    %v6978 = vpop.f32.mrb[0].mxu0
    %v6979 = vadd.f32 %v6149, %v6978
    %v6980 = vpop.f32.mrb[0].mxu0
    %v6981 = vadd.f32 %v6145, %v6980
    %v6982 = vpop.f32.mrb[0].mxu0
    %v6983 = vadd.f32 %v6149, %v6982
    %6984 = vmatprep.mubr.bf16.mxu0 0
    %6985 = vmatmul.mubr.bf16.gmra.mrb[0].mxu0 %v6052
    %v6986 = vpop.f32.mrb[0].mxu0
    %v6987 = vadd.f32 %v6145, %v6986
    %v6988 = vpop.f32.mrb[0].mxu0
    %v6989 = vadd.f32 %v6149, %v6988
    %v6990 = vpop.f32.mrb[0].mxu0
    %v6991 = vadd.f32 %v6145, %v6990
    %v6992 = vpop.f32.mrb[0].mxu0
    %v6993 = vadd.f32 %v6149, %v6992
    %6994 = vmatprep.mubr.bf16.mxu0 0
    %6995 = vmatmul.mubr.bf16.gmra.mrb[0].mxu0 %v6053
    %v6996 = vpop.f32.mrb[0].mxu0
    %v6997 = vadd.f32 %v6145, %v6996
    %v6998 = vpop.f32.mrb[0].mxu0
    %v6999 = vadd.f32 %v6149, %v6998
    %v7000 = vpop.f32.mrb[0].mxu0
    %v7001 = vadd.f32 %v6145, %v7000
    %v7002 = vpop.f32.mrb[0].mxu0
    %v7003 = vadd.f32 %v6149, %v7002
    %7004 = vmatprep.mubr.bf16.mxu0 0
    %7005 = vmatmul.mubr.bf16.gmra.mrb[0].mxu0 %v6054
    %v7006 = vpop.f32.mrb[0].mxu0
    %v7007 = vadd.f32 %v6145, %v7006
    %v7008 = vpop.f32.mrb[0].mxu0
    %v7009 = vadd.f32 %v6149, %v7008
    %v7010 = vpop.f32.mrb[0].mxu0
    %v7011 = vadd.f32 %v6145, %v7010
    %v7012 = vpop.f32.mrb[0].mxu0
    %v7013 = vadd.f32 %v6149, %v7012
    %7014 = vmatprep.mubr.bf16.mxu0 0
    %7015 = vmatmul.mubr.bf16.gmra.mrb[0].mxu0 %v6055
    %v7016 = vpop.f32.mrb[0].mxu0
    %v7017 = vadd.f32 %v6145, %v7016
    %v7018 = vpop.f32.mrb[0].mxu0
    %v7019 = vadd.f32 %v6149, %v7018
    %v7020 = vpop.f32.mrb[0].mxu0
    %v7021 = vadd.f32 %v6145, %v7020
    %v7022 = vpop.f32.mrb[0].mxu0
    %v7023 = vadd.f32 %v6149, %v7022
    %7024 = vmatprep.mubr.bf16.mxu0 0
    %7025 = vmatmul.mubr.bf16.gmra.mrb[0].mxu0 %v6056
    %v7026 = vpop.f32.mrb[0].mxu0
    %v7027 = vadd.f32 %v6145, %v7026
    %v7028 = vpop.f32.mrb[0].mxu0
    %v7029 = vadd.f32 %v6149, %v7028
    %v7030 = vpop.f32.mrb[0].mxu0
    %v7031 = vadd.f32 %v6145, %v7030
    %v7032 = vpop.f32.mrb[0].mxu0
    %v7033 = vadd.f32 %v6149, %v7032
    %7034 = vmatprep.mubr.bf16.mxu0 0
    %7035 = vmatmul.mubr.bf16.gmra.mrb[0].mxu0 %v6057
    %v7036 = vpop.f32.mrb[0].mxu0
    %v7037 = vadd.f32 %v6145, %v7036
    %v7038 = vpop.f32.mrb[0].mxu0
    %v7039 = vadd.f32 %v6149, %v7038
    %v7040 = vpop.f32.mrb[0].mxu0
    %v7041 = vadd.f32 %v6145, %v7040
    %v7042 = vpop.f32.mrb[0].mxu0
    %v7043 = vadd.f32 %v6149, %v7042
    %7044 = vmatprep.mubr.bf16.mxu0 0
    %7045 = vmatmul.mubr.bf16.gmra.mrb[0].mxu0 %v6058
    %v7046 = vpop.f32.mrb[0].mxu0
    %v7047 = vadd.f32 %v6145, %v7046
    %v7048 = vpop.f32.mrb[0].mxu0
    %v7049 = vadd.f32 %v6149, %v7048
    %v7050 = vpop.f32.mrb[0].mxu0
    %v7051 = vadd.f32 %v6145, %v7050
    %v7052 = vpop.f32.mrb[0].mxu0
    %v7053 = vadd.f32 %v6149, %v7052
    %7054 = vmatprep.mubr.bf16.mxu0 0
    %7055 = vmatmul.mubr.bf16.gmra.mrb[0].mxu0 %v6059
    %v7056 = vpop.f32.mrb[0].mxu0
    %v7057 = vadd.f32 %v6145, %v7056
    %v7058 = vpop.f32.mrb[0].mxu0
    %v7059 = vadd.f32 %v6149, %v7058
    %v7060 = vpop.f32.mrb[0].mxu0
    %v7061 = vadd.f32 %v6145, %v7060
    %v7062 = vpop.f32.mrb[0].mxu0
    %v7063 = vadd.f32 %v6149, %v7062
    %7064 = vdwg.mxu0
    %7065 = vmatprep.subr.bf16.mxu0 %v6365
    %7066 = vmatpush1.bf16.msra.mxu0 %v6364
    %7067 = vmatprep.subr.bf16.mxu0 %v6373
    %7068 = vmatpush1.bf16.msra.mxu0 %v6372
    %7069 = vmatprep.subr.bf16.mxu0 %v6381
    %7070 = vmatpush1.bf16.msra.mxu0 %v6380
    %7071 = vmatprep.subr.bf16.mxu0 %v6389
    %7072 = vmatpush1.bf16.msra.mxu0 %v6388
    %7073 = vmatprep.subr.bf16.mxu0 %v6397
    %7074 = vmatpush1.bf16.msra.mxu0 %v6396
    %7075 = vmatprep.subr.bf16.mxu0 %v6405
    %7076 = vmatpush1.bf16.msra.mxu0 %v6404
    %7077 = vmatprep.subr.bf16.mxu0 %v6413
    %7078 = vmatpush1.bf16.msra.mxu0 %v6412
    %7079 = vmatprep.subr.bf16.mxu0 %v6421
    %7080 = vmatpush1.bf16.msra.mxu0 %v6420
    %7081 = vmatprep.subr.bf16.mxu0 0
    %7082 = vmatpush1.bf16.msra.mxu0 0
    %7083 = vmatprep.subr.bf16.mxu0 0
    %7084 = vmatpush1.bf16.msra.mxu0 0
    %7085 = vmatprep.subr.bf16.mxu0 0
    %7086 = vmatpush1.bf16.msra.mxu0 0
    %7087 = vmatprep.subr.bf16.mxu0 0
    %7088 = vmatpush1.bf16.msra.mxu0 0
    %7089 = vmatprep.subr.bf16.mxu0 0
    %7090 = vmatpush1.bf16.msra.mxu0 0
    %7091 = vmatprep.subr.bf16.mxu0 0
    %7092 = vmatpush1.bf16.msra.mxu0 0
    %7093 = vmatprep.subr.bf16.mxu0 0
    %7094 = vmatpush1.bf16.msra.mxu0 0
    %7095 = vmatprep.subr.bf16.mxu0 0
    %7096 = vmatpush1.bf16.msra.mxu0 0
    %7097 = vmatprep.mubr.bf16.mxu0 0
    %7098 = vmatmul.mubr.bf16.gmra.mrb[0].mxu0 %v6044
    %v7099 = vpop.f32.mrb[0].mxu0
    %v7100 = vadd.f32 %v6153, %v7099
    %v7101 = vpop.f32.mrb[0].mxu0
    %v7102 = vadd.f32 %v6157, %v7101
    %v7103 = vpop.f32.mrb[0].mxu0
    %v7104 = vadd.f32 %v6153, %v7103
    %v7105 = vpop.f32.mrb[0].mxu0
    %v7106 = vadd.f32 %v6157, %v7105
    %7107 = vmatprep.mubr.bf16.mxu0 0
    %7108 = vmatmul.mubr.bf16.gmra.mrb[0].mxu0 %v6045
    %v7109 = vpop.f32.mrb[0].mxu0
    %v7110 = vadd.f32 %v6153, %v7109
    %v7111 = vpop.f32.mrb[0].mxu0
    %v7112 = vadd.f32 %v6157, %v7111
    %v7113 = vpop.f32.mrb[0].mxu0
    %v7114 = vadd.f32 %v6153, %v7113
    %v7115 = vpop.f32.mrb[0].mxu0
    %v7116 = vadd.f32 %v6157, %v7115
    %7117 = vmatprep.mubr.bf16.mxu0 0
    %7118 = vmatmul.mubr.bf16.gmra.mrb[0].mxu0 %v6046
    %v7119 = vpop.f32.mrb[0].mxu0
    %v7120 = vadd.f32 %v6153, %v7119
    %v7121 = vpop.f32.mrb[0].mxu0
    %v7122 = vadd.f32 %v6157, %v7121
    %v7123 = vpop.f32.mrb[0].mxu0
    %v7124 = vadd.f32 %v6153, %v7123
    %v7125 = vpop.f32.mrb[0].mxu0
    %v7126 = vadd.f32 %v6157, %v7125
    %7127 = vmatprep.mubr.bf16.mxu0 0
    %7128 = vmatmul.mubr.bf16.gmra.mrb[0].mxu0 %v6047
    %v7129 = vpop.f32.mrb[0].mxu0
    %v7130 = vadd.f32 %v6153, %v7129
    %v7131 = vpop.f32.mrb[0].mxu0
    %v7132 = vadd.f32 %v6157, %v7131
    %v7133 = vpop.f32.mrb[0].mxu0
    %v7134 = vadd.f32 %v6153, %v7133
    %v7135 = vpop.f32.mrb[0].mxu0
    %v7136 = vadd.f32 %v6157, %v7135
    %7137 = vmatprep.mubr.bf16.mxu0 0
    %7138 = vmatmul.mubr.bf16.gmra.mrb[0].mxu0 %v6048
    %v7139 = vpop.f32.mrb[0].mxu0
    %v7140 = vadd.f32 %v6153, %v7139
    %v7141 = vpop.f32.mrb[0].mxu0
    %v7142 = vadd.f32 %v6157, %v7141
    %v7143 = vpop.f32.mrb[0].mxu0
    %v7144 = vadd.f32 %v6153, %v7143
    %v7145 = vpop.f32.mrb[0].mxu0
    %v7146 = vadd.f32 %v6157, %v7145
    %7147 = vmatprep.mubr.bf16.mxu0 0
    %7148 = vmatmul.mubr.bf16.gmra.mrb[0].mxu0 %v6049
    %v7149 = vpop.f32.mrb[0].mxu0
    %v7150 = vadd.f32 %v6153, %v7149
    %v7151 = vpop.f32.mrb[0].mxu0
    %v7152 = vadd.f32 %v6157, %v7151
    %v7153 = vpop.f32.mrb[0].mxu0
    %v7154 = vadd.f32 %v6153, %v7153
    %v7155 = vpop.f32.mrb[0].mxu0
    %v7156 = vadd.f32 %v6157, %v7155
    %7157 = vmatprep.mubr.bf16.mxu0 0
    %7158 = vmatmul.mubr.bf16.gmra.mrb[0].mxu0 %v6050
    %v7159 = vpop.f32.mrb[0].mxu0
    %v7160 = vadd.f32 %v6153, %v7159
    %v7161 = vpop.f32.mrb[0].mxu0
    %v7162 = vadd.f32 %v6157, %v7161
    %v7163 = vpop.f32.mrb[0].mxu0
    %v7164 = vadd.f32 %v6153, %v7163
    %v7165 = vpop.f32.mrb[0].mxu0
    %v7166 = vadd.f32 %v6157, %v7165
    %7167 = vmatprep.mubr.bf16.mxu0 0
    %7168 = vmatmul.mubr.bf16.gmra.mrb[0].mxu0 %v6051
    %v7169 = vpop.f32.mrb[0].mxu0
    %v7170 = vadd.f32 %v6153, %v7169
    %v7171 = vpop.f32.mrb[0].mxu0
    %v7172 = vadd.f32 %v6157, %v7171
    %v7173 = vpop.f32.mrb[0].mxu0
    %v7174 = vadd.f32 %v6153, %v7173
    %v7175 = vpop.f32.mrb[0].mxu0
    %v7176 = vadd.f32 %v6157, %v7175
    %7177 = vmatprep.mubr.bf16.mxu0 0
    %7178 = vmatmul.mubr.bf16.gmra.mrb[0].mxu0 %v6052
    %v7179 = vpop.f32.mrb[0].mxu0
    %v7180 = vadd.f32 %v6153, %v7179
    %v7181 = vpop.f32.mrb[0].mxu0
    %v7182 = vadd.f32 %v6157, %v7181
    %v7183 = vpop.f32.mrb[0].mxu0
    %v7184 = vadd.f32 %v6153, %v7183
    %v7185 = vpop.f32.mrb[0].mxu0
    %v7186 = vadd.f32 %v6157, %v7185
    %7187 = vmatprep.mubr.bf16.mxu0 0
    %7188 = vmatmul.mubr.bf16.gmra.mrb[0].mxu0 %v6053
    %v7189 = vpop.f32.mrb[0].mxu0
    %v7190 = vadd.f32 %v6153, %v7189
    %v7191 = vpop.f32.mrb[0].mxu0
    %v7192 = vadd.f32 %v6157, %v7191
    %v7193 = vpop.f32.mrb[0].mxu0
    %v7194 = vadd.f32 %v6153, %v7193
    %v7195 = vpop.f32.mrb[0].mxu0
    %v7196 = vadd.f32 %v6157, %v7195
    %7197 = vmatprep.mubr.bf16.mxu0 0
    %7198 = vmatmul.mubr.bf16.gmra.mrb[0].mxu0 %v6054
    %v7199 = vpop.f32.mrb[0].mxu0
    %v7200 = vadd.f32 %v6153, %v7199
    %v7201 = vpop.f32.mrb[0].mxu0
    %v7202 = vadd.f32 %v6157, %v7201
    %v7203 = vpop.f32.mrb[0].mxu0
    %v7204 = vadd.f32 %v6153, %v7203
    %v7205 = vpop.f32.mrb[0].mxu0
    %v7206 = vadd.f32 %v6157, %v7205
    %7207 = vmatprep.mubr.bf16.mxu0 0
    %7208 = vmatmul.mubr.bf16.gmra.mrb[0].mxu0 %v6055
    %v7209 = vpop.f32.mrb[0].mxu0
    %v7210 = vadd.f32 %v6153, %v7209
    %v7211 = vpop.f32.mrb[0].mxu0
    %v7212 = vadd.f32 %v6157, %v7211
    %v7213 = vpop.f32.mrb[0].mxu0
    %v7214 = vadd.f32 %v6153, %v7213
    %v7215 = vpop.f32.mrb[0].mxu0
    %v7216 = vadd.f32 %v6157, %v7215
    %7217 = vmatprep.mubr.bf16.mxu0 0
    %7218 = vmatmul.mubr.bf16.gmra.mrb[0].mxu0 %v6056
    %v7219 = vpop.f32.mrb[0].mxu0
    %v7220 = vadd.f32 %v6153, %v7219
    %v7221 = vpop.f32.mrb[0].mxu0
    %v7222 = vadd.f32 %v6157, %v7221
    %v7223 = vpop.f32.mrb[0].mxu0
    %v7224 = vadd.f32 %v6153, %v7223
    %v7225 = vpop.f32.mrb[0].mxu0
    %v7226 = vadd.f32 %v6157, %v7225
    %7227 = vmatprep.mubr.bf16.mxu0 0
    %7228 = vmatmul.mubr.bf16.gmra.mrb[0].mxu0 %v6057
    %v7229 = vpop.f32.mrb[0].mxu0
    %v7230 = vadd.f32 %v6153, %v7229
    %v7231 = vpop.f32.mrb[0].mxu0
    %v7232 = vadd.f32 %v6157, %v7231
    %v7233 = vpop.f32.mrb[0].mxu0
    %v7234 = vadd.f32 %v6153, %v7233
    %v7235 = vpop.f32.mrb[0].mxu0
    %v7236 = vadd.f32 %v6157, %v7235
    %7237 = vmatprep.mubr.bf16.mxu0 0
    %7238 = vmatmul.mubr.bf16.gmra.mrb[0].mxu0 %v6058
    %v7239 = vpop.f32.mrb[0].mxu0
    %v7240 = vadd.f32 %v6153, %v7239
    %v7241 = vpop.f32.mrb[0].mxu0
    %v7242 = vadd.f32 %v6157, %v7241
    %v7243 = vpop.f32.mrb[0].mxu0
    %v7244 = vadd.f32 %v6153, %v7243
    %v7245 = vpop.f32.mrb[0].mxu0
    %v7246 = vadd.f32 %v6157, %v7245
    %7247 = vmatprep.mubr.bf16.mxu0 0
    %7248 = vmatmul.mubr.bf16.gmra.mrb[0].mxu0 %v6059
    %v7249 = vpop.f32.mrb[0].mxu0
    %v7250 = vadd.f32 %v6153, %v7249
    %v7251 = vpop.f32.mrb[0].mxu0
    %v7252 = vadd.f32 %v6157, %v7251
    %v7253 = vpop.f32.mrb[0].mxu0
    %v7254 = vadd.f32 %v6153, %v7253
    %v7255 = vpop.f32.mrb[0].mxu0
    %v7256 = vadd.f32 %v6157, %v7255
    %7257 = vdwg.mxu0
    %v7258 = vmax.f32 %v6521, %v6525
    %v7259 = vmax.f32 %v7258, %v6531
    %v7260 = vmax.f32 %v7259, %v6535
    %v7261 = vmax.f32 %v7260, %v6541
    %v7262 = vmax.f32 %v7261, %v6545
    %v7263 = vmax.f32 %v7262, %v6551
    %v7264 = vmax.f32 %v7263, %v6555
    %v7265 = vmax.f32 %v7264, %v6561
    %v7266 = vmax.f32 %v7265, %v6565
    %v7267 = vmax.f32 %v7266, %v6571
    %v7268 = vmax.f32 %v7267, %v6575
    %v7269 = vmax.f32 %v7268, %v6581
    %v7270 = vmax.f32 %v7269, %v6585
    %v7271 = vmax.f32 %v7270, %v6591
    %v7272 = vmax.f32 %v7271, %v6595
    %v7273 = vrot.slane %v7272, 4
    %v7274 = vmax.f32 %v7272, %v7273
    %v7275 = vrot.slane %v7274, 2
    %v7276 = vmax.f32 %v7274, %v7275
    %v7277 = vrot.slane %v7276, 1
    %v7278 = vmax.f32 %v7276, %v7277
    %v7279 = vmax.f32 %v6523, %v6527
    %v7280 = vmax.f32 %v7279, %v6533
    %v7281 = vmax.f32 %v7280, %v6537
    %v7282 = vmax.f32 %v7281, %v6543
    %v7283 = vmax.f32 %v7282, %v6547
    %v7284 = vmax.f32 %v7283, %v6553
    %v7285 = vmax.f32 %v7284, %v6557
    %v7286 = vmax.f32 %v7285, %v6563
    %v7287 = vmax.f32 %v7286, %v6567
    %v7288 = vmax.f32 %v7287, %v6573
    %v7289 = vmax.f32 %v7288, %v6577
    %v7290 = vmax.f32 %v7289, %v6583
    %v7291 = vmax.f32 %v7290, %v6587
    %v7292 = vmax.f32 %v7291, %v6593
    %v7293 = vmax.f32 %v7292, %v6597
    %v7294 = vrot.slane %v7293, 4
    %v7295 = vmax.f32 %v7293, %v7294
    %v7296 = vrot.slane %v7295, 2
    %v7297 = vmax.f32 %v7295, %v7296
    %v7298 = vrot.slane %v7297, 1
    %v7299 = vmax.f32 %v7297, %v7298
    %v7300 = vmax.f32 %v6714, %v6718
    %v7301 = vmax.f32 %v7300, %v6724
    %v7302 = vmax.f32 %v7301, %v6728
    %v7303 = vmax.f32 %v7302, %v6734
    %v7304 = vmax.f32 %v7303, %v6738
    %v7305 = vmax.f32 %v7304, %v6744
    %v7306 = vmax.f32 %v7305, %v6748
    %v7307 = vmax.f32 %v7306, %v6754
    %v7308 = vmax.f32 %v7307, %v6758
    %v7309 = vmax.f32 %v7308, %v6764
    %v7310 = vmax.f32 %v7309, %v6768
    %v7311 = vmax.f32 %v7310, %v6774
    %v7312 = vmax.f32 %v7311, %v6778
    %v7313 = vmax.f32 %v7312, %v6784
    %v7314 = vmax.f32 %v7313, %v6788
    %v7315 = vrot.slane %v7314, 4
    %v7316 = vmax.f32 %v7314, %v7315
    %v7317 = vrot.slane %v7316, 2
    %v7318 = vmax.f32 %v7316, %v7317
    %v7319 = vrot.slane %v7318, 1
    %v7320 = vmax.f32 %v7318, %v7319
    %v7321 = vmax.f32 %v6716, %v6720
    %v7322 = vmax.f32 %v7321, %v6726
    %v7323 = vmax.f32 %v7322, %v6730
    %v7324 = vmax.f32 %v7323, %v6736
    %v7325 = vmax.f32 %v7324, %v6740
    %v7326 = vmax.f32 %v7325, %v6746
    %v7327 = vmax.f32 %v7326, %v6750
    %v7328 = vmax.f32 %v7327, %v6756
    %v7329 = vmax.f32 %v7328, %v6760
    %v7330 = vmax.f32 %v7329, %v6766
    %v7331 = vmax.f32 %v7330, %v6770
    %v7332 = vmax.f32 %v7331, %v6776
    %v7333 = vmax.f32 %v7332, %v6780
    %v7334 = vmax.f32 %v7333, %v6786
    %v7335 = vmax.f32 %v7334, %v6790
    %v7336 = vrot.slane %v7335, 4
    %v7337 = vmax.f32 %v7335, %v7336
    %v7338 = vrot.slane %v7337, 2
    %v7339 = vmax.f32 %v7337, %v7338
    %v7340 = vrot.slane %v7339, 1
    %v7341 = vmax.f32 %v7339, %v7340
    %v7342 = vmax.f32 %v6907, %v6911
    %v7343 = vmax.f32 %v7342, %v6917
    %v7344 = vmax.f32 %v7343, %v6921
    %v7345 = vmax.f32 %v7344, %v6927
    %v7346 = vmax.f32 %v7345, %v6931
    %v7347 = vmax.f32 %v7346, %v6937
    %v7348 = vmax.f32 %v7347, %v6941
    %v7349 = vmax.f32 %v7348, %v6947
    %v7350 = vmax.f32 %v7349, %v6951
    %v7351 = vmax.f32 %v7350, %v6957
    %v7352 = vmax.f32 %v7351, %v6961
    %v7353 = vmax.f32 %v7352, %v6967
    %v7354 = vmax.f32 %v7353, %v6971
    %v7355 = vmax.f32 %v7354, %v6977
    %v7356 = vmax.f32 %v7355, %v6981
    %v7357 = vrot.slane %v7356, 4
    %v7358 = vmax.f32 %v7356, %v7357
    %v7359 = vrot.slane %v7358, 2
    %v7360 = vmax.f32 %v7358, %v7359
    %v7361 = vrot.slane %v7360, 1
    %v7362 = vmax.f32 %v7360, %v7361
    %v7363 = vmax.f32 %v6909, %v6913
    %v7364 = vmax.f32 %v7363, %v6919
    %v7365 = vmax.f32 %v7364, %v6923
    %v7366 = vmax.f32 %v7365, %v6929
    %v7367 = vmax.f32 %v7366, %v6933
    %v7368 = vmax.f32 %v7367, %v6939
    %v7369 = vmax.f32 %v7368, %v6943
    %v7370 = vmax.f32 %v7369, %v6949
    %v7371 = vmax.f32 %v7370, %v6953
    %v7372 = vmax.f32 %v7371, %v6959
    %v7373 = vmax.f32 %v7372, %v6963
    %v7374 = vmax.f32 %v7373, %v6969
    %v7375 = vmax.f32 %v7374, %v6973
    %v7376 = vmax.f32 %v7375, %v6979
    %v7377 = vmax.f32 %v7376, %v6983
    %v7378 = vrot.slane %v7377, 4
    %v7379 = vmax.f32 %v7377, %v7378
    %v7380 = vrot.slane %v7379, 2
    %v7381 = vmax.f32 %v7379, %v7380
    %v7382 = vrot.slane %v7381, 1
    %v7383 = vmax.f32 %v7381, %v7382
    %v7384 = vmax.f32 %v7100, %v7104
    %v7385 = vmax.f32 %v7384, %v7110
    %v7386 = vmax.f32 %v7385, %v7114
    %v7387 = vmax.f32 %v7386, %v7120
    %v7388 = vmax.f32 %v7387, %v7124
    %v7389 = vmax.f32 %v7388, %v7130
    %v7390 = vmax.f32 %v7389, %v7134
    %v7391 = vmax.f32 %v7390, %v7140
    %v7392 = vmax.f32 %v7391, %v7144
    %v7393 = vmax.f32 %v7392, %v7150
    %v7394 = vmax.f32 %v7393, %v7154
    %v7395 = vmax.f32 %v7394, %v7160
    %v7396 = vmax.f32 %v7395, %v7164
    %v7397 = vmax.f32 %v7396, %v7170
    %v7398 = vmax.f32 %v7397, %v7174
    %v7399 = vrot.slane %v7398, 4
    %v7400 = vmax.f32 %v7398, %v7399
    %v7401 = vrot.slane %v7400, 2
    %v7402 = vmax.f32 %v7400, %v7401
    %v7403 = vrot.slane %v7402, 1
    %v7404 = vmax.f32 %v7402, %v7403
    %v7405 = vmax.f32 %v7102, %v7106
    %v7406 = vmax.f32 %v7405, %v7112
    %v7407 = vmax.f32 %v7406, %v7116
    %v7408 = vmax.f32 %v7407, %v7122
    %v7409 = vmax.f32 %v7408, %v7126
    %v7410 = vmax.f32 %v7409, %v7132
    %v7411 = vmax.f32 %v7410, %v7136
    %v7412 = vmax.f32 %v7411, %v7142
    %v7413 = vmax.f32 %v7412, %v7146
    %v7414 = vmax.f32 %v7413, %v7152
    %v7415 = vmax.f32 %v7414, %v7156
    %v7416 = vmax.f32 %v7415, %v7162
    %v7417 = vmax.f32 %v7416, %v7166
    %v7418 = vmax.f32 %v7417, %v7172
    %v7419 = vmax.f32 %v7418, %v7176
    %v7420 = vrot.slane %v7419, 4
    %v7421 = vmax.f32 %v7419, %v7420
    %v7422 = vrot.slane %v7421, 2
    %v7423 = vmax.f32 %v7421, %v7422
    %v7424 = vrot.slane %v7423, 1
    %v7425 = vmax.f32 %v7423, %v7424
    %v7426 = vmax.f32 %v6601, %v6605
    %v7427 = vmax.f32 %v7426, %v6611
    %v7428 = vmax.f32 %v7427, %v6615
    %v7429 = vmax.f32 %v7428, %v6621
    %v7430 = vmax.f32 %v7429, %v6625
    %v7431 = vmax.f32 %v7430, %v6631
    %v7432 = vmax.f32 %v7431, %v6635
    %v7433 = vmax.f32 %v7432, %v6641
    %v7434 = vmax.f32 %v7433, %v6645
    %v7435 = vmax.f32 %v7434, %v6651
    %v7436 = vmax.f32 %v7435, %v6655
    %v7437 = vmax.f32 %v7436, %v6661
    %v7438 = vmax.f32 %v7437, %v6665
    %v7439 = vmax.f32 %v7438, %v6671
    %v7440 = vmax.f32 %v7439, %v6675
    %v7441 = vrot.slane %v7440, 4
    %v7442 = vmax.f32 %v7440, %v7441
    %v7443 = vrot.slane %v7442, 2
    %v7444 = vmax.f32 %v7442, %v7443
    %v7445 = vrot.slane %v7444, 1
    %v7446 = vmax.f32 %v7444, %v7445
    %v7447 = vmax.f32 %v6603, %v6607
    %v7448 = vmax.f32 %v7447, %v6613
    %v7449 = vmax.f32 %v7448, %v6617
    %v7450 = vmax.f32 %v7449, %v6623
    %v7451 = vmax.f32 %v7450, %v6627
    %v7452 = vmax.f32 %v7451, %v6633
    %v7453 = vmax.f32 %v7452, %v6637
    %v7454 = vmax.f32 %v7453, %v6643
    %v7455 = vmax.f32 %v7454, %v6647
    %v7456 = vmax.f32 %v7455, %v6653
    %v7457 = vmax.f32 %v7456, %v6657
    %v7458 = vmax.f32 %v7457, %v6663
    %v7459 = vmax.f32 %v7458, %v6667
    %v7460 = vmax.f32 %v7459, %v6673
    %v7461 = vmax.f32 %v7460, %v6677
    %v7462 = vrot.slane %v7461, 4
    %v7463 = vmax.f32 %v7461, %v7462
    %v7464 = vrot.slane %v7463, 2
    %v7465 = vmax.f32 %v7463, %v7464
    %v7466 = vrot.slane %v7465, 1
    %v7467 = vmax.f32 %v7465, %v7466
    %v7468 = vmax.f32 %v6794, %v6798
    %v7469 = vmax.f32 %v7468, %v6804
    %v7470 = vmax.f32 %v7469, %v6808
    %v7471 = vmax.f32 %v7470, %v6814
    %v7472 = vmax.f32 %v7471, %v6818
    %v7473 = vmax.f32 %v7472, %v6824
    %v7474 = vmax.f32 %v7473, %v6828
    %v7475 = vmax.f32 %v7474, %v6834
    %v7476 = vmax.f32 %v7475, %v6838
    %v7477 = vmax.f32 %v7476, %v6844
    %v7478 = vmax.f32 %v7477, %v6848
    %v7479 = vmax.f32 %v7478, %v6854
    %v7480 = vmax.f32 %v7479, %v6858
    %v7481 = vmax.f32 %v7480, %v6864
    %v7482 = vmax.f32 %v7481, %v6868
    %v7483 = vrot.slane %v7482, 4
    %v7484 = vmax.f32 %v7482, %v7483
    %v7485 = vrot.slane %v7484, 2
    %v7486 = vmax.f32 %v7484, %v7485
    %v7487 = vrot.slane %v7486, 1
    %v7488 = vmax.f32 %v7486, %v7487
    %v7489 = vmax.f32 %v6796, %v6800
    %v7490 = vmax.f32 %v7489, %v6806
    %v7491 = vmax.f32 %v7490, %v6810
    %v7492 = vmax.f32 %v7491, %v6816
    %v7493 = vmax.f32 %v7492, %v6820
    %v7494 = vmax.f32 %v7493, %v6826
    %v7495 = vmax.f32 %v7494, %v6830
    %v7496 = vmax.f32 %v7495, %v6836
    %v7497 = vmax.f32 %v7496, %v6840
    %v7498 = vmax.f32 %v7497, %v6846
    %v7499 = vmax.f32 %v7498, %v6850
    %v7500 = vmax.f32 %v7499, %v6856
    %v7501 = vmax.f32 %v7500, %v6860
    %v7502 = vmax.f32 %v7501, %v6866
    %v7503 = vmax.f32 %v7502, %v6870
    %v7504 = vrot.slane %v7503, 4
    %v7505 = vmax.f32 %v7503, %v7504
    %v7506 = vrot.slane %v7505, 2
    %v7507 = vmax.f32 %v7505, %v7506
    %v7508 = vrot.slane %v7507, 1
    %v7509 = vmax.f32 %v7507, %v7508
    %v7510 = vmax.f32 %v6987, %v6991
    %v7511 = vmax.f32 %v7510, %v6997
    %v7512 = vmax.f32 %v7511, %v7001
    %v7513 = vmax.f32 %v7512, %v7007
    %v7514 = vmax.f32 %v7513, %v7011
    %v7515 = vmax.f32 %v7514, %v7017
    %v7516 = vmax.f32 %v7515, %v7021
    %v7517 = vmax.f32 %v7516, %v7027
    %v7518 = vmax.f32 %v7517, %v7031
    %v7519 = vmax.f32 %v7518, %v7037
    %v7520 = vmax.f32 %v7519, %v7041
    %v7521 = vmax.f32 %v7520, %v7047
    %v7522 = vmax.f32 %v7521, %v7051
    %v7523 = vmax.f32 %v7522, %v7057
    %v7524 = vmax.f32 %v7523, %v7061
    %v7525 = vrot.slane %v7524, 4
    %v7526 = vmax.f32 %v7524, %v7525
    %v7527 = vrot.slane %v7526, 2
    %v7528 = vmax.f32 %v7526, %v7527
    %v7529 = vrot.slane %v7528, 1
    %v7530 = vmax.f32 %v7528, %v7529
    %v7531 = vmax.f32 %v6989, %v6993
    %v7532 = vmax.f32 %v7531, %v6999
    %v7533 = vmax.f32 %v7532, %v7003
    %v7534 = vmax.f32 %v7533, %v7009
    %v7535 = vmax.f32 %v7534, %v7013
    %v7536 = vmax.f32 %v7535, %v7019
    %v7537 = vmax.f32 %v7536, %v7023
    %v7538 = vmax.f32 %v7537, %v7029
    %v7539 = vmax.f32 %v7538, %v7033
    %v7540 = vmax.f32 %v7539, %v7039
    %v7541 = vmax.f32 %v7540, %v7043
    %v7542 = vmax.f32 %v7541, %v7049
    %v7543 = vmax.f32 %v7542, %v7053
    %v7544 = vmax.f32 %v7543, %v7059
    %v7545 = vmax.f32 %v7544, %v7063
    %v7546 = vrot.slane %v7545, 4
    %v7547 = vmax.f32 %v7545, %v7546
    %v7548 = vrot.slane %v7547, 2
    %v7549 = vmax.f32 %v7547, %v7548
    %v7550 = vrot.slane %v7549, 1
    %v7551 = vmax.f32 %v7549, %v7550
    %v7552 = vmax.f32 %v7180, %v7184
    %v7553 = vmax.f32 %v7552, %v7190
    %v7554 = vmax.f32 %v7553, %v7194
    %v7555 = vmax.f32 %v7554, %v7200
    %v7556 = vmax.f32 %v7555, %v7204
    %v7557 = vmax.f32 %v7556, %v7210
    %v7558 = vmax.f32 %v7557, %v7214
    %v7559 = vmax.f32 %v7558, %v7220
    %v7560 = vmax.f32 %v7559, %v7224
    %v7561 = vmax.f32 %v7560, %v7230
    %v7562 = vmax.f32 %v7561, %v7234
    %v7563 = vmax.f32 %v7562, %v7240
    %v7564 = vmax.f32 %v7563, %v7244
    %v7565 = vmax.f32 %v7564, %v7250
    %v7566 = vmax.f32 %v7565, %v7254
    %v7567 = vrot.slane %v7566, 4
    %v7568 = vmax.f32 %v7566, %v7567
    %v7569 = vrot.slane %v7568, 2
    %v7570 = vmax.f32 %v7568, %v7569
    %v7571 = vrot.slane %v7570, 1
    %v7572 = vmax.f32 %v7570, %v7571
    %v7573 = vmax.f32 %v7182, %v7186
    %v7574 = vmax.f32 %v7573, %v7192
    %v7575 = vmax.f32 %v7574, %v7196
    %v7576 = vmax.f32 %v7575, %v7202
    %v7577 = vmax.f32 %v7576, %v7206
    %v7578 = vmax.f32 %v7577, %v7212
    %v7579 = vmax.f32 %v7578, %v7216
    %v7580 = vmax.f32 %v7579, %v7222
    %v7581 = vmax.f32 %v7580, %v7226
    %v7582 = vmax.f32 %v7581, %v7232
    %v7583 = vmax.f32 %v7582, %v7236
    %v7584 = vmax.f32 %v7583, %v7242
    %v7585 = vmax.f32 %v7584, %v7246
    %v7586 = vmax.f32 %v7585, %v7252
    %v7587 = vmax.f32 %v7586, %v7256
    %v7588 = vrot.slane %v7587, 4
    %v7589 = vmax.f32 %v7587, %v7588
    %v7590 = vrot.slane %v7589, 2
    %v7591 = vmax.f32 %v7589, %v7590
    %v7592 = vrot.slane %v7591, 1
    %v7593 = vmax.f32 %v7591, %v7592
    %v7594 = vsel %vm230, %v7278, %v7446
    %v7595 = vsel %vm230, %v7299, %v7467
    %v7596 = vsel %vm230, %v7320, %v7488
    %v7597 = vsel %vm230, %v7341, %v7509
    %v7598 = vsel %vm230, %v7362, %v7530
    %v7599 = vsel %vm230, %v7383, %v7551
    %v7600 = vsel %vm230, %v7404, %v7572
    %v7601 = vsel %vm230, %v7425, %v7593
    %v7610 = vcombine.low %v7594, %v7595
    %v7611 = vcombine.low %v7596, %v7597
    %v7613 = vunpack.c.l.s4 1983009808
    %v7614 = vunpack.c.0.s8 %v7613
    %v7615 = vlaneseq
    %v7616 = vshrl.u32 %v7615, 7
    %v7617 = vsub.s32 %v7614, %v7616
    %v7618 = vrot.slane %v7610, %v7617
    %v7620 = vunpack.c.l.s4 1983009808
    %v7621 = vunpack.c.0.s8 %v7620
    %v7622 = vlaneseq
    %v7623 = vshrl.u32 %v7622, 7
    %v7624 = vsub.s32 %v7621, %v7623
    %v7625 = vrot.slane %v7611, %v7624
    %v7626 = vcombine.low %v7618, %v7625
    %v7627 = vcombine.low %v7598, %v7599
    %v7628 = vcombine.low %v7600, %v7601
    %v7630 = vunpack.c.l.s4 1983009808
    %v7631 = vunpack.c.0.s8 %v7630
    %v7632 = vlaneseq
    %v7633 = vshrl.u32 %v7632, 7
    %v7634 = vsub.s32 %v7631, %v7633
    %v7635 = vrot.slane %v7627, %v7634
    %v7637 = vunpack.c.l.s4 1983009808
    %v7638 = vunpack.c.0.s8 %v7637
    %v7639 = vlaneseq
    %v7640 = vshrl.u32 %v7639, 7
    %v7641 = vsub.s32 %v7638, %v7640
    %v7642 = vrot.slane %v7628, %v7641
    %v7643 = vcombine.low %v7635, %v7642
    %7646 = vst [vmem:[%s59] sm:$0xff] %v7626
    %7647 = vst [vmem:[%s59 + $0x8] sm:$0xff] %v7643
    %v7648 = vpack.c.bf16 %v7594, %v7594
    %v7649 = vpack.c.bf16 %v7595, %v7595
    %v7650 = vpack.c.bf16 %v7596, %v7596
    %v7651 = vpack.c.bf16 %v7597, %v7597
    %v7652 = vpack.c.bf16 %v7598, %v7598
    %v7653 = vpack.c.bf16 %v7599, %v7599
    %v7654 = vpack.c.bf16 %v7600, %v7600
    %v7655 = vpack.c.bf16 %v7601, %v7601
    %v7656 = vld [vmem:[%s45] sm:$0xff]
    %v7657 = vld [vmem:[%s45 + $0x8] sm:$0xff]
    %v7658 = vld [vmem:[%s45 + $0x10] sm:$0xff]
    %v7659 = vld [vmem:[%s45 + $0x18] sm:$0xff]
    %v7660 = vld [vmem:[%s45 + $0x20] sm:$0xff]
    %v7661 = vld [vmem:[%s45 + $0x28] sm:$0xff]
    %v7662 = vld [vmem:[%s45 + $0x30] sm:$0xff]
    %v7663 = vld [vmem:[%s45 + $0x38] sm:$0xff]
    %v7664 = vld [vmem:[%s45 + $0x40] sm:$0xff]
    %v7665 = vld [vmem:[%s45 + $0x48] sm:$0xff]
    %v7666 = vld [vmem:[%s45 + $0x50] sm:$0xff]
    %v7667 = vld [vmem:[%s45 + $0x58] sm:$0xff]
    %v7668 = vld [vmem:[%s45 + $0x60] sm:$0xff]
    %v7669 = vld [vmem:[%s45 + $0x68] sm:$0xff]
    %v7670 = vld [vmem:[%s45 + $0x70] sm:$0xff]
    %v7671 = vld [vmem:[%s45 + $0x78] sm:$0xff]
    %v7672 = vld [vmem:[%s45 + $0x80] sm:$0xff]
    %v7673 = vld [vmem:[%s45 + $0x88] sm:$0xff]
    %v7674 = vld [vmem:[%s45 + $0x90] sm:$0xff]
    %v7675 = vld [vmem:[%s45 + $0x98] sm:$0xff]
    %v7676 = vld [vmem:[%s45 + $0xa0] sm:$0xff]
    %v7677 = vld [vmem:[%s45 + $0xa8] sm:$0xff]
    %v7678 = vld [vmem:[%s45 + $0xb0] sm:$0xff]
    %v7679 = vld [vmem:[%s45 + $0xb8] sm:$0xff]
    %v7680 = vld [vmem:[%s45 + $0xc0] sm:$0xff]
    %v7681 = vld [vmem:[%s45 + $0xc8] sm:$0xff]
    %v7682 = vld [vmem:[%s45 + $0xd0] sm:$0xff]
    %v7683 = vld [vmem:[%s45 + $0xd8] sm:$0xff]
    %v7684 = vld [vmem:[%s45 + $0xe0] sm:$0xff]
    %v7685 = vld [vmem:[%s45 + $0xe8] sm:$0xff]
    %v7686 = vld [vmem:[%s45 + $0xf0] sm:$0xff]
    %v7687 = vld [vmem:[%s45 + $0xf8] sm:$0xff]
    %v7688 = vld [vmem:[%s45 + $0x100] sm:$0xff]
    %v7689 = vld [vmem:[%s45 + $0x108] sm:$0xff]
    %v7690 = vld [vmem:[%s45 + $0x110] sm:$0xff]
    %v7691 = vld [vmem:[%s45 + $0x118] sm:$0xff]
    %v7692 = vld [vmem:[%s45 + $0x120] sm:$0xff]
    %v7693 = vld [vmem:[%s45 + $0x128] sm:$0xff]
    %v7694 = vld [vmem:[%s45 + $0x130] sm:$0xff]
    %v7695 = vld [vmem:[%s45 + $0x138] sm:$0xff]
    %v7696 = vld [vmem:[%s45 + $0x140] sm:$0xff]
    %v7697 = vld [vmem:[%s45 + $0x148] sm:$0xff]
    %v7698 = vld [vmem:[%s45 + $0x150] sm:$0xff]
    %v7699 = vld [vmem:[%s45 + $0x158] sm:$0xff]
    %v7700 = vld [vmem:[%s45 + $0x160] sm:$0xff]
    %v7701 = vld [vmem:[%s45 + $0x168] sm:$0xff]
    %v7702 = vld [vmem:[%s45 + $0x170] sm:$0xff]
    %v7703 = vld [vmem:[%s45 + $0x178] sm:$0xff]
    %v7704 = vld [vmem:[%s45 + $0x180] sm:$0xff]
    %v7705 = vld [vmem:[%s45 + $0x188] sm:$0xff]
    %v7706 = vld [vmem:[%s45 + $0x190] sm:$0xff]
    %v7707 = vld [vmem:[%s45 + $0x198] sm:$0xff]
    %v7708 = vld [vmem:[%s45 + $0x1a0] sm:$0xff]
    %v7709 = vld [vmem:[%s45 + $0x1a8] sm:$0xff]
    %v7710 = vld [vmem:[%s45 + $0x1b0] sm:$0xff]
    %v7711 = vld [vmem:[%s45 + $0x1b8] sm:$0xff]
    %v7712 = vld [vmem:[%s45 + $0x1c0] sm:$0xff]
    %v7713 = vld [vmem:[%s45 + $0x1c8] sm:$0xff]
    %v7714 = vld [vmem:[%s45 + $0x1d0] sm:$0xff]
    %v7715 = vld [vmem:[%s45 + $0x1d8] sm:$0xff]
    %v7716 = vld [vmem:[%s45 + $0x1e0] sm:$0xff]
    %v7717 = vld [vmem:[%s45 + $0x1e8] sm:$0xff]
    %v7718 = vld [vmem:[%s45 + $0x1f0] sm:$0xff]
    %v7719 = vld [vmem:[%s45 + $0x1f8] sm:$0xff]
    %v7720 = vld [vmem:[%s45 + $0x200] sm:$0xff]
    %v7721 = vld [vmem:[%s45 + $0x208] sm:$0xff]
    %v7722 = vld [vmem:[%s45 + $0x210] sm:$0xff]
    %v7723 = vld [vmem:[%s45 + $0x218] sm:$0xff]
    %v7724 = vld [vmem:[%s45 + $0x220] sm:$0xff]
    %v7725 = vld [vmem:[%s45 + $0x228] sm:$0xff]
    %v7726 = vld [vmem:[%s45 + $0x230] sm:$0xff]
    %v7727 = vld [vmem:[%s45 + $0x238] sm:$0xff]
    %v7728 = vld [vmem:[%s45 + $0x240] sm:$0xff]
    %v7729 = vld [vmem:[%s45 + $0x248] sm:$0xff]
    %v7730 = vld [vmem:[%s45 + $0x250] sm:$0xff]
    %v7731 = vld [vmem:[%s45 + $0x258] sm:$0xff]
    %v7732 = vld [vmem:[%s45 + $0x260] sm:$0xff]
    %v7733 = vld [vmem:[%s45 + $0x268] sm:$0xff]
    %v7734 = vld [vmem:[%s45 + $0x270] sm:$0xff]
    %v7735 = vld [vmem:[%s45 + $0x278] sm:$0xff]
    %v7736 = vld [vmem:[%s45 + $0x280] sm:$0xff]
    %v7737 = vld [vmem:[%s45 + $0x288] sm:$0xff]
    %v7738 = vld [vmem:[%s45 + $0x290] sm:$0xff]
    %v7739 = vld [vmem:[%s45 + $0x298] sm:$0xff]
    %v7740 = vld [vmem:[%s45 + $0x2a0] sm:$0xff]
    %v7741 = vld [vmem:[%s45 + $0x2a8] sm:$0xff]
    %v7742 = vld [vmem:[%s45 + $0x2b0] sm:$0xff]
    %v7743 = vld [vmem:[%s45 + $0x2b8] sm:$0xff]
    %v7744 = vld [vmem:[%s45 + $0x2c0] sm:$0xff]
    %v7745 = vld [vmem:[%s45 + $0x2c8] sm:$0xff]
    %v7746 = vld [vmem:[%s45 + $0x2d0] sm:$0xff]
    %v7747 = vld [vmem:[%s45 + $0x2d8] sm:$0xff]
    %v7748 = vld [vmem:[%s45 + $0x2e0] sm:$0xff]
    %v7749 = vld [vmem:[%s45 + $0x2e8] sm:$0xff]
    %v7750 = vld [vmem:[%s45 + $0x2f0] sm:$0xff]
    %v7751 = vld [vmem:[%s45 + $0x2f8] sm:$0xff]
    %v7752 = vld [vmem:[%s45 + $0x300] sm:$0xff]
    %v7753 = vld [vmem:[%s45 + $0x308] sm:$0xff]
    %v7754 = vld [vmem:[%s45 + $0x310] sm:$0xff]
    %v7755 = vld [vmem:[%s45 + $0x318] sm:$0xff]
    %v7756 = vld [vmem:[%s45 + $0x320] sm:$0xff]
    %v7757 = vld [vmem:[%s45 + $0x328] sm:$0xff]
    %v7758 = vld [vmem:[%s45 + $0x330] sm:$0xff]
    %v7759 = vld [vmem:[%s45 + $0x338] sm:$0xff]
    %v7760 = vld [vmem:[%s45 + $0x340] sm:$0xff]
    %v7761 = vld [vmem:[%s45 + $0x348] sm:$0xff]
    %v7762 = vld [vmem:[%s45 + $0x350] sm:$0xff]
    %v7763 = vld [vmem:[%s45 + $0x358] sm:$0xff]
    %v7764 = vld [vmem:[%s45 + $0x360] sm:$0xff]
    %v7765 = vld [vmem:[%s45 + $0x368] sm:$0xff]
    %v7766 = vld [vmem:[%s45 + $0x370] sm:$0xff]
    %v7767 = vld [vmem:[%s45 + $0x378] sm:$0xff]
    %v7768 = vld [vmem:[%s45 + $0x380] sm:$0xff]
    %v7769 = vld [vmem:[%s45 + $0x388] sm:$0xff]
    %v7770 = vld [vmem:[%s45 + $0x390] sm:$0xff]
    %v7771 = vld [vmem:[%s45 + $0x398] sm:$0xff]
    %v7772 = vld [vmem:[%s45 + $0x3a0] sm:$0xff]
    %v7773 = vld [vmem:[%s45 + $0x3a8] sm:$0xff]
    %v7774 = vld [vmem:[%s45 + $0x3b0] sm:$0xff]
    %v7775 = vld [vmem:[%s45 + $0x3b8] sm:$0xff]
    %v7776 = vld [vmem:[%s45 + $0x3c0] sm:$0xff]
    %v7777 = vld [vmem:[%s45 + $0x3c8] sm:$0xff]
    %v7778 = vld [vmem:[%s45 + $0x3d0] sm:$0xff]
    %v7779 = vld [vmem:[%s45 + $0x3d8] sm:$0xff]
    %v7780 = vld [vmem:[%s45 + $0x3e0] sm:$0xff]
    %v7781 = vld [vmem:[%s45 + $0x3e8] sm:$0xff]
    %v7782 = vld [vmem:[%s45 + $0x3f0] sm:$0xff]
    %v7783 = vld [vmem:[%s45 + $0x3f8] sm:$0xff]
    %v7784 = vld [vmem:[%s45 + $0x400] sm:$0xff]
    %v7785 = vld [vmem:[%s45 + $0x408] sm:$0xff]
    %v7786 = vld [vmem:[%s45 + $0x410] sm:$0xff]
    %v7787 = vld [vmem:[%s45 + $0x418] sm:$0xff]
    %v7788 = vld [vmem:[%s45 + $0x420] sm:$0xff]
    %v7789 = vld [vmem:[%s45 + $0x428] sm:$0xff]
    %v7790 = vld [vmem:[%s45 + $0x430] sm:$0xff]
    %v7791 = vld [vmem:[%s45 + $0x438] sm:$0xff]
    %v7792 = vld [vmem:[%s45 + $0x440] sm:$0xff]
    %v7793 = vld [vmem:[%s45 + $0x448] sm:$0xff]
    %v7794 = vld [vmem:[%s45 + $0x450] sm:$0xff]
    %v7795 = vld [vmem:[%s45 + $0x458] sm:$0xff]
    %v7796 = vld [vmem:[%s45 + $0x460] sm:$0xff]
    %v7797 = vld [vmem:[%s45 + $0x468] sm:$0xff]
    %v7798 = vld [vmem:[%s45 + $0x470] sm:$0xff]
    %v7799 = vld [vmem:[%s45 + $0x478] sm:$0xff]
    %v7800 = vld [vmem:[%s45 + $0x480] sm:$0xff]
    %v7801 = vld [vmem:[%s45 + $0x488] sm:$0xff]
    %v7802 = vld [vmem:[%s45 + $0x490] sm:$0xff]
    %v7803 = vld [vmem:[%s45 + $0x498] sm:$0xff]
    %v7804 = vld [vmem:[%s45 + $0x4a0] sm:$0xff]
    %v7805 = vld [vmem:[%s45 + $0x4a8] sm:$0xff]
    %v7806 = vld [vmem:[%s45 + $0x4b0] sm:$0xff]
    %v7807 = vld [vmem:[%s45 + $0x4b8] sm:$0xff]
    %v7808 = vld [vmem:[%s45 + $0x4c0] sm:$0xff]
    %v7809 = vld [vmem:[%s45 + $0x4c8] sm:$0xff]
    %v7810 = vld [vmem:[%s45 + $0x4d0] sm:$0xff]
    %v7811 = vld [vmem:[%s45 + $0x4d8] sm:$0xff]
    %v7812 = vld [vmem:[%s45 + $0x4e0] sm:$0xff]
    %v7813 = vld [vmem:[%s45 + $0x4e8] sm:$0xff]
    %v7814 = vld [vmem:[%s45 + $0x4f0] sm:$0xff]
    %v7815 = vld [vmem:[%s45 + $0x4f8] sm:$0xff]
    %v7816 = vld [vmem:[%s45 + $0x500] sm:$0xff]
    %v7817 = vld [vmem:[%s45 + $0x508] sm:$0xff]
    %v7818 = vld [vmem:[%s45 + $0x510] sm:$0xff]
    %v7819 = vld [vmem:[%s45 + $0x518] sm:$0xff]
    %v7820 = vld [vmem:[%s45 + $0x520] sm:$0xff]
    %v7821 = vld [vmem:[%s45 + $0x528] sm:$0xff]
    %v7822 = vld [vmem:[%s45 + $0x530] sm:$0xff]
    %v7823 = vld [vmem:[%s45 + $0x538] sm:$0xff]
    %v7824 = vld [vmem:[%s45 + $0x540] sm:$0xff]
    %v7825 = vld [vmem:[%s45 + $0x548] sm:$0xff]
    %v7826 = vld [vmem:[%s45 + $0x550] sm:$0xff]
    %v7827 = vld [vmem:[%s45 + $0x558] sm:$0xff]
    %v7828 = vld [vmem:[%s45 + $0x560] sm:$0xff]
    %v7829 = vld [vmem:[%s45 + $0x568] sm:$0xff]
    %v7830 = vld [vmem:[%s45 + $0x570] sm:$0xff]
    %v7831 = vld [vmem:[%s45 + $0x578] sm:$0xff]
    %v7832 = vld [vmem:[%s45 + $0x580] sm:$0xff]
    %v7833 = vld [vmem:[%s45 + $0x588] sm:$0xff]
    %v7834 = vld [vmem:[%s45 + $0x590] sm:$0xff]
    %v7835 = vld [vmem:[%s45 + $0x598] sm:$0xff]
    %v7836 = vld [vmem:[%s45 + $0x5a0] sm:$0xff]
    %v7837 = vld [vmem:[%s45 + $0x5a8] sm:$0xff]
    %v7838 = vld [vmem:[%s45 + $0x5b0] sm:$0xff]
    %v7839 = vld [vmem:[%s45 + $0x5b8] sm:$0xff]
    %v7840 = vld [vmem:[%s45 + $0x5c0] sm:$0xff]
    %v7841 = vld [vmem:[%s45 + $0x5c8] sm:$0xff]
    %v7842 = vld [vmem:[%s45 + $0x5d0] sm:$0xff]
    %v7843 = vld [vmem:[%s45 + $0x5d8] sm:$0xff]
    %v7844 = vld [vmem:[%s45 + $0x5e0] sm:$0xff]
    %v7845 = vld [vmem:[%s45 + $0x5e8] sm:$0xff]
    %v7846 = vld [vmem:[%s45 + $0x5f0] sm:$0xff]
    %v7847 = vld [vmem:[%s45 + $0x5f8] sm:$0xff]
    %v7848 = vld [vmem:[%s45 + $0x600] sm:$0xff]
    %v7849 = vld [vmem:[%s45 + $0x608] sm:$0xff]
    %v7850 = vld [vmem:[%s45 + $0x610] sm:$0xff]
    %v7851 = vld [vmem:[%s45 + $0x618] sm:$0xff]
    %v7852 = vld [vmem:[%s45 + $0x620] sm:$0xff]
    %v7853 = vld [vmem:[%s45 + $0x628] sm:$0xff]
    %v7854 = vld [vmem:[%s45 + $0x630] sm:$0xff]
    %v7855 = vld [vmem:[%s45 + $0x638] sm:$0xff]
    %v7856 = vld [vmem:[%s45 + $0x640] sm:$0xff]
    %v7857 = vld [vmem:[%s45 + $0x648] sm:$0xff]
    %v7858 = vld [vmem:[%s45 + $0x650] sm:$0xff]
    %v7859 = vld [vmem:[%s45 + $0x658] sm:$0xff]
    %v7860 = vld [vmem:[%s45 + $0x660] sm:$0xff]
    %v7861 = vld [vmem:[%s45 + $0x668] sm:$0xff]
    %v7862 = vld [vmem:[%s45 + $0x670] sm:$0xff]
    %v7863 = vld [vmem:[%s45 + $0x678] sm:$0xff]
    %v7864 = vld [vmem:[%s45 + $0x680] sm:$0xff]
    %v7865 = vld [vmem:[%s45 + $0x688] sm:$0xff]
    %v7866 = vld [vmem:[%s45 + $0x690] sm:$0xff]
    %v7867 = vld [vmem:[%s45 + $0x698] sm:$0xff]
    %v7868 = vld [vmem:[%s45 + $0x6a0] sm:$0xff]
    %v7869 = vld [vmem:[%s45 + $0x6a8] sm:$0xff]
    %v7870 = vld [vmem:[%s45 + $0x6b0] sm:$0xff]
    %v7871 = vld [vmem:[%s45 + $0x6b8] sm:$0xff]
    %v7872 = vld [vmem:[%s45 + $0x6c0] sm:$0xff]
    %v7873 = vld [vmem:[%s45 + $0x6c8] sm:$0xff]
    %v7874 = vld [vmem:[%s45 + $0x6d0] sm:$0xff]
    %v7875 = vld [vmem:[%s45 + $0x6d8] sm:$0xff]
    %v7876 = vld [vmem:[%s45 + $0x6e0] sm:$0xff]
    %v7877 = vld [vmem:[%s45 + $0x6e8] sm:$0xff]
    %v7878 = vld [vmem:[%s45 + $0x6f0] sm:$0xff]
    %v7879 = vld [vmem:[%s45 + $0x6f8] sm:$0xff]
    %v7880 = vld [vmem:[%s45 + $0x700] sm:$0xff]
    %v7881 = vld [vmem:[%s45 + $0x708] sm:$0xff]
    %v7882 = vld [vmem:[%s45 + $0x710] sm:$0xff]
    %v7883 = vld [vmem:[%s45 + $0x718] sm:$0xff]
    %v7884 = vld [vmem:[%s45 + $0x720] sm:$0xff]
    %v7885 = vld [vmem:[%s45 + $0x728] sm:$0xff]
    %v7886 = vld [vmem:[%s45 + $0x730] sm:$0xff]
    %v7887 = vld [vmem:[%s45 + $0x738] sm:$0xff]
    %v7888 = vld [vmem:[%s45 + $0x740] sm:$0xff]
    %v7889 = vld [vmem:[%s45 + $0x748] sm:$0xff]
    %v7890 = vld [vmem:[%s45 + $0x750] sm:$0xff]
    %v7891 = vld [vmem:[%s45 + $0x758] sm:$0xff]
    %v7892 = vld [vmem:[%s45 + $0x760] sm:$0xff]
    %v7893 = vld [vmem:[%s45 + $0x768] sm:$0xff]
    %v7894 = vld [vmem:[%s45 + $0x770] sm:$0xff]
    %v7895 = vld [vmem:[%s45 + $0x778] sm:$0xff]
    %v7896 = vld [vmem:[%s45 + $0x780] sm:$0xff]
    %v7897 = vld [vmem:[%s45 + $0x788] sm:$0xff]
    %v7898 = vld [vmem:[%s45 + $0x790] sm:$0xff]
    %v7899 = vld [vmem:[%s45 + $0x798] sm:$0xff]
    %v7900 = vld [vmem:[%s45 + $0x7a0] sm:$0xff]
    %v7901 = vld [vmem:[%s45 + $0x7a8] sm:$0xff]
    %v7902 = vld [vmem:[%s45 + $0x7b0] sm:$0xff]
    %v7903 = vld [vmem:[%s45 + $0x7b8] sm:$0xff]
    %v7904 = vld [vmem:[%s45 + $0x7c0] sm:$0xff]
    %v7905 = vld [vmem:[%s45 + $0x7c8] sm:$0xff]
    %v7906 = vld [vmem:[%s45 + $0x7d0] sm:$0xff]
    %v7907 = vld [vmem:[%s45 + $0x7d8] sm:$0xff]
    %v7908 = vld [vmem:[%s45 + $0x7e0] sm:$0xff]
    %v7909 = vld [vmem:[%s45 + $0x7e8] sm:$0xff]
    %v7910 = vld [vmem:[%s45 + $0x7f0] sm:$0xff]
    %v7911 = vld [vmem:[%s45 + $0x7f8] sm:$0xff]
    %v7912 = vld [vmem:[%s47] sm:$0xf]
    %v7914 = vlaneseq
    %v7915 = vshrl.u32 %v7914, 7
    %v7916 = vsub.s32 0, %v7915
    %v7917 = vrot.slane %v7912, %v7916
    %v7918 = vlaneseq
    %v7919 = vshrl.u32 %v7918, 7
    %v7920 = vsub.s32 1, %v7919
    %v7921 = vrot.slane %v7912, %v7920
    %v7922 = vlaneseq
    %v7923 = vshrl.u32 %v7922, 7
    %v7924 = vsub.s32 2, %v7923
    %v7925 = vrot.slane %v7912, %v7924
    %v7926 = vlaneseq
    %v7927 = vshrl.u32 %v7926, 7
    %v7928 = vsub.s32 3, %v7927
    %v7929 = vrot.slane %v7912, %v7928
    %v8190 = vunpack.c.l.b16 %v7656
    %v8191 = vunpack.c.h.b16 %v7656
    %v8192 = vunpack.c.l.b16 %v7657
    %v8193 = vunpack.c.h.b16 %v7657
    %v8194 = vunpack.c.l.b16 %v7658
    %v8195 = vunpack.c.h.b16 %v7658
    %v8196 = vunpack.c.l.b16 %v7659
    %v8197 = vunpack.c.h.b16 %v7659
    %v8198 = vunpack.c.l.b16 %v7660
    %v8199 = vunpack.c.h.b16 %v7660
    %v8200 = vunpack.c.l.b16 %v7661
    %v8201 = vunpack.c.h.b16 %v7661
    %v8202 = vunpack.c.l.b16 %v7662
    %v8203 = vunpack.c.h.b16 %v7662
    %v8204 = vunpack.c.l.b16 %v7663
    %v8205 = vunpack.c.h.b16 %v7663
    %v8206 = vunpack.c.l.b16 %v7664
    %v8207 = vunpack.c.h.b16 %v7664
    %v8208 = vunpack.c.l.b16 %v7665
    %v8209 = vunpack.c.h.b16 %v7665
    %v8210 = vunpack.c.l.b16 %v7666
    %v8211 = vunpack.c.h.b16 %v7666
    %v8212 = vunpack.c.l.b16 %v7667
    %v8213 = vunpack.c.h.b16 %v7667
    %v8214 = vunpack.c.l.b16 %v7668
    %v8215 = vunpack.c.h.b16 %v7668
    %v8216 = vunpack.c.l.b16 %v7669
    %v8217 = vunpack.c.h.b16 %v7669
    %v8218 = vunpack.c.l.b16 %v7670
    %v8219 = vunpack.c.h.b16 %v7670
    %v8220 = vunpack.c.l.b16 %v7671
    %v8221 = vunpack.c.h.b16 %v7671
    %v8222 = vunpack.c.l.b16 %v7672
    %v8223 = vunpack.c.h.b16 %v7672
    %v8224 = vunpack.c.l.b16 %v7673
    %v8225 = vunpack.c.h.b16 %v7673
    %v8226 = vunpack.c.l.b16 %v7674
    %v8227 = vunpack.c.h.b16 %v7674
    %v8228 = vunpack.c.l.b16 %v7675
    %v8229 = vunpack.c.h.b16 %v7675
    %v8230 = vunpack.c.l.b16 %v7676
    %v8231 = vunpack.c.h.b16 %v7676
    %v8232 = vunpack.c.l.b16 %v7677
    %v8233 = vunpack.c.h.b16 %v7677
    %v8234 = vunpack.c.l.b16 %v7678
    %v8235 = vunpack.c.h.b16 %v7678
    %v8236 = vunpack.c.l.b16 %v7679
    %v8237 = vunpack.c.h.b16 %v7679
    %v8238 = vunpack.c.l.b16 %v7680
    %v8239 = vunpack.c.h.b16 %v7680
    %v8240 = vunpack.c.l.b16 %v7681
    %v8241 = vunpack.c.h.b16 %v7681
    %v8242 = vunpack.c.l.b16 %v7682
    %v8243 = vunpack.c.h.b16 %v7682
    %v8244 = vunpack.c.l.b16 %v7683
    %v8245 = vunpack.c.h.b16 %v7683
    %v8246 = vunpack.c.l.b16 %v7684
    %v8247 = vunpack.c.h.b16 %v7684
    %v8248 = vunpack.c.l.b16 %v7685
    %v8249 = vunpack.c.h.b16 %v7685
    %v8250 = vunpack.c.l.b16 %v7686
    %v8251 = vunpack.c.h.b16 %v7686
    %v8252 = vunpack.c.l.b16 %v7687
    %v8253 = vunpack.c.h.b16 %v7687
    %v8254 = vunpack.c.l.b16 %v7688
    %v8255 = vunpack.c.h.b16 %v7688
    %v8256 = vunpack.c.l.b16 %v7689
    %v8257 = vunpack.c.h.b16 %v7689
    %v8258 = vunpack.c.l.b16 %v7690
    %v8259 = vunpack.c.h.b16 %v7690
    %v8260 = vunpack.c.l.b16 %v7691
    %v8261 = vunpack.c.h.b16 %v7691
    %v8262 = vunpack.c.l.b16 %v7692
    %v8263 = vunpack.c.h.b16 %v7692
    %v8264 = vunpack.c.l.b16 %v7693
    %v8265 = vunpack.c.h.b16 %v7693
    %v8266 = vunpack.c.l.b16 %v7694
    %v8267 = vunpack.c.h.b16 %v7694
    %v8268 = vunpack.c.l.b16 %v7695
    %v8269 = vunpack.c.h.b16 %v7695
    %v8270 = vunpack.c.l.b16 %v7696
    %v8271 = vunpack.c.h.b16 %v7696
    %v8272 = vunpack.c.l.b16 %v7697
    %v8273 = vunpack.c.h.b16 %v7697
    %v8274 = vunpack.c.l.b16 %v7698
    %v8275 = vunpack.c.h.b16 %v7698
    %v8276 = vunpack.c.l.b16 %v7699
    %v8277 = vunpack.c.h.b16 %v7699
    %v8278 = vunpack.c.l.b16 %v7700
    %v8279 = vunpack.c.h.b16 %v7700
    %v8280 = vunpack.c.l.b16 %v7701
    %v8281 = vunpack.c.h.b16 %v7701
    %v8282 = vunpack.c.l.b16 %v7702
    %v8283 = vunpack.c.h.b16 %v7702
    %v8284 = vunpack.c.l.b16 %v7703
    %v8285 = vunpack.c.h.b16 %v7703
    %v8286 = vunpack.c.l.b16 %v7704
    %v8287 = vunpack.c.h.b16 %v7704
    %v8288 = vunpack.c.l.b16 %v7705
    %v8289 = vunpack.c.h.b16 %v7705
    %v8290 = vunpack.c.l.b16 %v7706
    %v8291 = vunpack.c.h.b16 %v7706
    %v8292 = vunpack.c.l.b16 %v7707
    %v8293 = vunpack.c.h.b16 %v7707
    %v8294 = vunpack.c.l.b16 %v7708
    %v8295 = vunpack.c.h.b16 %v7708
    %v8296 = vunpack.c.l.b16 %v7709
    %v8297 = vunpack.c.h.b16 %v7709
    %v8298 = vunpack.c.l.b16 %v7710
    %v8299 = vunpack.c.h.b16 %v7710
    %v8300 = vunpack.c.l.b16 %v7711
    %v8301 = vunpack.c.h.b16 %v7711
    %v8302 = vunpack.c.l.b16 %v7712
    %v8303 = vunpack.c.h.b16 %v7712
    %v8304 = vunpack.c.l.b16 %v7713
    %v8305 = vunpack.c.h.b16 %v7713
    %v8306 = vunpack.c.l.b16 %v7714
    %v8307 = vunpack.c.h.b16 %v7714
    %v8308 = vunpack.c.l.b16 %v7715
    %v8309 = vunpack.c.h.b16 %v7715
    %v8310 = vunpack.c.l.b16 %v7716
    %v8311 = vunpack.c.h.b16 %v7716
    %v8312 = vunpack.c.l.b16 %v7717
    %v8313 = vunpack.c.h.b16 %v7717
    %v8314 = vunpack.c.l.b16 %v7718
    %v8315 = vunpack.c.h.b16 %v7718
    %v8316 = vunpack.c.l.b16 %v7719
    %v8317 = vunpack.c.h.b16 %v7719
    %v8318 = vunpack.c.l.b16 %v7720
    %v8319 = vunpack.c.h.b16 %v7720
    %v8320 = vunpack.c.l.b16 %v7721
    %v8321 = vunpack.c.h.b16 %v7721
    %v8322 = vunpack.c.l.b16 %v7722
    %v8323 = vunpack.c.h.b16 %v7722
    %v8324 = vunpack.c.l.b16 %v7723
    %v8325 = vunpack.c.h.b16 %v7723
    %v8326 = vunpack.c.l.b16 %v7724
    %v8327 = vunpack.c.h.b16 %v7724
    %v8328 = vunpack.c.l.b16 %v7725
    %v8329 = vunpack.c.h.b16 %v7725
    %v8330 = vunpack.c.l.b16 %v7726
    %v8331 = vunpack.c.h.b16 %v7726
    %v8332 = vunpack.c.l.b16 %v7727
    %v8333 = vunpack.c.h.b16 %v7727
    %v8334 = vunpack.c.l.b16 %v7728
    %v8335 = vunpack.c.h.b16 %v7728
    %v8336 = vunpack.c.l.b16 %v7729
    %v8337 = vunpack.c.h.b16 %v7729
    %v8338 = vunpack.c.l.b16 %v7730
    %v8339 = vunpack.c.h.b16 %v7730
    %v8340 = vunpack.c.l.b16 %v7731
    %v8341 = vunpack.c.h.b16 %v7731
    %v8342 = vunpack.c.l.b16 %v7732
    %v8343 = vunpack.c.h.b16 %v7732
    %v8344 = vunpack.c.l.b16 %v7733
    %v8345 = vunpack.c.h.b16 %v7733
    %v8346 = vunpack.c.l.b16 %v7734
    %v8347 = vunpack.c.h.b16 %v7734
    %v8348 = vunpack.c.l.b16 %v7735
    %v8349 = vunpack.c.h.b16 %v7735
    %v8350 = vunpack.c.l.b16 %v7736
    %v8351 = vunpack.c.h.b16 %v7736
    %v8352 = vunpack.c.l.b16 %v7737
    %v8353 = vunpack.c.h.b16 %v7737
    %v8354 = vunpack.c.l.b16 %v7738
    %v8355 = vunpack.c.h.b16 %v7738
    %v8356 = vunpack.c.l.b16 %v7739
    %v8357 = vunpack.c.h.b16 %v7739
    %v8358 = vunpack.c.l.b16 %v7740
    %v8359 = vunpack.c.h.b16 %v7740
    %v8360 = vunpack.c.l.b16 %v7741
    %v8361 = vunpack.c.h.b16 %v7741
    %v8362 = vunpack.c.l.b16 %v7742
    %v8363 = vunpack.c.h.b16 %v7742
    %v8364 = vunpack.c.l.b16 %v7743
    %v8365 = vunpack.c.h.b16 %v7743
    %v8366 = vunpack.c.l.b16 %v7744
    %v8367 = vunpack.c.h.b16 %v7744
    %v8368 = vunpack.c.l.b16 %v7745
    %v8369 = vunpack.c.h.b16 %v7745
    %v8370 = vunpack.c.l.b16 %v7746
    %v8371 = vunpack.c.h.b16 %v7746
    %v8372 = vunpack.c.l.b16 %v7747
    %v8373 = vunpack.c.h.b16 %v7747
    %v8374 = vunpack.c.l.b16 %v7748
    %v8375 = vunpack.c.h.b16 %v7748
    %v8376 = vunpack.c.l.b16 %v7749
    %v8377 = vunpack.c.h.b16 %v7749
    %v8378 = vunpack.c.l.b16 %v7750
    %v8379 = vunpack.c.h.b16 %v7750
    %v8380 = vunpack.c.l.b16 %v7751
    %v8381 = vunpack.c.h.b16 %v7751
    %v8382 = vunpack.c.l.b16 %v7752
    %v8383 = vunpack.c.h.b16 %v7752
    %v8384 = vunpack.c.l.b16 %v7753
    %v8385 = vunpack.c.h.b16 %v7753
    %v8386 = vunpack.c.l.b16 %v7754
    %v8387 = vunpack.c.h.b16 %v7754
    %v8388 = vunpack.c.l.b16 %v7755
    %v8389 = vunpack.c.h.b16 %v7755
    %v8390 = vunpack.c.l.b16 %v7756
    %v8391 = vunpack.c.h.b16 %v7756
    %v8392 = vunpack.c.l.b16 %v7757
    %v8393 = vunpack.c.h.b16 %v7757
    %v8394 = vunpack.c.l.b16 %v7758
    %v8395 = vunpack.c.h.b16 %v7758
    %v8396 = vunpack.c.l.b16 %v7759
    %v8397 = vunpack.c.h.b16 %v7759
    %v8398 = vunpack.c.l.b16 %v7760
    %v8399 = vunpack.c.h.b16 %v7760
    %v8400 = vunpack.c.l.b16 %v7761
    %v8401 = vunpack.c.h.b16 %v7761
    %v8402 = vunpack.c.l.b16 %v7762
    %v8403 = vunpack.c.h.b16 %v7762
    %v8404 = vunpack.c.l.b16 %v7763
    %v8405 = vunpack.c.h.b16 %v7763
    %v8406 = vunpack.c.l.b16 %v7764
    %v8407 = vunpack.c.h.b16 %v7764
    %v8408 = vunpack.c.l.b16 %v7765
    %v8409 = vunpack.c.h.b16 %v7765
    %v8410 = vunpack.c.l.b16 %v7766
    %v8411 = vunpack.c.h.b16 %v7766
    %v8412 = vunpack.c.l.b16 %v7767
    %v8413 = vunpack.c.h.b16 %v7767
    %v8414 = vunpack.c.l.b16 %v7768
    %v8415 = vunpack.c.h.b16 %v7768
    %v8416 = vunpack.c.l.b16 %v7769
    %v8417 = vunpack.c.h.b16 %v7769
    %v8418 = vunpack.c.l.b16 %v7770
    %v8419 = vunpack.c.h.b16 %v7770
    %v8420 = vunpack.c.l.b16 %v7771
    %v8421 = vunpack.c.h.b16 %v7771
    %v8422 = vunpack.c.l.b16 %v7772
    %v8423 = vunpack.c.h.b16 %v7772
    %v8424 = vunpack.c.l.b16 %v7773
    %v8425 = vunpack.c.h.b16 %v7773
    %v8426 = vunpack.c.l.b16 %v7774
    %v8427 = vunpack.c.h.b16 %v7774
    %v8428 = vunpack.c.l.b16 %v7775
    %v8429 = vunpack.c.h.b16 %v7775
    %v8430 = vunpack.c.l.b16 %v7776
    %v8431 = vunpack.c.h.b16 %v7776
    %v8432 = vunpack.c.l.b16 %v7777
    %v8433 = vunpack.c.h.b16 %v7777
    %v8434 = vunpack.c.l.b16 %v7778
    %v8435 = vunpack.c.h.b16 %v7778
    %v8436 = vunpack.c.l.b16 %v7779
    %v8437 = vunpack.c.h.b16 %v7779
    %v8438 = vunpack.c.l.b16 %v7780
    %v8439 = vunpack.c.h.b16 %v7780
    %v8440 = vunpack.c.l.b16 %v7781
    %v8441 = vunpack.c.h.b16 %v7781
    %v8442 = vunpack.c.l.b16 %v7782
    %v8443 = vunpack.c.h.b16 %v7782
    %v8444 = vunpack.c.l.b16 %v7783
    %v8445 = vunpack.c.h.b16 %v7783
    %v8446 = vunpack.c.l.b16 %v7784
    %v8447 = vunpack.c.h.b16 %v7784
    %v8448 = vunpack.c.l.b16 %v7785
    %v8449 = vunpack.c.h.b16 %v7785
    %v8450 = vunpack.c.l.b16 %v7786
    %v8451 = vunpack.c.h.b16 %v7786
    %v8452 = vunpack.c.l.b16 %v7787
    %v8453 = vunpack.c.h.b16 %v7787
    %v8454 = vunpack.c.l.b16 %v7788
    %v8455 = vunpack.c.h.b16 %v7788
    %v8456 = vunpack.c.l.b16 %v7789
    %v8457 = vunpack.c.h.b16 %v7789
    %v8458 = vunpack.c.l.b16 %v7790
    %v8459 = vunpack.c.h.b16 %v7790
    %v8460 = vunpack.c.l.b16 %v7791
    %v8461 = vunpack.c.h.b16 %v7791
    %v8462 = vunpack.c.l.b16 %v7792
    %v8463 = vunpack.c.h.b16 %v7792
    %v8464 = vunpack.c.l.b16 %v7793
    %v8465 = vunpack.c.h.b16 %v7793
    %v8466 = vunpack.c.l.b16 %v7794
    %v8467 = vunpack.c.h.b16 %v7794
    %v8468 = vunpack.c.l.b16 %v7795
    %v8469 = vunpack.c.h.b16 %v7795
    %v8470 = vunpack.c.l.b16 %v7796
    %v8471 = vunpack.c.h.b16 %v7796
    %v8472 = vunpack.c.l.b16 %v7797
    %v8473 = vunpack.c.h.b16 %v7797
    %v8474 = vunpack.c.l.b16 %v7798
    %v8475 = vunpack.c.h.b16 %v7798
    %v8476 = vunpack.c.l.b16 %v7799
    %v8477 = vunpack.c.h.b16 %v7799
    %v8478 = vunpack.c.l.b16 %v7800
    %v8479 = vunpack.c.h.b16 %v7800
    %v8480 = vunpack.c.l.b16 %v7801
    %v8481 = vunpack.c.h.b16 %v7801
    %v8482 = vunpack.c.l.b16 %v7802
    %v8483 = vunpack.c.h.b16 %v7802
    %v8484 = vunpack.c.l.b16 %v7803
    %v8485 = vunpack.c.h.b16 %v7803
    %v8486 = vunpack.c.l.b16 %v7804
    %v8487 = vunpack.c.h.b16 %v7804
    %v8488 = vunpack.c.l.b16 %v7805
    %v8489 = vunpack.c.h.b16 %v7805
    %v8490 = vunpack.c.l.b16 %v7806
    %v8491 = vunpack.c.h.b16 %v7806
    %v8492 = vunpack.c.l.b16 %v7807
    %v8493 = vunpack.c.h.b16 %v7807
    %v8494 = vunpack.c.l.b16 %v7808
    %v8495 = vunpack.c.h.b16 %v7808
    %v8496 = vunpack.c.l.b16 %v7809
    %v8497 = vunpack.c.h.b16 %v7809
    %v8498 = vunpack.c.l.b16 %v7810
    %v8499 = vunpack.c.h.b16 %v7810
    %v8500 = vunpack.c.l.b16 %v7811
    %v8501 = vunpack.c.h.b16 %v7811
    %v8502 = vunpack.c.l.b16 %v7812
    %v8503 = vunpack.c.h.b16 %v7812
    %v8504 = vunpack.c.l.b16 %v7813
    %v8505 = vunpack.c.h.b16 %v7813
    %v8506 = vunpack.c.l.b16 %v7814
    %v8507 = vunpack.c.h.b16 %v7814
    %v8508 = vunpack.c.l.b16 %v7815
    %v8509 = vunpack.c.h.b16 %v7815
    %v8510 = vunpack.c.l.b16 %v7816
    %v8511 = vunpack.c.h.b16 %v7816
    %v8512 = vunpack.c.l.b16 %v7817
    %v8513 = vunpack.c.h.b16 %v7817
    %v8514 = vunpack.c.l.b16 %v7818
    %v8515 = vunpack.c.h.b16 %v7818
    %v8516 = vunpack.c.l.b16 %v7819
    %v8517 = vunpack.c.h.b16 %v7819
    %v8518 = vunpack.c.l.b16 %v7820
    %v8519 = vunpack.c.h.b16 %v7820
    %v8520 = vunpack.c.l.b16 %v7821
    %v8521 = vunpack.c.h.b16 %v7821
    %v8522 = vunpack.c.l.b16 %v7822
    %v8523 = vunpack.c.h.b16 %v7822
    %v8524 = vunpack.c.l.b16 %v7823
    %v8525 = vunpack.c.h.b16 %v7823
    %v8526 = vunpack.c.l.b16 %v7824
    %v8527 = vunpack.c.h.b16 %v7824
    %v8528 = vunpack.c.l.b16 %v7825
    %v8529 = vunpack.c.h.b16 %v7825
    %v8530 = vunpack.c.l.b16 %v7826
    %v8531 = vunpack.c.h.b16 %v7826
    %v8532 = vunpack.c.l.b16 %v7827
    %v8533 = vunpack.c.h.b16 %v7827
    %v8534 = vunpack.c.l.b16 %v7828
    %v8535 = vunpack.c.h.b16 %v7828
    %v8536 = vunpack.c.l.b16 %v7829
    %v8537 = vunpack.c.h.b16 %v7829
    %v8538 = vunpack.c.l.b16 %v7830
    %v8539 = vunpack.c.h.b16 %v7830
    %v8540 = vunpack.c.l.b16 %v7831
    %v8541 = vunpack.c.h.b16 %v7831
    %v8542 = vunpack.c.l.b16 %v7832
    %v8543 = vunpack.c.h.b16 %v7832
    %v8544 = vunpack.c.l.b16 %v7833
    %v8545 = vunpack.c.h.b16 %v7833
    %v8546 = vunpack.c.l.b16 %v7834
    %v8547 = vunpack.c.h.b16 %v7834
    %v8548 = vunpack.c.l.b16 %v7835
    %v8549 = vunpack.c.h.b16 %v7835
    %v8550 = vunpack.c.l.b16 %v7836
    %v8551 = vunpack.c.h.b16 %v7836
    %v8552 = vunpack.c.l.b16 %v7837
    %v8553 = vunpack.c.h.b16 %v7837
    %v8554 = vunpack.c.l.b16 %v7838
    %v8555 = vunpack.c.h.b16 %v7838
    %v8556 = vunpack.c.l.b16 %v7839
    %v8557 = vunpack.c.h.b16 %v7839
    %v8558 = vunpack.c.l.b16 %v7840
    %v8559 = vunpack.c.h.b16 %v7840
    %v8560 = vunpack.c.l.b16 %v7841
    %v8561 = vunpack.c.h.b16 %v7841
    %v8562 = vunpack.c.l.b16 %v7842
    %v8563 = vunpack.c.h.b16 %v7842
    %v8564 = vunpack.c.l.b16 %v7843
    %v8565 = vunpack.c.h.b16 %v7843
    %v8566 = vunpack.c.l.b16 %v7844
    %v8567 = vunpack.c.h.b16 %v7844
    %v8568 = vunpack.c.l.b16 %v7845
    %v8569 = vunpack.c.h.b16 %v7845
    %v8570 = vunpack.c.l.b16 %v7846
    %v8571 = vunpack.c.h.b16 %v7846
    %v8572 = vunpack.c.l.b16 %v7847
    %v8573 = vunpack.c.h.b16 %v7847
    %v8574 = vunpack.c.l.b16 %v7848
    %v8575 = vunpack.c.h.b16 %v7848
    %v8576 = vunpack.c.l.b16 %v7849
    %v8577 = vunpack.c.h.b16 %v7849
    %v8578 = vunpack.c.l.b16 %v7850
    %v8579 = vunpack.c.h.b16 %v7850
    %v8580 = vunpack.c.l.b16 %v7851
    %v8581 = vunpack.c.h.b16 %v7851
    %v8582 = vunpack.c.l.b16 %v7852
    %v8583 = vunpack.c.h.b16 %v7852
    %v8584 = vunpack.c.l.b16 %v7853
    %v8585 = vunpack.c.h.b16 %v7853
    %v8586 = vunpack.c.l.b16 %v7854
    %v8587 = vunpack.c.h.b16 %v7854
    %v8588 = vunpack.c.l.b16 %v7855
    %v8589 = vunpack.c.h.b16 %v7855
    %v8590 = vunpack.c.l.b16 %v7856
    %v8591 = vunpack.c.h.b16 %v7856
    %v8592 = vunpack.c.l.b16 %v7857
    %v8593 = vunpack.c.h.b16 %v7857
    %v8594 = vunpack.c.l.b16 %v7858
    %v8595 = vunpack.c.h.b16 %v7858
    %v8596 = vunpack.c.l.b16 %v7859
    %v8597 = vunpack.c.h.b16 %v7859
    %v8598 = vunpack.c.l.b16 %v7860
    %v8599 = vunpack.c.h.b16 %v7860
    %v8600 = vunpack.c.l.b16 %v7861
    %v8601 = vunpack.c.h.b16 %v7861
    %v8602 = vunpack.c.l.b16 %v7862
    %v8603 = vunpack.c.h.b16 %v7862
    %v8604 = vunpack.c.l.b16 %v7863
    %v8605 = vunpack.c.h.b16 %v7863
    %v8606 = vunpack.c.l.b16 %v7864
    %v8607 = vunpack.c.h.b16 %v7864
    %v8608 = vunpack.c.l.b16 %v7865
    %v8609 = vunpack.c.h.b16 %v7865
    %v8610 = vunpack.c.l.b16 %v7866
    %v8611 = vunpack.c.h.b16 %v7866
    %v8612 = vunpack.c.l.b16 %v7867
    %v8613 = vunpack.c.h.b16 %v7867
    %v8614 = vunpack.c.l.b16 %v7868
    %v8615 = vunpack.c.h.b16 %v7868
    %v8616 = vunpack.c.l.b16 %v7869
    %v8617 = vunpack.c.h.b16 %v7869
    %v8618 = vunpack.c.l.b16 %v7870
    %v8619 = vunpack.c.h.b16 %v7870
    %v8620 = vunpack.c.l.b16 %v7871
    %v8621 = vunpack.c.h.b16 %v7871
    %v8622 = vunpack.c.l.b16 %v7872
    %v8623 = vunpack.c.h.b16 %v7872
    %v8624 = vunpack.c.l.b16 %v7873
    %v8625 = vunpack.c.h.b16 %v7873
    %v8626 = vunpack.c.l.b16 %v7874
    %v8627 = vunpack.c.h.b16 %v7874
    %v8628 = vunpack.c.l.b16 %v7875
    %v8629 = vunpack.c.h.b16 %v7875
    %v8630 = vunpack.c.l.b16 %v7876
    %v8631 = vunpack.c.h.b16 %v7876
    %v8632 = vunpack.c.l.b16 %v7877
    %v8633 = vunpack.c.h.b16 %v7877
    %v8634 = vunpack.c.l.b16 %v7878
    %v8635 = vunpack.c.h.b16 %v7878
    %v8636 = vunpack.c.l.b16 %v7879
    %v8637 = vunpack.c.h.b16 %v7879
    %v8638 = vunpack.c.l.b16 %v7880
    %v8639 = vunpack.c.h.b16 %v7880
    %v8640 = vunpack.c.l.b16 %v7881
    %v8641 = vunpack.c.h.b16 %v7881
    %v8642 = vunpack.c.l.b16 %v7882
    %v8643 = vunpack.c.h.b16 %v7882
    %v8644 = vunpack.c.l.b16 %v7883
    %v8645 = vunpack.c.h.b16 %v7883
    %v8646 = vunpack.c.l.b16 %v7884
    %v8647 = vunpack.c.h.b16 %v7884
    %v8648 = vunpack.c.l.b16 %v7885
    %v8649 = vunpack.c.h.b16 %v7885
    %v8650 = vunpack.c.l.b16 %v7886
    %v8651 = vunpack.c.h.b16 %v7886
    %v8652 = vunpack.c.l.b16 %v7887
    %v8653 = vunpack.c.h.b16 %v7887
    %v8654 = vunpack.c.l.b16 %v7888
    %v8655 = vunpack.c.h.b16 %v7888
    %v8656 = vunpack.c.l.b16 %v7889
    %v8657 = vunpack.c.h.b16 %v7889
    %v8658 = vunpack.c.l.b16 %v7890
    %v8659 = vunpack.c.h.b16 %v7890
    %v8660 = vunpack.c.l.b16 %v7891
    %v8661 = vunpack.c.h.b16 %v7891
    %v8662 = vunpack.c.l.b16 %v7892
    %v8663 = vunpack.c.h.b16 %v7892
    %v8664 = vunpack.c.l.b16 %v7893
    %v8665 = vunpack.c.h.b16 %v7893
    %v8666 = vunpack.c.l.b16 %v7894
    %v8667 = vunpack.c.h.b16 %v7894
    %v8668 = vunpack.c.l.b16 %v7895
    %v8669 = vunpack.c.h.b16 %v7895
    %v8670 = vunpack.c.l.b16 %v7896
    %v8671 = vunpack.c.h.b16 %v7896
    %v8672 = vunpack.c.l.b16 %v7897
    %v8673 = vunpack.c.h.b16 %v7897
    %v8674 = vunpack.c.l.b16 %v7898
    %v8675 = vunpack.c.h.b16 %v7898
    %v8676 = vunpack.c.l.b16 %v7899
    %v8677 = vunpack.c.h.b16 %v7899
    %v8678 = vunpack.c.l.b16 %v7900
    %v8679 = vunpack.c.h.b16 %v7900
    %v8680 = vunpack.c.l.b16 %v7901
    %v8681 = vunpack.c.h.b16 %v7901
    %v8682 = vunpack.c.l.b16 %v7902
    %v8683 = vunpack.c.h.b16 %v7902
    %v8684 = vunpack.c.l.b16 %v7903
    %v8685 = vunpack.c.h.b16 %v7903
    %v8686 = vunpack.c.l.b16 %v7904
    %v8687 = vunpack.c.h.b16 %v7904
    %v8688 = vunpack.c.l.b16 %v7905
    %v8689 = vunpack.c.h.b16 %v7905
    %v8690 = vunpack.c.l.b16 %v7906
    %v8691 = vunpack.c.h.b16 %v7906
    %v8692 = vunpack.c.l.b16 %v7907
    %v8693 = vunpack.c.h.b16 %v7907
    %v8694 = vunpack.c.l.b16 %v7908
    %v8695 = vunpack.c.h.b16 %v7908
    %v8696 = vunpack.c.l.b16 %v7909
    %v8697 = vunpack.c.h.b16 %v7909
    %v8698 = vunpack.c.l.b16 %v7910
    %v8699 = vunpack.c.h.b16 %v7910
    %v8700 = vunpack.c.l.b16 %v7911
    %v8701 = vunpack.c.h.b16 %v7911
    %v8702 = vpack.c.b16 %v8194, %v8190
    %v8703 = vpack.c.b16 %v8195, %v8191
    %v8704 = vpack.c.b16 %v8196, %v8192
    %v8705 = vpack.c.b16 %v8197, %v8193
    %v8706 = vpack.c.b16 %v8202, %v8198
    %v8707 = vpack.c.b16 %v8203, %v8199
    %v8708 = vpack.c.b16 %v8204, %v8200
    %v8709 = vpack.c.b16 %v8205, %v8201
    %v8710 = vpack.c.b16 %v8210, %v8206
    %v8711 = vpack.c.b16 %v8211, %v8207
    %v8712 = vpack.c.b16 %v8212, %v8208
    %v8713 = vpack.c.b16 %v8213, %v8209
    %v8714 = vpack.c.b16 %v8218, %v8214
    %v8715 = vpack.c.b16 %v8219, %v8215
    %v8716 = vpack.c.b16 %v8220, %v8216
    %v8717 = vpack.c.b16 %v8221, %v8217
    %v8718 = vpack.c.b16 %v8226, %v8222
    %v8719 = vpack.c.b16 %v8227, %v8223
    %v8720 = vpack.c.b16 %v8228, %v8224
    %v8721 = vpack.c.b16 %v8229, %v8225
    %v8722 = vpack.c.b16 %v8234, %v8230
    %v8723 = vpack.c.b16 %v8235, %v8231
    %v8724 = vpack.c.b16 %v8236, %v8232
    %v8725 = vpack.c.b16 %v8237, %v8233
    %v8726 = vpack.c.b16 %v8242, %v8238
    %v8727 = vpack.c.b16 %v8243, %v8239
    %v8728 = vpack.c.b16 %v8244, %v8240
    %v8729 = vpack.c.b16 %v8245, %v8241
    %v8730 = vpack.c.b16 %v8250, %v8246
    %v8731 = vpack.c.b16 %v8251, %v8247
    %v8732 = vpack.c.b16 %v8252, %v8248
    %v8733 = vpack.c.b16 %v8253, %v8249
    %v8734 = vpack.c.b16 %v8258, %v8254
    %v8735 = vpack.c.b16 %v8259, %v8255
    %v8736 = vpack.c.b16 %v8260, %v8256
    %v8737 = vpack.c.b16 %v8261, %v8257
    %v8738 = vpack.c.b16 %v8266, %v8262
    %v8739 = vpack.c.b16 %v8267, %v8263
    %v8740 = vpack.c.b16 %v8268, %v8264
    %v8741 = vpack.c.b16 %v8269, %v8265
    %v8742 = vpack.c.b16 %v8274, %v8270
    %v8743 = vpack.c.b16 %v8275, %v8271
    %v8744 = vpack.c.b16 %v8276, %v8272
    %v8745 = vpack.c.b16 %v8277, %v8273
    %v8746 = vpack.c.b16 %v8282, %v8278
    %v8747 = vpack.c.b16 %v8283, %v8279
    %v8748 = vpack.c.b16 %v8284, %v8280
    %v8749 = vpack.c.b16 %v8285, %v8281
    %v8750 = vpack.c.b16 %v8290, %v8286
    %v8751 = vpack.c.b16 %v8291, %v8287
    %v8752 = vpack.c.b16 %v8292, %v8288
    %v8753 = vpack.c.b16 %v8293, %v8289
    %v8754 = vpack.c.b16 %v8298, %v8294
    %v8755 = vpack.c.b16 %v8299, %v8295
    %v8756 = vpack.c.b16 %v8300, %v8296
    %v8757 = vpack.c.b16 %v8301, %v8297
    %v8758 = vpack.c.b16 %v8306, %v8302
    %v8759 = vpack.c.b16 %v8307, %v8303
    %v8760 = vpack.c.b16 %v8308, %v8304
    %v8761 = vpack.c.b16 %v8309, %v8305
    %v8762 = vpack.c.b16 %v8314, %v8310
    %v8763 = vpack.c.b16 %v8315, %v8311
    %v8764 = vpack.c.b16 %v8316, %v8312
    %v8765 = vpack.c.b16 %v8317, %v8313
    %v8766 = vpack.c.b16 %v8322, %v8318
    %v8767 = vpack.c.b16 %v8323, %v8319
    %v8768 = vpack.c.b16 %v8324, %v8320
    %v8769 = vpack.c.b16 %v8325, %v8321
    %v8770 = vpack.c.b16 %v8330, %v8326
    %v8771 = vpack.c.b16 %v8331, %v8327
    %v8772 = vpack.c.b16 %v8332, %v8328
    %v8773 = vpack.c.b16 %v8333, %v8329
    %v8774 = vpack.c.b16 %v8338, %v8334
    %v8775 = vpack.c.b16 %v8339, %v8335
    %v8776 = vpack.c.b16 %v8340, %v8336
    %v8777 = vpack.c.b16 %v8341, %v8337
    %v8778 = vpack.c.b16 %v8346, %v8342
    %v8779 = vpack.c.b16 %v8347, %v8343
    %v8780 = vpack.c.b16 %v8348, %v8344
    %v8781 = vpack.c.b16 %v8349, %v8345
    %v8782 = vpack.c.b16 %v8354, %v8350
    %v8783 = vpack.c.b16 %v8355, %v8351
    %v8784 = vpack.c.b16 %v8356, %v8352
    %v8785 = vpack.c.b16 %v8357, %v8353
    %v8786 = vpack.c.b16 %v8362, %v8358
    %v8787 = vpack.c.b16 %v8363, %v8359
    %v8788 = vpack.c.b16 %v8364, %v8360
    %v8789 = vpack.c.b16 %v8365, %v8361
    %v8790 = vpack.c.b16 %v8370, %v8366
    %v8791 = vpack.c.b16 %v8371, %v8367
    %v8792 = vpack.c.b16 %v8372, %v8368
    %v8793 = vpack.c.b16 %v8373, %v8369
    %v8794 = vpack.c.b16 %v8378, %v8374
    %v8795 = vpack.c.b16 %v8379, %v8375
    %v8796 = vpack.c.b16 %v8380, %v8376
    %v8797 = vpack.c.b16 %v8381, %v8377
    %v8798 = vpack.c.b16 %v8386, %v8382
    %v8799 = vpack.c.b16 %v8387, %v8383
    %v8800 = vpack.c.b16 %v8388, %v8384
    %v8801 = vpack.c.b16 %v8389, %v8385
    %v8802 = vpack.c.b16 %v8394, %v8390
    %v8803 = vpack.c.b16 %v8395, %v8391
    %v8804 = vpack.c.b16 %v8396, %v8392
    %v8805 = vpack.c.b16 %v8397, %v8393
    %v8806 = vpack.c.b16 %v8402, %v8398
    %v8807 = vpack.c.b16 %v8403, %v8399
    %v8808 = vpack.c.b16 %v8404, %v8400
    %v8809 = vpack.c.b16 %v8405, %v8401
    %v8810 = vpack.c.b16 %v8410, %v8406
    %v8811 = vpack.c.b16 %v8411, %v8407
    %v8812 = vpack.c.b16 %v8412, %v8408
    %v8813 = vpack.c.b16 %v8413, %v8409
    %v8814 = vpack.c.b16 %v8418, %v8414
    %v8815 = vpack.c.b16 %v8419, %v8415
    %v8816 = vpack.c.b16 %v8420, %v8416
    %v8817 = vpack.c.b16 %v8421, %v8417
    %v8818 = vpack.c.b16 %v8426, %v8422
    %v8819 = vpack.c.b16 %v8427, %v8423
    %v8820 = vpack.c.b16 %v8428, %v8424
    %v8821 = vpack.c.b16 %v8429, %v8425
    %v8822 = vpack.c.b16 %v8434, %v8430
    %v8823 = vpack.c.b16 %v8435, %v8431
    %v8824 = vpack.c.b16 %v8436, %v8432
    %v8825 = vpack.c.b16 %v8437, %v8433
    %v8826 = vpack.c.b16 %v8442, %v8438
    %v8827 = vpack.c.b16 %v8443, %v8439
    %v8828 = vpack.c.b16 %v8444, %v8440
    %v8829 = vpack.c.b16 %v8445, %v8441
    %v8830 = vpack.c.b16 %v8450, %v8446
    %v8831 = vpack.c.b16 %v8451, %v8447
    %v8832 = vpack.c.b16 %v8452, %v8448
    %v8833 = vpack.c.b16 %v8453, %v8449
    %v8834 = vpack.c.b16 %v8458, %v8454
    %v8835 = vpack.c.b16 %v8459, %v8455
    %v8836 = vpack.c.b16 %v8460, %v8456
    %v8837 = vpack.c.b16 %v8461, %v8457
    %v8838 = vpack.c.b16 %v8466, %v8462
    %v8839 = vpack.c.b16 %v8467, %v8463
    %v8840 = vpack.c.b16 %v8468, %v8464
    %v8841 = vpack.c.b16 %v8469, %v8465
    %v8842 = vpack.c.b16 %v8474, %v8470
    %v8843 = vpack.c.b16 %v8475, %v8471
    %v8844 = vpack.c.b16 %v8476, %v8472
    %v8845 = vpack.c.b16 %v8477, %v8473
    %v8846 = vpack.c.b16 %v8482, %v8478
    %v8847 = vpack.c.b16 %v8483, %v8479
    %v8848 = vpack.c.b16 %v8484, %v8480
    %v8849 = vpack.c.b16 %v8485, %v8481
    %v8850 = vpack.c.b16 %v8490, %v8486
    %v8851 = vpack.c.b16 %v8491, %v8487
    %v8852 = vpack.c.b16 %v8492, %v8488
    %v8853 = vpack.c.b16 %v8493, %v8489
    %v8854 = vpack.c.b16 %v8498, %v8494
    %v8855 = vpack.c.b16 %v8499, %v8495
    %v8856 = vpack.c.b16 %v8500, %v8496
    %v8857 = vpack.c.b16 %v8501, %v8497
    %v8858 = vpack.c.b16 %v8506, %v8502
    %v8859 = vpack.c.b16 %v8507, %v8503
    %v8860 = vpack.c.b16 %v8508, %v8504
    %v8861 = vpack.c.b16 %v8509, %v8505
    %v8862 = vpack.c.b16 %v8514, %v8510
    %v8863 = vpack.c.b16 %v8515, %v8511
    %v8864 = vpack.c.b16 %v8516, %v8512
    %v8865 = vpack.c.b16 %v8517, %v8513
    %v8866 = vpack.c.b16 %v8522, %v8518
    %v8867 = vpack.c.b16 %v8523, %v8519
    %v8868 = vpack.c.b16 %v8524, %v8520
    %v8869 = vpack.c.b16 %v8525, %v8521
    %v8870 = vpack.c.b16 %v8530, %v8526
    %v8871 = vpack.c.b16 %v8531, %v8527
    %v8872 = vpack.c.b16 %v8532, %v8528
    %v8873 = vpack.c.b16 %v8533, %v8529
    %v8874 = vpack.c.b16 %v8538, %v8534
    %v8875 = vpack.c.b16 %v8539, %v8535
    %v8876 = vpack.c.b16 %v8540, %v8536
    %v8877 = vpack.c.b16 %v8541, %v8537
    %v8878 = vpack.c.b16 %v8546, %v8542
    %v8879 = vpack.c.b16 %v8547, %v8543
    %v8880 = vpack.c.b16 %v8548, %v8544
    %v8881 = vpack.c.b16 %v8549, %v8545
    %v8882 = vpack.c.b16 %v8554, %v8550
    %v8883 = vpack.c.b16 %v8555, %v8551
    %v8884 = vpack.c.b16 %v8556, %v8552
    %v8885 = vpack.c.b16 %v8557, %v8553
    %v8886 = vpack.c.b16 %v8562, %v8558
    %v8887 = vpack.c.b16 %v8563, %v8559
    %v8888 = vpack.c.b16 %v8564, %v8560
    %v8889 = vpack.c.b16 %v8565, %v8561
    %v8890 = vpack.c.b16 %v8570, %v8566
    %v8891 = vpack.c.b16 %v8571, %v8567
    %v8892 = vpack.c.b16 %v8572, %v8568
    %v8893 = vpack.c.b16 %v8573, %v8569
    %v8894 = vpack.c.b16 %v8578, %v8574
    %v8895 = vpack.c.b16 %v8579, %v8575
    %v8896 = vpack.c.b16 %v8580, %v8576
    %v8897 = vpack.c.b16 %v8581, %v8577
    %v8898 = vpack.c.b16 %v8586, %v8582
    %v8899 = vpack.c.b16 %v8587, %v8583
    %v8900 = vpack.c.b16 %v8588, %v8584
    %v8901 = vpack.c.b16 %v8589, %v8585
    %v8902 = vpack.c.b16 %v8594, %v8590
    %v8903 = vpack.c.b16 %v8595, %v8591
    %v8904 = vpack.c.b16 %v8596, %v8592
    %v8905 = vpack.c.b16 %v8597, %v8593
    %v8906 = vpack.c.b16 %v8602, %v8598
    %v8907 = vpack.c.b16 %v8603, %v8599
    %v8908 = vpack.c.b16 %v8604, %v8600
    %v8909 = vpack.c.b16 %v8605, %v8601
    %v8910 = vpack.c.b16 %v8610, %v8606
    %v8911 = vpack.c.b16 %v8611, %v8607
    %v8912 = vpack.c.b16 %v8612, %v8608
    %v8913 = vpack.c.b16 %v8613, %v8609
    %v8914 = vpack.c.b16 %v8618, %v8614
    %v8915 = vpack.c.b16 %v8619, %v8615
    %v8916 = vpack.c.b16 %v8620, %v8616
    %v8917 = vpack.c.b16 %v8621, %v8617
    %v8918 = vpack.c.b16 %v8626, %v8622
    %v8919 = vpack.c.b16 %v8627, %v8623
    %v8920 = vpack.c.b16 %v8628, %v8624
    %v8921 = vpack.c.b16 %v8629, %v8625
    %v8922 = vpack.c.b16 %v8634, %v8630
    %v8923 = vpack.c.b16 %v8635, %v8631
    %v8924 = vpack.c.b16 %v8636, %v8632
    %v8925 = vpack.c.b16 %v8637, %v8633
    %v8926 = vpack.c.b16 %v8642, %v8638
    %v8927 = vpack.c.b16 %v8643, %v8639
    %v8928 = vpack.c.b16 %v8644, %v8640
    %v8929 = vpack.c.b16 %v8645, %v8641
    %v8930 = vpack.c.b16 %v8650, %v8646
    %v8931 = vpack.c.b16 %v8651, %v8647
    %v8932 = vpack.c.b16 %v8652, %v8648
    %v8933 = vpack.c.b16 %v8653, %v8649
    %v8934 = vpack.c.b16 %v8658, %v8654
    %v8935 = vpack.c.b16 %v8659, %v8655
    %v8936 = vpack.c.b16 %v8660, %v8656
    %v8937 = vpack.c.b16 %v8661, %v8657
    %v8938 = vpack.c.b16 %v8666, %v8662
    %v8939 = vpack.c.b16 %v8667, %v8663
    %v8940 = vpack.c.b16 %v8668, %v8664
    %v8941 = vpack.c.b16 %v8669, %v8665
    %v8942 = vpack.c.b16 %v8674, %v8670
    %v8943 = vpack.c.b16 %v8675, %v8671
    %v8944 = vpack.c.b16 %v8676, %v8672
    %v8945 = vpack.c.b16 %v8677, %v8673
    %v8946 = vpack.c.b16 %v8682, %v8678
    %v8947 = vpack.c.b16 %v8683, %v8679
    %v8948 = vpack.c.b16 %v8684, %v8680
    %v8949 = vpack.c.b16 %v8685, %v8681
    %v8950 = vpack.c.b16 %v8690, %v8686
    %v8951 = vpack.c.b16 %v8691, %v8687
    %v8952 = vpack.c.b16 %v8692, %v8688
    %v8953 = vpack.c.b16 %v8693, %v8689
    %v8954 = vpack.c.b16 %v8698, %v8694
    %v8955 = vpack.c.b16 %v8699, %v8695
    %v8956 = vpack.c.b16 %v8700, %v8696
    %v8957 = vpack.c.b16 %v8701, %v8697
    %9214 = vmatprep.subr.bf16.mxu0 %v8703
    %9215 = vmatpush1.bf16.msra.mxu0 %v8702
    %9216 = vmatprep.subr.bf16.mxu0 %v8707
    %9217 = vmatpush1.bf16.msra.mxu0 %v8706
    %9218 = vmatprep.subr.bf16.mxu0 %v8711
    %9219 = vmatpush1.bf16.msra.mxu0 %v8710
    %9220 = vmatprep.subr.bf16.mxu0 %v8715
    %9221 = vmatpush1.bf16.msra.mxu0 %v8714
    %9222 = vmatprep.subr.bf16.mxu0 %v8719
    %9223 = vmatpush1.bf16.msra.mxu0 %v8718
    %9224 = vmatprep.subr.bf16.mxu0 %v8723
    %9225 = vmatpush1.bf16.msra.mxu0 %v8722
    %9226 = vmatprep.subr.bf16.mxu0 %v8727
    %9227 = vmatpush1.bf16.msra.mxu0 %v8726
    %9228 = vmatprep.subr.bf16.mxu0 %v8731
    %9229 = vmatpush1.bf16.msra.mxu0 %v8730
    %9230 = vmatprep.subr.bf16.mxu0 %v8735
    %9231 = vmatpush1.bf16.msra.mxu0 %v8734
    %9232 = vmatprep.subr.bf16.mxu0 %v8739
    %9233 = vmatpush1.bf16.msra.mxu0 %v8738
    %9234 = vmatprep.subr.bf16.mxu0 %v8743
    %9235 = vmatpush1.bf16.msra.mxu0 %v8742
    %9236 = vmatprep.subr.bf16.mxu0 %v8747
    %9237 = vmatpush1.bf16.msra.mxu0 %v8746
    %9238 = vmatprep.subr.bf16.mxu0 %v8751
    %9239 = vmatpush1.bf16.msra.mxu0 %v8750
    %9240 = vmatprep.subr.bf16.mxu0 %v8755
    %9241 = vmatpush1.bf16.msra.mxu0 %v8754
    %9242 = vmatprep.subr.bf16.mxu0 %v8759
    %9243 = vmatpush1.bf16.msra.mxu0 %v8758
    %9244 = vmatprep.subr.bf16.mxu0 %v8763
    %9245 = vmatpush1.bf16.msra.mxu0 %v8762
    %9246 = vmatprep.mubr.bf16.mxu0 %v7649
    %9247 = vmatmul.mubr.bf16.gmra.mrb[0].mxu0 %v7648
    %v9248 = vpop.f32.mrb[0].mxu0
    %v9249 = vadd.f32 %v7917, %v9248
    %v9250 = vpop.f32.mrb[0].mxu0
    %v9251 = vadd.f32 %v7921, %v9250
    %v9252 = vpop.f32.mrb[0].mxu0
    %v9253 = vpop.f32.mrb[0].mxu0
    %9254 = vdwg.mxu0
    %9255 = vmatprep.subr.bf16.mxu0 %v8767
    %9256 = vmatpush1.bf16.msra.mxu0 %v8766
    %9257 = vmatprep.subr.bf16.mxu0 %v8771
    %9258 = vmatpush1.bf16.msra.mxu0 %v8770
    %9259 = vmatprep.subr.bf16.mxu0 %v8775
    %9260 = vmatpush1.bf16.msra.mxu0 %v8774
    %9261 = vmatprep.subr.bf16.mxu0 %v8779
    %9262 = vmatpush1.bf16.msra.mxu0 %v8778
    %9263 = vmatprep.subr.bf16.mxu0 %v8783
    %9264 = vmatpush1.bf16.msra.mxu0 %v8782
    %9265 = vmatprep.subr.bf16.mxu0 %v8787
    %9266 = vmatpush1.bf16.msra.mxu0 %v8786
    %9267 = vmatprep.subr.bf16.mxu0 %v8791
    %9268 = vmatpush1.bf16.msra.mxu0 %v8790
    %9269 = vmatprep.subr.bf16.mxu0 %v8795
    %9270 = vmatpush1.bf16.msra.mxu0 %v8794
    %9271 = vmatprep.subr.bf16.mxu0 %v8799
    %9272 = vmatpush1.bf16.msra.mxu0 %v8798
    %9273 = vmatprep.subr.bf16.mxu0 %v8803
    %9274 = vmatpush1.bf16.msra.mxu0 %v8802
    %9275 = vmatprep.subr.bf16.mxu0 %v8807
    %9276 = vmatpush1.bf16.msra.mxu0 %v8806
    %9277 = vmatprep.subr.bf16.mxu0 %v8811
    %9278 = vmatpush1.bf16.msra.mxu0 %v8810
    %9279 = vmatprep.subr.bf16.mxu0 %v8815
    %9280 = vmatpush1.bf16.msra.mxu0 %v8814
    %9281 = vmatprep.subr.bf16.mxu0 %v8819
    %9282 = vmatpush1.bf16.msra.mxu0 %v8818
    %9283 = vmatprep.subr.bf16.mxu0 %v8823
    %9284 = vmatpush1.bf16.msra.mxu0 %v8822
    %9285 = vmatprep.subr.bf16.mxu0 %v8827
    %9286 = vmatpush1.bf16.msra.mxu0 %v8826
    %9287 = vmatprep.mubr.bf16.mxu0 %v7651
    %9288 = vmatmul.mubr.bf16.gmra.mrb[0].mxu0 %v7650
    %v9289 = vpop.f32.mrb[0].mxu0
    %v9290 = vadd.f32 %v9249, %v9289
    %v9291 = vpop.f32.mrb[0].mxu0
    %v9292 = vadd.f32 %v9251, %v9291
    %v9293 = vpop.f32.mrb[0].mxu0
    %v9294 = vpop.f32.mrb[0].mxu0
    %9295 = vdwg.mxu0
    %9296 = vmatprep.subr.bf16.mxu0 %v8831
    %9297 = vmatpush1.bf16.msra.mxu0 %v8830
    %9298 = vmatprep.subr.bf16.mxu0 %v8835
    %9299 = vmatpush1.bf16.msra.mxu0 %v8834
    %9300 = vmatprep.subr.bf16.mxu0 %v8839
    %9301 = vmatpush1.bf16.msra.mxu0 %v8838
    %9302 = vmatprep.subr.bf16.mxu0 %v8843
    %9303 = vmatpush1.bf16.msra.mxu0 %v8842
    %9304 = vmatprep.subr.bf16.mxu0 %v8847
    %9305 = vmatpush1.bf16.msra.mxu0 %v8846
    %9306 = vmatprep.subr.bf16.mxu0 %v8851
    %9307 = vmatpush1.bf16.msra.mxu0 %v8850
    %9308 = vmatprep.subr.bf16.mxu0 %v8855
    %9309 = vmatpush1.bf16.msra.mxu0 %v8854
    %9310 = vmatprep.subr.bf16.mxu0 %v8859
    %9311 = vmatpush1.bf16.msra.mxu0 %v8858
    %9312 = vmatprep.subr.bf16.mxu0 %v8863
    %9313 = vmatpush1.bf16.msra.mxu0 %v8862
    %9314 = vmatprep.subr.bf16.mxu0 %v8867
    %9315 = vmatpush1.bf16.msra.mxu0 %v8866
    %9316 = vmatprep.subr.bf16.mxu0 %v8871
    %9317 = vmatpush1.bf16.msra.mxu0 %v8870
    %9318 = vmatprep.subr.bf16.mxu0 %v8875
    %9319 = vmatpush1.bf16.msra.mxu0 %v8874
    %9320 = vmatprep.subr.bf16.mxu0 %v8879
    %9321 = vmatpush1.bf16.msra.mxu0 %v8878
    %9322 = vmatprep.subr.bf16.mxu0 %v8883
    %9323 = vmatpush1.bf16.msra.mxu0 %v8882
    %9324 = vmatprep.subr.bf16.mxu0 %v8887
    %9325 = vmatpush1.bf16.msra.mxu0 %v8886
    %9326 = vmatprep.subr.bf16.mxu0 %v8891
    %9327 = vmatpush1.bf16.msra.mxu0 %v8890
    %9328 = vmatprep.mubr.bf16.mxu0 %v7653
    %9329 = vmatmul.mubr.bf16.gmra.mrb[0].mxu0 %v7652
    %v9330 = vpop.f32.mrb[0].mxu0
    %v9331 = vadd.f32 %v9290, %v9330
    %v9332 = vpop.f32.mrb[0].mxu0
    %v9333 = vadd.f32 %v9292, %v9332
    %v9334 = vpop.f32.mrb[0].mxu0
    %v9335 = vpop.f32.mrb[0].mxu0
    %9336 = vdwg.mxu0
    %9337 = vmatprep.subr.bf16.mxu0 %v8895
    %9338 = vmatpush1.bf16.msra.mxu0 %v8894
    %9339 = vmatprep.subr.bf16.mxu0 %v8899
    %9340 = vmatpush1.bf16.msra.mxu0 %v8898
    %9341 = vmatprep.subr.bf16.mxu0 %v8903
    %9342 = vmatpush1.bf16.msra.mxu0 %v8902
    %9343 = vmatprep.subr.bf16.mxu0 %v8907
    %9344 = vmatpush1.bf16.msra.mxu0 %v8906
    %9345 = vmatprep.subr.bf16.mxu0 %v8911
    %9346 = vmatpush1.bf16.msra.mxu0 %v8910
    %9347 = vmatprep.subr.bf16.mxu0 %v8915
    %9348 = vmatpush1.bf16.msra.mxu0 %v8914
    %9349 = vmatprep.subr.bf16.mxu0 %v8919
    %9350 = vmatpush1.bf16.msra.mxu0 %v8918
    %9351 = vmatprep.subr.bf16.mxu0 %v8923
    %9352 = vmatpush1.bf16.msra.mxu0 %v8922
    %9353 = vmatprep.subr.bf16.mxu0 %v8927
    %9354 = vmatpush1.bf16.msra.mxu0 %v8926
    %9355 = vmatprep.subr.bf16.mxu0 %v8931
    %9356 = vmatpush1.bf16.msra.mxu0 %v8930
    %9357 = vmatprep.subr.bf16.mxu0 %v8935
    %9358 = vmatpush1.bf16.msra.mxu0 %v8934
    %9359 = vmatprep.subr.bf16.mxu0 %v8939
    %9360 = vmatpush1.bf16.msra.mxu0 %v8938
    %9361 = vmatprep.subr.bf16.mxu0 %v8943
    %9362 = vmatpush1.bf16.msra.mxu0 %v8942
    %9363 = vmatprep.subr.bf16.mxu0 %v8947
    %9364 = vmatpush1.bf16.msra.mxu0 %v8946
    %9365 = vmatprep.subr.bf16.mxu0 %v8951
    %9366 = vmatpush1.bf16.msra.mxu0 %v8950
    %9367 = vmatprep.subr.bf16.mxu0 %v8955
    %9368 = vmatpush1.bf16.msra.mxu0 %v8954
    %9369 = vmatprep.mubr.bf16.mxu0 %v7655
    %9370 = vmatmul.mubr.bf16.gmra.mrb[0].mxu0 %v7654
    %v9371 = vpop.f32.mrb[0].mxu0
    %v9372 = vadd.f32 %v9331, %v9371
    %v9373 = vpop.f32.mrb[0].mxu0
    %v9374 = vadd.f32 %v9333, %v9373
    %v9375 = vpop.f32.mrb[0].mxu0
    %v9376 = vpop.f32.mrb[0].mxu0
    %9377 = vdwg.mxu0
    %9378 = vmatprep.subr.bf16.mxu0 %v8705
    %9379 = vmatpush1.bf16.msra.mxu0 %v8704
    %9380 = vmatprep.subr.bf16.mxu0 %v8709
    %9381 = vmatpush1.bf16.msra.mxu0 %v8708
    %9382 = vmatprep.subr.bf16.mxu0 %v8713
    %9383 = vmatpush1.bf16.msra.mxu0 %v8712
    %9384 = vmatprep.subr.bf16.mxu0 %v8717
    %9385 = vmatpush1.bf16.msra.mxu0 %v8716
    %9386 = vmatprep.subr.bf16.mxu0 %v8721
    %9387 = vmatpush1.bf16.msra.mxu0 %v8720
    %9388 = vmatprep.subr.bf16.mxu0 %v8725
    %9389 = vmatpush1.bf16.msra.mxu0 %v8724
    %9390 = vmatprep.subr.bf16.mxu0 %v8729
    %9391 = vmatpush1.bf16.msra.mxu0 %v8728
    %9392 = vmatprep.subr.bf16.mxu0 %v8733
    %9393 = vmatpush1.bf16.msra.mxu0 %v8732
    %9394 = vmatprep.subr.bf16.mxu0 %v8737
    %9395 = vmatpush1.bf16.msra.mxu0 %v8736
    %9396 = vmatprep.subr.bf16.mxu0 %v8741
    %9397 = vmatpush1.bf16.msra.mxu0 %v8740
    %9398 = vmatprep.subr.bf16.mxu0 %v8745
    %9399 = vmatpush1.bf16.msra.mxu0 %v8744
    %9400 = vmatprep.subr.bf16.mxu0 %v8749
    %9401 = vmatpush1.bf16.msra.mxu0 %v8748
    %9402 = vmatprep.subr.bf16.mxu0 %v8753
    %9403 = vmatpush1.bf16.msra.mxu0 %v8752
    %9404 = vmatprep.subr.bf16.mxu0 %v8757
    %9405 = vmatpush1.bf16.msra.mxu0 %v8756
    %9406 = vmatprep.subr.bf16.mxu0 %v8761
    %9407 = vmatpush1.bf16.msra.mxu0 %v8760
    %9408 = vmatprep.subr.bf16.mxu0 %v8765
    %9409 = vmatpush1.bf16.msra.mxu0 %v8764
    %9410 = vmatprep.mubr.bf16.mxu0 %v7649
    %9411 = vmatmul.mubr.bf16.gmra.mrb[0].mxu0 %v7648
    %v9412 = vpop.f32.mrb[0].mxu0
    %v9413 = vadd.f32 %v7925, %v9412
    %v9414 = vpop.f32.mrb[0].mxu0
    %v9415 = vadd.f32 %v7929, %v9414
    %v9416 = vpop.f32.mrb[0].mxu0
    %v9417 = vpop.f32.mrb[0].mxu0
    %9418 = vdwg.mxu0
    %9419 = vmatprep.subr.bf16.mxu0 %v8769
    %9420 = vmatpush1.bf16.msra.mxu0 %v8768
    %9421 = vmatprep.subr.bf16.mxu0 %v8773
    %9422 = vmatpush1.bf16.msra.mxu0 %v8772
    %9423 = vmatprep.subr.bf16.mxu0 %v8777
    %9424 = vmatpush1.bf16.msra.mxu0 %v8776
    %9425 = vmatprep.subr.bf16.mxu0 %v8781
    %9426 = vmatpush1.bf16.msra.mxu0 %v8780
    %9427 = vmatprep.subr.bf16.mxu0 %v8785
    %9428 = vmatpush1.bf16.msra.mxu0 %v8784
    %9429 = vmatprep.subr.bf16.mxu0 %v8789
    %9430 = vmatpush1.bf16.msra.mxu0 %v8788
    %9431 = vmatprep.subr.bf16.mxu0 %v8793
    %9432 = vmatpush1.bf16.msra.mxu0 %v8792
    %9433 = vmatprep.subr.bf16.mxu0 %v8797
    %9434 = vmatpush1.bf16.msra.mxu0 %v8796
    %9435 = vmatprep.subr.bf16.mxu0 %v8801
    %9436 = vmatpush1.bf16.msra.mxu0 %v8800
    %9437 = vmatprep.subr.bf16.mxu0 %v8805
    %9438 = vmatpush1.bf16.msra.mxu0 %v8804
    %9439 = vmatprep.subr.bf16.mxu0 %v8809
    %9440 = vmatpush1.bf16.msra.mxu0 %v8808
    %9441 = vmatprep.subr.bf16.mxu0 %v8813
    %9442 = vmatpush1.bf16.msra.mxu0 %v8812
    %9443 = vmatprep.subr.bf16.mxu0 %v8817
    %9444 = vmatpush1.bf16.msra.mxu0 %v8816
    %9445 = vmatprep.subr.bf16.mxu0 %v8821
    %9446 = vmatpush1.bf16.msra.mxu0 %v8820
    %9447 = vmatprep.subr.bf16.mxu0 %v8825
    %9448 = vmatpush1.bf16.msra.mxu0 %v8824
    %9449 = vmatprep.subr.bf16.mxu0 %v8829
    %9450 = vmatpush1.bf16.msra.mxu0 %v8828
    %9451 = vmatprep.mubr.bf16.mxu0 %v7651
    %9452 = vmatmul.mubr.bf16.gmra.mrb[0].mxu0 %v7650
    %v9453 = vpop.f32.mrb[0].mxu0
    %v9454 = vadd.f32 %v9413, %v9453
    %v9455 = vpop.f32.mrb[0].mxu0
    %v9456 = vadd.f32 %v9415, %v9455
    %v9457 = vpop.f32.mrb[0].mxu0
    %v9458 = vpop.f32.mrb[0].mxu0
    %9459 = vdwg.mxu0
    %9460 = vmatprep.subr.bf16.mxu0 %v8833
    %9461 = vmatpush1.bf16.msra.mxu0 %v8832
    %9462 = vmatprep.subr.bf16.mxu0 %v8837
    %9463 = vmatpush1.bf16.msra.mxu0 %v8836
    %9464 = vmatprep.subr.bf16.mxu0 %v8841
    %9465 = vmatpush1.bf16.msra.mxu0 %v8840
    %9466 = vmatprep.subr.bf16.mxu0 %v8845
    %9467 = vmatpush1.bf16.msra.mxu0 %v8844
    %9468 = vmatprep.subr.bf16.mxu0 %v8849
    %9469 = vmatpush1.bf16.msra.mxu0 %v8848
    %9470 = vmatprep.subr.bf16.mxu0 %v8853
    %9471 = vmatpush1.bf16.msra.mxu0 %v8852
    %9472 = vmatprep.subr.bf16.mxu0 %v8857
    %9473 = vmatpush1.bf16.msra.mxu0 %v8856
    %9474 = vmatprep.subr.bf16.mxu0 %v8861
    %9475 = vmatpush1.bf16.msra.mxu0 %v8860
    %9476 = vmatprep.subr.bf16.mxu0 %v8865
    %9477 = vmatpush1.bf16.msra.mxu0 %v8864
    %9478 = vmatprep.subr.bf16.mxu0 %v8869
    %9479 = vmatpush1.bf16.msra.mxu0 %v8868
    %9480 = vmatprep.subr.bf16.mxu0 %v8873
    %9481 = vmatpush1.bf16.msra.mxu0 %v8872
    %9482 = vmatprep.subr.bf16.mxu0 %v8877
    %9483 = vmatpush1.bf16.msra.mxu0 %v8876
    %9484 = vmatprep.subr.bf16.mxu0 %v8881
    %9485 = vmatpush1.bf16.msra.mxu0 %v8880
    %9486 = vmatprep.subr.bf16.mxu0 %v8885
    %9487 = vmatpush1.bf16.msra.mxu0 %v8884
    %9488 = vmatprep.subr.bf16.mxu0 %v8889
    %9489 = vmatpush1.bf16.msra.mxu0 %v8888
    %9490 = vmatprep.subr.bf16.mxu0 %v8893
    %9491 = vmatpush1.bf16.msra.mxu0 %v8892
    %9492 = vmatprep.mubr.bf16.mxu0 %v7653
    %9493 = vmatmul.mubr.bf16.gmra.mrb[0].mxu0 %v7652
    %v9494 = vpop.f32.mrb[0].mxu0
    %v9495 = vadd.f32 %v9454, %v9494
    %v9496 = vpop.f32.mrb[0].mxu0
    %v9497 = vadd.f32 %v9456, %v9496
    %v9498 = vpop.f32.mrb[0].mxu0
    %v9499 = vpop.f32.mrb[0].mxu0
    %9500 = vdwg.mxu0
    %9501 = vmatprep.subr.bf16.mxu0 %v8897
    %9502 = vmatpush1.bf16.msra.mxu0 %v8896
    %9503 = vmatprep.subr.bf16.mxu0 %v8901
    %9504 = vmatpush1.bf16.msra.mxu0 %v8900
    %9505 = vmatprep.subr.bf16.mxu0 %v8905
    %9506 = vmatpush1.bf16.msra.mxu0 %v8904
    %9507 = vmatprep.subr.bf16.mxu0 %v8909
    %9508 = vmatpush1.bf16.msra.mxu0 %v8908
    %9509 = vmatprep.subr.bf16.mxu0 %v8913
    %9510 = vmatpush1.bf16.msra.mxu0 %v8912
    %9511 = vmatprep.subr.bf16.mxu0 %v8917
    %9512 = vmatpush1.bf16.msra.mxu0 %v8916
    %9513 = vmatprep.subr.bf16.mxu0 %v8921
    %9514 = vmatpush1.bf16.msra.mxu0 %v8920
    %9515 = vmatprep.subr.bf16.mxu0 %v8925
    %9516 = vmatpush1.bf16.msra.mxu0 %v8924
    %9517 = vmatprep.subr.bf16.mxu0 %v8929
    %9518 = vmatpush1.bf16.msra.mxu0 %v8928
    %9519 = vmatprep.subr.bf16.mxu0 %v8933
    %9520 = vmatpush1.bf16.msra.mxu0 %v8932
    %9521 = vmatprep.subr.bf16.mxu0 %v8937
    %9522 = vmatpush1.bf16.msra.mxu0 %v8936
    %9523 = vmatprep.subr.bf16.mxu0 %v8941
    %9524 = vmatpush1.bf16.msra.mxu0 %v8940
    %9525 = vmatprep.subr.bf16.mxu0 %v8945
    %9526 = vmatpush1.bf16.msra.mxu0 %v8944
    %9527 = vmatprep.subr.bf16.mxu0 %v8949
    %9528 = vmatpush1.bf16.msra.mxu0 %v8948
    %9529 = vmatprep.subr.bf16.mxu0 %v8953
    %9530 = vmatpush1.bf16.msra.mxu0 %v8952
    %9531 = vmatprep.subr.bf16.mxu0 %v8957
    %9532 = vmatpush1.bf16.msra.mxu0 %v8956
    %9533 = vmatprep.mubr.bf16.mxu0 %v7655
    %9534 = vmatmul.mubr.bf16.gmra.mrb[0].mxu0 %v7654
    %v9535 = vpop.f32.mrb[0].mxu0
    %v9536 = vadd.f32 %v9495, %v9535
    %v9537 = vpop.f32.mrb[0].mxu0
    %v9538 = vadd.f32 %v9497, %v9537
    %v9539 = vpop.f32.mrb[0].mxu0
    %v9540 = vpop.f32.mrb[0].mxu0
    %9541 = vdwg.mxu0
    %v9542 = vmax.f32 %v9372, 0.0
    %v9543 = vmax.f32 %v9374, 0.0
    %v9544 = vmax.f32 %v9536, 0.0
    %v9545 = vmax.f32 %v9538, 0.0
    %v9546 = vpack.c.bf16 %v9542, %v9542
    %v9547 = vpack.c.bf16 %v9543, %v9543
    %v9548 = vpack.c.bf16 %v9544, %v9544
    %v9549 = vpack.c.bf16 %v9545, %v9545
    %v9550 = vld [vmem:[%s49] sm:$0xff]
    %v9551 = vld [vmem:[%s49 + $0x8] sm:$0xff]
    %v9552 = vld [vmem:[%s49 + $0x10] sm:$0xff]
    %v9553 = vld [vmem:[%s49 + $0x18] sm:$0xff]
    %v9554 = vld [vmem:[%s49 + $0x20] sm:$0xff]
    %v9555 = vld [vmem:[%s49 + $0x28] sm:$0xff]
    %v9556 = vld [vmem:[%s49 + $0x30] sm:$0xff]
    %v9557 = vld [vmem:[%s49 + $0x38] sm:$0xff]
    %v9558 = vld [vmem:[%s49 + $0x40] sm:$0xff]
    %v9559 = vld [vmem:[%s49 + $0x48] sm:$0xff]
    %v9560 = vld [vmem:[%s49 + $0x50] sm:$0xff]
    %v9561 = vld [vmem:[%s49 + $0x58] sm:$0xff]
    %v9562 = vld [vmem:[%s49 + $0x60] sm:$0xff]
    %v9563 = vld [vmem:[%s49 + $0x68] sm:$0xff]
    %v9564 = vld [vmem:[%s49 + $0x70] sm:$0xff]
    %v9565 = vld [vmem:[%s49 + $0x78] sm:$0xff]
    %v9566 = vld [vmem:[%s49 + $0x80] sm:$0xff]
    %v9567 = vld [vmem:[%s49 + $0x88] sm:$0xff]
    %v9568 = vld [vmem:[%s49 + $0x90] sm:$0xff]
    %v9569 = vld [vmem:[%s49 + $0x98] sm:$0xff]
    %v9570 = vld [vmem:[%s49 + $0xa0] sm:$0xff]
    %v9571 = vld [vmem:[%s49 + $0xa8] sm:$0xff]
    %v9572 = vld [vmem:[%s49 + $0xb0] sm:$0xff]
    %v9573 = vld [vmem:[%s49 + $0xb8] sm:$0xff]
    %v9574 = vld [vmem:[%s49 + $0xc0] sm:$0xff]
    %v9575 = vld [vmem:[%s49 + $0xc8] sm:$0xff]
    %v9576 = vld [vmem:[%s49 + $0xd0] sm:$0xff]
    %v9577 = vld [vmem:[%s49 + $0xd8] sm:$0xff]
    %v9578 = vld [vmem:[%s49 + $0xe0] sm:$0xff]
    %v9579 = vld [vmem:[%s49 + $0xe8] sm:$0xff]
    %v9580 = vld [vmem:[%s49 + $0xf0] sm:$0xff]
    %v9581 = vld [vmem:[%s49 + $0xf8] sm:$0xff]
    %v9582 = vld [vmem:[%s49 + $0x100] sm:$0xff]
    %v9583 = vld [vmem:[%s49 + $0x108] sm:$0xff]
    %v9584 = vld [vmem:[%s49 + $0x110] sm:$0xff]
    %v9585 = vld [vmem:[%s49 + $0x118] sm:$0xff]
    %v9586 = vld [vmem:[%s49 + $0x120] sm:$0xff]
    %v9587 = vld [vmem:[%s49 + $0x128] sm:$0xff]
    %v9588 = vld [vmem:[%s49 + $0x130] sm:$0xff]
    %v9589 = vld [vmem:[%s49 + $0x138] sm:$0xff]
    %v9590 = vld [vmem:[%s49 + $0x140] sm:$0xff]
    %v9591 = vld [vmem:[%s49 + $0x148] sm:$0xff]
    %v9592 = vld [vmem:[%s49 + $0x150] sm:$0xff]
    %v9593 = vld [vmem:[%s49 + $0x158] sm:$0xff]
    %v9594 = vld [vmem:[%s49 + $0x160] sm:$0xff]
    %v9595 = vld [vmem:[%s49 + $0x168] sm:$0xff]
    %v9596 = vld [vmem:[%s49 + $0x170] sm:$0xff]
    %v9597 = vld [vmem:[%s49 + $0x178] sm:$0xff]
    %v9598 = vld [vmem:[%s49 + $0x180] sm:$0xff]
    %v9599 = vld [vmem:[%s49 + $0x188] sm:$0xff]
    %v9600 = vld [vmem:[%s49 + $0x190] sm:$0xff]
    %v9601 = vld [vmem:[%s49 + $0x198] sm:$0xff]
    %v9602 = vld [vmem:[%s49 + $0x1a0] sm:$0xff]
    %v9603 = vld [vmem:[%s49 + $0x1a8] sm:$0xff]
    %v9604 = vld [vmem:[%s49 + $0x1b0] sm:$0xff]
    %v9605 = vld [vmem:[%s49 + $0x1b8] sm:$0xff]
    %v9606 = vld [vmem:[%s49 + $0x1c0] sm:$0xff]
    %v9607 = vld [vmem:[%s49 + $0x1c8] sm:$0xff]
    %v9608 = vld [vmem:[%s49 + $0x1d0] sm:$0xff]
    %v9609 = vld [vmem:[%s49 + $0x1d8] sm:$0xff]
    %v9610 = vld [vmem:[%s49 + $0x1e0] sm:$0xff]
    %v9611 = vld [vmem:[%s49 + $0x1e8] sm:$0xff]
    %v9612 = vld [vmem:[%s49 + $0x1f0] sm:$0xff]
    %v9613 = vld [vmem:[%s49 + $0x1f8] sm:$0xff]
    %v9614 = vld [vmem:[%s51] sm:$0x3]
    %v9616 = vlaneseq
    %v9617 = vshrl.u32 %v9616, 7
    %v9618 = vsub.s32 0, %v9617
    %v9619 = vrot.slane %v9614, %v9618
    %v9620 = vlaneseq
    %v9621 = vshrl.u32 %v9620, 7
    %v9622 = vsub.s32 1, %v9621
    %v9623 = vrot.slane %v9614, %v9622
    %v9690 = vunpack.c.l.b16 %v9550
    %v9691 = vunpack.c.h.b16 %v9550
    %v9692 = vunpack.c.l.b16 %v9551
    %v9693 = vunpack.c.h.b16 %v9551
    %v9694 = vunpack.c.l.b16 %v9552
    %v9695 = vunpack.c.h.b16 %v9552
    %v9696 = vunpack.c.l.b16 %v9553
    %v9697 = vunpack.c.h.b16 %v9553
    %v9698 = vunpack.c.l.b16 %v9554
    %v9699 = vunpack.c.h.b16 %v9554
    %v9700 = vunpack.c.l.b16 %v9555
    %v9701 = vunpack.c.h.b16 %v9555
    %v9702 = vunpack.c.l.b16 %v9556
    %v9703 = vunpack.c.h.b16 %v9556
    %v9704 = vunpack.c.l.b16 %v9557
    %v9705 = vunpack.c.h.b16 %v9557
    %v9706 = vunpack.c.l.b16 %v9558
    %v9707 = vunpack.c.h.b16 %v9558
    %v9708 = vunpack.c.l.b16 %v9559
    %v9709 = vunpack.c.h.b16 %v9559
    %v9710 = vunpack.c.l.b16 %v9560
    %v9711 = vunpack.c.h.b16 %v9560
    %v9712 = vunpack.c.l.b16 %v9561
    %v9713 = vunpack.c.h.b16 %v9561
    %v9714 = vunpack.c.l.b16 %v9562
    %v9715 = vunpack.c.h.b16 %v9562
    %v9716 = vunpack.c.l.b16 %v9563
    %v9717 = vunpack.c.h.b16 %v9563
    %v9718 = vunpack.c.l.b16 %v9564
    %v9719 = vunpack.c.h.b16 %v9564
    %v9720 = vunpack.c.l.b16 %v9565
    %v9721 = vunpack.c.h.b16 %v9565
    %v9722 = vunpack.c.l.b16 %v9566
    %v9723 = vunpack.c.h.b16 %v9566
    %v9724 = vunpack.c.l.b16 %v9567
    %v9725 = vunpack.c.h.b16 %v9567
    %v9726 = vunpack.c.l.b16 %v9568
    %v9727 = vunpack.c.h.b16 %v9568
    %v9728 = vunpack.c.l.b16 %v9569
    %v9729 = vunpack.c.h.b16 %v9569
    %v9730 = vunpack.c.l.b16 %v9570
    %v9731 = vunpack.c.h.b16 %v9570
    %v9732 = vunpack.c.l.b16 %v9571
    %v9733 = vunpack.c.h.b16 %v9571
    %v9734 = vunpack.c.l.b16 %v9572
    %v9735 = vunpack.c.h.b16 %v9572
    %v9736 = vunpack.c.l.b16 %v9573
    %v9737 = vunpack.c.h.b16 %v9573
    %v9738 = vunpack.c.l.b16 %v9574
    %v9739 = vunpack.c.h.b16 %v9574
    %v9740 = vunpack.c.l.b16 %v9575
    %v9741 = vunpack.c.h.b16 %v9575
    %v9742 = vunpack.c.l.b16 %v9576
    %v9743 = vunpack.c.h.b16 %v9576
    %v9744 = vunpack.c.l.b16 %v9577
    %v9745 = vunpack.c.h.b16 %v9577
    %v9746 = vunpack.c.l.b16 %v9578
    %v9747 = vunpack.c.h.b16 %v9578
    %v9748 = vunpack.c.l.b16 %v9579
    %v9749 = vunpack.c.h.b16 %v9579
    %v9750 = vunpack.c.l.b16 %v9580
    %v9751 = vunpack.c.h.b16 %v9580
    %v9752 = vunpack.c.l.b16 %v9581
    %v9753 = vunpack.c.h.b16 %v9581
    %v9754 = vunpack.c.l.b16 %v9582
    %v9755 = vunpack.c.h.b16 %v9582
    %v9756 = vunpack.c.l.b16 %v9583
    %v9757 = vunpack.c.h.b16 %v9583
    %v9758 = vunpack.c.l.b16 %v9584
    %v9759 = vunpack.c.h.b16 %v9584
    %v9760 = vunpack.c.l.b16 %v9585
    %v9761 = vunpack.c.h.b16 %v9585
    %v9762 = vunpack.c.l.b16 %v9586
    %v9763 = vunpack.c.h.b16 %v9586
    %v9764 = vunpack.c.l.b16 %v9587
    %v9765 = vunpack.c.h.b16 %v9587
    %v9766 = vunpack.c.l.b16 %v9588
    %v9767 = vunpack.c.h.b16 %v9588
    %v9768 = vunpack.c.l.b16 %v9589
    %v9769 = vunpack.c.h.b16 %v9589
    %v9770 = vunpack.c.l.b16 %v9590
    %v9771 = vunpack.c.h.b16 %v9590
    %v9772 = vunpack.c.l.b16 %v9591
    %v9773 = vunpack.c.h.b16 %v9591
    %v9774 = vunpack.c.l.b16 %v9592
    %v9775 = vunpack.c.h.b16 %v9592
    %v9776 = vunpack.c.l.b16 %v9593
    %v9777 = vunpack.c.h.b16 %v9593
    %v9778 = vunpack.c.l.b16 %v9594
    %v9779 = vunpack.c.h.b16 %v9594
    %v9780 = vunpack.c.l.b16 %v9595
    %v9781 = vunpack.c.h.b16 %v9595
    %v9782 = vunpack.c.l.b16 %v9596
    %v9783 = vunpack.c.h.b16 %v9596
    %v9784 = vunpack.c.l.b16 %v9597
    %v9785 = vunpack.c.h.b16 %v9597
    %v9786 = vunpack.c.l.b16 %v9598
    %v9787 = vunpack.c.h.b16 %v9598
    %v9788 = vunpack.c.l.b16 %v9599
    %v9789 = vunpack.c.h.b16 %v9599
    %v9790 = vunpack.c.l.b16 %v9600
    %v9791 = vunpack.c.h.b16 %v9600
    %v9792 = vunpack.c.l.b16 %v9601
    %v9793 = vunpack.c.h.b16 %v9601
    %v9794 = vunpack.c.l.b16 %v9602
    %v9795 = vunpack.c.h.b16 %v9602
    %v9796 = vunpack.c.l.b16 %v9603
    %v9797 = vunpack.c.h.b16 %v9603
    %v9798 = vunpack.c.l.b16 %v9604
    %v9799 = vunpack.c.h.b16 %v9604
    %v9800 = vunpack.c.l.b16 %v9605
    %v9801 = vunpack.c.h.b16 %v9605
    %v9802 = vunpack.c.l.b16 %v9606
    %v9803 = vunpack.c.h.b16 %v9606
    %v9804 = vunpack.c.l.b16 %v9607
    %v9805 = vunpack.c.h.b16 %v9607
    %v9806 = vunpack.c.l.b16 %v9608
    %v9807 = vunpack.c.h.b16 %v9608
    %v9808 = vunpack.c.l.b16 %v9609
    %v9809 = vunpack.c.h.b16 %v9609
    %v9810 = vunpack.c.l.b16 %v9610
    %v9811 = vunpack.c.h.b16 %v9610
    %v9812 = vunpack.c.l.b16 %v9611
    %v9813 = vunpack.c.h.b16 %v9611
    %v9814 = vunpack.c.l.b16 %v9612
    %v9815 = vunpack.c.h.b16 %v9612
    %v9816 = vunpack.c.l.b16 %v9613
    %v9817 = vunpack.c.h.b16 %v9613
    %v9818 = vpack.c.b16 %v9692, %v9690
    %v9819 = vpack.c.b16 %v9693, %v9691
    %v9820 = vpack.c.b16 %v9696, %v9694
    %v9821 = vpack.c.b16 %v9697, %v9695
    %v9822 = vpack.c.b16 %v9700, %v9698
    %v9823 = vpack.c.b16 %v9701, %v9699
    %v9824 = vpack.c.b16 %v9704, %v9702
    %v9825 = vpack.c.b16 %v9705, %v9703
    %v9826 = vpack.c.b16 %v9708, %v9706
    %v9827 = vpack.c.b16 %v9709, %v9707
    %v9828 = vpack.c.b16 %v9712, %v9710
    %v9829 = vpack.c.b16 %v9713, %v9711
    %v9830 = vpack.c.b16 %v9716, %v9714
    %v9831 = vpack.c.b16 %v9717, %v9715
    %v9832 = vpack.c.b16 %v9720, %v9718
    %v9833 = vpack.c.b16 %v9721, %v9719
    %v9834 = vpack.c.b16 %v9724, %v9722
    %v9835 = vpack.c.b16 %v9725, %v9723
    %v9836 = vpack.c.b16 %v9728, %v9726
    %v9837 = vpack.c.b16 %v9729, %v9727
    %v9838 = vpack.c.b16 %v9732, %v9730
    %v9839 = vpack.c.b16 %v9733, %v9731
    %v9840 = vpack.c.b16 %v9736, %v9734
    %v9841 = vpack.c.b16 %v9737, %v9735
    %v9842 = vpack.c.b16 %v9740, %v9738
    %v9843 = vpack.c.b16 %v9741, %v9739
    %v9844 = vpack.c.b16 %v9744, %v9742
    %v9845 = vpack.c.b16 %v9745, %v9743
    %v9846 = vpack.c.b16 %v9748, %v9746
    %v9847 = vpack.c.b16 %v9749, %v9747
    %v9848 = vpack.c.b16 %v9752, %v9750
    %v9849 = vpack.c.b16 %v9753, %v9751
    %v9850 = vpack.c.b16 %v9756, %v9754
    %v9851 = vpack.c.b16 %v9757, %v9755
    %v9852 = vpack.c.b16 %v9760, %v9758
    %v9853 = vpack.c.b16 %v9761, %v9759
    %v9854 = vpack.c.b16 %v9764, %v9762
    %v9855 = vpack.c.b16 %v9765, %v9763
    %v9856 = vpack.c.b16 %v9768, %v9766
    %v9857 = vpack.c.b16 %v9769, %v9767
    %v9858 = vpack.c.b16 %v9772, %v9770
    %v9859 = vpack.c.b16 %v9773, %v9771
    %v9860 = vpack.c.b16 %v9776, %v9774
    %v9861 = vpack.c.b16 %v9777, %v9775
    %v9862 = vpack.c.b16 %v9780, %v9778
    %v9863 = vpack.c.b16 %v9781, %v9779
    %v9864 = vpack.c.b16 %v9784, %v9782
    %v9865 = vpack.c.b16 %v9785, %v9783
    %v9866 = vpack.c.b16 %v9788, %v9786
    %v9867 = vpack.c.b16 %v9789, %v9787
    %v9868 = vpack.c.b16 %v9792, %v9790
    %v9869 = vpack.c.b16 %v9793, %v9791
    %v9870 = vpack.c.b16 %v9796, %v9794
    %v9871 = vpack.c.b16 %v9797, %v9795
    %v9872 = vpack.c.b16 %v9800, %v9798
    %v9873 = vpack.c.b16 %v9801, %v9799
    %v9874 = vpack.c.b16 %v9804, %v9802
    %v9875 = vpack.c.b16 %v9805, %v9803
    %v9876 = vpack.c.b16 %v9808, %v9806
    %v9877 = vpack.c.b16 %v9809, %v9807
    %v9878 = vpack.c.b16 %v9812, %v9810
    %v9879 = vpack.c.b16 %v9813, %v9811
    %v9880 = vpack.c.b16 %v9816, %v9814
    %v9881 = vpack.c.b16 %v9817, %v9815
    %9946 = vmatprep.subr.bf16.mxu0 %v9819
    %9947 = vmatpush1.bf16.msra.mxu0 %v9818
    %9948 = vmatprep.subr.bf16.mxu0 %v9821
    %9949 = vmatpush1.bf16.msra.mxu0 %v9820
    %9950 = vmatprep.subr.bf16.mxu0 %v9823
    %9951 = vmatpush1.bf16.msra.mxu0 %v9822
    %9952 = vmatprep.subr.bf16.mxu0 %v9825
    %9953 = vmatpush1.bf16.msra.mxu0 %v9824
    %9954 = vmatprep.subr.bf16.mxu0 %v9827
    %9955 = vmatpush1.bf16.msra.mxu0 %v9826
    %9956 = vmatprep.subr.bf16.mxu0 %v9829
    %9957 = vmatpush1.bf16.msra.mxu0 %v9828
    %9958 = vmatprep.subr.bf16.mxu0 %v9831
    %9959 = vmatpush1.bf16.msra.mxu0 %v9830
    %9960 = vmatprep.subr.bf16.mxu0 %v9833
    %9961 = vmatpush1.bf16.msra.mxu0 %v9832
    %9962 = vmatprep.subr.bf16.mxu0 %v9835
    %9963 = vmatpush1.bf16.msra.mxu0 %v9834
    %9964 = vmatprep.subr.bf16.mxu0 %v9837
    %9965 = vmatpush1.bf16.msra.mxu0 %v9836
    %9966 = vmatprep.subr.bf16.mxu0 %v9839
    %9967 = vmatpush1.bf16.msra.mxu0 %v9838
    %9968 = vmatprep.subr.bf16.mxu0 %v9841
    %9969 = vmatpush1.bf16.msra.mxu0 %v9840
    %9970 = vmatprep.subr.bf16.mxu0 %v9843
    %9971 = vmatpush1.bf16.msra.mxu0 %v9842
    %9972 = vmatprep.subr.bf16.mxu0 %v9845
    %9973 = vmatpush1.bf16.msra.mxu0 %v9844
    %9974 = vmatprep.subr.bf16.mxu0 %v9847
    %9975 = vmatpush1.bf16.msra.mxu0 %v9846
    %9976 = vmatprep.subr.bf16.mxu0 %v9849
    %9977 = vmatpush1.bf16.msra.mxu0 %v9848
    %9978 = vmatprep.mubr.bf16.mxu0 %v9547
    %9979 = vmatmul.mubr.bf16.gmra.mrb[0].mxu0 %v9546
    %v9980 = vpop.f32.mrb[0].mxu0
    %v9981 = vadd.f32 %v9619, %v9980
    %v9982 = vpop.f32.mrb[0].mxu0
    %v9983 = vadd.f32 %v9623, %v9982
    %v9984 = vpop.f32.mrb[0].mxu0
    %v9985 = vpop.f32.mrb[0].mxu0
    %9986 = vdwg.mxu0
    %9987 = vmatprep.subr.bf16.mxu0 %v9851
    %9988 = vmatpush1.bf16.msra.mxu0 %v9850
    %9989 = vmatprep.subr.bf16.mxu0 %v9853
    %9990 = vmatpush1.bf16.msra.mxu0 %v9852
    %9991 = vmatprep.subr.bf16.mxu0 %v9855
    %9992 = vmatpush1.bf16.msra.mxu0 %v9854
    %9993 = vmatprep.subr.bf16.mxu0 %v9857
    %9994 = vmatpush1.bf16.msra.mxu0 %v9856
    %9995 = vmatprep.subr.bf16.mxu0 %v9859
    %9996 = vmatpush1.bf16.msra.mxu0 %v9858
    %9997 = vmatprep.subr.bf16.mxu0 %v9861
    %9998 = vmatpush1.bf16.msra.mxu0 %v9860
    %9999 = vmatprep.subr.bf16.mxu0 %v9863
    %10000 = vmatpush1.bf16.msra.mxu0 %v9862
    %10001 = vmatprep.subr.bf16.mxu0 %v9865
    %10002 = vmatpush1.bf16.msra.mxu0 %v9864
    %10003 = vmatprep.subr.bf16.mxu0 %v9867
    %10004 = vmatpush1.bf16.msra.mxu0 %v9866
    %10005 = vmatprep.subr.bf16.mxu0 %v9869
    %10006 = vmatpush1.bf16.msra.mxu0 %v9868
    %10007 = vmatprep.subr.bf16.mxu0 %v9871
    %10008 = vmatpush1.bf16.msra.mxu0 %v9870
    %10009 = vmatprep.subr.bf16.mxu0 %v9873
    %10010 = vmatpush1.bf16.msra.mxu0 %v9872
    %10011 = vmatprep.subr.bf16.mxu0 %v9875
    %10012 = vmatpush1.bf16.msra.mxu0 %v9874
    %10013 = vmatprep.subr.bf16.mxu0 %v9877
    %10014 = vmatpush1.bf16.msra.mxu0 %v9876
    %10015 = vmatprep.subr.bf16.mxu0 %v9879
    %10016 = vmatpush1.bf16.msra.mxu0 %v9878
    %10017 = vmatprep.subr.bf16.mxu0 %v9881
    %10018 = vmatpush1.bf16.msra.mxu0 %v9880
    %10019 = vmatprep.mubr.bf16.mxu0 %v9549
    %10020 = vmatmul.mubr.bf16.gmra.mrb[0].mxu0 %v9548
    %v10021 = vpop.f32.mrb[0].mxu0
    %v10022 = vadd.f32 %v9981, %v10021
    %v10023 = vpop.f32.mrb[0].mxu0
    %v10024 = vadd.f32 %v9983, %v10023
    %v10025 = vpop.f32.mrb[0].mxu0
    %v10026 = vpop.f32.mrb[0].mxu0
    %10027 = vdwg.mxu0
    %v10028 = vmax.f32 %v10022, 0.0
    %v10029 = vmax.f32 %v10024, 0.0
    %v10030 = vpack.c.bf16 %v10028, %v10028
    %v10031 = vpack.c.bf16 %v10029, %v10029
    %v10032 = vld [vmem:[%s53] sm:$0xf]
    %v10033 = vld [vmem:[%s53 + $0x4] sm:$0xf]
    %v10034 = vld [vmem:[%s53 + $0x8] sm:$0xf]
    %v10035 = vld [vmem:[%s53 + $0xc] sm:$0xf]
    %v10036 = vld [vmem:[%s53 + $0x10] sm:$0xf]
    %v10037 = vld [vmem:[%s53 + $0x14] sm:$0xf]
    %v10038 = vld [vmem:[%s53 + $0x18] sm:$0xf]
    %v10039 = vld [vmem:[%s53 + $0x1c] sm:$0xf]
    %v10040 = vld [vmem:[%s53 + $0x20] sm:$0xf]
    %v10041 = vld [vmem:[%s53 + $0x24] sm:$0xf]
    %v10042 = vld [vmem:[%s53 + $0x28] sm:$0xf]
    %v10043 = vld [vmem:[%s53 + $0x2c] sm:$0xf]
    %v10044 = vld [vmem:[%s53 + $0x30] sm:$0xf]
    %v10045 = vld [vmem:[%s53 + $0x34] sm:$0xf]
    %v10046 = vld [vmem:[%s53 + $0x38] sm:$0xf]
    %v10047 = vld [vmem:[%s53 + $0x3c] sm:$0xf]
    %v10048 = vld [vmem:[%s53 + $0x40] sm:$0xf]
    %v10049 = vld [vmem:[%s53 + $0x44] sm:$0xf]
    %v10050 = vld [vmem:[%s53 + $0x48] sm:$0xf]
    %v10051 = vld [vmem:[%s53 + $0x4c] sm:$0xf]
    %v10052 = vld [vmem:[%s53 + $0x50] sm:$0xf]
    %v10053 = vld [vmem:[%s53 + $0x54] sm:$0xf]
    %v10054 = vld [vmem:[%s53 + $0x58] sm:$0xf]
    %v10055 = vld [vmem:[%s53 + $0x5c] sm:$0xf]
    %v10056 = vld [vmem:[%s53 + $0x60] sm:$0xf]
    %v10057 = vld [vmem:[%s53 + $0x64] sm:$0xf]
    %v10058 = vld [vmem:[%s53 + $0x68] sm:$0xf]
    %v10059 = vld [vmem:[%s53 + $0x6c] sm:$0xf]
    %v10060 = vld [vmem:[%s53 + $0x70] sm:$0xf]
    %v10061 = vld [vmem:[%s53 + $0x74] sm:$0xf]
    %v10062 = vld [vmem:[%s53 + $0x78] sm:$0xf]
    %v10063 = vld [vmem:[%s53 + $0x7c] sm:$0xf]
    %v10064 = vld [vmem:[%s55] sm:$0x1]
    %v10066 = vlaneseq
    %v10067 = vshrl.u32 %v10066, 7
    %v10068 = vsub.s32 0, %v10067
    %v10069 = vrot.slane %v10064, %v10068
    %v10103 = vunpack.c.l.b16 %v10032
    %v10104 = vunpack.c.l.b16 %v10033
    %v10105 = vunpack.c.l.b16 %v10034
    %v10106 = vunpack.c.l.b16 %v10035
    %v10107 = vunpack.c.l.b16 %v10036
    %v10108 = vunpack.c.l.b16 %v10037
    %v10109 = vunpack.c.l.b16 %v10038
    %v10110 = vunpack.c.l.b16 %v10039
    %v10111 = vunpack.c.l.b16 %v10040
    %v10112 = vunpack.c.l.b16 %v10041
    %v10113 = vunpack.c.l.b16 %v10042
    %v10114 = vunpack.c.l.b16 %v10043
    %v10115 = vunpack.c.l.b16 %v10044
    %v10116 = vunpack.c.l.b16 %v10045
    %v10117 = vunpack.c.l.b16 %v10046
    %v10118 = vunpack.c.l.b16 %v10047
    %v10119 = vunpack.c.l.b16 %v10048
    %v10120 = vunpack.c.l.b16 %v10049
    %v10121 = vunpack.c.l.b16 %v10050
    %v10122 = vunpack.c.l.b16 %v10051
    %v10123 = vunpack.c.l.b16 %v10052
    %v10124 = vunpack.c.l.b16 %v10053
    %v10125 = vunpack.c.l.b16 %v10054
    %v10126 = vunpack.c.l.b16 %v10055
    %v10127 = vunpack.c.l.b16 %v10056
    %v10128 = vunpack.c.l.b16 %v10057
    %v10129 = vunpack.c.l.b16 %v10058
    %v10130 = vunpack.c.l.b16 %v10059
    %v10131 = vunpack.c.l.b16 %v10060
    %v10132 = vunpack.c.l.b16 %v10061
    %v10133 = vunpack.c.l.b16 %v10062
    %v10134 = vunpack.c.l.b16 %v10063
    %v10135 = vpack.c.b16 %v10104, %v10103
    %v10136 = vpack.c.b16 %v10106, %v10105
    %v10137 = vpack.c.b16 %v10108, %v10107
    %v10138 = vpack.c.b16 %v10110, %v10109
    %v10139 = vpack.c.b16 %v10112, %v10111
    %v10140 = vpack.c.b16 %v10114, %v10113
    %v10141 = vpack.c.b16 %v10116, %v10115
    %v10142 = vpack.c.b16 %v10118, %v10117
    %v10143 = vpack.c.b16 %v10120, %v10119
    %v10144 = vpack.c.b16 %v10122, %v10121
    %v10145 = vpack.c.b16 %v10124, %v10123
    %v10146 = vpack.c.b16 %v10126, %v10125
    %v10147 = vpack.c.b16 %v10128, %v10127
    %v10148 = vpack.c.b16 %v10130, %v10129
    %v10149 = vpack.c.b16 %v10132, %v10131
    %v10150 = vpack.c.b16 %v10134, %v10133
    %10167 = vmatprep.subr.bf16.mxu0 0
    %10168 = vmatpush1.bf16.msra.mxu0 %v10135
    %10169 = vmatprep.subr.bf16.mxu0 0
    %10170 = vmatpush1.bf16.msra.mxu0 %v10136
    %10171 = vmatprep.subr.bf16.mxu0 0
    %10172 = vmatpush1.bf16.msra.mxu0 %v10137
    %10173 = vmatprep.subr.bf16.mxu0 0
    %10174 = vmatpush1.bf16.msra.mxu0 %v10138
    %10175 = vmatprep.subr.bf16.mxu0 0
    %10176 = vmatpush1.bf16.msra.mxu0 %v10139
    %10177 = vmatprep.subr.bf16.mxu0 0
    %10178 = vmatpush1.bf16.msra.mxu0 %v10140
    %10179 = vmatprep.subr.bf16.mxu0 0
    %10180 = vmatpush1.bf16.msra.mxu0 %v10141
    %10181 = vmatprep.subr.bf16.mxu0 0
    %10182 = vmatpush1.bf16.msra.mxu0 %v10142
    %10183 = vmatprep.subr.bf16.mxu0 0
    %10184 = vmatpush1.bf16.msra.mxu0 %v10143
    %10185 = vmatprep.subr.bf16.mxu0 0
    %10186 = vmatpush1.bf16.msra.mxu0 %v10144
    %10187 = vmatprep.subr.bf16.mxu0 0
    %10188 = vmatpush1.bf16.msra.mxu0 %v10145
    %10189 = vmatprep.subr.bf16.mxu0 0
    %10190 = vmatpush1.bf16.msra.mxu0 %v10146
    %10191 = vmatprep.subr.bf16.mxu0 0
    %10192 = vmatpush1.bf16.msra.mxu0 %v10147
    %10193 = vmatprep.subr.bf16.mxu0 0
    %10194 = vmatpush1.bf16.msra.mxu0 %v10148
    %10195 = vmatprep.subr.bf16.mxu0 0
    %10196 = vmatpush1.bf16.msra.mxu0 %v10149
    %10197 = vmatprep.subr.bf16.mxu0 0
    %10198 = vmatpush1.bf16.msra.mxu0 %v10150
    %10199 = vmatprep.mubr.bf16.mxu0 %v10031
    %10200 = vmatmul.mubr.bf16.gmra.mrb[0].mxu0 %v10030
    %v10201 = vpop.f32.mrb[0].mxu0
    %v10202 = vadd.f32 %v10069, %v10201
    %v10203 = vpop.f32.mrb[0].mxu0
    %v10204 = vpop.f32.mrb[0].mxu0
    %v10205 = vpop.f32.mrb[0].mxu0
    %10206 = vdwg.mxu0
    %10207 = vst [vmem:[#allocation2] sm:$0x3] %v10202
    // Predicated region
    $region114: #{pointnet_cls_forward.1} parent=1 // pred_check
      _
    $region115: #{pointnet_cls_forward.1} parent=1 // pred_check_branch
      %10209 = sbr.rel (0) target = $region117
    $region116: #{pointnet_cls_forward.1} parent=1 // pred_region
      %s10211 = ssub.s32 32, 32
      %10212 = vsyncadd [#allocation3], %s10211
      %s10214 = sshll.u32 [#allocation2], 4
      %s10215 = int_to_ptr.vmem [resolvable:$true] %s10214
      %10217 = dma.vmem_to_hbm [thread:$0]  %s10215, 32, %s57, [#allocation3]
    $region117: #{pointnet_cls_forward.1} parent=1 // pred_fallthru
      _
    // Predicated region
    $region118: #{pointnet_cls_forward.1} parent=1 // pred_check
      _
    $region119: #{pointnet_cls_forward.1} parent=1 // pred_check_branch
      %10219 = sbr.rel (0) target = $region121
    $region120: #{pointnet_cls_forward.1} parent=1 // pred_region
      _
    $region121: #{pointnet_cls_forward.1} parent=1 // pred_fallthru
      _
    // Predicated region
    $region122: #{pointnet_cls_forward.1} parent=1 // pred_check
      _
    $region123: #{pointnet_cls_forward.1} parent=1 // pred_check_branch
      %10221 = sbr.rel (0) target = $region125
    $region124: #{pointnet_cls_forward.1} parent=1 // pred_region
      _
    $region125: #{pointnet_cls_forward.1} parent=1 // pred_fallthru
      _
    // Predicated region
    $region126: #{pointnet_cls_forward.1} parent=1 // pred_check
      _
    $region127: #{pointnet_cls_forward.1} parent=1 // pred_check_branch
      %10223 = sbr.rel (0) target = $region129
    $region128: #{pointnet_cls_forward.1} parent=1 // pred_region
      %10224 = dma.done [#allocation3], 32
    $region129: #{pointnet_cls_forward.1} parent=1 // pred_fallthru
      _
    // Predicated region
    $region130: #{pointnet_cls_forward.1} parent=1 // pred_check
      _
    $region131: #{pointnet_cls_forward.1} parent=1 // pred_check_branch
      %10226 = sbr.rel (0) target = $region133
    $region132: #{pointnet_cls_forward.1} parent=1 // pred_region
      _
    $region133: #{pointnet_cls_forward.1} parent=1 // pred_fallthru
      _
    // Predicated region
    $region134: #{pointnet_cls_forward.1} parent=1 // pred_check
      _
    $region135: #{pointnet_cls_forward.1} parent=1 // pred_check_branch
      %10228 = sbr.rel (0) target = $region137
    $region136: #{pointnet_cls_forward.1} parent=1 // pred_region
      _
    $region137: #{pointnet_cls_forward.1} parent=1 // pred_fallthru
      _
    %10229 = vsyncpa [#allocation3], 1

</llo_original>
